<compile_context>
chip_gen: v7x
topology: tpu7x:2x2x1
jax: 0.10.0
libtpu: 0.0.40
codegen_flags: <defaults>
</compile_context>

<pallas_src>
import math

import jax
import jax.numpy as jnp
from jax.experimental import pallas as pl
from jax.experimental.pallas import tpu as pltpu  # noqa: F401

# ---------------------------------------------------------------------------
# Architecture (matches the PyTorch module)
# ---------------------------------------------------------------------------
MOBILENET_V1_ARCH = [(64, 3, 1, 1), (128, 3, 2, 1), (128, 3, 1, 1),
                     (256, 3, 2, 1), (256, 3, 1, 1), (512, 3, 2, 1),
                     [(512, 3, 1, 1), 5], (1024, 3, 2, 1), (1024, 3, 2, 4)]

ALPHA = 0.25          # width multiplier `a` (kept small for the demo)
IN_CHANNELS = 3
NUM_CLASSES = 10
STEM_CHANNELS = 32    # fixed 32 in the reference module (not scaled by `a`)
BN_EPS = 1e-5


def build_layer_cfg(arch, a):
    """Returns list of (cin, cout, kernel, stride, padding) per separable block."""
    cfg = []
    cin = STEM_CHANNELS
    for x in arch:
        if isinstance(x, tuple):
            cout, k, s, p = x
            cout = math.ceil(a * cout)
            cfg.append((cin, cout, k, s, p))
            cin = cout
        else:  # [tuple, num_repeat]
            (cout, k, s, p), n = x[0], x[1]
            cout = math.ceil(a * cout)
            for _ in range(n):
                cfg.append((cin, cout, k, s, p))
                cin = cout
    return cfg


LAYER_CFG = build_layer_cfg(MOBILENET_V1_ARCH, ALPHA)
FEAT_CHANNELS = LAYER_CFG[-1][1]


# ---------------------------------------------------------------------------
# Pallas kernels (each layer is tiny -> single full-array invocation, no grid)
# ---------------------------------------------------------------------------
def _stem_kernel(cols_ref, w_ref, b_ref, o_ref):
    """Stem 3x3 conv as im2col matmul; BN scale folded into w, bias added, ReLU."""
    y = jnp.dot(cols_ref[...], w_ref[...], preferred_element_type=jnp.float32)
    o_ref[...] = jnp.maximum(y + b_ref[...], 0.0)


def _make_block_kernel(n_taps):
    """Fused separable block: depthwise MAC + BN + ReLU, then pointwise matmul
    + BN + ReLU, all in one kernel (no HBM round trip between them)."""
    def kernel(*refs):
        tap_refs = refs[:n_taps]                      # n_taps x (M, Cin) f32
        dww_ref, dwb_ref, pww_ref, pwb_ref, o_ref = refs[n_taps:]
        # depthwise: 9-tap multiply-accumulate on the VPU (f32, v5e-safe)
        acc = tap_refs[0][...] * dww_ref[0]           # dww_ref[t] -> (1, Cin)
        for t in range(1, n_taps):
            acc = acc + tap_refs[t][...] * dww_ref[t]
        h = jnp.maximum(acc + dwb_ref[...], 0.0)      # (M, Cin)
        # pointwise 1x1 conv: bf16 MXU matmul, f32 accumulate
        y = jnp.dot(h.astype(jnp.bfloat16), pww_ref[...],
                    preferred_element_type=jnp.float32)
        o_ref[...] = jnp.maximum(y + pwb_ref[...], 0.0)
    return kernel


def _head_kernel(x_ref, pm_ref, w_ref, b_ref, o_ref):
    """Fused global average pool (as a tiny matmul) + FC layer."""
    pooled = jnp.dot(pm_ref[...], x_ref[...],
                     preferred_element_type=jnp.float32)          # (N, C)
    o_ref[...] = jnp.dot(pooled, w_ref[...],
                         preferred_element_type=jnp.float32) + b_ref[...]


# ---------------------------------------------------------------------------
# JAX glue: tap extraction / BN folding / parameter init
# ---------------------------------------------------------------------------
def conv_tap_list(x, k, stride, padding):
    """x: (N,H,W,C) -> list of k*k flattened shifted views, each (N*Ho*Wo, C)."""
    N, H, W, C = x.shape
    Ho = (H + 2 * padding - k) // stride + 1
    Wo = (W + 2 * padding - k) // stride + 1
    xp = jnp.pad(x, ((0, 0), (padding, padding), (padding, padding), (0, 0)))
    taps = []
    for kh in range(k):
        for kw in range(k):
            t = jax.lax.slice(
                xp,
                (0, kh, kw, 0),
                (N, kh + (Ho - 1) * stride + 1, kw + (Wo - 1) * stride + 1, C),
                (1, stride, stride, 1))
            taps.append(t.reshape(N * Ho * Wo, C))
    return taps, Ho, Wo


def fold_bn(bn):
    s = bn["gamma"] * jax.lax.rsqrt(bn["var"] + BN_EPS)
    b = bn["beta"] - bn["mean"] * s
    return s, b


def init_params(key):
    keys = iter(jax.random.split(key, 256))
    nk = lambda: next(keys)

    def bn_params(c):
        return dict(gamma=1.0 + 0.1 * jax.random.normal(nk(), (c,), jnp.float32),
                    beta=0.1 * jax.random.normal(nk(), (c,), jnp.float32),
                    mean=0.05 * jax.random.normal(nk(), (c,), jnp.float32),
                    var=jnp.ones((c,), jnp.float32))

    params = {
        "stem": dict(w=0.1 * jax.random.normal(nk(), (STEM_CHANNELS, IN_CHANNELS, 3, 3),
                                               jnp.float32),
                     bn=bn_params(STEM_CHANNELS)),
        "blocks": [],
    }
    for (cin, cout, k, _, _) in LAYER_CFG:
        params["blocks"].append(dict(
            dw_w=0.1 * jax.random.normal(nk(), (cin, 1, k, k), jnp.float32),
            dw_bn=bn_params(cin),
            pw_w=0.1 * jax.random.normal(nk(), (cout, cin, 1, 1), jnp.float32),
            pw_bn=bn_params(cout)))
    params["fc_w"] = 0.1 * jax.random.normal(nk(), (NUM_CLASSES, FEAT_CHANNELS), jnp.float32)
    params["fc_b"] = 0.1 * jax.random.normal(nk(), (NUM_CLASSES,), jnp.float32)
    return params


# ---------------------------------------------------------------------------
# Layer wrappers
# ---------------------------------------------------------------------------
def stem_conv(x, p):
    """Full 3x3 conv, stride 2, pad 1, BN, ReLU -> single Pallas matmul kernel."""
    N = x.shape[0]
    cin = x.shape[-1]
    s, b = fold_bn(p["bn"])
    taps, Ho, Wo = conv_tap_list(x, 3, 2, 1)
    cols = jnp.concatenate(taps, axis=-1).astype(jnp.bfloat16)       # (M, 9*cin)
    wmat = jnp.transpose(p["w"], (2, 3, 1, 0)).reshape(9 * cin, STEM_CHANNELS)
    wmat = (wmat * s[None, :]).astype(jnp.bfloat16)                  # BN scale folded
    out = pl.pallas_call(
        _stem_kernel,
        out_shape=jax.ShapeDtypeStruct((N * Ho * Wo, STEM_CHANNELS), jnp.float32),
    )(cols, wmat, b.reshape(1, STEM_CHANNELS))
    return out.reshape(N, Ho, Wo, STEM_CHANNELS)


def separable_block(x, bp, cfg):
    """Depthwise 3x3 (BN+ReLU) + pointwise 1x1 (BN+ReLU), fused in one kernel."""
    cin, cout, k, stride, pad = cfg
    N = x.shape[0]
    taps, Ho, Wo = conv_tap_list(x, k, stride, pad)   # k*k separate (M, cin) views
    M = N * Ho * Wo

    s1, b1 = fold_bn(bp["dw_bn"])
    dww = (jnp.transpose(bp["dw_w"][:, 0], (1, 2, 0)).reshape(k * k, 1, cin)
           * s1[None, None, :])                        # (k*k, 1, cin), BN folded
    dwb = b1.reshape(1, cin)

    s2, b2 = fold_bn(bp["pw_bn"])
    pww = (jnp.transpose(bp["pw_w"][:, :, 0, 0]) * s2[None, :]).astype(jnp.bfloat16)
    pwb = b2.reshape(1, cout)

    out = pl.pallas_call(
        _make_block_kernel(k * k),
        out_shape=jax.ShapeDtypeStruct((M, cout), jnp.float32),
    )(*taps, dww, dwb, pww, pwb)
    return out.reshape(N, Ho, Wo, cout)


# ---------------------------------------------------------------------------
# Forward pass
# ---------------------------------------------------------------------------
def forward(params, x_nchw):
    x = jnp.transpose(x_nchw, (0, 2, 3, 1)).astype(jnp.float32)      # NHWC
    x = stem_conv(x, params["stem"])
    for cfg, bp in zip(LAYER_CFG, params["blocks"]):
        x = separable_block(x, bp, cfg)

    # adaptive avg pool (1,1) + flatten + fc, fused in one small kernel
    N, Ho, Wo, C = x.shape
    hw = Ho * Wo
    xf = x.reshape(N * hw, C)
    pool_mat = jnp.kron(jnp.eye(N, dtype=jnp.float32),
                        jnp.full((1, hw), 1.0 / hw, jnp.float32))    # (N, N*hw)
    fcw = jnp.transpose(params["fc_w"])                              # (C, classes)
    fcb = params["fc_b"].reshape(1, NUM_CLASSES)
    out = pl.pallas_call(
        _head_kernel,
        out_shape=jax.ShapeDtypeStruct((N, NUM_CLASSES), jnp.float32),
    )(xf, pool_mat, fcw, fcb)
    return out


# ---------------------------------------------------------------------------
if __name__ == "__main__":
    key = jax.random.PRNGKey(0)
    pkey, xkey = jax.random.split(key)
    params = init_params(pkey)
    x = jax.random.normal(xkey, (2, IN_CHANNELS, 32, 32), jnp.float32)

    out = jax.jit(forward)(params, x)
    out = jax.block_until_ready(out)

    assert out.shape == (2, NUM_CLASSES), out.shape
    assert bool(jnp.all(jnp.isfinite(out)))
    print("KERNEL_OK")
</pallas_src>

<mosaic_0001>
module attributes {stable_mosaic.version = 11 : i64} {
  func.func @_stem_kernel(%arg0: memref<512x27xbf16, #tpu.memory_space<vmem>>, %arg1: memref<27x32xbf16, #tpu.memory_space<vmem>>, %arg2: memref<1x32xf32, #tpu.memory_space<vmem>>, %arg3: memref<512x32xf32, #tpu.memory_space<vmem>>) attributes {dimension_semantics = [], scalar_prefetch = 0 : i64, scratch_operands = 0 : i64, tpu.core_type = #tpu.core_type<tc>} {
    %c0 = arith.constant 0 : index
    %c0_0 = arith.constant 0 : index
    %0 = vector.load %arg0[%c0, %c0_0] : memref<512x27xbf16, #tpu.memory_space<vmem>>, vector<512x27xbf16>
    %c0_1 = arith.constant 0 : index
    %c0_2 = arith.constant 0 : index
    %1 = vector.load %arg1[%c0_1, %c0_2] : memref<27x32xbf16, #tpu.memory_space<vmem>>, vector<27x32xbf16>
    %cst = arith.constant dense<0.000000e+00> : vector<512x32xf32>
    %2 = tpu.matmul %0, %1, %cst {dimension_numbers = #tpu.dot_dimension_numbers<[1], [0], [0], [1], [0, 0, 1, 1], [], []>} : vector<512x27xbf16>, vector<27x32xbf16>, vector<512x32xf32> -> vector<512x32xf32>
    %c0_3 = arith.constant 0 : index
    %c0_4 = arith.constant 0 : index
    %3 = vector.load %arg2[%c0_3, %c0_4] : memref<1x32xf32, #tpu.memory_space<vmem>>, vector<1x32xf32>
    %4 = vector.broadcast %3 : vector<1x32xf32> to vector<512x32xf32>
    %5 = arith.addf %2, %4 : vector<512x32xf32>
    %cst_5 = arith.constant 0.000000e+00 : f32
    %6 = vector.broadcast %cst_5 : f32 to vector<512x32xf32>
    %7 = arith.maximumf %5, %6 : vector<512x32xf32>
    %c0_6 = arith.constant 0 : index
    %c0_7 = arith.constant 0 : index
    %8 = vector.load %arg3[%c0_6, %c0_7] : memref<512x32xf32, #tpu.memory_space<vmem>>, vector<512x32xf32>
    tpu.vector_store %arg3[%c0_6, %c0_7], %7 {strides = array<i32>} : memref<512x32xf32, #tpu.memory_space<vmem>>, vector<512x32xf32>,
    return
  }
}

module attributes {stable_mosaic.version = 11 : i64} {
  func.func @kernel(%arg0: memref<512x32xf32, #tpu.memory_space<vmem>>, %arg1: memref<512x32xf32, #tpu.memory_space<vmem>>, %arg2: memref<512x32xf32, #tpu.memory_space<vmem>>, %arg3: memref<512x32xf32, #tpu.memory_space<vmem>>, %arg4: memref<512x32xf32, #tpu.memory_space<vmem>>, %arg5: memref<512x32xf32, #tpu.memory_space<vmem>>, %arg6: memref<512x32xf32, #tpu.memory_space<vmem>>, %arg7: memref<512x32xf32, #tpu.memory_space<vmem>>, %arg8: memref<512x32xf32, #tpu.memory_space<vmem>>, %arg9: memref<9x1x32xf32, #tpu.memory_space<vmem>>, %arg10: memref<1x32xf32, #tpu.memory_space<vmem>>, %arg11: memref<32x16xbf16, #tpu.memory_space<vmem>>, %arg12: memref<1x16xf32, #tpu.memory_space<vmem>>, %arg13: memref<512x16xf32, #tpu.memory_space<vmem>>) attributes {dimension_semantics = [], scalar_prefetch = 0 : i64, scratch_operands = 0 : i64, tpu.core_type = #tpu.core_type<tc>} {
    %c0 = arith.constant 0 : index
    %c0_0 = arith.constant 0 : index
    %0 = vector.load %arg0[%c0, %c0_0] : memref<512x32xf32, #tpu.memory_space<vmem>>, vector<512x32xf32>
    %c0_1 = arith.constant 0 : index
    %c0_2 = arith.constant 0 : index
    %c0_3 = arith.constant 0 : index
    %1 = vector.load %arg9[%c0_1, %c0_2, %c0_3] : memref<9x1x32xf32, #tpu.memory_space<vmem>>, vector<1x1x32xf32>
    %2 = vector.shape_cast %1 : vector<1x1x32xf32> to vector<1x32xf32>
    %3 = vector.broadcast %2 : vector<1x32xf32> to vector<512x32xf32>
    %4 = arith.mulf %0, %3 : vector<512x32xf32>
    %c0_4 = arith.constant 0 : index
    %c0_5 = arith.constant 0 : index
    %5 = vector.load %arg1[%c0_4, %c0_5] : memref<512x32xf32, #tpu.memory_space<vmem>>, vector<512x32xf32>
    %c1 = arith.constant 1 : index
    %c0_6 = arith.constant 0 : index
    %c0_7 = arith.constant 0 : index
    %6 = vector.load %arg9[%c1, %c0_6, %c0_7] : memref<9x1x32xf32, #tpu.memory_space<vmem>>, vector<1x1x32xf32>
    %7 = vector.shape_cast %6 : vector<1x1x32xf32> to vector<1x32xf32>
    %8 = vector.broadcast %7 : vector<1x32xf32> to vector<512x32xf32>
    %9 = arith.mulf %5, %8 : vector<512x32xf32>
    %10 = arith.addf %4, %9 : vector<512x32xf32>
    %c0_8 = arith.constant 0 : index
    %c0_9 = arith.constant 0 : index
    %11 = vector.load %arg2[%c0_8, %c0_9] : memref<512x32xf32, #tpu.memory_space<vmem>>, vector<512x32xf32>
    %c2 = arith.constant 2 : index
    %c0_10 = arith.constant 0 : index
    %c0_11 = arith.constant 0 : index
    %12 = vector.load %arg9[%c2, %c0_10, %c0_11] : memref<9x1x32xf32, #tpu.memory_space<vmem>>, vector<1x1x32xf32>
    %13 = vector.shape_cast %12 : vector<1x1x32xf32> to vector<1x32xf32>
    %14 = vector.broadcast %13 : vector<1x32xf32> to vector<512x32xf32>
    %15 = arith.mulf %11, %14 : vector<512x32xf32>
    %16 = arith.addf %10, %15 : vector<512x32xf32>
    %c0_12 = arith.constant 0 : index
    %c0_13 = arith.constant 0 : index
    %17 = vector.load %arg3[%c0_12, %c0_13] : memref<512x32xf32, #tpu.memory_space<vmem>>, vector<512x32xf32>
    %c3 = arith.constant 3 : index
    %c0_14 = arith.constant 0 : index
    %c0_15 = arith.constant 0 : index
    %18 = vector.load %arg9[%c3, %c0_14, %c0_15] : memref<9x1x32xf32, #tpu.memory_space<vmem>>, vector<1x1x32xf32>
    %19 = vector.shape_cast %18 : vector<1x1x32xf32> to vector<1x32xf32>
    %20 = vector.broadcast %19 : vector<1x32xf32> to vector<512x32xf32>
    %21 = arith.mulf %17, %20 : vector<512x32xf32>
    %22 = arith.addf %16, %21 : vector<512x32xf32>
    %c0_16 = arith.constant 0 : index
    %c0_17 = arith.constant 0 : index
    %23 = vector.load %arg4[%c0_16, %c0_17] : memref<512x32xf32, #tpu.memory_space<vmem>>, vector<512x32xf32>
    %c4 = arith.constant 4 : index
    %c0_18 = arith.constant 0 : index
    %c0_19 = arith.constant 0 : index
    %24 = vector.load %arg9[%c4, %c0_18, %c0_19] : memref<9x1x32xf32, #tpu.memory_space<vmem>>, vector<1x1x32xf32>
    %25 = vector.shape_cast %24 : vector<1x1x32xf32> to vector<1x32xf32>
    %26 = vector.broadcast %25 : vector<1x32xf32> to vector<512x32xf32>
    %27 = arith.mulf %23, %26 : vector<512x32xf32>
    %28 = arith.addf %22, %27 : vector<512x32xf32>
    %c0_20 = arith.constant 0 : index
    %c0_21 = arith.constant 0 : index
    %29 = vector.load %arg5[%c0_20, %c0_21] : memref<512x32xf32, #tpu.memory_space<vmem>>, vector<512x32xf32>
    %c5 = arith.constant 5 : index
    %c0_22 = arith.constant 0 : index
    %c0_23 = arith.constant 0 : index
    %30 = vector.load %arg9[%c5, %c0_22, %c0_23] : memref<9x1x32xf32, #tpu.memory_space<vmem>>, vector<1x1x32xf32>
    %31 = vector.shape_cast %30 : vector<1x1x32xf32> to vector<1x32xf32>
    %32 = vector.broadcast %31 : vector<1x32xf32> to vector<512x32xf32>
    %33 = arith.mulf %29, %32 : vector<512x32xf32>
    %34 = arith.addf %28, %33 : vector<512x32xf32>
    %c0_24 = arith.constant 0 : index
    %c0_25 = arith.constant 0 : index
    %35 = vector.load %arg6[%c0_24, %c0_25] : memref<512x32xf32, #tpu.memory_space<vmem>>, vector<512x32xf32>
    %c6 = arith.constant 6 : index
    %c0_26 = arith.constant 0 : index
    %c0_27 = arith.constant 0 : index
    %36 = vector.load %arg9[%c6, %c0_26, %c0_27] : memref<9x1x32xf32, #tpu.memory_space<vmem>>, vector<1x1x32xf32>
    %37 = vector.shape_cast %36 : vector<1x1x32xf32> to vector<1x32xf32>
    %38 = vector.broadcast %37 : vector<1x32xf32> to vector<512x32xf32>
    %39 = arith.mulf %35, %38 : vector<512x32xf32>
    %40 = arith.addf %34, %39 : vector<512x32xf32>
    %c0_28 = arith.constant 0 : index
    %c0_29 = arith.constant 0 : index
    %41 = vector.load %arg7[%c0_28, %c0_29] : memref<512x32xf32, #tpu.memory_space<vmem>>, vector<512x32xf32>
    %c7 = arith.constant 7 : index
    %c0_30 = arith.constant 0 : index
    %c0_31 = arith.constant 0 : index
    %42 = vector.load %arg9[%c7, %c0_30, %c0_31] : memref<9x1x32xf32, #tpu.memory_space<vmem>>, vector<1x1x32xf32>
    %43 = vector.shape_cast %42 : vector<1x1x32xf32> to vector<1x32xf32>
    %44 = vector.broadcast %43 : vector<1x32xf32> to vector<512x32xf32>
    %45 = arith.mulf %41, %44 : vector<512x32xf32>
    %46 = arith.addf %40, %45 : vector<512x32xf32>
    %c0_32 = arith.constant 0 : index
    %c0_33 = arith.constant 0 : index
    %47 = vector.load %arg8[%c0_32, %c0_33] : memref<512x32xf32, #tpu.memory_space<vmem>>, vector<512x32xf32>
    %c8 = arith.constant 8 : index
    %c0_34 = arith.constant 0 : index
    %c0_35 = arith.constant 0 : index
    %48 = vector.load %arg9[%c8, %c0_34, %c0_35] : memref<9x1x32xf32, #tpu.memory_space<vmem>>, vector<1x1x32xf32>
    %49 = vector.shape_cast %48 : vector<1x1x32xf32> to vector<1x32xf32>
    %50 = vector.broadcast %49 : vector<1x32xf32> to vector<512x32xf32>
    %51 = arith.mulf %47, %50 : vector<512x32xf32>
    %52 = arith.addf %46, %51 : vector<512x32xf32>
    %c0_36 = arith.constant 0 : index
    %c0_37 = arith.constant 0 : index
    %53 = vector.load %arg10[%c0_36, %c0_37] : memref<1x32xf32, #tpu.memory_space<vmem>>, vector<1x32xf32>
    %54 = vector.broadcast %53 : vector<1x32xf32> to vector<512x32xf32>
    %55 = arith.addf %52, %54 : vector<512x32xf32>
    %cst = arith.constant 0.000000e+00 : f32
    %56 = vector.broadcast %cst : f32 to vector<512x32xf32>
    %57 = arith.maximumf %55, %56 : vector<512x32xf32>
    %58 = arith.truncf %57 : vector<512x32xf32> to vector<512x32xbf16>
    %c0_38 = arith.constant 0 : index
    %c0_39 = arith.constant 0 : index
    %59 = vector.load %arg11[%c0_38, %c0_39] : memref<32x16xbf16, #tpu.memory_space<vmem>>, vector<32x16xbf16>
    %cst_40 = arith.constant dense<0.000000e+00> : vector<512x16xf32>
    %60 = tpu.matmul %58, %59, %cst_40 {dimension_numbers = #tpu.dot_dimension_numbers<[1], [0], [0], [1], [0, 0, 1, 1], [], []>} : vector<512x32xbf16>, vector<32x16xbf16>, vector<512x16xf32> -> vector<512x16xf32>
    %c0_41 = arith.constant 0 : index
    %c0_42 = arith.constant 0 : index
    %61 = vector.load %arg12[%c0_41, %c0_42] : memref<1x16xf32, #tpu.memory_space<vmem>>, vector<1x16xf32>
    %62 = vector.broadcast %61 : vector<1x16xf32> to vector<512x16xf32>
    %63 = arith.addf %60, %62 : vector<512x16xf32>
    %cst_43 = arith.constant 0.000000e+00 : f32
    %64 = vector.broadcast %cst_43 : f32 to vector<512x16xf32>
    %65 = arith.maximumf %63, %64 : vector<512x16xf32>
    %c0_44 = arith.constant 0 : index
    %c0_45 = arith.constant 0 : index
    %66 = vector.load %arg13[%c0_44, %c0_45] : memref<512x16xf32, #tpu.memory_space<vmem>>, vector<512x16xf32>
    tpu.vector_store %arg13[%c0_44, %c0_45], %65 {strides = array<i32>} : memref<512x16xf32, #tpu.memory_space<vmem>>, vector<512x16xf32>,
    return
  }
}

module attributes {stable_mosaic.version = 11 : i64} {
  func.func @kernel(%arg0: memref<128x16xf32, #tpu.memory_space<vmem>>, %arg1: memref<128x16xf32, #tpu.memory_space<vmem>>, %arg2: memref<128x16xf32, #tpu.memory_space<vmem>>, %arg3: memref<128x16xf32, #tpu.memory_space<vmem>>, %arg4: memref<128x16xf32, #tpu.memory_space<vmem>>, %arg5: memref<128x16xf32, #tpu.memory_space<vmem>>, %arg6: memref<128x16xf32, #tpu.memory_space<vmem>>, %arg7: memref<128x16xf32, #tpu.memory_space<vmem>>, %arg8: memref<128x16xf32, #tpu.memory_space<vmem>>, %arg9: memref<9x1x16xf32, #tpu.memory_space<vmem>>, %arg10: memref<1x16xf32, #tpu.memory_space<vmem>>, %arg11: memref<16x32xbf16, #tpu.memory_space<vmem>>, %arg12: memref<1x32xf32, #tpu.memory_space<vmem>>, %arg13: memref<128x32xf32, #tpu.memory_space<vmem>>) attributes {dimension_semantics = [], scalar_prefetch = 0 : i64, scratch_operands = 0 : i64, tpu.core_type = #tpu.core_type<tc>} {
    %c0 = arith.constant 0 : index
    %c0_0 = arith.constant 0 : index
    %0 = vector.load %arg0[%c0, %c0_0] : memref<128x16xf32, #tpu.memory_space<vmem>>, vector<128x16xf32>
    %c0_1 = arith.constant 0 : index
    %c0_2 = arith.constant 0 : index
    %c0_3 = arith.constant 0 : index
    %1 = vector.load %arg9[%c0_1, %c0_2, %c0_3] : memref<9x1x16xf32, #tpu.memory_space<vmem>>, vector<1x1x16xf32>
    %2 = vector.shape_cast %1 : vector<1x1x16xf32> to vector<1x16xf32>
    %3 = vector.broadcast %2 : vector<1x16xf32> to vector<128x16xf32>
    %4 = arith.mulf %0, %3 : vector<128x16xf32>
    %c0_4 = arith.constant 0 : index
    %c0_5 = arith.constant 0 : index
    %5 = vector.load %arg1[%c0_4, %c0_5] : memref<128x16xf32, #tpu.memory_space<vmem>>, vector<128x16xf32>
    %c1 = arith.constant 1 : index
    %c0_6 = arith.constant 0 : index
    %c0_7 = arith.constant 0 : index
    %6 = vector.load %arg9[%c1, %c0_6, %c0_7] : memref<9x1x16xf32, #tpu.memory_space<vmem>>, vector<1x1x16xf32>
    %7 = vector.shape_cast %6 : vector<1x1x16xf32> to vector<1x16xf32>
    %8 = vector.broadcast %7 : vector<1x16xf32> to vector<128x16xf32>
    %9 = arith.mulf %5, %8 : vector<128x16xf32>
    %10 = arith.addf %4, %9 : vector<128x16xf32>
    %c0_8 = arith.constant 0 : index
    %c0_9 = arith.constant 0 : index
    %11 = vector.load %arg2[%c0_8, %c0_9] : memref<128x16xf32, #tpu.memory_space<vmem>>, vector<128x16xf32>
    %c2 = arith.constant 2 : index
    %c0_10 = arith.constant 0 : index
    %c0_11 = arith.constant 0 : index
    %12 = vector.load %arg9[%c2, %c0_10, %c0_11] : memref<9x1x16xf32, #tpu.memory_space<vmem>>, vector<1x1x16xf32>
    %13 = vector.shape_cast %12 : vector<1x1x16xf32> to vector<1x16xf32>
    %14 = vector.broadcast %13 : vector<1x16xf32> to vector<128x16xf32>
    %15 = arith.mulf %11, %14 : vector<128x16xf32>
    %16 = arith.addf %10, %15 : vector<128x16xf32>
    %c0_12 = arith.constant 0 : index
    %c0_13 = arith.constant 0 : index
    %17 = vector.load %arg3[%c0_12, %c0_13] : memref<128x16xf32, #tpu.memory_space<vmem>>, vector<128x16xf32>
    %c3 = arith.constant 3 : index
    %c0_14 = arith.constant 0 : index
    %c0_15 = arith.constant 0 : index
    %18 = vector.load %arg9[%c3, %c0_14, %c0_15] : memref<9x1x16xf32, #tpu.memory_space<vmem>>, vector<1x1x16xf32>
    %19 = vector.shape_cast %18 : vector<1x1x16xf32> to vector<1x16xf32>
    %20 = vector.broadcast %19 : vector<1x16xf32> to vector<128x16xf32>
    %21 = arith.mulf %17, %20 : vector<128x16xf32>
    %22 = arith.addf %16, %21 : vector<128x16xf32>
    %c0_16 = arith.constant 0 : index
    %c0_17 = arith.constant 0 : index
    %23 = vector.load %arg4[%c0_16, %c0_17] : memref<128x16xf32, #tpu.memory_space<vmem>>, vector<128x16xf32>
    %c4 = arith.constant 4 : index
    %c0_18 = arith.constant 0 : index
    %c0_19 = arith.constant 0 : index
    %24 = vector.load %arg9[%c4, %c0_18, %c0_19] : memref<9x1x16xf32, #tpu.memory_space<vmem>>, vector<1x1x16xf32>
    %25 = vector.shape_cast %24 : vector<1x1x16xf32> to vector<1x16xf32>
    %26 = vector.broadcast %25 : vector<1x16xf32> to vector<128x16xf32>
    %27 = arith.mulf %23, %26 : vector<128x16xf32>
    %28 = arith.addf %22, %27 : vector<128x16xf32>
    %c0_20 = arith.constant 0 : index
    %c0_21 = arith.constant 0 : index
    %29 = vector.load %arg5[%c0_20, %c0_21] : memref<128x16xf32, #tpu.memory_space<vmem>>, vector<128x16xf32>
    %c5 = arith.constant 5 : index
    %c0_22 = arith.constant 0 : index
    %c0_23 = arith.constant 0 : index
    %30 = vector.load %arg9[%c5, %c0_22, %c0_23] : memref<9x1x16xf32, #tpu.memory_space<vmem>>, vector<1x1x16xf32>
    %31 = vector.shape_cast %30 : vector<1x1x16xf32> to vector<1x16xf32>
    %32 = vector.broadcast %31 : vector<1x16xf32> to vector<128x16xf32>
    %33 = arith.mulf %29, %32 : vector<128x16xf32>
    %34 = arith.addf %28, %33 : vector<128x16xf32>
    %c0_24 = arith.constant 0 : index
    %c0_25 = arith.constant 0 : index
    %35 = vector.load %arg6[%c0_24, %c0_25] : memref<128x16xf32, #tpu.memory_space<vmem>>, vector<128x16xf32>
    %c6 = arith.constant 6 : index
    %c0_26 = arith.constant 0 : index
    %c0_27 = arith.constant 0 : index
    %36 = vector.load %arg9[%c6, %c0_26, %c0_27] : memref<9x1x16xf32, #tpu.memory_space<vmem>>, vector<1x1x16xf32>
    %37 = vector.shape_cast %36 : vector<1x1x16xf32> to vector<1x16xf32>
    %38 = vector.broadcast %37 : vector<1x16xf32> to vector<128x16xf32>
    %39 = arith.mulf %35, %38 : vector<128x16xf32>
    %40 = arith.addf %34, %39 : vector<128x16xf32>
    %c0_28 = arith.constant 0 : index
    %c0_29 = arith.constant 0 : index
    %41 = vector.load %arg7[%c0_28, %c0_29] : memref<128x16xf32, #tpu.memory_space<vmem>>, vector<128x16xf32>
    %c7 = arith.constant 7 : index
    %c0_30 = arith.constant 0 : index
    %c0_31 = arith.constant 0 : index
    %42 = vector.load %arg9[%c7, %c0_30, %c0_31] : memref<9x1x16xf32, #tpu.memory_space<vmem>>, vector<1x1x16xf32>
    %43 = vector.shape_cast %42 : vector<1x1x16xf32> to vector<1x16xf32>
    %44 = vector.broadcast %43 : vector<1x16xf32> to vector<128x16xf32>
    %45 = arith.mulf %41, %44 : vector<128x16xf32>
    %46 = arith.addf %40, %45 : vector<128x16xf32>
    %c0_32 = arith.constant 0 : index
    %c0_33 = arith.constant 0 : index
    %47 = vector.load %arg8[%c0_32, %c0_33] : memref<128x16xf32, #tpu.memory_space<vmem>>, vector<128x16xf32>
    %c8 = arith.constant 8 : index
    %c0_34 = arith.constant 0 : index
    %c0_35 = arith.constant 0 : index
    %48 = vector.load %arg9[%c8, %c0_34, %c0_35] : memref<9x1x16xf32, #tpu.memory_space<vmem>>, vector<1x1x16xf32>
    %49 = vector.shape_cast %48 : vector<1x1x16xf32> to vector<1x16xf32>
    %50 = vector.broadcast %49 : vector<1x16xf32> to vector<128x16xf32>
    %51 = arith.mulf %47, %50 : vector<128x16xf32>
    %52 = arith.addf %46, %51 : vector<128x16xf32>
    %c0_36 = arith.constant 0 : index
    %c0_37 = arith.constant 0 : index
    %53 = vector.load %arg10[%c0_36, %c0_37] : memref<1x16xf32, #tpu.memory_space<vmem>>, vector<1x16xf32>
    %54 = vector.broadcast %53 : vector<1x16xf32> to vector<128x16xf32>
    %55 = arith.addf %52, %54 : vector<128x16xf32>
    %cst = arith.constant 0.000000e+00 : f32
    %56 = vector.broadcast %cst : f32 to vector<128x16xf32>
    %57 = arith.maximumf %55, %56 : vector<128x16xf32>
    %58 = arith.truncf %57 : vector<128x16xf32> to vector<128x16xbf16>
    %c0_38 = arith.constant 0 : index
    %c0_39 = arith.constant 0 : index
    %59 = vector.load %arg11[%c0_38, %c0_39] : memref<16x32xbf16, #tpu.memory_space<vmem>>, vector<16x32xbf16>
    %cst_40 = arith.constant dense<0.000000e+00> : vector<128x32xf32>
    %60 = tpu.matmul %58, %59, %cst_40 {dimension_numbers = #tpu.dot_dimension_numbers<[1], [0], [0], [1], [0, 0, 1, 1], [], []>} : vector<128x16xbf16>, vector<16x32xbf16>, vector<128x32xf32> -> vector<128x32xf32>
    %c0_41 = arith.constant 0 : index
    %c0_42 = arith.constant 0 : index
    %61 = vector.load %arg12[%c0_41, %c0_42] : memref<1x32xf32, #tpu.memory_space<vmem>>, vector<1x32xf32>
    %62 = vector.broadcast %61 : vector<1x32xf32> to vector<128x32xf32>
    %63 = arith.addf %60, %62 : vector<128x32xf32>
    %cst_43 = arith.constant 0.000000e+00 : f32
    %64 = vector.broadcast %cst_43 : f32 to vector<128x32xf32>
    %65 = arith.maximumf %63, %64 : vector<128x32xf32>
    %c0_44 = arith.constant 0 : index
    %c0_45 = arith.constant 0 : index
    %66 = vector.load %arg13[%c0_44, %c0_45] : memref<128x32xf32, #tpu.memory_space<vmem>>, vector<128x32xf32>
    tpu.vector_store %arg13[%c0_44, %c0_45], %65 {strides = array<i32>} : memref<128x32xf32, #tpu.memory_space<vmem>>, vector<128x32xf32>,
    return
  }
}

module attributes {stable_mosaic.version = 11 : i64} {
  func.func @kernel(%arg0: memref<128x32xf32, #tpu.memory_space<vmem>>, %arg1: memref<128x32xf32, #tpu.memory_space<vmem>>, %arg2: memref<128x32xf32, #tpu.memory_space<vmem>>, %arg3: memref<128x32xf32, #tpu.memory_space<vmem>>, %arg4: memref<128x32xf32, #tpu.memory_space<vmem>>, %arg5: memref<128x32xf32, #tpu.memory_space<vmem>>, %arg6: memref<128x32xf32, #tpu.memory_space<vmem>>, %arg7: memref<128x32xf32, #tpu.memory_space<vmem>>, %arg8: memref<128x32xf32, #tpu.memory_space<vmem>>, %arg9: memref<9x1x32xf32, #tpu.memory_space<vmem>>, %arg10: memref<1x32xf32, #tpu.memory_space<vmem>>, %arg11: memref<32x32xbf16, #tpu.memory_space<vmem>>, %arg12: memref<1x32xf32, #tpu.memory_space<vmem>>, %arg13: memref<128x32xf32, #tpu.memory_space<vmem>>) attributes {dimension_semantics = [], scalar_prefetch = 0 : i64, scratch_operands = 0 : i64, tpu.core_type = #tpu.core_type<tc>} {
    %c0 = arith.constant 0 : index
    %c0_0 = arith.constant 0 : index
    %0 = vector.load %arg0[%c0, %c0_0] : memref<128x32xf32, #tpu.memory_space<vmem>>, vector<128x32xf32>
    %c0_1 = arith.constant 0 : index
    %c0_2 = arith.constant 0 : index
    %c0_3 = arith.constant 0 : index
    %1 = vector.load %arg9[%c0_1, %c0_2, %c0_3] : memref<9x1x32xf32, #tpu.memory_space<vmem>>, vector<1x1x32xf32>
    %2 = vector.shape_cast %1 : vector<1x1x32xf32> to vector<1x32xf32>
    %3 = vector.broadcast %2 : vector<1x32xf32> to vector<128x32xf32>
    %4 = arith.mulf %0, %3 : vector<128x32xf32>
    %c0_4 = arith.constant 0 : index
    %c0_5 = arith.constant 0 : index
    %5 = vector.load %arg1[%c0_4, %c0_5] : memref<128x32xf32, #tpu.memory_space<vmem>>, vector<128x32xf32>
    %c1 = arith.constant 1 : index
    %c0_6 = arith.constant 0 : index
    %c0_7 = arith.constant 0 : index
    %6 = vector.load %arg9[%c1, %c0_6, %c0_7] : memref<9x1x32xf32, #tpu.memory_space<vmem>>, vector<1x1x32xf32>
    %7 = vector.shape_cast %6 : vector<1x1x32xf32> to vector<1x32xf32>
    %8 = vector.broadcast %7 : vector<1x32xf32> to vector<128x32xf32>
    %9 = arith.mulf %5, %8 : vector<128x32xf32>
    %10 = arith.addf %4, %9 : vector<128x32xf32>
    %c0_8 = arith.constant 0 : index
    %c0_9 = arith.constant 0 : index
    %11 = vector.load %arg2[%c0_8, %c0_9] : memref<128x32xf32, #tpu.memory_space<vmem>>, vector<128x32xf32>
    %c2 = arith.constant 2 : index
    %c0_10 = arith.constant 0 : index
    %c0_11 = arith.constant 0 : index
    %12 = vector.load %arg9[%c2, %c0_10, %c0_11] : memref<9x1x32xf32, #tpu.memory_space<vmem>>, vector<1x1x32xf32>
    %13 = vector.shape_cast %12 : vector<1x1x32xf32> to vector<1x32xf32>
    %14 = vector.broadcast %13 : vector<1x32xf32> to vector<128x32xf32>
    %15 = arith.mulf %11, %14 : vector<128x32xf32>
    %16 = arith.addf %10, %15 : vector<128x32xf32>
    %c0_12 = arith.constant 0 : index
    %c0_13 = arith.constant 0 : index
    %17 = vector.load %arg3[%c0_12, %c0_13] : memref<128x32xf32, #tpu.memory_space<vmem>>, vector<128x32xf32>
    %c3 = arith.constant 3 : index
    %c0_14 = arith.constant 0 : index
    %c0_15 = arith.constant 0 : index
    %18 = vector.load %arg9[%c3, %c0_14, %c0_15] : memref<9x1x32xf32, #tpu.memory_space<vmem>>, vector<1x1x32xf32>
    %19 = vector.shape_cast %18 : vector<1x1x32xf32> to vector<1x32xf32>
    %20 = vector.broadcast %19 : vector<1x32xf32> to vector<128x32xf32>
    %21 = arith.mulf %17, %20 : vector<128x32xf32>
    %22 = arith.addf %16, %21 : vector<128x32xf32>
    %c0_16 = arith.constant 0 : index
    %c0_17 = arith.constant 0 : index
    %23 = vector.load %arg4[%c0_16, %c0_17] : memref<128x32xf32, #tpu.memory_space<vmem>>, vector<128x32xf32>
    %c4 = arith.constant 4 : index
    %c0_18 = arith.constant 0 : index
    %c0_19 = arith.constant 0 : index
    %24 = vector.load %arg9[%c4, %c0_18, %c0_19] : memref<9x1x32xf32, #tpu.memory_space<vmem>>, vector<1x1x32xf32>
    %25 = vector.shape_cast %24 : vector<1x1x32xf32> to vector<1x32xf32>
    %26 = vector.broadcast %25 : vector<1x32xf32> to vector<128x32xf32>
    %27 = arith.mulf %23, %26 : vector<128x32xf32>
    %28 = arith.addf %22, %27 : vector<128x32xf32>
    %c0_20 = arith.constant 0 : index
    %c0_21 = arith.constant 0 : index
    %29 = vector.load %arg5[%c0_20, %c0_21] : memref<128x32xf32, #tpu.memory_space<vmem>>, vector<128x32xf32>
    %c5 = arith.constant 5 : index
    %c0_22 = arith.constant 0 : index
    %c0_23 = arith.constant 0 : index
    %30 = vector.load %arg9[%c5, %c0_22, %c0_23] : memref<9x1x32xf32, #tpu.memory_space<vmem>>, vector<1x1x32xf32>
    %31 = vector.shape_cast %30 : vector<1x1x32xf32> to vector<1x32xf32>
    %32 = vector.broadcast %31 : vector<1x32xf32> to vector<128x32xf32>
    %33 = arith.mulf %29, %32 : vector<128x32xf32>
    %34 = arith.addf %28, %33 : vector<128x32xf32>
    %c0_24 = arith.constant 0 : index
    %c0_25 = arith.constant 0 : index
    %35 = vector.load %arg6[%c0_24, %c0_25] : memref<128x32xf32, #tpu.memory_space<vmem>>, vector<128x32xf32>
    %c6 = arith.constant 6 : index
    %c0_26 = arith.constant 0 : index
    %c0_27 = arith.constant 0 : index
    %36 = vector.load %arg9[%c6, %c0_26, %c0_27] : memref<9x1x32xf32, #tpu.memory_space<vmem>>, vector<1x1x32xf32>
    %37 = vector.shape_cast %36 : vector<1x1x32xf32> to vector<1x32xf32>
    %38 = vector.broadcast %37 : vector<1x32xf32> to vector<128x32xf32>
    %39 = arith.mulf %35, %38 : vector<128x32xf32>
    %40 = arith.addf %34, %39 : vector<128x32xf32>
    %c0_28 = arith.constant 0 : index
    %c0_29 = arith.constant 0 : index
    %41 = vector.load %arg7[%c0_28, %c0_29] : memref<128x32xf32, #tpu.memory_space<vmem>>, vector<128x32xf32>
    %c7 = arith.constant 7 : index
    %c0_30 = arith.constant 0 : index
    %c0_31 = arith.constant 0 : index
    %42 = vector.load %arg9[%c7, %c0_30, %c0_31] : memref<9x1x32xf32, #tpu.memory_space<vmem>>, vector<1x1x32xf32>
    %43 = vector.shape_cast %42 : vector<1x1x32xf32> to vector<1x32xf32>
    %44 = vector.broadcast %43 : vector<1x32xf32> to vector<128x32xf32>
    %45 = arith.mulf %41, %44 : vector<128x32xf32>
    %46 = arith.addf %40, %45 : vector<128x32xf32>
    %c0_32 = arith.constant 0 : index
    %c0_33 = arith.constant 0 : index
    %47 = vector.load %arg8[%c0_32, %c0_33] : memref<128x32xf32, #tpu.memory_space<vmem>>, vector<128x32xf32>
    %c8 = arith.constant 8 : index
    %c0_34 = arith.constant 0 : index
    %c0_35 = arith.constant 0 : index
    %48 = vector.load %arg9[%c8, %c0_34, %c0_35] : memref<9x1x32xf32, #tpu.memory_space<vmem>>, vector<1x1x32xf32>
    %49 = vector.shape_cast %48 : vector<1x1x32xf32> to vector<1x32xf32>
    %50 = vector.broadcast %49 : vector<1x32xf32> to vector<128x32xf32>
    %51 = arith.mulf %47, %50 : vector<128x32xf32>
    %52 = arith.addf %46, %51 : vector<128x32xf32>
    %c0_36 = arith.constant 0 : index
    %c0_37 = arith.constant 0 : index
    %53 = vector.load %arg10[%c0_36, %c0_37] : memref<1x32xf32, #tpu.memory_space<vmem>>, vector<1x32xf32>
    %54 = vector.broadcast %53 : vector<1x32xf32> to vector<128x32xf32>
    %55 = arith.addf %52, %54 : vector<128x32xf32>
    %cst = arith.constant 0.000000e+00 : f32
    %56 = vector.broadcast %cst : f32 to vector<128x32xf32>
    %57 = arith.maximumf %55, %56 : vector<128x32xf32>
    %58 = arith.truncf %57 : vector<128x32xf32> to vector<128x32xbf16>
    %c0_38 = arith.constant 0 : index
    %c0_39 = arith.constant 0 : index
    %59 = vector.load %arg11[%c0_38, %c0_39] : memref<32x32xbf16, #tpu.memory_space<vmem>>, vector<32x32xbf16>
    %cst_40 = arith.constant dense<0.000000e+00> : vector<128x32xf32>
    %60 = tpu.matmul %58, %59, %cst_40 {dimension_numbers = #tpu.dot_dimension_numbers<[1], [0], [0], [1], [0, 0, 1, 1], [], []>} : vector<128x32xbf16>, vector<32x32xbf16>, vector<128x32xf32> -> vector<128x32xf32>
    %c0_41 = arith.constant 0 : index
    %c0_42 = arith.constant 0 : index
    %61 = vector.load %arg12[%c0_41, %c0_42] : memref<1x32xf32, #tpu.memory_space<vmem>>, vector<1x32xf32>
    %62 = vector.broadcast %61 : vector<1x32xf32> to vector<128x32xf32>
    %63 = arith.addf %60, %62 : vector<128x32xf32>
    %cst_43 = arith.constant 0.000000e+00 : f32
    %64 = vector.broadcast %cst_43 : f32 to vector<128x32xf32>
    %65 = arith.maximumf %63, %64 : vector<128x32xf32>
    %c0_44 = arith.constant 0 : index
    %c0_45 = arith.constant 0 : index
    %66 = vector.load %arg13[%c0_44, %c0_45] : memref<128x32xf32, #tpu.memory_space<vmem>>, vector<128x32xf32>
    tpu.vector_store %arg13[%c0_44, %c0_45], %65 {strides = array<i32>} : memref<128x32xf32, #tpu.memory_space<vmem>>, vector<128x32xf32>,
    return
  }
}

module attributes {stable_mosaic.version = 11 : i64} {
  func.func @kernel(%arg0: memref<32x32xf32, #tpu.memory_space<vmem>>, %arg1: memref<32x32xf32, #tpu.memory_space<vmem>>, %arg2: memref<32x32xf32, #tpu.memory_space<vmem>>, %arg3: memref<32x32xf32, #tpu.memory_space<vmem>>, %arg4: memref<32x32xf32, #tpu.memory_space<vmem>>, %arg5: memref<32x32xf32, #tpu.memory_space<vmem>>, %arg6: memref<32x32xf32, #tpu.memory_space<vmem>>, %arg7: memref<32x32xf32, #tpu.memory_space<vmem>>, %arg8: memref<32x32xf32, #tpu.memory_space<vmem>>, %arg9: memref<9x1x32xf32, #tpu.memory_space<vmem>>, %arg10: memref<1x32xf32, #tpu.memory_space<vmem>>, %arg11: memref<32x64xbf16, #tpu.memory_space<vmem>>, %arg12: memref<1x64xf32, #tpu.memory_space<vmem>>, %arg13: memref<32x64xf32, #tpu.memory_space<vmem>>) attributes {dimension_semantics = [], scalar_prefetch = 0 : i64, scratch_operands = 0 : i64, tpu.core_type = #tpu.core_type<tc>} {
    %c0 = arith.constant 0 : index
    %c0_0 = arith.constant 0 : index
    %0 = vector.load %arg0[%c0, %c0_0] : memref<32x32xf32, #tpu.memory_space<vmem>>, vector<32x32xf32>
    %c0_1 = arith.constant 0 : index
    %c0_2 = arith.constant 0 : index
    %c0_3 = arith.constant 0 : index
    %1 = vector.load %arg9[%c0_1, %c0_2, %c0_3] : memref<9x1x32xf32, #tpu.memory_space<vmem>>, vector<1x1x32xf32>
    %2 = vector.shape_cast %1 : vector<1x1x32xf32> to vector<1x32xf32>
    %3 = vector.broadcast %2 : vector<1x32xf32> to vector<32x32xf32>
    %4 = arith.mulf %0, %3 : vector<32x32xf32>
    %c0_4 = arith.constant 0 : index
    %c0_5 = arith.constant 0 : index
    %5 = vector.load %arg1[%c0_4, %c0_5] : memref<32x32xf32, #tpu.memory_space<vmem>>, vector<32x32xf32>
    %c1 = arith.constant 1 : index
    %c0_6 = arith.constant 0 : index
    %c0_7 = arith.constant 0 : index
    %6 = vector.load %arg9[%c1, %c0_6, %c0_7] : memref<9x1x32xf32, #tpu.memory_space<vmem>>, vector<1x1x32xf32>
    %7 = vector.shape_cast %6 : vector<1x1x32xf32> to vector<1x32xf32>
    %8 = vector.broadcast %7 : vector<1x32xf32> to vector<32x32xf32>
    %9 = arith.mulf %5, %8 : vector<32x32xf32>
    %10 = arith.addf %4, %9 : vector<32x32xf32>
    %c0_8 = arith.constant 0 : index
    %c0_9 = arith.constant 0 : index
    %11 = vector.load %arg2[%c0_8, %c0_9] : memref<32x32xf32, #tpu.memory_space<vmem>>, vector<32x32xf32>
    %c2 = arith.constant 2 : index
    %c0_10 = arith.constant 0 : index
    %c0_11 = arith.constant 0 : index
    %12 = vector.load %arg9[%c2, %c0_10, %c0_11] : memref<9x1x32xf32, #tpu.memory_space<vmem>>, vector<1x1x32xf32>
    %13 = vector.shape_cast %12 : vector<1x1x32xf32> to vector<1x32xf32>
    %14 = vector.broadcast %13 : vector<1x32xf32> to vector<32x32xf32>
    %15 = arith.mulf %11, %14 : vector<32x32xf32>
    %16 = arith.addf %10, %15 : vector<32x32xf32>
    %c0_12 = arith.constant 0 : index
    %c0_13 = arith.constant 0 : index
    %17 = vector.load %arg3[%c0_12, %c0_13] : memref<32x32xf32, #tpu.memory_space<vmem>>, vector<32x32xf32>
    %c3 = arith.constant 3 : index
    %c0_14 = arith.constant 0 : index
    %c0_15 = arith.constant 0 : index
    %18 = vector.load %arg9[%c3, %c0_14, %c0_15] : memref<9x1x32xf32, #tpu.memory_space<vmem>>, vector<1x1x32xf32>
    %19 = vector.shape_cast %18 : vector<1x1x32xf32> to vector<1x32xf32>
    %20 = vector.broadcast %19 : vector<1x32xf32> to vector<32x32xf32>
    %21 = arith.mulf %17, %20 : vector<32x32xf32>
    %22 = arith.addf %16, %21 : vector<32x32xf32>
    %c0_16 = arith.constant 0 : index
    %c0_17 = arith.constant 0 : index
    %23 = vector.load %arg4[%c0_16, %c0_17] : memref<32x32xf32, #tpu.memory_space<vmem>>, vector<32x32xf32>
    %c4 = arith.constant 4 : index
    %c0_18 = arith.constant 0 : index
    %c0_19 = arith.constant 0 : index
    %24 = vector.load %arg9[%c4, %c0_18, %c0_19] : memref<9x1x32xf32, #tpu.memory_space<vmem>>, vector<1x1x32xf32>
    %25 = vector.shape_cast %24 : vector<1x1x32xf32> to vector<1x32xf32>
    %26 = vector.broadcast %25 : vector<1x32xf32> to vector<32x32xf32>
    %27 = arith.mulf %23, %26 : vector<32x32xf32>
    %28 = arith.addf %22, %27 : vector<32x32xf32>
    %c0_20 = arith.constant 0 : index
    %c0_21 = arith.constant 0 : index
    %29 = vector.load %arg5[%c0_20, %c0_21] : memref<32x32xf32, #tpu.memory_space<vmem>>, vector<32x32xf32>
    %c5 = arith.constant 5 : index
    %c0_22 = arith.constant 0 : index
    %c0_23 = arith.constant 0 : index
    %30 = vector.load %arg9[%c5, %c0_22, %c0_23] : memref<9x1x32xf32, #tpu.memory_space<vmem>>, vector<1x1x32xf32>
    %31 = vector.shape_cast %30 : vector<1x1x32xf32> to vector<1x32xf32>
    %32 = vector.broadcast %31 : vector<1x32xf32> to vector<32x32xf32>
    %33 = arith.mulf %29, %32 : vector<32x32xf32>
    %34 = arith.addf %28, %33 : vector<32x32xf32>
    %c0_24 = arith.constant 0 : index
    %c0_25 = arith.constant 0 : index
    %35 = vector.load %arg6[%c0_24, %c0_25] : memref<32x32xf32, #tpu.memory_space<vmem>>, vector<32x32xf32>
    %c6 = arith.constant 6 : index
    %c0_26 = arith.constant 0 : index
    %c0_27 = arith.constant 0 : index
    %36 = vector.load %arg9[%c6, %c0_26, %c0_27] : memref<9x1x32xf32, #tpu.memory_space<vmem>>, vector<1x1x32xf32>
    %37 = vector.shape_cast %36 : vector<1x1x32xf32> to vector<1x32xf32>
    %38 = vector.broadcast %37 : vector<1x32xf32> to vector<32x32xf32>
    %39 = arith.mulf %35, %38 : vector<32x32xf32>
    %40 = arith.addf %34, %39 : vector<32x32xf32>
    %c0_28 = arith.constant 0 : index
    %c0_29 = arith.constant 0 : index
    %41 = vector.load %arg7[%c0_28, %c0_29] : memref<32x32xf32, #tpu.memory_space<vmem>>, vector<32x32xf32>
    %c7 = arith.constant 7 : index
    %c0_30 = arith.constant 0 : index
    %c0_31 = arith.constant 0 : index
    %42 = vector.load %arg9[%c7, %c0_30, %c0_31] : memref<9x1x32xf32, #tpu.memory_space<vmem>>, vector<1x1x32xf32>
    %43 = vector.shape_cast %42 : vector<1x1x32xf32> to vector<1x32xf32>
    %44 = vector.broadcast %43 : vector<1x32xf32> to vector<32x32xf32>
    %45 = arith.mulf %41, %44 : vector<32x32xf32>
    %46 = arith.addf %40, %45 : vector<32x32xf32>
    %c0_32 = arith.constant 0 : index
    %c0_33 = arith.constant 0 : index
    %47 = vector.load %arg8[%c0_32, %c0_33] : memref<32x32xf32, #tpu.memory_space<vmem>>, vector<32x32xf32>
    %c8 = arith.constant 8 : index
    %c0_34 = arith.constant 0 : index
    %c0_35 = arith.constant 0 : index
    %48 = vector.load %arg9[%c8, %c0_34, %c0_35] : memref<9x1x32xf32, #tpu.memory_space<vmem>>, vector<1x1x32xf32>
    %49 = vector.shape_cast %48 : vector<1x1x32xf32> to vector<1x32xf32>
    %50 = vector.broadcast %49 : vector<1x32xf32> to vector<32x32xf32>
    %51 = arith.mulf %47, %50 : vector<32x32xf32>
    %52 = arith.addf %46, %51 : vector<32x32xf32>
    %c0_36 = arith.constant 0 : index
    %c0_37 = arith.constant 0 : index
    %53 = vector.load %arg10[%c0_36, %c0_37] : memref<1x32xf32, #tpu.memory_space<vmem>>, vector<1x32xf32>
    %54 = vector.broadcast %53 : vector<1x32xf32> to vector<32x32xf32>
    %55 = arith.addf %52, %54 : vector<32x32xf32>
    %cst = arith.constant 0.000000e+00 : f32
    %56 = vector.broadcast %cst : f32 to vector<32x32xf32>
    %57 = arith.maximumf %55, %56 : vector<32x32xf32>
    %58 = arith.truncf %57 : vector<32x32xf32> to vector<32x32xbf16>
    %c0_38 = arith.constant 0 : index
    %c0_39 = arith.constant 0 : index
    %59 = vector.load %arg11[%c0_38, %c0_39] : memref<32x64xbf16, #tpu.memory_space<vmem>>, vector<32x64xbf16>
    %cst_40 = arith.constant dense<0.000000e+00> : vector<32x64xf32>
    %60 = tpu.matmul %58, %59, %cst_40 {dimension_numbers = #tpu.dot_dimension_numbers<[1], [0], [0], [1], [0, 0, 1, 1], [], []>} : vector<32x32xbf16>, vector<32x64xbf16>, vector<32x64xf32> -> vector<32x64xf32>
    %c0_41 = arith.constant 0 : index
    %c0_42 = arith.constant 0 : index
    %61 = vector.load %arg12[%c0_41, %c0_42] : memref<1x64xf32, #tpu.memory_space<vmem>>, vector<1x64xf32>
    %62 = vector.broadcast %61 : vector<1x64xf32> to vector<32x64xf32>
    %63 = arith.addf %60, %62 : vector<32x64xf32>
    %cst_43 = arith.constant 0.000000e+00 : f32
    %64 = vector.broadcast %cst_43 : f32 to vector<32x64xf32>
    %65 = arith.maximumf %63, %64 : vector<32x64xf32>
    %c0_44 = arith.constant 0 : index
    %c0_45 = arith.constant 0 : index
    %66 = vector.load %arg13[%c0_44, %c0_45] : memref<32x64xf32, #tpu.memory_space<vmem>>, vector<32x64xf32>
    tpu.vector_store %arg13[%c0_44, %c0_45], %65 {strides = array<i32>} : memref<32x64xf32, #tpu.memory_space<vmem>>, vector<32x64xf32>,
    return
  }
}

module attributes {stable_mosaic.version = 11 : i64} {
  func.func @kernel(%arg0: memref<32x64xf32, #tpu.memory_space<vmem>>, %arg1: memref<32x64xf32, #tpu.memory_space<vmem>>, %arg2: memref<32x64xf32, #tpu.memory_space<vmem>>, %arg3: memref<32x64xf32, #tpu.memory_space<vmem>>, %arg4: memref<32x64xf32, #tpu.memory_space<vmem>>, %arg5: memref<32x64xf32, #tpu.memory_space<vmem>>, %arg6: memref<32x64xf32, #tpu.memory_space<vmem>>, %arg7: memref<32x64xf32, #tpu.memory_space<vmem>>, %arg8: memref<32x64xf32, #tpu.memory_space<vmem>>, %arg9: memref<9x1x64xf32, #tpu.memory_space<vmem>>, %arg10: memref<1x64xf32, #tpu.memory_space<vmem>>, %arg11: memref<64x64xbf16, #tpu.memory_space<vmem>>, %arg12: memref<1x64xf32, #tpu.memory_space<vmem>>, %arg13: memref<32x64xf32, #tpu.memory_space<vmem>>) attributes {dimension_semantics = [], scalar_prefetch = 0 : i64, scratch_operands = 0 : i64, tpu.core_type = #tpu.core_type<tc>} {
    %c0 = arith.constant 0 : index
    %c0_0 = arith.constant 0 : index
    %0 = vector.load %arg0[%c0, %c0_0] : memref<32x64xf32, #tpu.memory_space<vmem>>, vector<32x64xf32>
    %c0_1 = arith.constant 0 : index
    %c0_2 = arith.constant 0 : index
    %c0_3 = arith.constant 0 : index
    %1 = vector.load %arg9[%c0_1, %c0_2, %c0_3] : memref<9x1x64xf32, #tpu.memory_space<vmem>>, vector<1x1x64xf32>
    %2 = vector.shape_cast %1 : vector<1x1x64xf32> to vector<1x64xf32>
    %3 = vector.broadcast %2 : vector<1x64xf32> to vector<32x64xf32>
    %4 = arith.mulf %0, %3 : vector<32x64xf32>
    %c0_4 = arith.constant 0 : index
    %c0_5 = arith.constant 0 : index
    %5 = vector.load %arg1[%c0_4, %c0_5] : memref<32x64xf32, #tpu.memory_space<vmem>>, vector<32x64xf32>
    %c1 = arith.constant 1 : index
    %c0_6 = arith.constant 0 : index
    %c0_7 = arith.constant 0 : index
    %6 = vector.load %arg9[%c1, %c0_6, %c0_7] : memref<9x1x64xf32, #tpu.memory_space<vmem>>, vector<1x1x64xf32>
    %7 = vector.shape_cast %6 : vector<1x1x64xf32> to vector<1x64xf32>
    %8 = vector.broadcast %7 : vector<1x64xf32> to vector<32x64xf32>
    %9 = arith.mulf %5, %8 : vector<32x64xf32>
    %10 = arith.addf %4, %9 : vector<32x64xf32>
    %c0_8 = arith.constant 0 : index
    %c0_9 = arith.constant 0 : index
    %11 = vector.load %arg2[%c0_8, %c0_9] : memref<32x64xf32, #tpu.memory_space<vmem>>, vector<32x64xf32>
    %c2 = arith.constant 2 : index
    %c0_10 = arith.constant 0 : index
    %c0_11 = arith.constant 0 : index
    %12 = vector.load %arg9[%c2, %c0_10, %c0_11] : memref<9x1x64xf32, #tpu.memory_space<vmem>>, vector<1x1x64xf32>
    %13 = vector.shape_cast %12 : vector<1x1x64xf32> to vector<1x64xf32>
    %14 = vector.broadcast %13 : vector<1x64xf32> to vector<32x64xf32>
    %15 = arith.mulf %11, %14 : vector<32x64xf32>
    %16 = arith.addf %10, %15 : vector<32x64xf32>
    %c0_12 = arith.constant 0 : index
    %c0_13 = arith.constant 0 : index
    %17 = vector.load %arg3[%c0_12, %c0_13] : memref<32x64xf32, #tpu.memory_space<vmem>>, vector<32x64xf32>
    %c3 = arith.constant 3 : index
    %c0_14 = arith.constant 0 : index
    %c0_15 = arith.constant 0 : index
    %18 = vector.load %arg9[%c3, %c0_14, %c0_15] : memref<9x1x64xf32, #tpu.memory_space<vmem>>, vector<1x1x64xf32>
    %19 = vector.shape_cast %18 : vector<1x1x64xf32> to vector<1x64xf32>
    %20 = vector.broadcast %19 : vector<1x64xf32> to vector<32x64xf32>
    %21 = arith.mulf %17, %20 : vector<32x64xf32>
    %22 = arith.addf %16, %21 : vector<32x64xf32>
    %c0_16 = arith.constant 0 : index
    %c0_17 = arith.constant 0 : index
    %23 = vector.load %arg4[%c0_16, %c0_17] : memref<32x64xf32, #tpu.memory_space<vmem>>, vector<32x64xf32>
    %c4 = arith.constant 4 : index
    %c0_18 = arith.constant 0 : index
    %c0_19 = arith.constant 0 : index
    %24 = vector.load %arg9[%c4, %c0_18, %c0_19] : memref<9x1x64xf32, #tpu.memory_space<vmem>>, vector<1x1x64xf32>
    %25 = vector.shape_cast %24 : vector<1x1x64xf32> to vector<1x64xf32>
    %26 = vector.broadcast %25 : vector<1x64xf32> to vector<32x64xf32>
    %27 = arith.mulf %23, %26 : vector<32x64xf32>
    %28 = arith.addf %22, %27 : vector<32x64xf32>
    %c0_20 = arith.constant 0 : index
    %c0_21 = arith.constant 0 : index
    %29 = vector.load %arg5[%c0_20, %c0_21] : memref<32x64xf32, #tpu.memory_space<vmem>>, vector<32x64xf32>
    %c5 = arith.constant 5 : index
    %c0_22 = arith.constant 0 : index
    %c0_23 = arith.constant 0 : index
    %30 = vector.load %arg9[%c5, %c0_22, %c0_23] : memref<9x1x64xf32, #tpu.memory_space<vmem>>, vector<1x1x64xf32>
    %31 = vector.shape_cast %30 : vector<1x1x64xf32> to vector<1x64xf32>
    %32 = vector.broadcast %31 : vector<1x64xf32> to vector<32x64xf32>
    %33 = arith.mulf %29, %32 : vector<32x64xf32>
    %34 = arith.addf %28, %33 : vector<32x64xf32>
    %c0_24 = arith.constant 0 : index
    %c0_25 = arith.constant 0 : index
    %35 = vector.load %arg6[%c0_24, %c0_25] : memref<32x64xf32, #tpu.memory_space<vmem>>, vector<32x64xf32>
    %c6 = arith.constant 6 : index
    %c0_26 = arith.constant 0 : index
    %c0_27 = arith.constant 0 : index
    %36 = vector.load %arg9[%c6, %c0_26, %c0_27] : memref<9x1x64xf32, #tpu.memory_space<vmem>>, vector<1x1x64xf32>
    %37 = vector.shape_cast %36 : vector<1x1x64xf32> to vector<1x64xf32>
    %38 = vector.broadcast %37 : vector<1x64xf32> to vector<32x64xf32>
    %39 = arith.mulf %35, %38 : vector<32x64xf32>
    %40 = arith.addf %34, %39 : vector<32x64xf32>
    %c0_28 = arith.constant 0 : index
    %c0_29 = arith.constant 0 : index
    %41 = vector.load %arg7[%c0_28, %c0_29] : memref<32x64xf32, #tpu.memory_space<vmem>>, vector<32x64xf32>
    %c7 = arith.constant 7 : index
    %c0_30 = arith.constant 0 : index
    %c0_31 = arith.constant 0 : index
    %42 = vector.load %arg9[%c7, %c0_30, %c0_31] : memref<9x1x64xf32, #tpu.memory_space<vmem>>, vector<1x1x64xf32>
    %43 = vector.shape_cast %42 : vector<1x1x64xf32> to vector<1x64xf32>
    %44 = vector.broadcast %43 : vector<1x64xf32> to vector<32x64xf32>
    %45 = arith.mulf %41, %44 : vector<32x64xf32>
    %46 = arith.addf %40, %45 : vector<32x64xf32>
    %c0_32 = arith.constant 0 : index
    %c0_33 = arith.constant 0 : index
    %47 = vector.load %arg8[%c0_32, %c0_33] : memref<32x64xf32, #tpu.memory_space<vmem>>, vector<32x64xf32>
    %c8 = arith.constant 8 : index
    %c0_34 = arith.constant 0 : index
    %c0_35 = arith.constant 0 : index
    %48 = vector.load %arg9[%c8, %c0_34, %c0_35] : memref<9x1x64xf32, #tpu.memory_space<vmem>>, vector<1x1x64xf32>
    %49 = vector.shape_cast %48 : vector<1x1x64xf32> to vector<1x64xf32>
    %50 = vector.broadcast %49 : vector<1x64xf32> to vector<32x64xf32>
    %51 = arith.mulf %47, %50 : vector<32x64xf32>
    %52 = arith.addf %46, %51 : vector<32x64xf32>
    %c0_36 = arith.constant 0 : index
    %c0_37 = arith.constant 0 : index
    %53 = vector.load %arg10[%c0_36, %c0_37] : memref<1x64xf32, #tpu.memory_space<vmem>>, vector<1x64xf32>
    %54 = vector.broadcast %53 : vector<1x64xf32> to vector<32x64xf32>
    %55 = arith.addf %52, %54 : vector<32x64xf32>
    %cst = arith.constant 0.000000e+00 : f32
    %56 = vector.broadcast %cst : f32 to vector<32x64xf32>
    %57 = arith.maximumf %55, %56 : vector<32x64xf32>
    %58 = arith.truncf %57 : vector<32x64xf32> to vector<32x64xbf16>
    %c0_38 = arith.constant 0 : index
    %c0_39 = arith.constant 0 : index
    %59 = vector.load %arg11[%c0_38, %c0_39] : memref<64x64xbf16, #tpu.memory_space<vmem>>, vector<64x64xbf16>
    %cst_40 = arith.constant dense<0.000000e+00> : vector<32x64xf32>
    %60 = tpu.matmul %58, %59, %cst_40 {dimension_numbers = #tpu.dot_dimension_numbers<[1], [0], [0], [1], [0, 0, 1, 1], [], []>} : vector<32x64xbf16>, vector<64x64xbf16>, vector<32x64xf32> -> vector<32x64xf32>
    %c0_41 = arith.constant 0 : index
    %c0_42 = arith.constant 0 : index
    %61 = vector.load %arg12[%c0_41, %c0_42] : memref<1x64xf32, #tpu.memory_space<vmem>>, vector<1x64xf32>
    %62 = vector.broadcast %61 : vector<1x64xf32> to vector<32x64xf32>
    %63 = arith.addf %60, %62 : vector<32x64xf32>
    %cst_43 = arith.constant 0.000000e+00 : f32
    %64 = vector.broadcast %cst_43 : f32 to vector<32x64xf32>
    %65 = arith.maximumf %63, %64 : vector<32x64xf32>
    %c0_44 = arith.constant 0 : index
    %c0_45 = arith.constant 0 : index
    %66 = vector.load %arg13[%c0_44, %c0_45] : memref<32x64xf32, #tpu.memory_space<vmem>>, vector<32x64xf32>
    tpu.vector_store %arg13[%c0_44, %c0_45], %65 {strides = array<i32>} : memref<32x64xf32, #tpu.memory_space<vmem>>, vector<32x64xf32>,
    return
  }
}

module attributes {stable_mosaic.version = 11 : i64} {
  func.func @kernel(%arg0: memref<8x64xf32, #tpu.memory_space<vmem>>, %arg1: memref<8x64xf32, #tpu.memory_space<vmem>>, %arg2: memref<8x64xf32, #tpu.memory_space<vmem>>, %arg3: memref<8x64xf32, #tpu.memory_space<vmem>>, %arg4: memref<8x64xf32, #tpu.memory_space<vmem>>, %arg5: memref<8x64xf32, #tpu.memory_space<vmem>>, %arg6: memref<8x64xf32, #tpu.memory_space<vmem>>, %arg7: memref<8x64xf32, #tpu.memory_space<vmem>>, %arg8: memref<8x64xf32, #tpu.memory_space<vmem>>, %arg9: memref<9x1x64xf32, #tpu.memory_space<vmem>>, %arg10: memref<1x64xf32, #tpu.memory_space<vmem>>, %arg11: memref<64x128xbf16, #tpu.memory_space<vmem>>, %arg12: memref<1x128xf32, #tpu.memory_space<vmem>>, %arg13: memref<8x128xf32, #tpu.memory_space<vmem>>) attributes {dimension_semantics = [], scalar_prefetch = 0 : i64, scratch_operands = 0 : i64, tpu.core_type = #tpu.core_type<tc>} {
    %c0 = arith.constant 0 : index
    %c0_0 = arith.constant 0 : index
    %0 = vector.load %arg0[%c0, %c0_0] : memref<8x64xf32, #tpu.memory_space<vmem>>, vector<8x64xf32>
    %c0_1 = arith.constant 0 : index
    %c0_2 = arith.constant 0 : index
    %c0_3 = arith.constant 0 : index
    %1 = vector.load %arg9[%c0_1, %c0_2, %c0_3] : memref<9x1x64xf32, #tpu.memory_space<vmem>>, vector<1x1x64xf32>
    %2 = vector.shape_cast %1 : vector<1x1x64xf32> to vector<1x64xf32>
    %3 = vector.broadcast %2 : vector<1x64xf32> to vector<8x64xf32>
    %4 = arith.mulf %0, %3 : vector<8x64xf32>
    %c0_4 = arith.constant 0 : index
    %c0_5 = arith.constant 0 : index
    %5 = vector.load %arg1[%c0_4, %c0_5] : memref<8x64xf32, #tpu.memory_space<vmem>>, vector<8x64xf32>
    %c1 = arith.constant 1 : index
    %c0_6 = arith.constant 0 : index
    %c0_7 = arith.constant 0 : index
    %6 = vector.load %arg9[%c1, %c0_6, %c0_7] : memref<9x1x64xf32, #tpu.memory_space<vmem>>, vector<1x1x64xf32>
    %7 = vector.shape_cast %6 : vector<1x1x64xf32> to vector<1x64xf32>
    %8 = vector.broadcast %7 : vector<1x64xf32> to vector<8x64xf32>
    %9 = arith.mulf %5, %8 : vector<8x64xf32>
    %10 = arith.addf %4, %9 : vector<8x64xf32>
    %c0_8 = arith.constant 0 : index
    %c0_9 = arith.constant 0 : index
    %11 = vector.load %arg2[%c0_8, %c0_9] : memref<8x64xf32, #tpu.memory_space<vmem>>, vector<8x64xf32>
    %c2 = arith.constant 2 : index
    %c0_10 = arith.constant 0 : index
    %c0_11 = arith.constant 0 : index
    %12 = vector.load %arg9[%c2, %c0_10, %c0_11] : memref<9x1x64xf32, #tpu.memory_space<vmem>>, vector<1x1x64xf32>
    %13 = vector.shape_cast %12 : vector<1x1x64xf32> to vector<1x64xf32>
    %14 = vector.broadcast %13 : vector<1x64xf32> to vector<8x64xf32>
    %15 = arith.mulf %11, %14 : vector<8x64xf32>
    %16 = arith.addf %10, %15 : vector<8x64xf32>
    %c0_12 = arith.constant 0 : index
    %c0_13 = arith.constant 0 : index
    %17 = vector.load %arg3[%c0_12, %c0_13] : memref<8x64xf32, #tpu.memory_space<vmem>>, vector<8x64xf32>
    %c3 = arith.constant 3 : index
    %c0_14 = arith.constant 0 : index
    %c0_15 = arith.constant 0 : index
    %18 = vector.load %arg9[%c3, %c0_14, %c0_15] : memref<9x1x64xf32, #tpu.memory_space<vmem>>, vector<1x1x64xf32>
    %19 = vector.shape_cast %18 : vector<1x1x64xf32> to vector<1x64xf32>
    %20 = vector.broadcast %19 : vector<1x64xf32> to vector<8x64xf32>
    %21 = arith.mulf %17, %20 : vector<8x64xf32>
    %22 = arith.addf %16, %21 : vector<8x64xf32>
    %c0_16 = arith.constant 0 : index
    %c0_17 = arith.constant 0 : index
    %23 = vector.load %arg4[%c0_16, %c0_17] : memref<8x64xf32, #tpu.memory_space<vmem>>, vector<8x64xf32>
    %c4 = arith.constant 4 : index
    %c0_18 = arith.constant 0 : index
    %c0_19 = arith.constant 0 : index
    %24 = vector.load %arg9[%c4, %c0_18, %c0_19] : memref<9x1x64xf32, #tpu.memory_space<vmem>>, vector<1x1x64xf32>
    %25 = vector.shape_cast %24 : vector<1x1x64xf32> to vector<1x64xf32>
    %26 = vector.broadcast %25 : vector<1x64xf32> to vector<8x64xf32>
    %27 = arith.mulf %23, %26 : vector<8x64xf32>
    %28 = arith.addf %22, %27 : vector<8x64xf32>
    %c0_20 = arith.constant 0 : index
    %c0_21 = arith.constant 0 : index
    %29 = vector.load %arg5[%c0_20, %c0_21] : memref<8x64xf32, #tpu.memory_space<vmem>>, vector<8x64xf32>
    %c5 = arith.constant 5 : index
    %c0_22 = arith.constant 0 : index
    %c0_23 = arith.constant 0 : index
    %30 = vector.load %arg9[%c5, %c0_22, %c0_23] : memref<9x1x64xf32, #tpu.memory_space<vmem>>, vector<1x1x64xf32>
    %31 = vector.shape_cast %30 : vector<1x1x64xf32> to vector<1x64xf32>
    %32 = vector.broadcast %31 : vector<1x64xf32> to vector<8x64xf32>
    %33 = arith.mulf %29, %32 : vector<8x64xf32>
    %34 = arith.addf %28, %33 : vector<8x64xf32>
    %c0_24 = arith.constant 0 : index
    %c0_25 = arith.constant 0 : index
    %35 = vector.load %arg6[%c0_24, %c0_25] : memref<8x64xf32, #tpu.memory_space<vmem>>, vector<8x64xf32>
    %c6 = arith.constant 6 : index
    %c0_26 = arith.constant 0 : index
    %c0_27 = arith.constant 0 : index
    %36 = vector.load %arg9[%c6, %c0_26, %c0_27] : memref<9x1x64xf32, #tpu.memory_space<vmem>>, vector<1x1x64xf32>
    %37 = vector.shape_cast %36 : vector<1x1x64xf32> to vector<1x64xf32>
    %38 = vector.broadcast %37 : vector<1x64xf32> to vector<8x64xf32>
    %39 = arith.mulf %35, %38 : vector<8x64xf32>
    %40 = arith.addf %34, %39 : vector<8x64xf32>
    %c0_28 = arith.constant 0 : index
    %c0_29 = arith.constant 0 : index
    %41 = vector.load %arg7[%c0_28, %c0_29] : memref<8x64xf32, #tpu.memory_space<vmem>>, vector<8x64xf32>
    %c7 = arith.constant 7 : index
    %c0_30 = arith.constant 0 : index
    %c0_31 = arith.constant 0 : index
    %42 = vector.load %arg9[%c7, %c0_30, %c0_31] : memref<9x1x64xf32, #tpu.memory_space<vmem>>, vector<1x1x64xf32>
    %43 = vector.shape_cast %42 : vector<1x1x64xf32> to vector<1x64xf32>
    %44 = vector.broadcast %43 : vector<1x64xf32> to vector<8x64xf32>
    %45 = arith.mulf %41, %44 : vector<8x64xf32>
    %46 = arith.addf %40, %45 : vector<8x64xf32>
    %c0_32 = arith.constant 0 : index
    %c0_33 = arith.constant 0 : index
    %47 = vector.load %arg8[%c0_32, %c0_33] : memref<8x64xf32, #tpu.memory_space<vmem>>, vector<8x64xf32>
    %c8 = arith.constant 8 : index
    %c0_34 = arith.constant 0 : index
    %c0_35 = arith.constant 0 : index
    %48 = vector.load %arg9[%c8, %c0_34, %c0_35] : memref<9x1x64xf32, #tpu.memory_space<vmem>>, vector<1x1x64xf32>
    %49 = vector.shape_cast %48 : vector<1x1x64xf32> to vector<1x64xf32>
    %50 = vector.broadcast %49 : vector<1x64xf32> to vector<8x64xf32>
    %51 = arith.mulf %47, %50 : vector<8x64xf32>
    %52 = arith.addf %46, %51 : vector<8x64xf32>
    %c0_36 = arith.constant 0 : index
    %c0_37 = arith.constant 0 : index
    %53 = vector.load %arg10[%c0_36, %c0_37] : memref<1x64xf32, #tpu.memory_space<vmem>>, vector<1x64xf32>
    %54 = vector.broadcast %53 : vector<1x64xf32> to vector<8x64xf32>
    %55 = arith.addf %52, %54 : vector<8x64xf32>
    %cst = arith.constant 0.000000e+00 : f32
    %56 = vector.broadcast %cst : f32 to vector<8x64xf32>
    %57 = arith.maximumf %55, %56 : vector<8x64xf32>
    %58 = arith.truncf %57 : vector<8x64xf32> to vector<8x64xbf16>
    %c0_38 = arith.constant 0 : index
    %c0_39 = arith.constant 0 : index
    %59 = vector.load %arg11[%c0_38, %c0_39] : memref<64x128xbf16, #tpu.memory_space<vmem>>, vector<64x128xbf16>
    %cst_40 = arith.constant dense<0.000000e+00> : vector<8x128xf32>
    %60 = tpu.matmul %58, %59, %cst_40 {dimension_numbers = #tpu.dot_dimension_numbers<[1], [0], [0], [1], [0, 0, 1, 1], [], []>} : vector<8x64xbf16>, vector<64x128xbf16>, vector<8x128xf32> -> vector<8x128xf32>
    %c0_41 = arith.constant 0 : index
    %c0_42 = arith.constant 0 : index
    %61 = vector.load %arg12[%c0_41, %c0_42] : memref<1x128xf32, #tpu.memory_space<vmem>>, vector<1x128xf32>
    %62 = vector.broadcast %61 : vector<1x128xf32> to vector<8x128xf32>
    %63 = arith.addf %60, %62 : vector<8x128xf32>
    %cst_43 = arith.constant 0.000000e+00 : f32
    %64 = vector.broadcast %cst_43 : f32 to vector<8x128xf32>
    %65 = arith.maximumf %63, %64 : vector<8x128xf32>
    %c0_44 = arith.constant 0 : index
    %c0_45 = arith.constant 0 : index
    %66 = vector.load %arg13[%c0_44, %c0_45] : memref<8x128xf32, #tpu.memory_space<vmem>>, vector<8x128xf32>
    tpu.vector_store %arg13[%c0_44, %c0_45], %65 {strides = array<i32>} : memref<8x128xf32, #tpu.memory_space<vmem>>, vector<8x128xf32>,
    return
  }
}

module attributes {stable_mosaic.version = 11 : i64} {
  func.func @kernel(%arg0: memref<8x128xf32, #tpu.memory_space<vmem>>, %arg1: memref<8x128xf32, #tpu.memory_space<vmem>>, %arg2: memref<8x128xf32, #tpu.memory_space<vmem>>, %arg3: memref<8x128xf32, #tpu.memory_space<vmem>>, %arg4: memref<8x128xf32, #tpu.memory_space<vmem>>, %arg5: memref<8x128xf32, #tpu.memory_space<vmem>>, %arg6: memref<8x128xf32, #tpu.memory_space<vmem>>, %arg7: memref<8x128xf32, #tpu.memory_space<vmem>>, %arg8: memref<8x128xf32, #tpu.memory_space<vmem>>, %arg9: memref<9x1x128xf32, #tpu.memory_space<vmem>>, %arg10: memref<1x128xf32, #tpu.memory_space<vmem>>, %arg11: memref<128x128xbf16, #tpu.memory_space<vmem>>, %arg12: memref<1x128xf32, #tpu.memory_space<vmem>>, %arg13: memref<8x128xf32, #tpu.memory_space<vmem>>) attributes {dimension_semantics = [], scalar_prefetch = 0 : i64, scratch_operands = 0 : i64, tpu.core_type = #tpu.core_type<tc>} {
    %c0 = arith.constant 0 : index
    %c0_0 = arith.constant 0 : index
    %0 = vector.load %arg0[%c0, %c0_0] : memref<8x128xf32, #tpu.memory_space<vmem>>, vector<8x128xf32>
    %c0_1 = arith.constant 0 : index
    %c0_2 = arith.constant 0 : index
    %c0_3 = arith.constant 0 : index
    %1 = vector.load %arg9[%c0_1, %c0_2, %c0_3] : memref<9x1x128xf32, #tpu.memory_space<vmem>>, vector<1x1x128xf32>
    %2 = vector.shape_cast %1 : vector<1x1x128xf32> to vector<1x128xf32>
    %3 = vector.broadcast %2 : vector<1x128xf32> to vector<8x128xf32>
    %4 = arith.mulf %0, %3 : vector<8x128xf32>
    %c0_4 = arith.constant 0 : index
    %c0_5 = arith.constant 0 : index
    %5 = vector.load %arg1[%c0_4, %c0_5] : memref<8x128xf32, #tpu.memory_space<vmem>>, vector<8x128xf32>
    %c1 = arith.constant 1 : index
    %c0_6 = arith.constant 0 : index
    %c0_7 = arith.constant 0 : index
    %6 = vector.load %arg9[%c1, %c0_6, %c0_7] : memref<9x1x128xf32, #tpu.memory_space<vmem>>, vector<1x1x128xf32>
    %7 = vector.shape_cast %6 : vector<1x1x128xf32> to vector<1x128xf32>
    %8 = vector.broadcast %7 : vector<1x128xf32> to vector<8x128xf32>
    %9 = arith.mulf %5, %8 : vector<8x128xf32>
    %10 = arith.addf %4, %9 : vector<8x128xf32>
    %c0_8 = arith.constant 0 : index
    %c0_9 = arith.constant 0 : index
    %11 = vector.load %arg2[%c0_8, %c0_9] : memref<8x128xf32, #tpu.memory_space<vmem>>, vector<8x128xf32>
    %c2 = arith.constant 2 : index
    %c0_10 = arith.constant 0 : index
    %c0_11 = arith.constant 0 : index
    %12 = vector.load %arg9[%c2, %c0_10, %c0_11] : memref<9x1x128xf32, #tpu.memory_space<vmem>>, vector<1x1x128xf32>
    %13 = vector.shape_cast %12 : vector<1x1x128xf32> to vector<1x128xf32>
    %14 = vector.broadcast %13 : vector<1x128xf32> to vector<8x128xf32>
    %15 = arith.mulf %11, %14 : vector<8x128xf32>
    %16 = arith.addf %10, %15 : vector<8x128xf32>
    %c0_12 = arith.constant 0 : index
    %c0_13 = arith.constant 0 : index
    %17 = vector.load %arg3[%c0_12, %c0_13] : memref<8x128xf32, #tpu.memory_space<vmem>>, vector<8x128xf32>
    %c3 = arith.constant 3 : index
    %c0_14 = arith.constant 0 : index
    %c0_15 = arith.constant 0 : index
    %18 = vector.load %arg9[%c3, %c0_14, %c0_15] : memref<9x1x128xf32, #tpu.memory_space<vmem>>, vector<1x1x128xf32>
    %19 = vector.shape_cast %18 : vector<1x1x128xf32> to vector<1x128xf32>
    %20 = vector.broadcast %19 : vector<1x128xf32> to vector<8x128xf32>
    %21 = arith.mulf %17, %20 : vector<8x128xf32>
    %22 = arith.addf %16, %21 : vector<8x128xf32>
    %c0_16 = arith.constant 0 : index
    %c0_17 = arith.constant 0 : index
    %23 = vector.load %arg4[%c0_16, %c0_17] : memref<8x128xf32, #tpu.memory_space<vmem>>, vector<8x128xf32>
    %c4 = arith.constant 4 : index
    %c0_18 = arith.constant 0 : index
    %c0_19 = arith.constant 0 : index
    %24 = vector.load %arg9[%c4, %c0_18, %c0_19] : memref<9x1x128xf32, #tpu.memory_space<vmem>>, vector<1x1x128xf32>
    %25 = vector.shape_cast %24 : vector<1x1x128xf32> to vector<1x128xf32>
    %26 = vector.broadcast %25 : vector<1x128xf32> to vector<8x128xf32>
    %27 = arith.mulf %23, %26 : vector<8x128xf32>
    %28 = arith.addf %22, %27 : vector<8x128xf32>
    %c0_20 = arith.constant 0 : index
    %c0_21 = arith.constant 0 : index
    %29 = vector.load %arg5[%c0_20, %c0_21] : memref<8x128xf32, #tpu.memory_space<vmem>>, vector<8x128xf32>
    %c5 = arith.constant 5 : index
    %c0_22 = arith.constant 0 : index
    %c0_23 = arith.constant 0 : index
    %30 = vector.load %arg9[%c5, %c0_22, %c0_23] : memref<9x1x128xf32, #tpu.memory_space<vmem>>, vector<1x1x128xf32>
    %31 = vector.shape_cast %30 : vector<1x1x128xf32> to vector<1x128xf32>
    %32 = vector.broadcast %31 : vector<1x128xf32> to vector<8x128xf32>
    %33 = arith.mulf %29, %32 : vector<8x128xf32>
    %34 = arith.addf %28, %33 : vector<8x128xf32>
    %c0_24 = arith.constant 0 : index
    %c0_25 = arith.constant 0 : index
    %35 = vector.load %arg6[%c0_24, %c0_25] : memref<8x128xf32, #tpu.memory_space<vmem>>, vector<8x128xf32>
    %c6 = arith.constant 6 : index
    %c0_26 = arith.constant 0 : index
    %c0_27 = arith.constant 0 : index
    %36 = vector.load %arg9[%c6, %c0_26, %c0_27] : memref<9x1x128xf32, #tpu.memory_space<vmem>>, vector<1x1x128xf32>
    %37 = vector.shape_cast %36 : vector<1x1x128xf32> to vector<1x128xf32>
    %38 = vector.broadcast %37 : vector<1x128xf32> to vector<8x128xf32>
    %39 = arith.mulf %35, %38 : vector<8x128xf32>
    %40 = arith.addf %34, %39 : vector<8x128xf32>
    %c0_28 = arith.constant 0 : index
    %c0_29 = arith.constant 0 : index
    %41 = vector.load %arg7[%c0_28, %c0_29] : memref<8x128xf32, #tpu.memory_space<vmem>>, vector<8x128xf32>
    %c7 = arith.constant 7 : index
    %c0_30 = arith.constant 0 : index
    %c0_31 = arith.constant 0 : index
    %42 = vector.load %arg9[%c7, %c0_30, %c0_31] : memref<9x1x128xf32, #tpu.memory_space<vmem>>, vector<1x1x128xf32>
    %43 = vector.shape_cast %42 : vector<1x1x128xf32> to vector<1x128xf32>
    %44 = vector.broadcast %43 : vector<1x128xf32> to vector<8x128xf32>
    %45 = arith.mulf %41, %44 : vector<8x128xf32>
    %46 = arith.addf %40, %45 : vector<8x128xf32>
    %c0_32 = arith.constant 0 : index
    %c0_33 = arith.constant 0 : index
    %47 = vector.load %arg8[%c0_32, %c0_33] : memref<8x128xf32, #tpu.memory_space<vmem>>, vector<8x128xf32>
    %c8 = arith.constant 8 : index
    %c0_34 = arith.constant 0 : index
    %c0_35 = arith.constant 0 : index
    %48 = vector.load %arg9[%c8, %c0_34, %c0_35] : memref<9x1x128xf32, #tpu.memory_space<vmem>>, vector<1x1x128xf32>
    %49 = vector.shape_cast %48 : vector<1x1x128xf32> to vector<1x128xf32>
    %50 = vector.broadcast %49 : vector<1x128xf32> to vector<8x128xf32>
    %51 = arith.mulf %47, %50 : vector<8x128xf32>
    %52 = arith.addf %46, %51 : vector<8x128xf32>
    %c0_36 = arith.constant 0 : index
    %c0_37 = arith.constant 0 : index
    %53 = vector.load %arg10[%c0_36, %c0_37] : memref<1x128xf32, #tpu.memory_space<vmem>>, vector<1x128xf32>
    %54 = vector.broadcast %53 : vector<1x128xf32> to vector<8x128xf32>
    %55 = arith.addf %52, %54 : vector<8x128xf32>
    %cst = arith.constant 0.000000e+00 : f32
    %56 = vector.broadcast %cst : f32 to vector<8x128xf32>
    %57 = arith.maximumf %55, %56 : vector<8x128xf32>
    %58 = arith.truncf %57 : vector<8x128xf32> to vector<8x128xbf16>
    %c0_38 = arith.constant 0 : index
    %c0_39 = arith.constant 0 : index
    %59 = vector.load %arg11[%c0_38, %c0_39] : memref<128x128xbf16, #tpu.memory_space<vmem>>, vector<128x128xbf16>
    %cst_40 = arith.constant dense<0.000000e+00> : vector<8x128xf32>
    %60 = tpu.matmul %58, %59, %cst_40 {dimension_numbers = #tpu.dot_dimension_numbers<[1], [0], [0], [1], [0, 0, 1, 1], [], []>} : vector<8x128xbf16>, vector<128x128xbf16>, vector<8x128xf32> -> vector<8x128xf32>
    %c0_41 = arith.constant 0 : index
    %c0_42 = arith.constant 0 : index
    %61 = vector.load %arg12[%c0_41, %c0_42] : memref<1x128xf32, #tpu.memory_space<vmem>>, vector<1x128xf32>
    %62 = vector.broadcast %61 : vector<1x128xf32> to vector<8x128xf32>
    %63 = arith.addf %60, %62 : vector<8x128xf32>
    %cst_43 = arith.constant 0.000000e+00 : f32
    %64 = vector.broadcast %cst_43 : f32 to vector<8x128xf32>
    %65 = arith.maximumf %63, %64 : vector<8x128xf32>
    %c0_44 = arith.constant 0 : index
    %c0_45 = arith.constant 0 : index
    %66 = vector.load %arg13[%c0_44, %c0_45] : memref<8x128xf32, #tpu.memory_space<vmem>>, vector<8x128xf32>
    tpu.vector_store %arg13[%c0_44, %c0_45], %65 {strides = array<i32>} : memref<8x128xf32, #tpu.memory_space<vmem>>, vector<8x128xf32>,
    return
  }
}

module attributes {stable_mosaic.version = 11 : i64} {
  func.func @kernel(%arg0: memref<2x128xf32, #tpu.memory_space<vmem>>, %arg1: memref<2x128xf32, #tpu.memory_space<vmem>>, %arg2: memref<2x128xf32, #tpu.memory_space<vmem>>, %arg3: memref<2x128xf32, #tpu.memory_space<vmem>>, %arg4: memref<2x128xf32, #tpu.memory_space<vmem>>, %arg5: memref<2x128xf32, #tpu.memory_space<vmem>>, %arg6: memref<2x128xf32, #tpu.memory_space<vmem>>, %arg7: memref<2x128xf32, #tpu.memory_space<vmem>>, %arg8: memref<2x128xf32, #tpu.memory_space<vmem>>, %arg9: memref<9x1x128xf32, #tpu.memory_space<vmem>>, %arg10: memref<1x128xf32, #tpu.memory_space<vmem>>, %arg11: memref<128x256xbf16, #tpu.memory_space<vmem>>, %arg12: memref<1x256xf32, #tpu.memory_space<vmem>>, %arg13: memref<2x256xf32, #tpu.memory_space<vmem>>) attributes {dimension_semantics = [], scalar_prefetch = 0 : i64, scratch_operands = 0 : i64, tpu.core_type = #tpu.core_type<tc>} {
    %c0 = arith.constant 0 : index
    %c0_0 = arith.constant 0 : index
    %0 = vector.load %arg0[%c0, %c0_0] : memref<2x128xf32, #tpu.memory_space<vmem>>, vector<2x128xf32>
    %c0_1 = arith.constant 0 : index
    %c0_2 = arith.constant 0 : index
    %c0_3 = arith.constant 0 : index
    %1 = vector.load %arg9[%c0_1, %c0_2, %c0_3] : memref<9x1x128xf32, #tpu.memory_space<vmem>>, vector<1x1x128xf32>
    %2 = vector.shape_cast %1 : vector<1x1x128xf32> to vector<1x128xf32>
    %3 = vector.broadcast %2 : vector<1x128xf32> to vector<2x128xf32>
    %4 = arith.mulf %0, %3 : vector<2x128xf32>
    %c0_4 = arith.constant 0 : index
    %c0_5 = arith.constant 0 : index
    %5 = vector.load %arg1[%c0_4, %c0_5] : memref<2x128xf32, #tpu.memory_space<vmem>>, vector<2x128xf32>
    %c1 = arith.constant 1 : index
    %c0_6 = arith.constant 0 : index
    %c0_7 = arith.constant 0 : index
    %6 = vector.load %arg9[%c1, %c0_6, %c0_7] : memref<9x1x128xf32, #tpu.memory_space<vmem>>, vector<1x1x128xf32>
    %7 = vector.shape_cast %6 : vector<1x1x128xf32> to vector<1x128xf32>
    %8 = vector.broadcast %7 : vector<1x128xf32> to vector<2x128xf32>
    %9 = arith.mulf %5, %8 : vector<2x128xf32>
    %10 = arith.addf %4, %9 : vector<2x128xf32>
    %c0_8 = arith.constant 0 : index
    %c0_9 = arith.constant 0 : index
    %11 = vector.load %arg2[%c0_8, %c0_9] : memref<2x128xf32, #tpu.memory_space<vmem>>, vector<2x128xf32>
    %c2 = arith.constant 2 : index
    %c0_10 = arith.constant 0 : index
    %c0_11 = arith.constant 0 : index
    %12 = vector.load %arg9[%c2, %c0_10, %c0_11] : memref<9x1x128xf32, #tpu.memory_space<vmem>>, vector<1x1x128xf32>
    %13 = vector.shape_cast %12 : vector<1x1x128xf32> to vector<1x128xf32>
    %14 = vector.broadcast %13 : vector<1x128xf32> to vector<2x128xf32>
    %15 = arith.mulf %11, %14 : vector<2x128xf32>
    %16 = arith.addf %10, %15 : vector<2x128xf32>
    %c0_12 = arith.constant 0 : index
    %c0_13 = arith.constant 0 : index
    %17 = vector.load %arg3[%c0_12, %c0_13] : memref<2x128xf32, #tpu.memory_space<vmem>>, vector<2x128xf32>
    %c3 = arith.constant 3 : index
    %c0_14 = arith.constant 0 : index
    %c0_15 = arith.constant 0 : index
    %18 = vector.load %arg9[%c3, %c0_14, %c0_15] : memref<9x1x128xf32, #tpu.memory_space<vmem>>, vector<1x1x128xf32>
    %19 = vector.shape_cast %18 : vector<1x1x128xf32> to vector<1x128xf32>
    %20 = vector.broadcast %19 : vector<1x128xf32> to vector<2x128xf32>
    %21 = arith.mulf %17, %20 : vector<2x128xf32>
    %22 = arith.addf %16, %21 : vector<2x128xf32>
    %c0_16 = arith.constant 0 : index
    %c0_17 = arith.constant 0 : index
    %23 = vector.load %arg4[%c0_16, %c0_17] : memref<2x128xf32, #tpu.memory_space<vmem>>, vector<2x128xf32>
    %c4 = arith.constant 4 : index
    %c0_18 = arith.constant 0 : index
    %c0_19 = arith.constant 0 : index
    %24 = vector.load %arg9[%c4, %c0_18, %c0_19] : memref<9x1x128xf32, #tpu.memory_space<vmem>>, vector<1x1x128xf32>
    %25 = vector.shape_cast %24 : vector<1x1x128xf32> to vector<1x128xf32>
    %26 = vector.broadcast %25 : vector<1x128xf32> to vector<2x128xf32>
    %27 = arith.mulf %23, %26 : vector<2x128xf32>
    %28 = arith.addf %22, %27 : vector<2x128xf32>
    %c0_20 = arith.constant 0 : index
    %c0_21 = arith.constant 0 : index
    %29 = vector.load %arg5[%c0_20, %c0_21] : memref<2x128xf32, #tpu.memory_space<vmem>>, vector<2x128xf32>
    %c5 = arith.constant 5 : index
    %c0_22 = arith.constant 0 : index
    %c0_23 = arith.constant 0 : index
    %30 = vector.load %arg9[%c5, %c0_22, %c0_23] : memref<9x1x128xf32, #tpu.memory_space<vmem>>, vector<1x1x128xf32>
    %31 = vector.shape_cast %30 : vector<1x1x128xf32> to vector<1x128xf32>
    %32 = vector.broadcast %31 : vector<1x128xf32> to vector<2x128xf32>
    %33 = arith.mulf %29, %32 : vector<2x128xf32>
    %34 = arith.addf %28, %33 : vector<2x128xf32>
    %c0_24 = arith.constant 0 : index
    %c0_25 = arith.constant 0 : index
    %35 = vector.load %arg6[%c0_24, %c0_25] : memref<2x128xf32, #tpu.memory_space<vmem>>, vector<2x128xf32>
    %c6 = arith.constant 6 : index
    %c0_26 = arith.constant 0 : index
    %c0_27 = arith.constant 0 : index
    %36 = vector.load %arg9[%c6, %c0_26, %c0_27] : memref<9x1x128xf32, #tpu.memory_space<vmem>>, vector<1x1x128xf32>
    %37 = vector.shape_cast %36 : vector<1x1x128xf32> to vector<1x128xf32>
    %38 = vector.broadcast %37 : vector<1x128xf32> to vector<2x128xf32>
    %39 = arith.mulf %35, %38 : vector<2x128xf32>
    %40 = arith.addf %34, %39 : vector<2x128xf32>
    %c0_28 = arith.constant 0 : index
    %c0_29 = arith.constant 0 : index
    %41 = vector.load %arg7[%c0_28, %c0_29] : memref<2x128xf32, #tpu.memory_space<vmem>>, vector<2x128xf32>
    %c7 = arith.constant 7 : index
    %c0_30 = arith.constant 0 : index
    %c0_31 = arith.constant 0 : index
    %42 = vector.load %arg9[%c7, %c0_30, %c0_31] : memref<9x1x128xf32, #tpu.memory_space<vmem>>, vector<1x1x128xf32>
    %43 = vector.shape_cast %42 : vector<1x1x128xf32> to vector<1x128xf32>
    %44 = vector.broadcast %43 : vector<1x128xf32> to vector<2x128xf32>
    %45 = arith.mulf %41, %44 : vector<2x128xf32>
    %46 = arith.addf %40, %45 : vector<2x128xf32>
    %c0_32 = arith.constant 0 : index
    %c0_33 = arith.constant 0 : index
    %47 = vector.load %arg8[%c0_32, %c0_33] : memref<2x128xf32, #tpu.memory_space<vmem>>, vector<2x128xf32>
    %c8 = arith.constant 8 : index
    %c0_34 = arith.constant 0 : index
    %c0_35 = arith.constant 0 : index
    %48 = vector.load %arg9[%c8, %c0_34, %c0_35] : memref<9x1x128xf32, #tpu.memory_space<vmem>>, vector<1x1x128xf32>
    %49 = vector.shape_cast %48 : vector<1x1x128xf32> to vector<1x128xf32>
    %50 = vector.broadcast %49 : vector<1x128xf32> to vector<2x128xf32>
    %51 = arith.mulf %47, %50 : vector<2x128xf32>
    %52 = arith.addf %46, %51 : vector<2x128xf32>
    %c0_36 = arith.constant 0 : index
    %c0_37 = arith.constant 0 : index
    %53 = vector.load %arg10[%c0_36, %c0_37] : memref<1x128xf32, #tpu.memory_space<vmem>>, vector<1x128xf32>
    %54 = vector.broadcast %53 : vector<1x128xf32> to vector<2x128xf32>
    %55 = arith.addf %52, %54 : vector<2x128xf32>
    %cst = arith.constant 0.000000e+00 : f32
    %56 = vector.broadcast %cst : f32 to vector<2x128xf32>
    %57 = arith.maximumf %55, %56 : vector<2x128xf32>
    %58 = arith.truncf %57 : vector<2x128xf32> to vector<2x128xbf16>
    %c0_38 = arith.constant 0 : index
    %c0_39 = arith.constant 0 : index
    %59 = vector.load %arg11[%c0_38, %c0_39] : memref<128x256xbf16, #tpu.memory_space<vmem>>, vector<128x256xbf16>
    %cst_40 = arith.constant dense<0.000000e+00> : vector<2x256xf32>
    %60 = tpu.matmul %58, %59, %cst_40 {dimension_numbers = #tpu.dot_dimension_numbers<[1], [0], [0], [1], [0, 0, 1, 1], [], []>} : vector<2x128xbf16>, vector<128x256xbf16>, vector<2x256xf32> -> vector<2x256xf32>
    %c0_41 = arith.constant 0 : index
    %c0_42 = arith.constant 0 : index
    %61 = vector.load %arg12[%c0_41, %c0_42] : memref<1x256xf32, #tpu.memory_space<vmem>>, vector<1x256xf32>
    %62 = vector.broadcast %61 : vector<1x256xf32> to vector<2x256xf32>
    %63 = arith.addf %60, %62 : vector<2x256xf32>
    %cst_43 = arith.constant 0.000000e+00 : f32
    %64 = vector.broadcast %cst_43 : f32 to vector<2x256xf32>
    %65 = arith.maximumf %63, %64 : vector<2x256xf32>
    %c0_44 = arith.constant 0 : index
    %c0_45 = arith.constant 0 : index
    %66 = vector.load %arg13[%c0_44, %c0_45] : memref<2x256xf32, #tpu.memory_space<vmem>>, vector<2x256xf32>
    tpu.vector_store %arg13[%c0_44, %c0_45], %65 {strides = array<i32>} : memref<2x256xf32, #tpu.memory_space<vmem>>, vector<2x256xf32>,
    return
  }
}

module attributes {stable_mosaic.version = 11 : i64} {
  func.func @_head_kernel(%arg0: memref<32x256xf32, #tpu.memory_space<vmem>>, %arg1: memref<2x32xf32, #tpu.memory_space<vmem>>, %arg2: memref<256x10xf32, #tpu.memory_space<vmem>>, %arg3: memref<1x10xf32, #tpu.memory_space<vmem>>, %arg4: memref<2x10xf32, #tpu.memory_space<vmem>>) attributes {dimension_semantics = [], scalar_prefetch = 0 : i64, scratch_operands = 0 : i64, tpu.core_type = #tpu.core_type<tc>} {
    %c0 = arith.constant 0 : index
    %c0_0 = arith.constant 0 : index
    %0 = vector.load %arg1[%c0, %c0_0] : memref<2x32xf32, #tpu.memory_space<vmem>>, vector<2x32xf32>
    %c0_1 = arith.constant 0 : index
    %c0_2 = arith.constant 0 : index
    %1 = vector.load %arg0[%c0_1, %c0_2] : memref<32x256xf32, #tpu.memory_space<vmem>>, vector<32x256xf32>
    %cst = arith.constant dense<0.000000e+00> : vector<2x256xf32>
    %2 = tpu.matmul %0, %1, %cst {dimension_numbers = #tpu.dot_dimension_numbers<[1], [0], [0], [1], [0, 0, 1, 1], [], []>} : vector<2x32xf32>, vector<32x256xf32>, vector<2x256xf32> -> vector<2x256xf32>
    %c0_3 = arith.constant 0 : index
    %c0_4 = arith.constant 0 : index
    %3 = vector.load %arg2[%c0_3, %c0_4] : memref<256x10xf32, #tpu.memory_space<vmem>>, vector<256x10xf32>
    %cst_5 = arith.constant dense<0.000000e+00> : vector<2x10xf32>
    %4 = tpu.matmul %2, %3, %cst_5 {dimension_numbers = #tpu.dot_dimension_numbers<[1], [0], [0], [1], [0, 0, 1, 1], [], []>} : vector<2x256xf32>, vector<256x10xf32>, vector<2x10xf32> -> vector<2x10xf32>
    %c0_6 = arith.constant 0 : index
    %c0_7 = arith.constant 0 : index
    %5 = vector.load %arg3[%c0_6, %c0_7] : memref<1x10xf32, #tpu.memory_space<vmem>>, vector<1x10xf32>
    %6 = vector.broadcast %5 : vector<1x10xf32> to vector<2x10xf32>
    %7 = arith.addf %4, %6 : vector<2x10xf32>
    %c0_8 = arith.constant 0 : index
    %c0_9 = arith.constant 0 : index
    %8 = vector.load %arg4[%c0_8, %c0_9] : memref<2x10xf32, #tpu.memory_space<vmem>>, vector<2x10xf32>
    tpu.vector_store %arg4[%c0_8, %c0_9], %7 {strides = array<i32>} : memref<2x10xf32, #tpu.memory_space<vmem>>, vector<2x10xf32>,
    return
  }
}

module attributes {stable_mosaic.version = 11 : i64} {
  func.func @kernel(%arg0: memref<32x256xf32, #tpu.memory_space<vmem>>, %arg1: memref<32x256xf32, #tpu.memory_space<vmem>>, %arg2: memref<32x256xf32, #tpu.memory_space<vmem>>, %arg3: memref<32x256xf32, #tpu.memory_space<vmem>>, %arg4: memref<32x256xf32, #tpu.memory_space<vmem>>, %arg5: memref<32x256xf32, #tpu.memory_space<vmem>>, %arg6: memref<32x256xf32, #tpu.memory_space<vmem>>, %arg7: memref<32x256xf32, #tpu.memory_space<vmem>>, %arg8: memref<32x256xf32, #tpu.memory_space<vmem>>, %arg9: memref<9x1x256xf32, #tpu.memory_space<vmem>>, %arg10: memref<1x256xf32, #tpu.memory_space<vmem>>, %arg11: memref<256x256xbf16, #tpu.memory_space<vmem>>, %arg12: memref<1x256xf32, #tpu.memory_space<vmem>>, %arg13: memref<32x256xf32, #tpu.memory_space<vmem>>) attributes {dimension_semantics = [], scalar_prefetch = 0 : i64, scratch_operands = 0 : i64, tpu.core_type = #tpu.core_type<tc>} {
    %c0 = arith.constant 0 : index
    %c0_0 = arith.constant 0 : index
    %0 = vector.load %arg0[%c0, %c0_0] : memref<32x256xf32, #tpu.memory_space<vmem>>, vector<32x256xf32>
    %c0_1 = arith.constant 0 : index
    %c0_2 = arith.constant 0 : index
    %c0_3 = arith.constant 0 : index
    %1 = vector.load %arg9[%c0_1, %c0_2, %c0_3] : memref<9x1x256xf32, #tpu.memory_space<vmem>>, vector<1x1x256xf32>
    %2 = vector.shape_cast %1 : vector<1x1x256xf32> to vector<1x256xf32>
    %3 = vector.broadcast %2 : vector<1x256xf32> to vector<32x256xf32>
    %4 = arith.mulf %0, %3 : vector<32x256xf32>
    %c0_4 = arith.constant 0 : index
    %c0_5 = arith.constant 0 : index
    %5 = vector.load %arg1[%c0_4, %c0_5] : memref<32x256xf32, #tpu.memory_space<vmem>>, vector<32x256xf32>
    %c1 = arith.constant 1 : index
    %c0_6 = arith.constant 0 : index
    %c0_7 = arith.constant 0 : index
    %6 = vector.load %arg9[%c1, %c0_6, %c0_7] : memref<9x1x256xf32, #tpu.memory_space<vmem>>, vector<1x1x256xf32>
    %7 = vector.shape_cast %6 : vector<1x1x256xf32> to vector<1x256xf32>
    %8 = vector.broadcast %7 : vector<1x256xf32> to vector<32x256xf32>
    %9 = arith.mulf %5, %8 : vector<32x256xf32>
    %10 = arith.addf %4, %9 : vector<32x256xf32>
    %c0_8 = arith.constant 0 : index
    %c0_9 = arith.constant 0 : index
    %11 = vector.load %arg2[%c0_8, %c0_9] : memref<32x256xf32, #tpu.memory_space<vmem>>, vector<32x256xf32>
    %c2 = arith.constant 2 : index
    %c0_10 = arith.constant 0 : index
    %c0_11 = arith.constant 0 : index
    %12 = vector.load %arg9[%c2, %c0_10, %c0_11] : memref<9x1x256xf32, #tpu.memory_space<vmem>>, vector<1x1x256xf32>
    %13 = vector.shape_cast %12 : vector<1x1x256xf32> to vector<1x256xf32>
    %14 = vector.broadcast %13 : vector<1x256xf32> to vector<32x256xf32>
    %15 = arith.mulf %11, %14 : vector<32x256xf32>
    %16 = arith.addf %10, %15 : vector<32x256xf32>
    %c0_12 = arith.constant 0 : index
    %c0_13 = arith.constant 0 : index
    %17 = vector.load %arg3[%c0_12, %c0_13] : memref<32x256xf32, #tpu.memory_space<vmem>>, vector<32x256xf32>
    %c3 = arith.constant 3 : index
    %c0_14 = arith.constant 0 : index
    %c0_15 = arith.constant 0 : index
    %18 = vector.load %arg9[%c3, %c0_14, %c0_15] : memref<9x1x256xf32, #tpu.memory_space<vmem>>, vector<1x1x256xf32>
    %19 = vector.shape_cast %18 : vector<1x1x256xf32> to vector<1x256xf32>
    %20 = vector.broadcast %19 : vector<1x256xf32> to vector<32x256xf32>
    %21 = arith.mulf %17, %20 : vector<32x256xf32>
    %22 = arith.addf %16, %21 : vector<32x256xf32>
    %c0_16 = arith.constant 0 : index
    %c0_17 = arith.constant 0 : index
    %23 = vector.load %arg4[%c0_16, %c0_17] : memref<32x256xf32, #tpu.memory_space<vmem>>, vector<32x256xf32>
    %c4 = arith.constant 4 : index
    %c0_18 = arith.constant 0 : index
    %c0_19 = arith.constant 0 : index
    %24 = vector.load %arg9[%c4, %c0_18, %c0_19] : memref<9x1x256xf32, #tpu.memory_space<vmem>>, vector<1x1x256xf32>
    %25 = vector.shape_cast %24 : vector<1x1x256xf32> to vector<1x256xf32>
    %26 = vector.broadcast %25 : vector<1x256xf32> to vector<32x256xf32>
    %27 = arith.mulf %23, %26 : vector<32x256xf32>
    %28 = arith.addf %22, %27 : vector<32x256xf32>
    %c0_20 = arith.constant 0 : index
    %c0_21 = arith.constant 0 : index
    %29 = vector.load %arg5[%c0_20, %c0_21] : memref<32x256xf32, #tpu.memory_space<vmem>>, vector<32x256xf32>
    %c5 = arith.constant 5 : index
    %c0_22 = arith.constant 0 : index
    %c0_23 = arith.constant 0 : index
    %30 = vector.load %arg9[%c5, %c0_22, %c0_23] : memref<9x1x256xf32, #tpu.memory_space<vmem>>, vector<1x1x256xf32>
    %31 = vector.shape_cast %30 : vector<1x1x256xf32> to vector<1x256xf32>
    %32 = vector.broadcast %31 : vector<1x256xf32> to vector<32x256xf32>
    %33 = arith.mulf %29, %32 : vector<32x256xf32>
    %34 = arith.addf %28, %33 : vector<32x256xf32>
    %c0_24 = arith.constant 0 : index
    %c0_25 = arith.constant 0 : index
    %35 = vector.load %arg6[%c0_24, %c0_25] : memref<32x256xf32, #tpu.memory_space<vmem>>, vector<32x256xf32>
    %c6 = arith.constant 6 : index
    %c0_26 = arith.constant 0 : index
    %c0_27 = arith.constant 0 : index
    %36 = vector.load %arg9[%c6, %c0_26, %c0_27] : memref<9x1x256xf32, #tpu.memory_space<vmem>>, vector<1x1x256xf32>
    %37 = vector.shape_cast %36 : vector<1x1x256xf32> to vector<1x256xf32>
    %38 = vector.broadcast %37 : vector<1x256xf32> to vector<32x256xf32>
    %39 = arith.mulf %35, %38 : vector<32x256xf32>
    %40 = arith.addf %34, %39 : vector<32x256xf32>
    %c0_28 = arith.constant 0 : index
    %c0_29 = arith.constant 0 : index
    %41 = vector.load %arg7[%c0_28, %c0_29] : memref<32x256xf32, #tpu.memory_space<vmem>>, vector<32x256xf32>
    %c7 = arith.constant 7 : index
    %c0_30 = arith.constant 0 : index
    %c0_31 = arith.constant 0 : index
    %42 = vector.load %arg9[%c7, %c0_30, %c0_31] : memref<9x1x256xf32, #tpu.memory_space<vmem>>, vector<1x1x256xf32>
    %43 = vector.shape_cast %42 : vector<1x1x256xf32> to vector<1x256xf32>
    %44 = vector.broadcast %43 : vector<1x256xf32> to vector<32x256xf32>
    %45 = arith.mulf %41, %44 : vector<32x256xf32>
    %46 = arith.addf %40, %45 : vector<32x256xf32>
    %c0_32 = arith.constant 0 : index
    %c0_33 = arith.constant 0 : index
    %47 = vector.load %arg8[%c0_32, %c0_33] : memref<32x256xf32, #tpu.memory_space<vmem>>, vector<32x256xf32>
    %c8 = arith.constant 8 : index
    %c0_34 = arith.constant 0 : index
    %c0_35 = arith.constant 0 : index
    %48 = vector.load %arg9[%c8, %c0_34, %c0_35] : memref<9x1x256xf32, #tpu.memory_space<vmem>>, vector<1x1x256xf32>
    %49 = vector.shape_cast %48 : vector<1x1x256xf32> to vector<1x256xf32>
    %50 = vector.broadcast %49 : vector<1x256xf32> to vector<32x256xf32>
    %51 = arith.mulf %47, %50 : vector<32x256xf32>
    %52 = arith.addf %46, %51 : vector<32x256xf32>
    %c0_36 = arith.constant 0 : index
    %c0_37 = arith.constant 0 : index
    %53 = vector.load %arg10[%c0_36, %c0_37] : memref<1x256xf32, #tpu.memory_space<vmem>>, vector<1x256xf32>
    %54 = vector.broadcast %53 : vector<1x256xf32> to vector<32x256xf32>
    %55 = arith.addf %52, %54 : vector<32x256xf32>
    %cst = arith.constant 0.000000e+00 : f32
    %56 = vector.broadcast %cst : f32 to vector<32x256xf32>
    %57 = arith.maximumf %55, %56 : vector<32x256xf32>
    %58 = arith.truncf %57 : vector<32x256xf32> to vector<32x256xbf16>
    %c0_38 = arith.constant 0 : index
    %c0_39 = arith.constant 0 : index
    %59 = vector.load %arg11[%c0_38, %c0_39] : memref<256x256xbf16, #tpu.memory_space<vmem>>, vector<256x256xbf16>
    %cst_40 = arith.constant dense<0.000000e+00> : vector<32x256xf32>
    %60 = tpu.matmul %58, %59, %cst_40 {dimension_numbers = #tpu.dot_dimension_numbers<[1], [0], [0], [1], [0, 0, 1, 1], [], []>} : vector<32x256xbf16>, vector<256x256xbf16>, vector<32x256xf32> -> vector<32x256xf32>
    %c0_41 = arith.constant 0 : index
    %c0_42 = arith.constant 0 : index
    %61 = vector.load %arg12[%c0_41, %c0_42] : memref<1x256xf32, #tpu.memory_space<vmem>>, vector<1x256xf32>
    %62 = vector.broadcast %61 : vector<1x256xf32> to vector<32x256xf32>
    %63 = arith.addf %60, %62 : vector<32x256xf32>
    %cst_43 = arith.constant 0.000000e+00 : f32
    %64 = vector.broadcast %cst_43 : f32 to vector<32x256xf32>
    %65 = arith.maximumf %63, %64 : vector<32x256xf32>
    %c0_44 = arith.constant 0 : index
    %c0_45 = arith.constant 0 : index
    %66 = vector.load %arg13[%c0_44, %c0_45] : memref<32x256xf32, #tpu.memory_space<vmem>>, vector<32x256xf32>
    tpu.vector_store %arg13[%c0_44, %c0_45], %65 {strides = array<i32>} : memref<32x256xf32, #tpu.memory_space<vmem>>, vector<32x256xf32>,
    return
  }
}

</mosaic_0001>

<llo_original>
// kernel: forward.15
$region0: #{forward.15}
  #allocation0 [shape = 'u32[]', space=smem, size = 0x4, offset = 0x4, fixed_abs, tag = 'smem constant byte address 0x4 - core index']
  #allocation1 [shape = 'u32[144,128]{1,0:T(1,128)}', space=vmem, size = 0x12000, scoped, tag = 'internal scratch']
  %s0 = inlined_call_operand.vmem [shape: bf16[512,27], index: 0, kind: input, shape index: {}]
  %s1 = inlined_call_operand.vmem [shape: bf16[27,32], index: 1, kind: input, shape index: {}]
  %s2 = inlined_call_operand.vmem [shape: f32[1,32], index: 2, kind: input, shape index: {}]
  %s3 = inlined_call_operand.vmem [shape: f32[512,32], index: 3, kind: output, shape index: {}]
  %s4 = sld [smem:[#allocation0]]
  $region22: #{forward.15} parent=0
    _
  %s6 = ssub.s32 1, %s4
  %s7 = scalar_select 0, %s6, %s4
  // Predicated region
  $region2: #{forward.15} parent=0 // pred_check
    _
  $region3: #{forward.15} parent=0 // pred_check_branch
    %9 = sbr.rel (0) target = $region5
  $region4: #{forward.15} parent=0 // pred_region
    _
  $region5: #{forward.15} parent=0 // pred_fallthru
    _
  // Predicated region
  $region6: #{forward.15} parent=0 // pred_check
    _
  $region7: #{forward.15} parent=0 // pred_check_branch
    %11 = sbr.rel (0) target = $region9
  $region8: #{forward.15} parent=0 // pred_region
    _
  $region9: #{forward.15} parent=0 // pred_fallthru
    _
  // Predicated region
  $region10: #{forward.15} parent=0 // pred_check
    _
  $region11: #{forward.15} parent=0 // pred_check_branch
    %13 = sbr.rel (0) target = $region13
  $region12: #{forward.15} parent=0 // pred_region
    _
  $region13: #{forward.15} parent=0 // pred_fallthru
    _
  %v15 = vld [vmem:[%s0] sm:$0xf]
  %v16 = vld [vmem:[%s0 + $0x4] sm:$0xf]
  %v17 = vld [vmem:[%s0 + $0x8] sm:$0xf]
  %v18 = vld [vmem:[%s0 + $0xc] sm:$0xf]
  %v19 = vld [vmem:[%s0 + $0x10] sm:$0xf]
  %v20 = vld [vmem:[%s0 + $0x14] sm:$0xf]
  %v21 = vld [vmem:[%s0 + $0x18] sm:$0xf]
  %v22 = vld [vmem:[%s0 + $0x1c] sm:$0xf]
  %v23 = vld [vmem:[%s0 + $0x20] sm:$0xf]
  %v24 = vld [vmem:[%s0 + $0x24] sm:$0xf]
  %v25 = vld [vmem:[%s0 + $0x28] sm:$0xf]
  %v26 = vld [vmem:[%s0 + $0x2c] sm:$0xf]
  %v27 = vld [vmem:[%s0 + $0x30] sm:$0xf]
  %v28 = vld [vmem:[%s0 + $0x34] sm:$0xf]
  %v29 = vld [vmem:[%s0 + $0x38] sm:$0xf]
  %v30 = vld [vmem:[%s0 + $0x3c] sm:$0xf]
  %v31 = vld [vmem:[%s0 + $0x40] sm:$0xf]
  %v32 = vld [vmem:[%s0 + $0x44] sm:$0xf]
  %v33 = vld [vmem:[%s0 + $0x48] sm:$0xf]
  %v34 = vld [vmem:[%s0 + $0x4c] sm:$0xf]
  %v35 = vld [vmem:[%s0 + $0x50] sm:$0xf]
  %v36 = vld [vmem:[%s0 + $0x54] sm:$0xf]
  %v37 = vld [vmem:[%s0 + $0x58] sm:$0xf]
  %v38 = vld [vmem:[%s0 + $0x5c] sm:$0xf]
  %v39 = vld [vmem:[%s0 + $0x60] sm:$0xf]
  %v40 = vld [vmem:[%s0 + $0x64] sm:$0xf]
  %v41 = vld [vmem:[%s0 + $0x68] sm:$0xf]
  %v42 = vld [vmem:[%s0 + $0x6c] sm:$0xf]
  %v43 = vld [vmem:[%s0 + $0x70] sm:$0xf]
  %v44 = vld [vmem:[%s0 + $0x74] sm:$0xf]
  %v45 = vld [vmem:[%s0 + $0x78] sm:$0xf]
  %v46 = vld [vmem:[%s0 + $0x7c] sm:$0xf]
  %v47 = vld [vmem:[%s0 + $0x80] sm:$0xf]
  %v48 = vld [vmem:[%s0 + $0x84] sm:$0xf]
  %v49 = vld [vmem:[%s0 + $0x88] sm:$0xf]
  %v50 = vld [vmem:[%s0 + $0x8c] sm:$0xf]
  %v51 = vld [vmem:[%s0 + $0x90] sm:$0xf]
  %v52 = vld [vmem:[%s0 + $0x94] sm:$0xf]
  %v53 = vld [vmem:[%s0 + $0x98] sm:$0xf]
  %v54 = vld [vmem:[%s0 + $0x9c] sm:$0xf]
  %v55 = vld [vmem:[%s0 + $0xa0] sm:$0xf]
  %v56 = vld [vmem:[%s0 + $0xa4] sm:$0xf]
  %v57 = vld [vmem:[%s0 + $0xa8] sm:$0xf]
  %v58 = vld [vmem:[%s0 + $0xac] sm:$0xf]
  %v59 = vld [vmem:[%s0 + $0xb0] sm:$0xf]
  %v60 = vld [vmem:[%s0 + $0xb4] sm:$0xf]
  %v61 = vld [vmem:[%s0 + $0xb8] sm:$0xf]
  %v62 = vld [vmem:[%s0 + $0xbc] sm:$0xf]
  %v63 = vld [vmem:[%s0 + $0xc0] sm:$0xf]
  %v64 = vld [vmem:[%s0 + $0xc4] sm:$0xf]
  %v65 = vld [vmem:[%s0 + $0xc8] sm:$0xf]
  %v66 = vld [vmem:[%s0 + $0xcc] sm:$0xf]
  %v67 = vld [vmem:[%s0 + $0xd0] sm:$0xf]
  %v68 = vld [vmem:[%s0 + $0xd4] sm:$0xf]
  %v69 = vld [vmem:[%s0 + $0xd8] sm:$0xf]
  %v70 = vld [vmem:[%s0 + $0xdc] sm:$0xf]
  %v71 = vld [vmem:[%s0 + $0xe0] sm:$0xf]
  %v72 = vld [vmem:[%s0 + $0xe4] sm:$0xf]
  %v73 = vld [vmem:[%s0 + $0xe8] sm:$0xf]
  %v74 = vld [vmem:[%s0 + $0xec] sm:$0xf]
  %v75 = vld [vmem:[%s0 + $0xf0] sm:$0xf]
  %v76 = vld [vmem:[%s0 + $0xf4] sm:$0xf]
  %v77 = vld [vmem:[%s0 + $0xf8] sm:$0xf]
  %v78 = vld [vmem:[%s0 + $0xfc] sm:$0xf]
  %v79 = vld [vmem:[%s1] sm:$0xf]
  %v80 = vld [vmem:[%s1 + $0x4] sm:$0xf]
  %v81 = vld [vmem:[%s1 + $0x8] sm:$0xf]
  %v82 = vld [vmem:[%s1 + $0xc] sm:$0x3]
  %v83 = vld [vmem:[%s2] sm:$0x1]
  %v85 = vlaneseq
  %v86 = vshrl.u32 %v85, 7
  %v87 = vsub.s32 0, %v86
  %v88 = vrot.slane %v83, %v87
  %v154 = vunpack.c.l.b16 %v15
  %v155 = vunpack.c.l.b16 %v16
  %v156 = vunpack.c.l.b16 %v17
  %v157 = vunpack.c.l.b16 %v18
  %v158 = vunpack.c.l.b16 %v19
  %v159 = vunpack.c.l.b16 %v20
  %v160 = vunpack.c.l.b16 %v21
  %v161 = vunpack.c.l.b16 %v22
  %v162 = vunpack.c.l.b16 %v23
  %v163 = vunpack.c.l.b16 %v24
  %v164 = vunpack.c.l.b16 %v25
  %v165 = vunpack.c.l.b16 %v26
  %v166 = vunpack.c.l.b16 %v27
  %v167 = vunpack.c.l.b16 %v28
  %v168 = vunpack.c.l.b16 %v29
  %v169 = vunpack.c.l.b16 %v30
  %v170 = vunpack.c.l.b16 %v31
  %v171 = vunpack.c.l.b16 %v32
  %v172 = vunpack.c.l.b16 %v33
  %v173 = vunpack.c.l.b16 %v34
  %v174 = vunpack.c.l.b16 %v35
  %v175 = vunpack.c.l.b16 %v36
  %v176 = vunpack.c.l.b16 %v37
  %v177 = vunpack.c.l.b16 %v38
  %v178 = vunpack.c.l.b16 %v39
  %v179 = vunpack.c.l.b16 %v40
  %v180 = vunpack.c.l.b16 %v41
  %v181 = vunpack.c.l.b16 %v42
  %v182 = vunpack.c.l.b16 %v43
  %v183 = vunpack.c.l.b16 %v44
  %v184 = vunpack.c.l.b16 %v45
  %v185 = vunpack.c.l.b16 %v46
  %v186 = vunpack.c.l.b16 %v47
  %v187 = vunpack.c.l.b16 %v48
  %v188 = vunpack.c.l.b16 %v49
  %v189 = vunpack.c.l.b16 %v50
  %v190 = vunpack.c.l.b16 %v51
  %v191 = vunpack.c.l.b16 %v52
  %v192 = vunpack.c.l.b16 %v53
  %v193 = vunpack.c.l.b16 %v54
  %v194 = vunpack.c.l.b16 %v55
  %v195 = vunpack.c.l.b16 %v56
  %v196 = vunpack.c.l.b16 %v57
  %v197 = vunpack.c.l.b16 %v58
  %v198 = vunpack.c.l.b16 %v59
  %v199 = vunpack.c.l.b16 %v60
  %v200 = vunpack.c.l.b16 %v61
  %v201 = vunpack.c.l.b16 %v62
  %v202 = vunpack.c.l.b16 %v63
  %v203 = vunpack.c.l.b16 %v64
  %v204 = vunpack.c.l.b16 %v65
  %v205 = vunpack.c.l.b16 %v66
  %v206 = vunpack.c.l.b16 %v67
  %v207 = vunpack.c.l.b16 %v68
  %v208 = vunpack.c.l.b16 %v69
  %v209 = vunpack.c.l.b16 %v70
  %v210 = vunpack.c.l.b16 %v71
  %v211 = vunpack.c.l.b16 %v72
  %v212 = vunpack.c.l.b16 %v73
  %v213 = vunpack.c.l.b16 %v74
  %v214 = vunpack.c.l.b16 %v75
  %v215 = vunpack.c.l.b16 %v76
  %v216 = vunpack.c.l.b16 %v77
  %v217 = vunpack.c.l.b16 %v78
  %v218 = vpack.c.b16 %v155, %v154
  %v219 = vpack.c.b16 %v157, %v156
  %v220 = vpack.c.b16 %v159, %v158
  %v221 = vpack.c.b16 %v161, %v160
  %v222 = vpack.c.b16 %v163, %v162
  %v223 = vpack.c.b16 %v165, %v164
  %v224 = vpack.c.b16 %v167, %v166
  %v225 = vpack.c.b16 %v169, %v168
  %v226 = vpack.c.b16 %v171, %v170
  %v227 = vpack.c.b16 %v173, %v172
  %v228 = vpack.c.b16 %v175, %v174
  %v229 = vpack.c.b16 %v177, %v176
  %v230 = vpack.c.b16 %v179, %v178
  %v231 = vpack.c.b16 %v181, %v180
  %v232 = vpack.c.b16 %v183, %v182
  %v233 = vpack.c.b16 %v185, %v184
  %v234 = vpack.c.b16 %v187, %v186
  %v235 = vpack.c.b16 %v189, %v188
  %v236 = vpack.c.b16 %v191, %v190
  %v237 = vpack.c.b16 %v193, %v192
  %v238 = vpack.c.b16 %v195, %v194
  %v239 = vpack.c.b16 %v197, %v196
  %v240 = vpack.c.b16 %v199, %v198
  %v241 = vpack.c.b16 %v201, %v200
  %v242 = vpack.c.b16 %v203, %v202
  %v243 = vpack.c.b16 %v205, %v204
  %v244 = vpack.c.b16 %v207, %v206
  %v245 = vpack.c.b16 %v209, %v208
  %v246 = vpack.c.b16 %v211, %v210
  %v247 = vpack.c.b16 %v213, %v212
  %v248 = vpack.c.b16 %v215, %v214
  %v249 = vpack.c.b16 %v217, %v216
  %v254 = vunpack.c.l.b16 %v79
  %v255 = vunpack.c.l.b16 %v80
  %v256 = vunpack.c.l.b16 %v81
  %v257 = vunpack.c.l.b16 %v82
  %v258 = vpack.c.b16 %v255, %v254
  %v259 = vpack.c.b16 %v257, %v256
  %vm261 = vcmask 220160
  %v263 = vsel %vm261, %v218, 0
  %v266 = vsel %vm261, %v219, 0
  %v269 = vsel %vm261, %v220, 0
  %v272 = vsel %vm261, %v221, 0
  %v275 = vsel %vm261, %v222, 0
  %v278 = vsel %vm261, %v223, 0
  %v281 = vsel %vm261, %v224, 0
  %v284 = vsel %vm261, %v225, 0
  %v287 = vsel %vm261, %v226, 0
  %v290 = vsel %vm261, %v227, 0
  %v293 = vsel %vm261, %v228, 0
  %v296 = vsel %vm261, %v229, 0
  %v299 = vsel %vm261, %v230, 0
  %v302 = vsel %vm261, %v231, 0
  %v305 = vsel %vm261, %v232, 0
  %v308 = vsel %vm261, %v233, 0
  %v311 = vsel %vm261, %v234, 0
  %v314 = vsel %vm261, %v235, 0
  %v317 = vsel %vm261, %v236, 0
  %v320 = vsel %vm261, %v237, 0
  %v323 = vsel %vm261, %v238, 0
  %v326 = vsel %vm261, %v239, 0
  %v329 = vsel %vm261, %v240, 0
  %v332 = vsel %vm261, %v241, 0
  %v335 = vsel %vm261, %v242, 0
  %v338 = vsel %vm261, %v243, 0
  %v341 = vsel %vm261, %v244, 0
  %v344 = vsel %vm261, %v245, 0
  %v347 = vsel %vm261, %v246, 0
  %v350 = vsel %vm261, %v247, 0
  %v353 = vsel %vm261, %v248, 0
  %v356 = vsel %vm261, %v249, 0
  %vm358 = vcmask 1044480
  %vm359 = vcmask 1045504
  %v360 = vsel %vm358, 4294967295, 65535
  %v361 = vsel %vm359, %v360, 0
  %v363 = vand.u32 %v259, %v361
  %365 = vmatprep.subr.bf16.mxu0 0
  %366 = vmatpush1.bf16.msra.mxu0 %v258
  %367 = vmatprep.subr.bf16.mxu0 0
  %368 = vmatpush1.bf16.msra.mxu0 %v363
  %369 = vmatprep.subr.bf16.mxu0 0
  %370 = vmatpush1.bf16.msra.mxu0 0
  %371 = vmatprep.subr.bf16.mxu0 0
  %372 = vmatpush1.bf16.msra.mxu0 0
  %373 = vmatprep.subr.bf16.mxu0 0
  %374 = vmatpush1.bf16.msra.mxu0 0
  %375 = vmatprep.subr.bf16.mxu0 0
  %376 = vmatpush1.bf16.msra.mxu0 0
  %377 = vmatprep.subr.bf16.mxu0 0
  %378 = vmatpush1.bf16.msra.mxu0 0
  %379 = vmatprep.subr.bf16.mxu0 0
  %380 = vmatpush1.bf16.msra.mxu0 0
  %381 = vmatprep.subr.bf16.mxu0 0
  %382 = vmatpush1.bf16.msra.mxu0 0
  %383 = vmatprep.subr.bf16.mxu0 0
  %384 = vmatpush1.bf16.msra.mxu0 0
  %385 = vmatprep.subr.bf16.mxu0 0
  %386 = vmatpush1.bf16.msra.mxu0 0
  %387 = vmatprep.subr.bf16.mxu0 0
  %388 = vmatpush1.bf16.msra.mxu0 0
  %389 = vmatprep.subr.bf16.mxu0 0
  %390 = vmatpush1.bf16.msra.mxu0 0
  %391 = vmatprep.subr.bf16.mxu0 0
  %392 = vmatpush1.bf16.msra.mxu0 0
  %393 = vmatprep.subr.bf16.mxu0 0
  %394 = vmatpush1.bf16.msra.mxu0 0
  %395 = vmatprep.subr.bf16.mxu0 0
  %396 = vmatpush1.bf16.msra.mxu0 0
  %397 = vmatprep.mubr.bf16.mxu0 0
  %398 = vmatmul.mubr.bf16.gmra.mrb[0].mxu0 %v263
  %v399 = vpop.f32.mrb[0].mxu0
  %v400 = vadd.f32 %v88, %v399
  %v401 = vpop.f32.mrb[0].mxu0
  %v402 = vpop.f32.mrb[0].mxu0
  %v403 = vadd.f32 %v88, %v402
  %v404 = vpop.f32.mrb[0].mxu0
  %405 = vmatprep.mubr.bf16.mxu0 0
  %406 = vmatmul.mubr.bf16.gmra.mrb[0].mxu0 %v266
  %v407 = vpop.f32.mrb[0].mxu0
  %v408 = vadd.f32 %v88, %v407
  %v409 = vpop.f32.mrb[0].mxu0
  %v410 = vpop.f32.mrb[0].mxu0
  %v411 = vadd.f32 %v88, %v410
  %v412 = vpop.f32.mrb[0].mxu0
  %413 = vmatprep.mubr.bf16.mxu0 0
  %414 = vmatmul.mubr.bf16.gmra.mrb[0].mxu0 %v269
  %v415 = vpop.f32.mrb[0].mxu0
  %v416 = vadd.f32 %v88, %v415
  %v417 = vpop.f32.mrb[0].mxu0
  %v418 = vpop.f32.mrb[0].mxu0
  %v419 = vadd.f32 %v88, %v418
  %v420 = vpop.f32.mrb[0].mxu0
  %421 = vmatprep.mubr.bf16.mxu0 0
  %422 = vmatmul.mubr.bf16.gmra.mrb[0].mxu0 %v272
  %v423 = vpop.f32.mrb[0].mxu0
  %v424 = vadd.f32 %v88, %v423
  %v425 = vpop.f32.mrb[0].mxu0
  %v426 = vpop.f32.mrb[0].mxu0
  %v427 = vadd.f32 %v88, %v426
  %v428 = vpop.f32.mrb[0].mxu0
  %429 = vmatprep.mubr.bf16.mxu0 0
  %430 = vmatmul.mubr.bf16.gmra.mrb[0].mxu0 %v275
  %v431 = vpop.f32.mrb[0].mxu0
  %v432 = vadd.f32 %v88, %v431
  %v433 = vpop.f32.mrb[0].mxu0
  %v434 = vpop.f32.mrb[0].mxu0
  %v435 = vadd.f32 %v88, %v434
  %v436 = vpop.f32.mrb[0].mxu0
  %437 = vmatprep.mubr.bf16.mxu0 0
  %438 = vmatmul.mubr.bf16.gmra.mrb[0].mxu0 %v278
  %v439 = vpop.f32.mrb[0].mxu0
  %v440 = vadd.f32 %v88, %v439
  %v441 = vpop.f32.mrb[0].mxu0
  %v442 = vpop.f32.mrb[0].mxu0
  %v443 = vadd.f32 %v88, %v442
  %v444 = vpop.f32.mrb[0].mxu0
  %445 = vmatprep.mubr.bf16.mxu0 0
  %446 = vmatmul.mubr.bf16.gmra.mrb[0].mxu0 %v281
  %v447 = vpop.f32.mrb[0].mxu0
  %v448 = vadd.f32 %v88, %v447
  %v449 = vpop.f32.mrb[0].mxu0
  %v450 = vpop.f32.mrb[0].mxu0
  %v451 = vadd.f32 %v88, %v450
  %v452 = vpop.f32.mrb[0].mxu0
  %453 = vmatprep.mubr.bf16.mxu0 0
  %454 = vmatmul.mubr.bf16.gmra.mrb[0].mxu0 %v284
  %v455 = vpop.f32.mrb[0].mxu0
  %v456 = vadd.f32 %v88, %v455
  %v457 = vpop.f32.mrb[0].mxu0
  %v458 = vpop.f32.mrb[0].mxu0
  %v459 = vadd.f32 %v88, %v458
  %v460 = vpop.f32.mrb[0].mxu0
  %461 = vmatprep.mubr.bf16.mxu0 0
  %462 = vmatmul.mubr.bf16.gmra.mrb[0].mxu0 %v287
  %v463 = vpop.f32.mrb[0].mxu0
  %v464 = vadd.f32 %v88, %v463
  %v465 = vpop.f32.mrb[0].mxu0
  %v466 = vpop.f32.mrb[0].mxu0
  %v467 = vadd.f32 %v88, %v466
  %v468 = vpop.f32.mrb[0].mxu0
  %469 = vmatprep.mubr.bf16.mxu0 0
  %470 = vmatmul.mubr.bf16.gmra.mrb[0].mxu0 %v290
  %v471 = vpop.f32.mrb[0].mxu0
  %v472 = vadd.f32 %v88, %v471
  %v473 = vpop.f32.mrb[0].mxu0
  %v474 = vpop.f32.mrb[0].mxu0
  %v475 = vadd.f32 %v88, %v474
  %v476 = vpop.f32.mrb[0].mxu0
  %477 = vmatprep.mubr.bf16.mxu0 0
  %478 = vmatmul.mubr.bf16.gmra.mrb[0].mxu0 %v293
  %v479 = vpop.f32.mrb[0].mxu0
  %v480 = vadd.f32 %v88, %v479
  %v481 = vpop.f32.mrb[0].mxu0
  %v482 = vpop.f32.mrb[0].mxu0
  %v483 = vadd.f32 %v88, %v482
  %v484 = vpop.f32.mrb[0].mxu0
  %485 = vmatprep.mubr.bf16.mxu0 0
  %486 = vmatmul.mubr.bf16.gmra.mrb[0].mxu0 %v296
  %v487 = vpop.f32.mrb[0].mxu0
  %v488 = vadd.f32 %v88, %v487
  %v489 = vpop.f32.mrb[0].mxu0
  %v490 = vpop.f32.mrb[0].mxu0
  %v491 = vadd.f32 %v88, %v490
  %v492 = vpop.f32.mrb[0].mxu0
  %493 = vmatprep.mubr.bf16.mxu0 0
  %494 = vmatmul.mubr.bf16.gmra.mrb[0].mxu0 %v299
  %v495 = vpop.f32.mrb[0].mxu0
  %v496 = vadd.f32 %v88, %v495
  %v497 = vpop.f32.mrb[0].mxu0
  %v498 = vpop.f32.mrb[0].mxu0
  %v499 = vadd.f32 %v88, %v498
  %v500 = vpop.f32.mrb[0].mxu0
  %501 = vmatprep.mubr.bf16.mxu0 0
  %502 = vmatmul.mubr.bf16.gmra.mrb[0].mxu0 %v302
  %v503 = vpop.f32.mrb[0].mxu0
  %v504 = vadd.f32 %v88, %v503
  %v505 = vpop.f32.mrb[0].mxu0
  %v506 = vpop.f32.mrb[0].mxu0
  %v507 = vadd.f32 %v88, %v506
  %v508 = vpop.f32.mrb[0].mxu0
  %509 = vmatprep.mubr.bf16.mxu0 0
  %510 = vmatmul.mubr.bf16.gmra.mrb[0].mxu0 %v305
  %v511 = vpop.f32.mrb[0].mxu0
  %v512 = vadd.f32 %v88, %v511
  %v513 = vpop.f32.mrb[0].mxu0
  %v514 = vpop.f32.mrb[0].mxu0
  %v515 = vadd.f32 %v88, %v514
  %v516 = vpop.f32.mrb[0].mxu0
  %517 = vmatprep.mubr.bf16.mxu0 0
  %518 = vmatmul.mubr.bf16.gmra.mrb[0].mxu0 %v308
  %v519 = vpop.f32.mrb[0].mxu0
  %v520 = vadd.f32 %v88, %v519
  %v521 = vpop.f32.mrb[0].mxu0
  %v522 = vpop.f32.mrb[0].mxu0
  %v523 = vadd.f32 %v88, %v522
  %v524 = vpop.f32.mrb[0].mxu0
  %525 = vmatprep.mubr.bf16.mxu0 0
  %526 = vmatmul.mubr.bf16.gmra.mrb[0].mxu0 %v311
  %v527 = vpop.f32.mrb[0].mxu0
  %v528 = vadd.f32 %v88, %v527
  %v529 = vpop.f32.mrb[0].mxu0
  %v530 = vpop.f32.mrb[0].mxu0
  %v531 = vadd.f32 %v88, %v530
  %v532 = vpop.f32.mrb[0].mxu0
  %533 = vmatprep.mubr.bf16.mxu0 0
  %534 = vmatmul.mubr.bf16.gmra.mrb[0].mxu0 %v314
  %v535 = vpop.f32.mrb[0].mxu0
  %v536 = vadd.f32 %v88, %v535
  %v537 = vpop.f32.mrb[0].mxu0
  %v538 = vpop.f32.mrb[0].mxu0
  %v539 = vadd.f32 %v88, %v538
  %v540 = vpop.f32.mrb[0].mxu0
  %541 = vmatprep.mubr.bf16.mxu0 0
  %542 = vmatmul.mubr.bf16.gmra.mrb[0].mxu0 %v317
  %v543 = vpop.f32.mrb[0].mxu0
  %v544 = vadd.f32 %v88, %v543
  %v545 = vpop.f32.mrb[0].mxu0
  %v546 = vpop.f32.mrb[0].mxu0
  %v547 = vadd.f32 %v88, %v546
  %v548 = vpop.f32.mrb[0].mxu0
  %549 = vmatprep.mubr.bf16.mxu0 0
  %550 = vmatmul.mubr.bf16.gmra.mrb[0].mxu0 %v320
  %v551 = vpop.f32.mrb[0].mxu0
  %v552 = vadd.f32 %v88, %v551
  %v553 = vpop.f32.mrb[0].mxu0
  %v554 = vpop.f32.mrb[0].mxu0
  %v555 = vadd.f32 %v88, %v554
  %v556 = vpop.f32.mrb[0].mxu0
  %557 = vmatprep.mubr.bf16.mxu0 0
  %558 = vmatmul.mubr.bf16.gmra.mrb[0].mxu0 %v323
  %v559 = vpop.f32.mrb[0].mxu0
  %v560 = vadd.f32 %v88, %v559
  %v561 = vpop.f32.mrb[0].mxu0
  %v562 = vpop.f32.mrb[0].mxu0
  %v563 = vadd.f32 %v88, %v562
  %v564 = vpop.f32.mrb[0].mxu0
  %565 = vmatprep.mubr.bf16.mxu0 0
  %566 = vmatmul.mubr.bf16.gmra.mrb[0].mxu0 %v326
  %v567 = vpop.f32.mrb[0].mxu0
  %v568 = vadd.f32 %v88, %v567
  %v569 = vpop.f32.mrb[0].mxu0
  %v570 = vpop.f32.mrb[0].mxu0
  %v571 = vadd.f32 %v88, %v570
  %v572 = vpop.f32.mrb[0].mxu0
  %573 = vmatprep.mubr.bf16.mxu0 0
  %574 = vmatmul.mubr.bf16.gmra.mrb[0].mxu0 %v329
  %v575 = vpop.f32.mrb[0].mxu0
  %v576 = vadd.f32 %v88, %v575
  %v577 = vpop.f32.mrb[0].mxu0
  %v578 = vpop.f32.mrb[0].mxu0
  %v579 = vadd.f32 %v88, %v578
  %v580 = vpop.f32.mrb[0].mxu0
  %581 = vmatprep.mubr.bf16.mxu0 0
  %582 = vmatmul.mubr.bf16.gmra.mrb[0].mxu0 %v332
  %v583 = vpop.f32.mrb[0].mxu0
  %v584 = vadd.f32 %v88, %v583
  %v585 = vpop.f32.mrb[0].mxu0
  %v586 = vpop.f32.mrb[0].mxu0
  %v587 = vadd.f32 %v88, %v586
  %v588 = vpop.f32.mrb[0].mxu0
  %589 = vmatprep.mubr.bf16.mxu0 0
  %590 = vmatmul.mubr.bf16.gmra.mrb[0].mxu0 %v335
  %v591 = vpop.f32.mrb[0].mxu0
  %v592 = vadd.f32 %v88, %v591
  %v593 = vpop.f32.mrb[0].mxu0
  %v594 = vpop.f32.mrb[0].mxu0
  %v595 = vadd.f32 %v88, %v594
  %v596 = vpop.f32.mrb[0].mxu0
  %597 = vmatprep.mubr.bf16.mxu0 0
  %598 = vmatmul.mubr.bf16.gmra.mrb[0].mxu0 %v338
  %v599 = vpop.f32.mrb[0].mxu0
  %v600 = vadd.f32 %v88, %v599
  %v601 = vpop.f32.mrb[0].mxu0
  %v602 = vpop.f32.mrb[0].mxu0
  %v603 = vadd.f32 %v88, %v602
  %v604 = vpop.f32.mrb[0].mxu0
  %605 = vmatprep.mubr.bf16.mxu0 0
  %606 = vmatmul.mubr.bf16.gmra.mrb[0].mxu0 %v341
  %v607 = vpop.f32.mrb[0].mxu0
  %v608 = vadd.f32 %v88, %v607
  %v609 = vpop.f32.mrb[0].mxu0
  %v610 = vpop.f32.mrb[0].mxu0
  %v611 = vadd.f32 %v88, %v610
  %v612 = vpop.f32.mrb[0].mxu0
  %613 = vmatprep.mubr.bf16.mxu0 0
  %614 = vmatmul.mubr.bf16.gmra.mrb[0].mxu0 %v344
  %v615 = vpop.f32.mrb[0].mxu0
  %v616 = vadd.f32 %v88, %v615
  %v617 = vpop.f32.mrb[0].mxu0
  %v618 = vpop.f32.mrb[0].mxu0
  %v619 = vadd.f32 %v88, %v618
  %v620 = vpop.f32.mrb[0].mxu0
  %621 = vmatprep.mubr.bf16.mxu0 0
  %622 = vmatmul.mubr.bf16.gmra.mrb[0].mxu0 %v347
  %v623 = vpop.f32.mrb[0].mxu0
  %v624 = vadd.f32 %v88, %v623
  %v625 = vpop.f32.mrb[0].mxu0
  %v626 = vpop.f32.mrb[0].mxu0
  %v627 = vadd.f32 %v88, %v626
  %v628 = vpop.f32.mrb[0].mxu0
  %629 = vmatprep.mubr.bf16.mxu0 0
  %630 = vmatmul.mubr.bf16.gmra.mrb[0].mxu0 %v350
  %v631 = vpop.f32.mrb[0].mxu0
  %v632 = vadd.f32 %v88, %v631
  %v633 = vpop.f32.mrb[0].mxu0
  %v634 = vpop.f32.mrb[0].mxu0
  %v635 = vadd.f32 %v88, %v634
  %v636 = vpop.f32.mrb[0].mxu0
  %637 = vmatprep.mubr.bf16.mxu0 0
  %638 = vmatmul.mubr.bf16.gmra.mrb[0].mxu0 %v353
  %v639 = vpop.f32.mrb[0].mxu0
  %v640 = vadd.f32 %v88, %v639
  %v641 = vpop.f32.mrb[0].mxu0
  %v642 = vpop.f32.mrb[0].mxu0
  %v643 = vadd.f32 %v88, %v642
  %v644 = vpop.f32.mrb[0].mxu0
  %645 = vmatprep.mubr.bf16.mxu0 0
  %646 = vmatmul.mubr.bf16.gmra.mrb[0].mxu0 %v356
  %v647 = vpop.f32.mrb[0].mxu0
  %v648 = vadd.f32 %v88, %v647
  %v649 = vpop.f32.mrb[0].mxu0
  %v650 = vpop.f32.mrb[0].mxu0
  %v651 = vadd.f32 %v88, %v650
  %v652 = vpop.f32.mrb[0].mxu0
  %653 = vdwg.mxu0
  %v654 = vmax.f32 %v400, 0.0
  %v655 = vmax.f32 %v403, 0.0
  %v656 = vmax.f32 %v408, 0.0
  %v657 = vmax.f32 %v411, 0.0
  %v658 = vmax.f32 %v416, 0.0
  %v659 = vmax.f32 %v419, 0.0
  %v660 = vmax.f32 %v424, 0.0
  %v661 = vmax.f32 %v427, 0.0
  %v662 = vmax.f32 %v432, 0.0
  %v663 = vmax.f32 %v435, 0.0
  %v664 = vmax.f32 %v440, 0.0
  %v665 = vmax.f32 %v443, 0.0
  %v666 = vmax.f32 %v448, 0.0
  %v667 = vmax.f32 %v451, 0.0
  %v668 = vmax.f32 %v456, 0.0
  %v669 = vmax.f32 %v459, 0.0
  %v670 = vmax.f32 %v464, 0.0
  %v671 = vmax.f32 %v467, 0.0
  %v672 = vmax.f32 %v472, 0.0
  %v673 = vmax.f32 %v475, 0.0
  %v674 = vmax.f32 %v480, 0.0
  %v675 = vmax.f32 %v483, 0.0
  %v676 = vmax.f32 %v488, 0.0
  %v677 = vmax.f32 %v491, 0.0
  %v678 = vmax.f32 %v496, 0.0
  %v679 = vmax.f32 %v499, 0.0
  %v680 = vmax.f32 %v504, 0.0
  %v681 = vmax.f32 %v507, 0.0
  %v682 = vmax.f32 %v512, 0.0
  %v683 = vmax.f32 %v515, 0.0
  %v684 = vmax.f32 %v520, 0.0
  %v685 = vmax.f32 %v523, 0.0
  %v686 = vmax.f32 %v528, 0.0
  %v687 = vmax.f32 %v531, 0.0
  %v688 = vmax.f32 %v536, 0.0
  %v689 = vmax.f32 %v539, 0.0
  %v690 = vmax.f32 %v544, 0.0
  %v691 = vmax.f32 %v547, 0.0
  %v692 = vmax.f32 %v552, 0.0
  %v693 = vmax.f32 %v555, 0.0
  %v694 = vmax.f32 %v560, 0.0
  %v695 = vmax.f32 %v563, 0.0
  %v696 = vmax.f32 %v568, 0.0
  %v697 = vmax.f32 %v571, 0.0
  %v698 = vmax.f32 %v576, 0.0
  %v699 = vmax.f32 %v579, 0.0
  %v700 = vmax.f32 %v584, 0.0
  %v701 = vmax.f32 %v587, 0.0
  %v702 = vmax.f32 %v592, 0.0
  %v703 = vmax.f32 %v595, 0.0
  %v704 = vmax.f32 %v600, 0.0
  %v705 = vmax.f32 %v603, 0.0
  %v706 = vmax.f32 %v608, 0.0
  %v707 = vmax.f32 %v611, 0.0
  %v708 = vmax.f32 %v616, 0.0
  %v709 = vmax.f32 %v619, 0.0
  %v710 = vmax.f32 %v624, 0.0
  %v711 = vmax.f32 %v627, 0.0
  %v712 = vmax.f32 %v632, 0.0
  %v713 = vmax.f32 %v635, 0.0
  %v714 = vmax.f32 %v640, 0.0
  %v715 = vmax.f32 %v643, 0.0
  %v716 = vmax.f32 %v648, 0.0
  %v717 = vmax.f32 %v651, 0.0
  %vm718 = vcmask 261120
  %719 = vst.msk [vmem:[%s3] sm:$0xff] %vm718, %v654
  %720 = vst.msk [vmem:[%s3 + $0x8] sm:$0xff] %vm718, %v655
  %721 = vst.msk [vmem:[%s3 + $0x10] sm:$0xff] %vm718, %v656
  %722 = vst.msk [vmem:[%s3 + $0x18] sm:$0xff] %vm718, %v657
  %723 = vst.msk [vmem:[%s3 + $0x20] sm:$0xff] %vm718, %v658
  %724 = vst.msk [vmem:[%s3 + $0x28] sm:$0xff] %vm718, %v659
  %725 = vst.msk [vmem:[%s3 + $0x30] sm:$0xff] %vm718, %v660
  %726 = vst.msk [vmem:[%s3 + $0x38] sm:$0xff] %vm718, %v661
  %727 = vst.msk [vmem:[%s3 + $0x40] sm:$0xff] %vm718, %v662
  %728 = vst.msk [vmem:[%s3 + $0x48] sm:$0xff] %vm718, %v663
  %729 = vst.msk [vmem:[%s3 + $0x50] sm:$0xff] %vm718, %v664
  %730 = vst.msk [vmem:[%s3 + $0x58] sm:$0xff] %vm718, %v665
  %731 = vst.msk [vmem:[%s3 + $0x60] sm:$0xff] %vm718, %v666
  %732 = vst.msk [vmem:[%s3 + $0x68] sm:$0xff] %vm718, %v667
  %733 = vst.msk [vmem:[%s3 + $0x70] sm:$0xff] %vm718, %v668
  %734 = vst.msk [vmem:[%s3 + $0x78] sm:$0xff] %vm718, %v669
  %735 = vst.msk [vmem:[%s3 + $0x80] sm:$0xff] %vm718, %v670
  %736 = vst.msk [vmem:[%s3 + $0x88] sm:$0xff] %vm718, %v671
  %737 = vst.msk [vmem:[%s3 + $0x90] sm:$0xff] %vm718, %v672
  %738 = vst.msk [vmem:[%s3 + $0x98] sm:$0xff] %vm718, %v673
  %739 = vst.msk [vmem:[%s3 + $0xa0] sm:$0xff] %vm718, %v674
  %740 = vst.msk [vmem:[%s3 + $0xa8] sm:$0xff] %vm718, %v675
  %741 = vst.msk [vmem:[%s3 + $0xb0] sm:$0xff] %vm718, %v676
  %742 = vst.msk [vmem:[%s3 + $0xb8] sm:$0xff] %vm718, %v677
  %743 = vst.msk [vmem:[%s3 + $0xc0] sm:$0xff] %vm718, %v678
  %744 = vst.msk [vmem:[%s3 + $0xc8] sm:$0xff] %vm718, %v679
  %745 = vst.msk [vmem:[%s3 + $0xd0] sm:$0xff] %vm718, %v680
  %746 = vst.msk [vmem:[%s3 + $0xd8] sm:$0xff] %vm718, %v681
  %747 = vst.msk [vmem:[%s3 + $0xe0] sm:$0xff] %vm718, %v682
  %748 = vst.msk [vmem:[%s3 + $0xe8] sm:$0xff] %vm718, %v683
  %749 = vst.msk [vmem:[%s3 + $0xf0] sm:$0xff] %vm718, %v684
  %750 = vst.msk [vmem:[%s3 + $0xf8] sm:$0xff] %vm718, %v685
  %751 = vst.msk [vmem:[%s3 + $0x100] sm:$0xff] %vm718, %v686
  %752 = vst.msk [vmem:[%s3 + $0x108] sm:$0xff] %vm718, %v687
  %753 = vst.msk [vmem:[%s3 + $0x110] sm:$0xff] %vm718, %v688
  %754 = vst.msk [vmem:[%s3 + $0x118] sm:$0xff] %vm718, %v689
  %755 = vst.msk [vmem:[%s3 + $0x120] sm:$0xff] %vm718, %v690
  %756 = vst.msk [vmem:[%s3 + $0x128] sm:$0xff] %vm718, %v691
  %757 = vst.msk [vmem:[%s3 + $0x130] sm:$0xff] %vm718, %v692
  %758 = vst.msk [vmem:[%s3 + $0x138] sm:$0xff] %vm718, %v693
  %759 = vst.msk [vmem:[%s3 + $0x140] sm:$0xff] %vm718, %v694
  %760 = vst.msk [vmem:[%s3 + $0x148] sm:$0xff] %vm718, %v695
  %761 = vst.msk [vmem:[%s3 + $0x150] sm:$0xff] %vm718, %v696
  %762 = vst.msk [vmem:[%s3 + $0x158] sm:$0xff] %vm718, %v697
  %763 = vst.msk [vmem:[%s3 + $0x160] sm:$0xff] %vm718, %v698
  %764 = vst.msk [vmem:[%s3 + $0x168] sm:$0xff] %vm718, %v699
  %765 = vst.msk [vmem:[%s3 + $0x170] sm:$0xff] %vm718, %v700
  %766 = vst.msk [vmem:[%s3 + $0x178] sm:$0xff] %vm718, %v701
  %767 = vst.msk [vmem:[%s3 + $0x180] sm:$0xff] %vm718, %v702
  %768 = vst.msk [vmem:[%s3 + $0x188] sm:$0xff] %vm718, %v703
  %769 = vst.msk [vmem:[%s3 + $0x190] sm:$0xff] %vm718, %v704
  %770 = vst.msk [vmem:[%s3 + $0x198] sm:$0xff] %vm718, %v705
  %771 = vst.msk [vmem:[%s3 + $0x1a0] sm:$0xff] %vm718, %v706
  %772 = vst.msk [vmem:[%s3 + $0x1a8] sm:$0xff] %vm718, %v707
  %773 = vst.msk [vmem:[%s3 + $0x1b0] sm:$0xff] %vm718, %v708
  %774 = vst.msk [vmem:[%s3 + $0x1b8] sm:$0xff] %vm718, %v709
  %775 = vst.msk [vmem:[%s3 + $0x1c0] sm:$0xff] %vm718, %v710
  %776 = vst.msk [vmem:[%s3 + $0x1c8] sm:$0xff] %vm718, %v711
  %777 = vst.msk [vmem:[%s3 + $0x1d0] sm:$0xff] %vm718, %v712
  %778 = vst.msk [vmem:[%s3 + $0x1d8] sm:$0xff] %vm718, %v713
  %779 = vst.msk [vmem:[%s3 + $0x1e0] sm:$0xff] %vm718, %v714
  %780 = vst.msk [vmem:[%s3 + $0x1e8] sm:$0xff] %vm718, %v715
  %781 = vst.msk [vmem:[%s3 + $0x1f0] sm:$0xff] %vm718, %v716
  %782 = vst.msk [vmem:[%s3 + $0x1f8] sm:$0xff] %vm718, %v717
  // Predicated region
  $region14: #{forward.15} parent=0 // pred_check
    _
  $region15: #{forward.15} parent=0 // pred_check_branch
    %784 = sbr.rel (0) target = $region17
  $region16: #{forward.15} parent=0 // pred_region
    _
  $region17: #{forward.15} parent=0 // pred_fallthru
    _
  // Predicated region
  $region18: #{forward.15} parent=0 // pred_check
    _
  $region19: #{forward.15} parent=0 // pred_check_branch
    %786 = sbr.rel (0) target = $region21
  $region20: #{forward.15} parent=0 // pred_region
    _
  $region21: #{forward.15} parent=0 // pred_fallthru
    _

// kernel: forward.16
$region0: #{forward.16}
  #allocation0 [shape = 'u32[]', space=smem, size = 0x4, offset = 0x4, fixed_abs, tag = 'smem constant byte address 0x4 - core index']
  #allocation1 [shape = 'u32[144,128]{1,0:T(1,128)}', space=vmem, size = 0x12000, scoped, tag = 'internal scratch']
  %s0 = inlined_call_operand.vmem [shape: f32[512,32], index: 0, kind: input, shape index: {}]
  %s1 = inlined_call_operand.vmem [shape: f32[512,32], index: 1, kind: input, shape index: {}]
  %s2 = inlined_call_operand.vmem [shape: f32[512,32], index: 2, kind: input, shape index: {}]
  %s3 = inlined_call_operand.vmem [shape: f32[512,32], index: 3, kind: input, shape index: {}]
  %s4 = inlined_call_operand.vmem [shape: f32[512,32], index: 4, kind: input, shape index: {}]
  %s5 = inlined_call_operand.vmem [shape: f32[512,32], index: 5, kind: input, shape index: {}]
  %s6 = inlined_call_operand.vmem [shape: f32[512,32], index: 6, kind: input, shape index: {}]
  %s7 = inlined_call_operand.vmem [shape: f32[512,32], index: 7, kind: input, shape index: {}]
  %s8 = inlined_call_operand.vmem [shape: f32[512,32], index: 8, kind: input, shape index: {}]
  %s9 = inlined_call_operand.vmem [shape: f32[9,1,32], index: 9, kind: input, shape index: {}]
  %s10 = inlined_call_operand.vmem [shape: f32[1,32], index: 10, kind: input, shape index: {}]
  %s11 = inlined_call_operand.vmem [shape: bf16[32,16], index: 11, kind: input, shape index: {}]
  %s12 = inlined_call_operand.vmem [shape: f32[1,16], index: 12, kind: input, shape index: {}]
  %s13 = inlined_call_operand.vmem [shape: f32[512,16], index: 13, kind: output, shape index: {}]
  %s14 = sld [smem:[#allocation0]]
  $region62: #{forward.16} parent=0
    _
  %s16 = ssub.s32 1, %s14
  %s17 = scalar_select 0, %s16, %s14
  // Predicated region
  $region2: #{forward.16} parent=0 // pred_check
    _
  $region3: #{forward.16} parent=0 // pred_check_branch
    %19 = sbr.rel (0) target = $region5
  $region4: #{forward.16} parent=0 // pred_region
    _
  $region5: #{forward.16} parent=0 // pred_fallthru
    _
  // Predicated region
  $region6: #{forward.16} parent=0 // pred_check
    _
  $region7: #{forward.16} parent=0 // pred_check_branch
    %21 = sbr.rel (0) target = $region9
  $region8: #{forward.16} parent=0 // pred_region
    _
  $region9: #{forward.16} parent=0 // pred_fallthru
    _
  // Predicated region
  $region10: #{forward.16} parent=0 // pred_check
    _
  $region11: #{forward.16} parent=0 // pred_check_branch
    %23 = sbr.rel (0) target = $region13
  $region12: #{forward.16} parent=0 // pred_region
    _
  $region13: #{forward.16} parent=0 // pred_fallthru
    _
  // Predicated region
  $region14: #{forward.16} parent=0 // pred_check
    _
  $region15: #{forward.16} parent=0 // pred_check_branch
    %25 = sbr.rel (0) target = $region17
  $region16: #{forward.16} parent=0 // pred_region
    _
  $region17: #{forward.16} parent=0 // pred_fallthru
    _
  // Predicated region
  $region18: #{forward.16} parent=0 // pred_check
    _
  $region19: #{forward.16} parent=0 // pred_check_branch
    %27 = sbr.rel (0) target = $region21
  $region20: #{forward.16} parent=0 // pred_region
    _
  $region21: #{forward.16} parent=0 // pred_fallthru
    _
  // Predicated region
  $region22: #{forward.16} parent=0 // pred_check
    _
  $region23: #{forward.16} parent=0 // pred_check_branch
    %29 = sbr.rel (0) target = $region25
  $region24: #{forward.16} parent=0 // pred_region
    _
  $region25: #{forward.16} parent=0 // pred_fallthru
    _
  // Predicated region
  $region26: #{forward.16} parent=0 // pred_check
    _
  $region27: #{forward.16} parent=0 // pred_check_branch
    %31 = sbr.rel (0) target = $region29
  $region28: #{forward.16} parent=0 // pred_region
    _
  $region29: #{forward.16} parent=0 // pred_fallthru
    _
  // Predicated region
  $region30: #{forward.16} parent=0 // pred_check
    _
  $region31: #{forward.16} parent=0 // pred_check_branch
    %33 = sbr.rel (0) target = $region33
  $region32: #{forward.16} parent=0 // pred_region
    _
  $region33: #{forward.16} parent=0 // pred_fallthru
    _
  // Predicated region
  $region34: #{forward.16} parent=0 // pred_check
    _
  $region35: #{forward.16} parent=0 // pred_check_branch
    %35 = sbr.rel (0) target = $region37
  $region36: #{forward.16} parent=0 // pred_region
    _
  $region37: #{forward.16} parent=0 // pred_fallthru
    _
  // Predicated region
  $region38: #{forward.16} parent=0 // pred_check
    _
  $region39: #{forward.16} parent=0 // pred_check_branch
    %37 = sbr.rel (0) target = $region41
  $region40: #{forward.16} parent=0 // pred_region
    _
  $region41: #{forward.16} parent=0 // pred_fallthru
    _
  // Predicated region
  $region42: #{forward.16} parent=0 // pred_check
    _
  $region43: #{forward.16} parent=0 // pred_check_branch
    %39 = sbr.rel (0) target = $region45
  $region44: #{forward.16} parent=0 // pred_region
    _
  $region45: #{forward.16} parent=0 // pred_fallthru
    _
  // Predicated region
  $region46: #{forward.16} parent=0 // pred_check
    _
  $region47: #{forward.16} parent=0 // pred_check_branch
    %41 = sbr.rel (0) target = $region49
  $region48: #{forward.16} parent=0 // pred_region
    _
  $region49: #{forward.16} parent=0 // pred_fallthru
    _
  // Predicated region
  $region50: #{forward.16} parent=0 // pred_check
    _
  $region51: #{forward.16} parent=0 // pred_check_branch
    %43 = sbr.rel (0) target = $region53
  $region52: #{forward.16} parent=0 // pred_region
    _
  $region53: #{forward.16} parent=0 // pred_fallthru
    _
  %v45 = vld [vmem:[%s0] sm:$0xff]
  %v46 = vld [vmem:[%s0 + $0x8] sm:$0xff]
  %v47 = vld [vmem:[%s0 + $0x10] sm:$0xff]
  %v48 = vld [vmem:[%s0 + $0x18] sm:$0xff]
  %v49 = vld [vmem:[%s0 + $0x20] sm:$0xff]
  %v50 = vld [vmem:[%s0 + $0x28] sm:$0xff]
  %v51 = vld [vmem:[%s0 + $0x30] sm:$0xff]
  %v52 = vld [vmem:[%s0 + $0x38] sm:$0xff]
  %v53 = vld [vmem:[%s0 + $0x40] sm:$0xff]
  %v54 = vld [vmem:[%s0 + $0x48] sm:$0xff]
  %v55 = vld [vmem:[%s0 + $0x50] sm:$0xff]
  %v56 = vld [vmem:[%s0 + $0x58] sm:$0xff]
  %v57 = vld [vmem:[%s0 + $0x60] sm:$0xff]
  %v58 = vld [vmem:[%s0 + $0x68] sm:$0xff]
  %v59 = vld [vmem:[%s0 + $0x70] sm:$0xff]
  %v60 = vld [vmem:[%s0 + $0x78] sm:$0xff]
  %v61 = vld [vmem:[%s0 + $0x80] sm:$0xff]
  %v62 = vld [vmem:[%s0 + $0x88] sm:$0xff]
  %v63 = vld [vmem:[%s0 + $0x90] sm:$0xff]
  %v64 = vld [vmem:[%s0 + $0x98] sm:$0xff]
  %v65 = vld [vmem:[%s0 + $0xa0] sm:$0xff]
  %v66 = vld [vmem:[%s0 + $0xa8] sm:$0xff]
  %v67 = vld [vmem:[%s0 + $0xb0] sm:$0xff]
  %v68 = vld [vmem:[%s0 + $0xb8] sm:$0xff]
  %v69 = vld [vmem:[%s0 + $0xc0] sm:$0xff]
  %v70 = vld [vmem:[%s0 + $0xc8] sm:$0xff]
  %v71 = vld [vmem:[%s0 + $0xd0] sm:$0xff]
  %v72 = vld [vmem:[%s0 + $0xd8] sm:$0xff]
  %v73 = vld [vmem:[%s0 + $0xe0] sm:$0xff]
  %v74 = vld [vmem:[%s0 + $0xe8] sm:$0xff]
  %v75 = vld [vmem:[%s0 + $0xf0] sm:$0xff]
  %v76 = vld [vmem:[%s0 + $0xf8] sm:$0xff]
  %v77 = vld [vmem:[%s0 + $0x100] sm:$0xff]
  %v78 = vld [vmem:[%s0 + $0x108] sm:$0xff]
  %v79 = vld [vmem:[%s0 + $0x110] sm:$0xff]
  %v80 = vld [vmem:[%s0 + $0x118] sm:$0xff]
  %v81 = vld [vmem:[%s0 + $0x120] sm:$0xff]
  %v82 = vld [vmem:[%s0 + $0x128] sm:$0xff]
  %v83 = vld [vmem:[%s0 + $0x130] sm:$0xff]
  %v84 = vld [vmem:[%s0 + $0x138] sm:$0xff]
  %v85 = vld [vmem:[%s0 + $0x140] sm:$0xff]
  %v86 = vld [vmem:[%s0 + $0x148] sm:$0xff]
  %v87 = vld [vmem:[%s0 + $0x150] sm:$0xff]
  %v88 = vld [vmem:[%s0 + $0x158] sm:$0xff]
  %v89 = vld [vmem:[%s0 + $0x160] sm:$0xff]
  %v90 = vld [vmem:[%s0 + $0x168] sm:$0xff]
  %v91 = vld [vmem:[%s0 + $0x170] sm:$0xff]
  %v92 = vld [vmem:[%s0 + $0x178] sm:$0xff]
  %v93 = vld [vmem:[%s0 + $0x180] sm:$0xff]
  %v94 = vld [vmem:[%s0 + $0x188] sm:$0xff]
  %v95 = vld [vmem:[%s0 + $0x190] sm:$0xff]
  %v96 = vld [vmem:[%s0 + $0x198] sm:$0xff]
  %v97 = vld [vmem:[%s0 + $0x1a0] sm:$0xff]
  %v98 = vld [vmem:[%s0 + $0x1a8] sm:$0xff]
  %v99 = vld [vmem:[%s0 + $0x1b0] sm:$0xff]
  %v100 = vld [vmem:[%s0 + $0x1b8] sm:$0xff]
  %v101 = vld [vmem:[%s0 + $0x1c0] sm:$0xff]
  %v102 = vld [vmem:[%s0 + $0x1c8] sm:$0xff]
  %v103 = vld [vmem:[%s0 + $0x1d0] sm:$0xff]
  %v104 = vld [vmem:[%s0 + $0x1d8] sm:$0xff]
  %v105 = vld [vmem:[%s0 + $0x1e0] sm:$0xff]
  %v106 = vld [vmem:[%s0 + $0x1e8] sm:$0xff]
  %v107 = vld [vmem:[%s0 + $0x1f0] sm:$0xff]
  %v108 = vld [vmem:[%s0 + $0x1f8] sm:$0xff]
  %v109 = vld [vmem:[%s9] sm:$0x1]
  %v111 = vlaneseq
  %v112 = vshrl.u32 %v111, 7
  %v113 = vsub.s32 0, %v112
  %v114 = vrot.slane %v109, %v113
  %v116 = vmul.f32 %v45, %v114
  %v117 = vmul.f32 %v46, %v114
  %v118 = vmul.f32 %v47, %v114
  %v119 = vmul.f32 %v48, %v114
  %v120 = vmul.f32 %v49, %v114
  %v121 = vmul.f32 %v50, %v114
  %v122 = vmul.f32 %v51, %v114
  %v123 = vmul.f32 %v52, %v114
  %v124 = vmul.f32 %v53, %v114
  %v125 = vmul.f32 %v54, %v114
  %v126 = vmul.f32 %v55, %v114
  %v127 = vmul.f32 %v56, %v114
  %v128 = vmul.f32 %v57, %v114
  %v129 = vmul.f32 %v58, %v114
  %v130 = vmul.f32 %v59, %v114
  %v131 = vmul.f32 %v60, %v114
  %v132 = vmul.f32 %v61, %v114
  %v133 = vmul.f32 %v62, %v114
  %v134 = vmul.f32 %v63, %v114
  %v135 = vmul.f32 %v64, %v114
  %v136 = vmul.f32 %v65, %v114
  %v137 = vmul.f32 %v66, %v114
  %v138 = vmul.f32 %v67, %v114
  %v139 = vmul.f32 %v68, %v114
  %v140 = vmul.f32 %v69, %v114
  %v141 = vmul.f32 %v70, %v114
  %v142 = vmul.f32 %v71, %v114
  %v143 = vmul.f32 %v72, %v114
  %v144 = vmul.f32 %v73, %v114
  %v145 = vmul.f32 %v74, %v114
  %v146 = vmul.f32 %v75, %v114
  %v147 = vmul.f32 %v76, %v114
  %v148 = vmul.f32 %v77, %v114
  %v149 = vmul.f32 %v78, %v114
  %v150 = vmul.f32 %v79, %v114
  %v151 = vmul.f32 %v80, %v114
  %v152 = vmul.f32 %v81, %v114
  %v153 = vmul.f32 %v82, %v114
  %v154 = vmul.f32 %v83, %v114
  %v155 = vmul.f32 %v84, %v114
  %v156 = vmul.f32 %v85, %v114
  %v157 = vmul.f32 %v86, %v114
  %v158 = vmul.f32 %v87, %v114
  %v159 = vmul.f32 %v88, %v114
  %v160 = vmul.f32 %v89, %v114
  %v161 = vmul.f32 %v90, %v114
  %v162 = vmul.f32 %v91, %v114
  %v163 = vmul.f32 %v92, %v114
  %v164 = vmul.f32 %v93, %v114
  %v165 = vmul.f32 %v94, %v114
  %v166 = vmul.f32 %v95, %v114
  %v167 = vmul.f32 %v96, %v114
  %v168 = vmul.f32 %v97, %v114
  %v169 = vmul.f32 %v98, %v114
  %v170 = vmul.f32 %v99, %v114
  %v171 = vmul.f32 %v100, %v114
  %v172 = vmul.f32 %v101, %v114
  %v173 = vmul.f32 %v102, %v114
  %v174 = vmul.f32 %v103, %v114
  %v175 = vmul.f32 %v104, %v114
  %v176 = vmul.f32 %v105, %v114
  %v177 = vmul.f32 %v106, %v114
  %v178 = vmul.f32 %v107, %v114
  %v179 = vmul.f32 %v108, %v114
  %v180 = vld [vmem:[%s1] sm:$0xff]
  %v181 = vld [vmem:[%s1 + $0x8] sm:$0xff]
  %v182 = vld [vmem:[%s1 + $0x10] sm:$0xff]
  %v183 = vld [vmem:[%s1 + $0x18] sm:$0xff]
  %v184 = vld [vmem:[%s1 + $0x20] sm:$0xff]
  %v185 = vld [vmem:[%s1 + $0x28] sm:$0xff]
  %v186 = vld [vmem:[%s1 + $0x30] sm:$0xff]
  %v187 = vld [vmem:[%s1 + $0x38] sm:$0xff]
  %v188 = vld [vmem:[%s1 + $0x40] sm:$0xff]
  %v189 = vld [vmem:[%s1 + $0x48] sm:$0xff]
  %v190 = vld [vmem:[%s1 + $0x50] sm:$0xff]
  %v191 = vld [vmem:[%s1 + $0x58] sm:$0xff]
  %v192 = vld [vmem:[%s1 + $0x60] sm:$0xff]
  %v193 = vld [vmem:[%s1 + $0x68] sm:$0xff]
  %v194 = vld [vmem:[%s1 + $0x70] sm:$0xff]
  %v195 = vld [vmem:[%s1 + $0x78] sm:$0xff]
  %v196 = vld [vmem:[%s1 + $0x80] sm:$0xff]
  %v197 = vld [vmem:[%s1 + $0x88] sm:$0xff]
  %v198 = vld [vmem:[%s1 + $0x90] sm:$0xff]
  %v199 = vld [vmem:[%s1 + $0x98] sm:$0xff]
  %v200 = vld [vmem:[%s1 + $0xa0] sm:$0xff]
  %v201 = vld [vmem:[%s1 + $0xa8] sm:$0xff]
  %v202 = vld [vmem:[%s1 + $0xb0] sm:$0xff]
  %v203 = vld [vmem:[%s1 + $0xb8] sm:$0xff]
  %v204 = vld [vmem:[%s1 + $0xc0] sm:$0xff]
  %v205 = vld [vmem:[%s1 + $0xc8] sm:$0xff]
  %v206 = vld [vmem:[%s1 + $0xd0] sm:$0xff]
  %v207 = vld [vmem:[%s1 + $0xd8] sm:$0xff]
  %v208 = vld [vmem:[%s1 + $0xe0] sm:$0xff]
  %v209 = vld [vmem:[%s1 + $0xe8] sm:$0xff]
  %v210 = vld [vmem:[%s1 + $0xf0] sm:$0xff]
  %v211 = vld [vmem:[%s1 + $0xf8] sm:$0xff]
  %v212 = vld [vmem:[%s1 + $0x100] sm:$0xff]
  %v213 = vld [vmem:[%s1 + $0x108] sm:$0xff]
  %v214 = vld [vmem:[%s1 + $0x110] sm:$0xff]
  %v215 = vld [vmem:[%s1 + $0x118] sm:$0xff]
  %v216 = vld [vmem:[%s1 + $0x120] sm:$0xff]
  %v217 = vld [vmem:[%s1 + $0x128] sm:$0xff]
  %v218 = vld [vmem:[%s1 + $0x130] sm:$0xff]
  %v219 = vld [vmem:[%s1 + $0x138] sm:$0xff]
  %v220 = vld [vmem:[%s1 + $0x140] sm:$0xff]
  %v221 = vld [vmem:[%s1 + $0x148] sm:$0xff]
  %v222 = vld [vmem:[%s1 + $0x150] sm:$0xff]
  %v223 = vld [vmem:[%s1 + $0x158] sm:$0xff]
  %v224 = vld [vmem:[%s1 + $0x160] sm:$0xff]
  %v225 = vld [vmem:[%s1 + $0x168] sm:$0xff]
  %v226 = vld [vmem:[%s1 + $0x170] sm:$0xff]
  %v227 = vld [vmem:[%s1 + $0x178] sm:$0xff]
  %v228 = vld [vmem:[%s1 + $0x180] sm:$0xff]
  %v229 = vld [vmem:[%s1 + $0x188] sm:$0xff]
  %v230 = vld [vmem:[%s1 + $0x190] sm:$0xff]
  %v231 = vld [vmem:[%s1 + $0x198] sm:$0xff]
  %v232 = vld [vmem:[%s1 + $0x1a0] sm:$0xff]
  %v233 = vld [vmem:[%s1 + $0x1a8] sm:$0xff]
  %v234 = vld [vmem:[%s1 + $0x1b0] sm:$0xff]
  %v235 = vld [vmem:[%s1 + $0x1b8] sm:$0xff]
  %v236 = vld [vmem:[%s1 + $0x1c0] sm:$0xff]
  %v237 = vld [vmem:[%s1 + $0x1c8] sm:$0xff]
  %v238 = vld [vmem:[%s1 + $0x1d0] sm:$0xff]
  %v239 = vld [vmem:[%s1 + $0x1d8] sm:$0xff]
  %v240 = vld [vmem:[%s1 + $0x1e0] sm:$0xff]
  %v241 = vld [vmem:[%s1 + $0x1e8] sm:$0xff]
  %v242 = vld [vmem:[%s1 + $0x1f0] sm:$0xff]
  %v243 = vld [vmem:[%s1 + $0x1f8] sm:$0xff]
  %s244 = scalar_lea.vmem %s9, 1
  %v245 = vld [vmem:[%s244] sm:$0x1]
  %v247 = vlaneseq
  %v248 = vshrl.u32 %v247, 7
  %v249 = vsub.s32 0, %v248
  %v250 = vrot.slane %v245, %v249
  %v252 = vmul.f32 %v180, %v250
  %v253 = vmul.f32 %v181, %v250
  %v254 = vmul.f32 %v182, %v250
  %v255 = vmul.f32 %v183, %v250
  %v256 = vmul.f32 %v184, %v250
  %v257 = vmul.f32 %v185, %v250
  %v258 = vmul.f32 %v186, %v250
  %v259 = vmul.f32 %v187, %v250
  %v260 = vmul.f32 %v188, %v250
  %v261 = vmul.f32 %v189, %v250
  %v262 = vmul.f32 %v190, %v250
  %v263 = vmul.f32 %v191, %v250
  %v264 = vmul.f32 %v192, %v250
  %v265 = vmul.f32 %v193, %v250
  %v266 = vmul.f32 %v194, %v250
  %v267 = vmul.f32 %v195, %v250
  %v268 = vmul.f32 %v196, %v250
  %v269 = vmul.f32 %v197, %v250
  %v270 = vmul.f32 %v198, %v250
  %v271 = vmul.f32 %v199, %v250
  %v272 = vmul.f32 %v200, %v250
  %v273 = vmul.f32 %v201, %v250
  %v274 = vmul.f32 %v202, %v250
  %v275 = vmul.f32 %v203, %v250
  %v276 = vmul.f32 %v204, %v250
  %v277 = vmul.f32 %v205, %v250
  %v278 = vmul.f32 %v206, %v250
  %v279 = vmul.f32 %v207, %v250
  %v280 = vmul.f32 %v208, %v250
  %v281 = vmul.f32 %v209, %v250
  %v282 = vmul.f32 %v210, %v250
  %v283 = vmul.f32 %v211, %v250
  %v284 = vmul.f32 %v212, %v250
  %v285 = vmul.f32 %v213, %v250
  %v286 = vmul.f32 %v214, %v250
  %v287 = vmul.f32 %v215, %v250
  %v288 = vmul.f32 %v216, %v250
  %v289 = vmul.f32 %v217, %v250
  %v290 = vmul.f32 %v218, %v250
  %v291 = vmul.f32 %v219, %v250
  %v292 = vmul.f32 %v220, %v250
  %v293 = vmul.f32 %v221, %v250
  %v294 = vmul.f32 %v222, %v250
  %v295 = vmul.f32 %v223, %v250
  %v296 = vmul.f32 %v224, %v250
  %v297 = vmul.f32 %v225, %v250
  %v298 = vmul.f32 %v226, %v250
  %v299 = vmul.f32 %v227, %v250
  %v300 = vmul.f32 %v228, %v250
  %v301 = vmul.f32 %v229, %v250
  %v302 = vmul.f32 %v230, %v250
  %v303 = vmul.f32 %v231, %v250
  %v304 = vmul.f32 %v232, %v250
  %v305 = vmul.f32 %v233, %v250
  %v306 = vmul.f32 %v234, %v250
  %v307 = vmul.f32 %v235, %v250
  %v308 = vmul.f32 %v236, %v250
  %v309 = vmul.f32 %v237, %v250
  %v310 = vmul.f32 %v238, %v250
  %v311 = vmul.f32 %v239, %v250
  %v312 = vmul.f32 %v240, %v250
  %v313 = vmul.f32 %v241, %v250
  %v314 = vmul.f32 %v242, %v250
  %v315 = vmul.f32 %v243, %v250
  %v316 = vadd.f32 %v116, %v252
  %v317 = vadd.f32 %v117, %v253
  %v318 = vadd.f32 %v118, %v254
  %v319 = vadd.f32 %v119, %v255
  %v320 = vadd.f32 %v120, %v256
  %v321 = vadd.f32 %v121, %v257
  %v322 = vadd.f32 %v122, %v258
  %v323 = vadd.f32 %v123, %v259
  %v324 = vadd.f32 %v124, %v260
  %v325 = vadd.f32 %v125, %v261
  %v326 = vadd.f32 %v126, %v262
  %v327 = vadd.f32 %v127, %v263
  %v328 = vadd.f32 %v128, %v264
  %v329 = vadd.f32 %v129, %v265
  %v330 = vadd.f32 %v130, %v266
  %v331 = vadd.f32 %v131, %v267
  %v332 = vadd.f32 %v132, %v268
  %v333 = vadd.f32 %v133, %v269
  %v334 = vadd.f32 %v134, %v270
  %v335 = vadd.f32 %v135, %v271
  %v336 = vadd.f32 %v136, %v272
  %v337 = vadd.f32 %v137, %v273
  %v338 = vadd.f32 %v138, %v274
  %v339 = vadd.f32 %v139, %v275
  %v340 = vadd.f32 %v140, %v276
  %v341 = vadd.f32 %v141, %v277
  %v342 = vadd.f32 %v142, %v278
  %v343 = vadd.f32 %v143, %v279
  %v344 = vadd.f32 %v144, %v280
  %v345 = vadd.f32 %v145, %v281
  %v346 = vadd.f32 %v146, %v282
  %v347 = vadd.f32 %v147, %v283
  %v348 = vadd.f32 %v148, %v284
  %v349 = vadd.f32 %v149, %v285
  %v350 = vadd.f32 %v150, %v286
  %v351 = vadd.f32 %v151, %v287
  %v352 = vadd.f32 %v152, %v288
  %v353 = vadd.f32 %v153, %v289
  %v354 = vadd.f32 %v154, %v290
  %v355 = vadd.f32 %v155, %v291
  %v356 = vadd.f32 %v156, %v292
  %v357 = vadd.f32 %v157, %v293
  %v358 = vadd.f32 %v158, %v294
  %v359 = vadd.f32 %v159, %v295
  %v360 = vadd.f32 %v160, %v296
  %v361 = vadd.f32 %v161, %v297
  %v362 = vadd.f32 %v162, %v298
  %v363 = vadd.f32 %v163, %v299
  %v364 = vadd.f32 %v164, %v300
  %v365 = vadd.f32 %v165, %v301
  %v366 = vadd.f32 %v166, %v302
  %v367 = vadd.f32 %v167, %v303
  %v368 = vadd.f32 %v168, %v304
  %v369 = vadd.f32 %v169, %v305
  %v370 = vadd.f32 %v170, %v306
  %v371 = vadd.f32 %v171, %v307
  %v372 = vadd.f32 %v172, %v308
  %v373 = vadd.f32 %v173, %v309
  %v374 = vadd.f32 %v174, %v310
  %v375 = vadd.f32 %v175, %v311
  %v376 = vadd.f32 %v176, %v312
  %v377 = vadd.f32 %v177, %v313
  %v378 = vadd.f32 %v178, %v314
  %v379 = vadd.f32 %v179, %v315
  %v380 = vld [vmem:[%s2] sm:$0xff]
  %v381 = vld [vmem:[%s2 + $0x8] sm:$0xff]
  %v382 = vld [vmem:[%s2 + $0x10] sm:$0xff]
  %v383 = vld [vmem:[%s2 + $0x18] sm:$0xff]
  %v384 = vld [vmem:[%s2 + $0x20] sm:$0xff]
  %v385 = vld [vmem:[%s2 + $0x28] sm:$0xff]
  %v386 = vld [vmem:[%s2 + $0x30] sm:$0xff]
  %v387 = vld [vmem:[%s2 + $0x38] sm:$0xff]
  %v388 = vld [vmem:[%s2 + $0x40] sm:$0xff]
  %v389 = vld [vmem:[%s2 + $0x48] sm:$0xff]
  %v390 = vld [vmem:[%s2 + $0x50] sm:$0xff]
  %v391 = vld [vmem:[%s2 + $0x58] sm:$0xff]
  %v392 = vld [vmem:[%s2 + $0x60] sm:$0xff]
  %v393 = vld [vmem:[%s2 + $0x68] sm:$0xff]
  %v394 = vld [vmem:[%s2 + $0x70] sm:$0xff]
  %v395 = vld [vmem:[%s2 + $0x78] sm:$0xff]
  %v396 = vld [vmem:[%s2 + $0x80] sm:$0xff]
  %v397 = vld [vmem:[%s2 + $0x88] sm:$0xff]
  %v398 = vld [vmem:[%s2 + $0x90] sm:$0xff]
  %v399 = vld [vmem:[%s2 + $0x98] sm:$0xff]
  %v400 = vld [vmem:[%s2 + $0xa0] sm:$0xff]
  %v401 = vld [vmem:[%s2 + $0xa8] sm:$0xff]
  %v402 = vld [vmem:[%s2 + $0xb0] sm:$0xff]
  %v403 = vld [vmem:[%s2 + $0xb8] sm:$0xff]
  %v404 = vld [vmem:[%s2 + $0xc0] sm:$0xff]
  %v405 = vld [vmem:[%s2 + $0xc8] sm:$0xff]
  %v406 = vld [vmem:[%s2 + $0xd0] sm:$0xff]
  %v407 = vld [vmem:[%s2 + $0xd8] sm:$0xff]
  %v408 = vld [vmem:[%s2 + $0xe0] sm:$0xff]
  %v409 = vld [vmem:[%s2 + $0xe8] sm:$0xff]
  %v410 = vld [vmem:[%s2 + $0xf0] sm:$0xff]
  %v411 = vld [vmem:[%s2 + $0xf8] sm:$0xff]
  %v412 = vld [vmem:[%s2 + $0x100] sm:$0xff]
  %v413 = vld [vmem:[%s2 + $0x108] sm:$0xff]
  %v414 = vld [vmem:[%s2 + $0x110] sm:$0xff]
  %v415 = vld [vmem:[%s2 + $0x118] sm:$0xff]
  %v416 = vld [vmem:[%s2 + $0x120] sm:$0xff]
  %v417 = vld [vmem:[%s2 + $0x128] sm:$0xff]
  %v418 = vld [vmem:[%s2 + $0x130] sm:$0xff]
  %v419 = vld [vmem:[%s2 + $0x138] sm:$0xff]
  %v420 = vld [vmem:[%s2 + $0x140] sm:$0xff]
  %v421 = vld [vmem:[%s2 + $0x148] sm:$0xff]
  %v422 = vld [vmem:[%s2 + $0x150] sm:$0xff]
  %v423 = vld [vmem:[%s2 + $0x158] sm:$0xff]
  %v424 = vld [vmem:[%s2 + $0x160] sm:$0xff]
  %v425 = vld [vmem:[%s2 + $0x168] sm:$0xff]
  %v426 = vld [vmem:[%s2 + $0x170] sm:$0xff]
  %v427 = vld [vmem:[%s2 + $0x178] sm:$0xff]
  %v428 = vld [vmem:[%s2 + $0x180] sm:$0xff]
  %v429 = vld [vmem:[%s2 + $0x188] sm:$0xff]
  %v430 = vld [vmem:[%s2 + $0x190] sm:$0xff]
  %v431 = vld [vmem:[%s2 + $0x198] sm:$0xff]
  %v432 = vld [vmem:[%s2 + $0x1a0] sm:$0xff]
  %v433 = vld [vmem:[%s2 + $0x1a8] sm:$0xff]
  %v434 = vld [vmem:[%s2 + $0x1b0] sm:$0xff]
  %v435 = vld [vmem:[%s2 + $0x1b8] sm:$0xff]
  %v436 = vld [vmem:[%s2 + $0x1c0] sm:$0xff]
  %v437 = vld [vmem:[%s2 + $0x1c8] sm:$0xff]
  %v438 = vld [vmem:[%s2 + $0x1d0] sm:$0xff]
  %v439 = vld [vmem:[%s2 + $0x1d8] sm:$0xff]
  %v440 = vld [vmem:[%s2 + $0x1e0] sm:$0xff]
  %v441 = vld [vmem:[%s2 + $0x1e8] sm:$0xff]
  %v442 = vld [vmem:[%s2 + $0x1f0] sm:$0xff]
  %v443 = vld [vmem:[%s2 + $0x1f8] sm:$0xff]
  %s444 = scalar_lea.vmem %s9, 2
  %v445 = vld [vmem:[%s444] sm:$0x1]
  %v447 = vlaneseq
  %v448 = vshrl.u32 %v447, 7
  %v449 = vsub.s32 0, %v448
  %v450 = vrot.slane %v445, %v449
  %v452 = vmul.f32 %v380, %v450
  %v453 = vmul.f32 %v381, %v450
  %v454 = vmul.f32 %v382, %v450
  %v455 = vmul.f32 %v383, %v450
  %v456 = vmul.f32 %v384, %v450
  %v457 = vmul.f32 %v385, %v450
  %v458 = vmul.f32 %v386, %v450
  %v459 = vmul.f32 %v387, %v450
  %v460 = vmul.f32 %v388, %v450
  %v461 = vmul.f32 %v389, %v450
  %v462 = vmul.f32 %v390, %v450
  %v463 = vmul.f32 %v391, %v450
  %v464 = vmul.f32 %v392, %v450
  %v465 = vmul.f32 %v393, %v450
  %v466 = vmul.f32 %v394, %v450
  %v467 = vmul.f32 %v395, %v450
  %v468 = vmul.f32 %v396, %v450
  %v469 = vmul.f32 %v397, %v450
  %v470 = vmul.f32 %v398, %v450
  %v471 = vmul.f32 %v399, %v450
  %v472 = vmul.f32 %v400, %v450
  %v473 = vmul.f32 %v401, %v450
  %v474 = vmul.f32 %v402, %v450
  %v475 = vmul.f32 %v403, %v450
  %v476 = vmul.f32 %v404, %v450
  %v477 = vmul.f32 %v405, %v450
  %v478 = vmul.f32 %v406, %v450
  %v479 = vmul.f32 %v407, %v450
  %v480 = vmul.f32 %v408, %v450
  %v481 = vmul.f32 %v409, %v450
  %v482 = vmul.f32 %v410, %v450
  %v483 = vmul.f32 %v411, %v450
  %v484 = vmul.f32 %v412, %v450
  %v485 = vmul.f32 %v413, %v450
  %v486 = vmul.f32 %v414, %v450
  %v487 = vmul.f32 %v415, %v450
  %v488 = vmul.f32 %v416, %v450
  %v489 = vmul.f32 %v417, %v450
  %v490 = vmul.f32 %v418, %v450
  %v491 = vmul.f32 %v419, %v450
  %v492 = vmul.f32 %v420, %v450
  %v493 = vmul.f32 %v421, %v450
  %v494 = vmul.f32 %v422, %v450
  %v495 = vmul.f32 %v423, %v450
  %v496 = vmul.f32 %v424, %v450
  %v497 = vmul.f32 %v425, %v450
  %v498 = vmul.f32 %v426, %v450
  %v499 = vmul.f32 %v427, %v450
  %v500 = vmul.f32 %v428, %v450
  %v501 = vmul.f32 %v429, %v450
  %v502 = vmul.f32 %v430, %v450
  %v503 = vmul.f32 %v431, %v450
  %v504 = vmul.f32 %v432, %v450
  %v505 = vmul.f32 %v433, %v450
  %v506 = vmul.f32 %v434, %v450
  %v507 = vmul.f32 %v435, %v450
  %v508 = vmul.f32 %v436, %v450
  %v509 = vmul.f32 %v437, %v450
  %v510 = vmul.f32 %v438, %v450
  %v511 = vmul.f32 %v439, %v450
  %v512 = vmul.f32 %v440, %v450
  %v513 = vmul.f32 %v441, %v450
  %v514 = vmul.f32 %v442, %v450
  %v515 = vmul.f32 %v443, %v450
  %v516 = vadd.f32 %v316, %v452
  %v517 = vadd.f32 %v317, %v453
  %v518 = vadd.f32 %v318, %v454
  %v519 = vadd.f32 %v319, %v455
  %v520 = vadd.f32 %v320, %v456
  %v521 = vadd.f32 %v321, %v457
  %v522 = vadd.f32 %v322, %v458
  %v523 = vadd.f32 %v323, %v459
  %v524 = vadd.f32 %v324, %v460
  %v525 = vadd.f32 %v325, %v461
  %v526 = vadd.f32 %v326, %v462
  %v527 = vadd.f32 %v327, %v463
  %v528 = vadd.f32 %v328, %v464
  %v529 = vadd.f32 %v329, %v465
  %v530 = vadd.f32 %v330, %v466
  %v531 = vadd.f32 %v331, %v467
  %v532 = vadd.f32 %v332, %v468
  %v533 = vadd.f32 %v333, %v469
  %v534 = vadd.f32 %v334, %v470
  %v535 = vadd.f32 %v335, %v471
  %v536 = vadd.f32 %v336, %v472
  %v537 = vadd.f32 %v337, %v473
  %v538 = vadd.f32 %v338, %v474
  %v539 = vadd.f32 %v339, %v475
  %v540 = vadd.f32 %v340, %v476
  %v541 = vadd.f32 %v341, %v477
  %v542 = vadd.f32 %v342, %v478
  %v543 = vadd.f32 %v343, %v479
  %v544 = vadd.f32 %v344, %v480
  %v545 = vadd.f32 %v345, %v481
  %v546 = vadd.f32 %v346, %v482
  %v547 = vadd.f32 %v347, %v483
  %v548 = vadd.f32 %v348, %v484
  %v549 = vadd.f32 %v349, %v485
  %v550 = vadd.f32 %v350, %v486
  %v551 = vadd.f32 %v351, %v487
  %v552 = vadd.f32 %v352, %v488
  %v553 = vadd.f32 %v353, %v489
  %v554 = vadd.f32 %v354, %v490
  %v555 = vadd.f32 %v355, %v491
  %v556 = vadd.f32 %v356, %v492
  %v557 = vadd.f32 %v357, %v493
  %v558 = vadd.f32 %v358, %v494
  %v559 = vadd.f32 %v359, %v495
  %v560 = vadd.f32 %v360, %v496
  %v561 = vadd.f32 %v361, %v497
  %v562 = vadd.f32 %v362, %v498
  %v563 = vadd.f32 %v363, %v499
  %v564 = vadd.f32 %v364, %v500
  %v565 = vadd.f32 %v365, %v501
  %v566 = vadd.f32 %v366, %v502
  %v567 = vadd.f32 %v367, %v503
  %v568 = vadd.f32 %v368, %v504
  %v569 = vadd.f32 %v369, %v505
  %v570 = vadd.f32 %v370, %v506
  %v571 = vadd.f32 %v371, %v507
  %v572 = vadd.f32 %v372, %v508
  %v573 = vadd.f32 %v373, %v509
  %v574 = vadd.f32 %v374, %v510
  %v575 = vadd.f32 %v375, %v511
  %v576 = vadd.f32 %v376, %v512
  %v577 = vadd.f32 %v377, %v513
  %v578 = vadd.f32 %v378, %v514
  %v579 = vadd.f32 %v379, %v515
  %v580 = vld [vmem:[%s3] sm:$0xff]
  %v581 = vld [vmem:[%s3 + $0x8] sm:$0xff]
  %v582 = vld [vmem:[%s3 + $0x10] sm:$0xff]
  %v583 = vld [vmem:[%s3 + $0x18] sm:$0xff]
  %v584 = vld [vmem:[%s3 + $0x20] sm:$0xff]
  %v585 = vld [vmem:[%s3 + $0x28] sm:$0xff]
  %v586 = vld [vmem:[%s3 + $0x30] sm:$0xff]
  %v587 = vld [vmem:[%s3 + $0x38] sm:$0xff]
  %v588 = vld [vmem:[%s3 + $0x40] sm:$0xff]
  %v589 = vld [vmem:[%s3 + $0x48] sm:$0xff]
  %v590 = vld [vmem:[%s3 + $0x50] sm:$0xff]
  %v591 = vld [vmem:[%s3 + $0x58] sm:$0xff]
  %v592 = vld [vmem:[%s3 + $0x60] sm:$0xff]
  %v593 = vld [vmem:[%s3 + $0x68] sm:$0xff]
  %v594 = vld [vmem:[%s3 + $0x70] sm:$0xff]
  %v595 = vld [vmem:[%s3 + $0x78] sm:$0xff]
  %v596 = vld [vmem:[%s3 + $0x80] sm:$0xff]
  %v597 = vld [vmem:[%s3 + $0x88] sm:$0xff]
  %v598 = vld [vmem:[%s3 + $0x90] sm:$0xff]
  %v599 = vld [vmem:[%s3 + $0x98] sm:$0xff]
  %v600 = vld [vmem:[%s3 + $0xa0] sm:$0xff]
  %v601 = vld [vmem:[%s3 + $0xa8] sm:$0xff]
  %v602 = vld [vmem:[%s3 + $0xb0] sm:$0xff]
  %v603 = vld [vmem:[%s3 + $0xb8] sm:$0xff]
  %v604 = vld [vmem:[%s3 + $0xc0] sm:$0xff]
  %v605 = vld [vmem:[%s3 + $0xc8] sm:$0xff]
  %v606 = vld [vmem:[%s3 + $0xd0] sm:$0xff]
  %v607 = vld [vmem:[%s3 + $0xd8] sm:$0xff]
  %v608 = vld [vmem:[%s3 + $0xe0] sm:$0xff]
  %v609 = vld [vmem:[%s3 + $0xe8] sm:$0xff]
  %v610 = vld [vmem:[%s3 + $0xf0] sm:$0xff]
  %v611 = vld [vmem:[%s3 + $0xf8] sm:$0xff]
  %v612 = vld [vmem:[%s3 + $0x100] sm:$0xff]
  %v613 = vld [vmem:[%s3 + $0x108] sm:$0xff]
  %v614 = vld [vmem:[%s3 + $0x110] sm:$0xff]
  %v615 = vld [vmem:[%s3 + $0x118] sm:$0xff]
  %v616 = vld [vmem:[%s3 + $0x120] sm:$0xff]
  %v617 = vld [vmem:[%s3 + $0x128] sm:$0xff]
  %v618 = vld [vmem:[%s3 + $0x130] sm:$0xff]
  %v619 = vld [vmem:[%s3 + $0x138] sm:$0xff]
  %v620 = vld [vmem:[%s3 + $0x140] sm:$0xff]
  %v621 = vld [vmem:[%s3 + $0x148] sm:$0xff]
  %v622 = vld [vmem:[%s3 + $0x150] sm:$0xff]
  %v623 = vld [vmem:[%s3 + $0x158] sm:$0xff]
  %v624 = vld [vmem:[%s3 + $0x160] sm:$0xff]
  %v625 = vld [vmem:[%s3 + $0x168] sm:$0xff]
  %v626 = vld [vmem:[%s3 + $0x170] sm:$0xff]
  %v627 = vld [vmem:[%s3 + $0x178] sm:$0xff]
  %v628 = vld [vmem:[%s3 + $0x180] sm:$0xff]
  %v629 = vld [vmem:[%s3 + $0x188] sm:$0xff]
  %v630 = vld [vmem:[%s3 + $0x190] sm:$0xff]
  %v631 = vld [vmem:[%s3 + $0x198] sm:$0xff]
  %v632 = vld [vmem:[%s3 + $0x1a0] sm:$0xff]
  %v633 = vld [vmem:[%s3 + $0x1a8] sm:$0xff]
  %v634 = vld [vmem:[%s3 + $0x1b0] sm:$0xff]
  %v635 = vld [vmem:[%s3 + $0x1b8] sm:$0xff]
  %v636 = vld [vmem:[%s3 + $0x1c0] sm:$0xff]
  %v637 = vld [vmem:[%s3 + $0x1c8] sm:$0xff]
  %v638 = vld [vmem:[%s3 + $0x1d0] sm:$0xff]
  %v639 = vld [vmem:[%s3 + $0x1d8] sm:$0xff]
  %v640 = vld [vmem:[%s3 + $0x1e0] sm:$0xff]
  %v641 = vld [vmem:[%s3 + $0x1e8] sm:$0xff]
  %v642 = vld [vmem:[%s3 + $0x1f0] sm:$0xff]
  %v643 = vld [vmem:[%s3 + $0x1f8] sm:$0xff]
  %s644 = scalar_lea.vmem %s9, 3
  %v645 = vld [vmem:[%s644] sm:$0x1]
  %v647 = vlaneseq
  %v648 = vshrl.u32 %v647, 7
  %v649 = vsub.s32 0, %v648
  %v650 = vrot.slane %v645, %v649
  %v652 = vmul.f32 %v580, %v650
  %v653 = vmul.f32 %v581, %v650
  %v654 = vmul.f32 %v582, %v650
  %v655 = vmul.f32 %v583, %v650
  %v656 = vmul.f32 %v584, %v650
  %v657 = vmul.f32 %v585, %v650
  %v658 = vmul.f32 %v586, %v650
  %v659 = vmul.f32 %v587, %v650
  %v660 = vmul.f32 %v588, %v650
  %v661 = vmul.f32 %v589, %v650
  %v662 = vmul.f32 %v590, %v650
  %v663 = vmul.f32 %v591, %v650
  %v664 = vmul.f32 %v592, %v650
  %v665 = vmul.f32 %v593, %v650
  %v666 = vmul.f32 %v594, %v650
  %v667 = vmul.f32 %v595, %v650
  %v668 = vmul.f32 %v596, %v650
  %v669 = vmul.f32 %v597, %v650
  %v670 = vmul.f32 %v598, %v650
  %v671 = vmul.f32 %v599, %v650
  %v672 = vmul.f32 %v600, %v650
  %v673 = vmul.f32 %v601, %v650
  %v674 = vmul.f32 %v602, %v650
  %v675 = vmul.f32 %v603, %v650
  %v676 = vmul.f32 %v604, %v650
  %v677 = vmul.f32 %v605, %v650
  %v678 = vmul.f32 %v606, %v650
  %v679 = vmul.f32 %v607, %v650
  %v680 = vmul.f32 %v608, %v650
  %v681 = vmul.f32 %v609, %v650
  %v682 = vmul.f32 %v610, %v650
  %v683 = vmul.f32 %v611, %v650
  %v684 = vmul.f32 %v612, %v650
  %v685 = vmul.f32 %v613, %v650
  %v686 = vmul.f32 %v614, %v650
  %v687 = vmul.f32 %v615, %v650
  %v688 = vmul.f32 %v616, %v650
  %v689 = vmul.f32 %v617, %v650
  %v690 = vmul.f32 %v618, %v650
  %v691 = vmul.f32 %v619, %v650
  %v692 = vmul.f32 %v620, %v650
  %v693 = vmul.f32 %v621, %v650
  %v694 = vmul.f32 %v622, %v650
  %v695 = vmul.f32 %v623, %v650
  %v696 = vmul.f32 %v624, %v650
  %v697 = vmul.f32 %v625, %v650
  %v698 = vmul.f32 %v626, %v650
  %v699 = vmul.f32 %v627, %v650
  %v700 = vmul.f32 %v628, %v650
  %v701 = vmul.f32 %v629, %v650
  %v702 = vmul.f32 %v630, %v650
  %v703 = vmul.f32 %v631, %v650
  %v704 = vmul.f32 %v632, %v650
  %v705 = vmul.f32 %v633, %v650
  %v706 = vmul.f32 %v634, %v650
  %v707 = vmul.f32 %v635, %v650
  %v708 = vmul.f32 %v636, %v650
  %v709 = vmul.f32 %v637, %v650
  %v710 = vmul.f32 %v638, %v650
  %v711 = vmul.f32 %v639, %v650
  %v712 = vmul.f32 %v640, %v650
  %v713 = vmul.f32 %v641, %v650
  %v714 = vmul.f32 %v642, %v650
  %v715 = vmul.f32 %v643, %v650
  %v716 = vadd.f32 %v516, %v652
  %v717 = vadd.f32 %v517, %v653
  %v718 = vadd.f32 %v518, %v654
  %v719 = vadd.f32 %v519, %v655
  %v720 = vadd.f32 %v520, %v656
  %v721 = vadd.f32 %v521, %v657
  %v722 = vadd.f32 %v522, %v658
  %v723 = vadd.f32 %v523, %v659
  %v724 = vadd.f32 %v524, %v660
  %v725 = vadd.f32 %v525, %v661
  %v726 = vadd.f32 %v526, %v662
  %v727 = vadd.f32 %v527, %v663
  %v728 = vadd.f32 %v528, %v664
  %v729 = vadd.f32 %v529, %v665
  %v730 = vadd.f32 %v530, %v666
  %v731 = vadd.f32 %v531, %v667
  %v732 = vadd.f32 %v532, %v668
  %v733 = vadd.f32 %v533, %v669
  %v734 = vadd.f32 %v534, %v670
  %v735 = vadd.f32 %v535, %v671
  %v736 = vadd.f32 %v536, %v672
  %v737 = vadd.f32 %v537, %v673
  %v738 = vadd.f32 %v538, %v674
  %v739 = vadd.f32 %v539, %v675
  %v740 = vadd.f32 %v540, %v676
  %v741 = vadd.f32 %v541, %v677
  %v742 = vadd.f32 %v542, %v678
  %v743 = vadd.f32 %v543, %v679
  %v744 = vadd.f32 %v544, %v680
  %v745 = vadd.f32 %v545, %v681
  %v746 = vadd.f32 %v546, %v682
  %v747 = vadd.f32 %v547, %v683
  %v748 = vadd.f32 %v548, %v684
  %v749 = vadd.f32 %v549, %v685
  %v750 = vadd.f32 %v550, %v686
  %v751 = vadd.f32 %v551, %v687
  %v752 = vadd.f32 %v552, %v688
  %v753 = vadd.f32 %v553, %v689
  %v754 = vadd.f32 %v554, %v690
  %v755 = vadd.f32 %v555, %v691
  %v756 = vadd.f32 %v556, %v692
  %v757 = vadd.f32 %v557, %v693
  %v758 = vadd.f32 %v558, %v694
  %v759 = vadd.f32 %v559, %v695
  %v760 = vadd.f32 %v560, %v696
  %v761 = vadd.f32 %v561, %v697
  %v762 = vadd.f32 %v562, %v698
  %v763 = vadd.f32 %v563, %v699
  %v764 = vadd.f32 %v564, %v700
  %v765 = vadd.f32 %v565, %v701
  %v766 = vadd.f32 %v566, %v702
  %v767 = vadd.f32 %v567, %v703
  %v768 = vadd.f32 %v568, %v704
  %v769 = vadd.f32 %v569, %v705
  %v770 = vadd.f32 %v570, %v706
  %v771 = vadd.f32 %v571, %v707
  %v772 = vadd.f32 %v572, %v708
  %v773 = vadd.f32 %v573, %v709
  %v774 = vadd.f32 %v574, %v710
  %v775 = vadd.f32 %v575, %v711
  %v776 = vadd.f32 %v576, %v712
  %v777 = vadd.f32 %v577, %v713
  %v778 = vadd.f32 %v578, %v714
  %v779 = vadd.f32 %v579, %v715
  %v780 = vld [vmem:[%s4] sm:$0xff]
  %v781 = vld [vmem:[%s4 + $0x8] sm:$0xff]
  %v782 = vld [vmem:[%s4 + $0x10] sm:$0xff]
  %v783 = vld [vmem:[%s4 + $0x18] sm:$0xff]
  %v784 = vld [vmem:[%s4 + $0x20] sm:$0xff]
  %v785 = vld [vmem:[%s4 + $0x28] sm:$0xff]
  %v786 = vld [vmem:[%s4 + $0x30] sm:$0xff]
  %v787 = vld [vmem:[%s4 + $0x38] sm:$0xff]
  %v788 = vld [vmem:[%s4 + $0x40] sm:$0xff]
  %v789 = vld [vmem:[%s4 + $0x48] sm:$0xff]
  %v790 = vld [vmem:[%s4 + $0x50] sm:$0xff]
  %v791 = vld [vmem:[%s4 + $0x58] sm:$0xff]
  %v792 = vld [vmem:[%s4 + $0x60] sm:$0xff]
  %v793 = vld [vmem:[%s4 + $0x68] sm:$0xff]
  %v794 = vld [vmem:[%s4 + $0x70] sm:$0xff]
  %v795 = vld [vmem:[%s4 + $0x78] sm:$0xff]
  %v796 = vld [vmem:[%s4 + $0x80] sm:$0xff]
  %v797 = vld [vmem:[%s4 + $0x88] sm:$0xff]
  %v798 = vld [vmem:[%s4 + $0x90] sm:$0xff]
  %v799 = vld [vmem:[%s4 + $0x98] sm:$0xff]
  %v800 = vld [vmem:[%s4 + $0xa0] sm:$0xff]
  %v801 = vld [vmem:[%s4 + $0xa8] sm:$0xff]
  %v802 = vld [vmem:[%s4 + $0xb0] sm:$0xff]
  %v803 = vld [vmem:[%s4 + $0xb8] sm:$0xff]
  %v804 = vld [vmem:[%s4 + $0xc0] sm:$0xff]
  %v805 = vld [vmem:[%s4 + $0xc8] sm:$0xff]
  %v806 = vld [vmem:[%s4 + $0xd0] sm:$0xff]
  %v807 = vld [vmem:[%s4 + $0xd8] sm:$0xff]
  %v808 = vld [vmem:[%s4 + $0xe0] sm:$0xff]
  %v809 = vld [vmem:[%s4 + $0xe8] sm:$0xff]
  %v810 = vld [vmem:[%s4 + $0xf0] sm:$0xff]
  %v811 = vld [vmem:[%s4 + $0xf8] sm:$0xff]
  %v812 = vld [vmem:[%s4 + $0x100] sm:$0xff]
  %v813 = vld [vmem:[%s4 + $0x108] sm:$0xff]
  %v814 = vld [vmem:[%s4 + $0x110] sm:$0xff]
  %v815 = vld [vmem:[%s4 + $0x118] sm:$0xff]
  %v816 = vld [vmem:[%s4 + $0x120] sm:$0xff]
  %v817 = vld [vmem:[%s4 + $0x128] sm:$0xff]
  %v818 = vld [vmem:[%s4 + $0x130] sm:$0xff]
  %v819 = vld [vmem:[%s4 + $0x138] sm:$0xff]
  %v820 = vld [vmem:[%s4 + $0x140] sm:$0xff]
  %v821 = vld [vmem:[%s4 + $0x148] sm:$0xff]
  %v822 = vld [vmem:[%s4 + $0x150] sm:$0xff]
  %v823 = vld [vmem:[%s4 + $0x158] sm:$0xff]
  %v824 = vld [vmem:[%s4 + $0x160] sm:$0xff]
  %v825 = vld [vmem:[%s4 + $0x168] sm:$0xff]
  %v826 = vld [vmem:[%s4 + $0x170] sm:$0xff]
  %v827 = vld [vmem:[%s4 + $0x178] sm:$0xff]
  %v828 = vld [vmem:[%s4 + $0x180] sm:$0xff]
  %v829 = vld [vmem:[%s4 + $0x188] sm:$0xff]
  %v830 = vld [vmem:[%s4 + $0x190] sm:$0xff]
  %v831 = vld [vmem:[%s4 + $0x198] sm:$0xff]
  %v832 = vld [vmem:[%s4 + $0x1a0] sm:$0xff]
  %v833 = vld [vmem:[%s4 + $0x1a8] sm:$0xff]
  %v834 = vld [vmem:[%s4 + $0x1b0] sm:$0xff]
  %v835 = vld [vmem:[%s4 + $0x1b8] sm:$0xff]
  %v836 = vld [vmem:[%s4 + $0x1c0] sm:$0xff]
  %v837 = vld [vmem:[%s4 + $0x1c8] sm:$0xff]
  %v838 = vld [vmem:[%s4 + $0x1d0] sm:$0xff]
  %v839 = vld [vmem:[%s4 + $0x1d8] sm:$0xff]
  %v840 = vld [vmem:[%s4 + $0x1e0] sm:$0xff]
  %v841 = vld [vmem:[%s4 + $0x1e8] sm:$0xff]
  %v842 = vld [vmem:[%s4 + $0x1f0] sm:$0xff]
  %v843 = vld [vmem:[%s4 + $0x1f8] sm:$0xff]
  %s844 = scalar_lea.vmem %s9, 4
  %v845 = vld [vmem:[%s844] sm:$0x1]
  %v847 = vlaneseq
  %v848 = vshrl.u32 %v847, 7
  %v849 = vsub.s32 0, %v848
  %v850 = vrot.slane %v845, %v849
  %v852 = vmul.f32 %v780, %v850
  %v853 = vmul.f32 %v781, %v850
  %v854 = vmul.f32 %v782, %v850
  %v855 = vmul.f32 %v783, %v850
  %v856 = vmul.f32 %v784, %v850
  %v857 = vmul.f32 %v785, %v850
  %v858 = vmul.f32 %v786, %v850
  %v859 = vmul.f32 %v787, %v850
  %v860 = vmul.f32 %v788, %v850
  %v861 = vmul.f32 %v789, %v850
  %v862 = vmul.f32 %v790, %v850
  %v863 = vmul.f32 %v791, %v850
  %v864 = vmul.f32 %v792, %v850
  %v865 = vmul.f32 %v793, %v850
  %v866 = vmul.f32 %v794, %v850
  %v867 = vmul.f32 %v795, %v850
  %v868 = vmul.f32 %v796, %v850
  %v869 = vmul.f32 %v797, %v850
  %v870 = vmul.f32 %v798, %v850
  %v871 = vmul.f32 %v799, %v850
  %v872 = vmul.f32 %v800, %v850
  %v873 = vmul.f32 %v801, %v850
  %v874 = vmul.f32 %v802, %v850
  %v875 = vmul.f32 %v803, %v850
  %v876 = vmul.f32 %v804, %v850
  %v877 = vmul.f32 %v805, %v850
  %v878 = vmul.f32 %v806, %v850
  %v879 = vmul.f32 %v807, %v850
  %v880 = vmul.f32 %v808, %v850
  %v881 = vmul.f32 %v809, %v850
  %v882 = vmul.f32 %v810, %v850
  %v883 = vmul.f32 %v811, %v850
  %v884 = vmul.f32 %v812, %v850
  %v885 = vmul.f32 %v813, %v850
  %v886 = vmul.f32 %v814, %v850
  %v887 = vmul.f32 %v815, %v850
  %v888 = vmul.f32 %v816, %v850
  %v889 = vmul.f32 %v817, %v850
  %v890 = vmul.f32 %v818, %v850
  %v891 = vmul.f32 %v819, %v850
  %v892 = vmul.f32 %v820, %v850
  %v893 = vmul.f32 %v821, %v850
  %v894 = vmul.f32 %v822, %v850
  %v895 = vmul.f32 %v823, %v850
  %v896 = vmul.f32 %v824, %v850
  %v897 = vmul.f32 %v825, %v850
  %v898 = vmul.f32 %v826, %v850
  %v899 = vmul.f32 %v827, %v850
  %v900 = vmul.f32 %v828, %v850
  %v901 = vmul.f32 %v829, %v850
  %v902 = vmul.f32 %v830, %v850
  %v903 = vmul.f32 %v831, %v850
  %v904 = vmul.f32 %v832, %v850
  %v905 = vmul.f32 %v833, %v850
  %v906 = vmul.f32 %v834, %v850
  %v907 = vmul.f32 %v835, %v850
  %v908 = vmul.f32 %v836, %v850
  %v909 = vmul.f32 %v837, %v850
  %v910 = vmul.f32 %v838, %v850
  %v911 = vmul.f32 %v839, %v850
  %v912 = vmul.f32 %v840, %v850
  %v913 = vmul.f32 %v841, %v850
  %v914 = vmul.f32 %v842, %v850
  %v915 = vmul.f32 %v843, %v850
  %v916 = vadd.f32 %v716, %v852
  %v917 = vadd.f32 %v717, %v853
  %v918 = vadd.f32 %v718, %v854
  %v919 = vadd.f32 %v719, %v855
  %v920 = vadd.f32 %v720, %v856
  %v921 = vadd.f32 %v721, %v857
  %v922 = vadd.f32 %v722, %v858
  %v923 = vadd.f32 %v723, %v859
  %v924 = vadd.f32 %v724, %v860
  %v925 = vadd.f32 %v725, %v861
  %v926 = vadd.f32 %v726, %v862
  %v927 = vadd.f32 %v727, %v863
  %v928 = vadd.f32 %v728, %v864
  %v929 = vadd.f32 %v729, %v865
  %v930 = vadd.f32 %v730, %v866
  %v931 = vadd.f32 %v731, %v867
  %v932 = vadd.f32 %v732, %v868
  %v933 = vadd.f32 %v733, %v869
  %v934 = vadd.f32 %v734, %v870
  %v935 = vadd.f32 %v735, %v871
  %v936 = vadd.f32 %v736, %v872
  %v937 = vadd.f32 %v737, %v873
  %v938 = vadd.f32 %v738, %v874
  %v939 = vadd.f32 %v739, %v875
  %v940 = vadd.f32 %v740, %v876
  %v941 = vadd.f32 %v741, %v877
  %v942 = vadd.f32 %v742, %v878
  %v943 = vadd.f32 %v743, %v879
  %v944 = vadd.f32 %v744, %v880
  %v945 = vadd.f32 %v745, %v881
  %v946 = vadd.f32 %v746, %v882
  %v947 = vadd.f32 %v747, %v883
  %v948 = vadd.f32 %v748, %v884
  %v949 = vadd.f32 %v749, %v885
  %v950 = vadd.f32 %v750, %v886
  %v951 = vadd.f32 %v751, %v887
  %v952 = vadd.f32 %v752, %v888
  %v953 = vadd.f32 %v753, %v889
  %v954 = vadd.f32 %v754, %v890
  %v955 = vadd.f32 %v755, %v891
  %v956 = vadd.f32 %v756, %v892
  %v957 = vadd.f32 %v757, %v893
  %v958 = vadd.f32 %v758, %v894
  %v959 = vadd.f32 %v759, %v895
  %v960 = vadd.f32 %v760, %v896
  %v961 = vadd.f32 %v761, %v897
  %v962 = vadd.f32 %v762, %v898
  %v963 = vadd.f32 %v763, %v899
  %v964 = vadd.f32 %v764, %v900
  %v965 = vadd.f32 %v765, %v901
  %v966 = vadd.f32 %v766, %v902
  %v967 = vadd.f32 %v767, %v903
  %v968 = vadd.f32 %v768, %v904
  %v969 = vadd.f32 %v769, %v905
  %v970 = vadd.f32 %v770, %v906
  %v971 = vadd.f32 %v771, %v907
  %v972 = vadd.f32 %v772, %v908
  %v973 = vadd.f32 %v773, %v909
  %v974 = vadd.f32 %v774, %v910
  %v975 = vadd.f32 %v775, %v911
  %v976 = vadd.f32 %v776, %v912
  %v977 = vadd.f32 %v777, %v913
  %v978 = vadd.f32 %v778, %v914
  %v979 = vadd.f32 %v779, %v915
  %v980 = vld [vmem:[%s5] sm:$0xff]
  %v981 = vld [vmem:[%s5 + $0x8] sm:$0xff]
  %v982 = vld [vmem:[%s5 + $0x10] sm:$0xff]
  %v983 = vld [vmem:[%s5 + $0x18] sm:$0xff]
  %v984 = vld [vmem:[%s5 + $0x20] sm:$0xff]
  %v985 = vld [vmem:[%s5 + $0x28] sm:$0xff]
  %v986 = vld [vmem:[%s5 + $0x30] sm:$0xff]
  %v987 = vld [vmem:[%s5 + $0x38] sm:$0xff]
  %v988 = vld [vmem:[%s5 + $0x40] sm:$0xff]
  %v989 = vld [vmem:[%s5 + $0x48] sm:$0xff]
  %v990 = vld [vmem:[%s5 + $0x50] sm:$0xff]
  %v991 = vld [vmem:[%s5 + $0x58] sm:$0xff]
  %v992 = vld [vmem:[%s5 + $0x60] sm:$0xff]
  %v993 = vld [vmem:[%s5 + $0x68] sm:$0xff]
  %v994 = vld [vmem:[%s5 + $0x70] sm:$0xff]
  %v995 = vld [vmem:[%s5 + $0x78] sm:$0xff]
  %v996 = vld [vmem:[%s5 + $0x80] sm:$0xff]
  %v997 = vld [vmem:[%s5 + $0x88] sm:$0xff]
  %v998 = vld [vmem:[%s5 + $0x90] sm:$0xff]
  %v999 = vld [vmem:[%s5 + $0x98] sm:$0xff]
  %v1000 = vld [vmem:[%s5 + $0xa0] sm:$0xff]
  %v1001 = vld [vmem:[%s5 + $0xa8] sm:$0xff]
  %v1002 = vld [vmem:[%s5 + $0xb0] sm:$0xff]
  %v1003 = vld [vmem:[%s5 + $0xb8] sm:$0xff]
  %v1004 = vld [vmem:[%s5 + $0xc0] sm:$0xff]
  %v1005 = vld [vmem:[%s5 + $0xc8] sm:$0xff]
  %v1006 = vld [vmem:[%s5 + $0xd0] sm:$0xff]
  %v1007 = vld [vmem:[%s5 + $0xd8] sm:$0xff]
  %v1008 = vld [vmem:[%s5 + $0xe0] sm:$0xff]
  %v1009 = vld [vmem:[%s5 + $0xe8] sm:$0xff]
  %v1010 = vld [vmem:[%s5 + $0xf0] sm:$0xff]
  %v1011 = vld [vmem:[%s5 + $0xf8] sm:$0xff]
  %v1012 = vld [vmem:[%s5 + $0x100] sm:$0xff]
  %v1013 = vld [vmem:[%s5 + $0x108] sm:$0xff]
  %v1014 = vld [vmem:[%s5 + $0x110] sm:$0xff]
  %v1015 = vld [vmem:[%s5 + $0x118] sm:$0xff]
  %v1016 = vld [vmem:[%s5 + $0x120] sm:$0xff]
  %v1017 = vld [vmem:[%s5 + $0x128] sm:$0xff]
  %v1018 = vld [vmem:[%s5 + $0x130] sm:$0xff]
  %v1019 = vld [vmem:[%s5 + $0x138] sm:$0xff]
  %v1020 = vld [vmem:[%s5 + $0x140] sm:$0xff]
  %v1021 = vld [vmem:[%s5 + $0x148] sm:$0xff]
  %v1022 = vld [vmem:[%s5 + $0x150] sm:$0xff]
  %v1023 = vld [vmem:[%s5 + $0x158] sm:$0xff]
  %v1024 = vld [vmem:[%s5 + $0x160] sm:$0xff]
  %v1025 = vld [vmem:[%s5 + $0x168] sm:$0xff]
  %v1026 = vld [vmem:[%s5 + $0x170] sm:$0xff]
  %v1027 = vld [vmem:[%s5 + $0x178] sm:$0xff]
  %v1028 = vld [vmem:[%s5 + $0x180] sm:$0xff]
  %v1029 = vld [vmem:[%s5 + $0x188] sm:$0xff]
  %v1030 = vld [vmem:[%s5 + $0x190] sm:$0xff]
  %v1031 = vld [vmem:[%s5 + $0x198] sm:$0xff]
  %v1032 = vld [vmem:[%s5 + $0x1a0] sm:$0xff]
  %v1033 = vld [vmem:[%s5 + $0x1a8] sm:$0xff]
  %v1034 = vld [vmem:[%s5 + $0x1b0] sm:$0xff]
  %v1035 = vld [vmem:[%s5 + $0x1b8] sm:$0xff]
  %v1036 = vld [vmem:[%s5 + $0x1c0] sm:$0xff]
  %v1037 = vld [vmem:[%s5 + $0x1c8] sm:$0xff]
  %v1038 = vld [vmem:[%s5 + $0x1d0] sm:$0xff]
  %v1039 = vld [vmem:[%s5 + $0x1d8] sm:$0xff]
  %v1040 = vld [vmem:[%s5 + $0x1e0] sm:$0xff]
  %v1041 = vld [vmem:[%s5 + $0x1e8] sm:$0xff]
  %v1042 = vld [vmem:[%s5 + $0x1f0] sm:$0xff]
  %v1043 = vld [vmem:[%s5 + $0x1f8] sm:$0xff]
  %s1044 = scalar_lea.vmem %s9, 5
  %v1045 = vld [vmem:[%s1044] sm:$0x1]
  %v1047 = vlaneseq
  %v1048 = vshrl.u32 %v1047, 7
  %v1049 = vsub.s32 0, %v1048
  %v1050 = vrot.slane %v1045, %v1049
  %v1052 = vmul.f32 %v980, %v1050
  %v1053 = vmul.f32 %v981, %v1050
  %v1054 = vmul.f32 %v982, %v1050
  %v1055 = vmul.f32 %v983, %v1050
  %v1056 = vmul.f32 %v984, %v1050
  %v1057 = vmul.f32 %v985, %v1050
  %v1058 = vmul.f32 %v986, %v1050
  %v1059 = vmul.f32 %v987, %v1050
  %v1060 = vmul.f32 %v988, %v1050
  %v1061 = vmul.f32 %v989, %v1050
  %v1062 = vmul.f32 %v990, %v1050
  %v1063 = vmul.f32 %v991, %v1050
  %v1064 = vmul.f32 %v992, %v1050
  %v1065 = vmul.f32 %v993, %v1050
  %v1066 = vmul.f32 %v994, %v1050
  %v1067 = vmul.f32 %v995, %v1050
  %v1068 = vmul.f32 %v996, %v1050
  %v1069 = vmul.f32 %v997, %v1050
  %v1070 = vmul.f32 %v998, %v1050
  %v1071 = vmul.f32 %v999, %v1050
  %v1072 = vmul.f32 %v1000, %v1050
  %v1073 = vmul.f32 %v1001, %v1050
  %v1074 = vmul.f32 %v1002, %v1050
  %v1075 = vmul.f32 %v1003, %v1050
  %v1076 = vmul.f32 %v1004, %v1050
  %v1077 = vmul.f32 %v1005, %v1050
  %v1078 = vmul.f32 %v1006, %v1050
  %v1079 = vmul.f32 %v1007, %v1050
  %v1080 = vmul.f32 %v1008, %v1050
  %v1081 = vmul.f32 %v1009, %v1050
  %v1082 = vmul.f32 %v1010, %v1050
  %v1083 = vmul.f32 %v1011, %v1050
  %v1084 = vmul.f32 %v1012, %v1050
  %v1085 = vmul.f32 %v1013, %v1050
  %v1086 = vmul.f32 %v1014, %v1050
  %v1087 = vmul.f32 %v1015, %v1050
  %v1088 = vmul.f32 %v1016, %v1050
  %v1089 = vmul.f32 %v1017, %v1050
  %v1090 = vmul.f32 %v1018, %v1050
  %v1091 = vmul.f32 %v1019, %v1050
  %v1092 = vmul.f32 %v1020, %v1050
  %v1093 = vmul.f32 %v1021, %v1050
  %v1094 = vmul.f32 %v1022, %v1050
  %v1095 = vmul.f32 %v1023, %v1050
  %v1096 = vmul.f32 %v1024, %v1050
  %v1097 = vmul.f32 %v1025, %v1050
  %v1098 = vmul.f32 %v1026, %v1050
  %v1099 = vmul.f32 %v1027, %v1050
  %v1100 = vmul.f32 %v1028, %v1050
  %v1101 = vmul.f32 %v1029, %v1050
  %v1102 = vmul.f32 %v1030, %v1050
  %v1103 = vmul.f32 %v1031, %v1050
  %v1104 = vmul.f32 %v1032, %v1050
  %v1105 = vmul.f32 %v1033, %v1050
  %v1106 = vmul.f32 %v1034, %v1050
  %v1107 = vmul.f32 %v1035, %v1050
  %v1108 = vmul.f32 %v1036, %v1050
  %v1109 = vmul.f32 %v1037, %v1050
  %v1110 = vmul.f32 %v1038, %v1050
  %v1111 = vmul.f32 %v1039, %v1050
  %v1112 = vmul.f32 %v1040, %v1050
  %v1113 = vmul.f32 %v1041, %v1050
  %v1114 = vmul.f32 %v1042, %v1050
  %v1115 = vmul.f32 %v1043, %v1050
  %v1116 = vadd.f32 %v916, %v1052
  %v1117 = vadd.f32 %v917, %v1053
  %v1118 = vadd.f32 %v918, %v1054
  %v1119 = vadd.f32 %v919, %v1055
  %v1120 = vadd.f32 %v920, %v1056
  %v1121 = vadd.f32 %v921, %v1057
  %v1122 = vadd.f32 %v922, %v1058
  %v1123 = vadd.f32 %v923, %v1059
  %v1124 = vadd.f32 %v924, %v1060
  %v1125 = vadd.f32 %v925, %v1061
  %v1126 = vadd.f32 %v926, %v1062
  %v1127 = vadd.f32 %v927, %v1063
  %v1128 = vadd.f32 %v928, %v1064
  %v1129 = vadd.f32 %v929, %v1065
  %v1130 = vadd.f32 %v930, %v1066
  %v1131 = vadd.f32 %v931, %v1067
  %v1132 = vadd.f32 %v932, %v1068
  %v1133 = vadd.f32 %v933, %v1069
  %v1134 = vadd.f32 %v934, %v1070
  %v1135 = vadd.f32 %v935, %v1071
  %v1136 = vadd.f32 %v936, %v1072
  %v1137 = vadd.f32 %v937, %v1073
  %v1138 = vadd.f32 %v938, %v1074
  %v1139 = vadd.f32 %v939, %v1075
  %v1140 = vadd.f32 %v940, %v1076
  %v1141 = vadd.f32 %v941, %v1077
  %v1142 = vadd.f32 %v942, %v1078
  %v1143 = vadd.f32 %v943, %v1079
  %v1144 = vadd.f32 %v944, %v1080
  %v1145 = vadd.f32 %v945, %v1081
  %v1146 = vadd.f32 %v946, %v1082
  %v1147 = vadd.f32 %v947, %v1083
  %v1148 = vadd.f32 %v948, %v1084
  %v1149 = vadd.f32 %v949, %v1085
  %v1150 = vadd.f32 %v950, %v1086
  %v1151 = vadd.f32 %v951, %v1087
  %v1152 = vadd.f32 %v952, %v1088
  %v1153 = vadd.f32 %v953, %v1089
  %v1154 = vadd.f32 %v954, %v1090
  %v1155 = vadd.f32 %v955, %v1091
  %v1156 = vadd.f32 %v956, %v1092
  %v1157 = vadd.f32 %v957, %v1093
  %v1158 = vadd.f32 %v958, %v1094
  %v1159 = vadd.f32 %v959, %v1095
  %v1160 = vadd.f32 %v960, %v1096
  %v1161 = vadd.f32 %v961, %v1097
  %v1162 = vadd.f32 %v962, %v1098
  %v1163 = vadd.f32 %v963, %v1099
  %v1164 = vadd.f32 %v964, %v1100
  %v1165 = vadd.f32 %v965, %v1101
  %v1166 = vadd.f32 %v966, %v1102
  %v1167 = vadd.f32 %v967, %v1103
  %v1168 = vadd.f32 %v968, %v1104
  %v1169 = vadd.f32 %v969, %v1105
  %v1170 = vadd.f32 %v970, %v1106
  %v1171 = vadd.f32 %v971, %v1107
  %v1172 = vadd.f32 %v972, %v1108
  %v1173 = vadd.f32 %v973, %v1109
  %v1174 = vadd.f32 %v974, %v1110
  %v1175 = vadd.f32 %v975, %v1111
  %v1176 = vadd.f32 %v976, %v1112
  %v1177 = vadd.f32 %v977, %v1113
  %v1178 = vadd.f32 %v978, %v1114
  %v1179 = vadd.f32 %v979, %v1115
  %v1180 = vld [vmem:[%s6] sm:$0xff]
  %v1181 = vld [vmem:[%s6 + $0x8] sm:$0xff]
  %v1182 = vld [vmem:[%s6 + $0x10] sm:$0xff]
  %v1183 = vld [vmem:[%s6 + $0x18] sm:$0xff]
  %v1184 = vld [vmem:[%s6 + $0x20] sm:$0xff]
  %v1185 = vld [vmem:[%s6 + $0x28] sm:$0xff]
  %v1186 = vld [vmem:[%s6 + $0x30] sm:$0xff]
  %v1187 = vld [vmem:[%s6 + $0x38] sm:$0xff]
  %v1188 = vld [vmem:[%s6 + $0x40] sm:$0xff]
  %v1189 = vld [vmem:[%s6 + $0x48] sm:$0xff]
  %v1190 = vld [vmem:[%s6 + $0x50] sm:$0xff]
  %v1191 = vld [vmem:[%s6 + $0x58] sm:$0xff]
  %v1192 = vld [vmem:[%s6 + $0x60] sm:$0xff]
  %v1193 = vld [vmem:[%s6 + $0x68] sm:$0xff]
  %v1194 = vld [vmem:[%s6 + $0x70] sm:$0xff]
  %v1195 = vld [vmem:[%s6 + $0x78] sm:$0xff]
  %v1196 = vld [vmem:[%s6 + $0x80] sm:$0xff]
  %v1197 = vld [vmem:[%s6 + $0x88] sm:$0xff]
  %v1198 = vld [vmem:[%s6 + $0x90] sm:$0xff]
  %v1199 = vld [vmem:[%s6 + $0x98] sm:$0xff]
  %v1200 = vld [vmem:[%s6 + $0xa0] sm:$0xff]
  %v1201 = vld [vmem:[%s6 + $0xa8] sm:$0xff]
  %v1202 = vld [vmem:[%s6 + $0xb0] sm:$0xff]
  %v1203 = vld [vmem:[%s6 + $0xb8] sm:$0xff]
  %v1204 = vld [vmem:[%s6 + $0xc0] sm:$0xff]
  %v1205 = vld [vmem:[%s6 + $0xc8] sm:$0xff]
  %v1206 = vld [vmem:[%s6 + $0xd0] sm:$0xff]
  %v1207 = vld [vmem:[%s6 + $0xd8] sm:$0xff]
  %v1208 = vld [vmem:[%s6 + $0xe0] sm:$0xff]
  %v1209 = vld [vmem:[%s6 + $0xe8] sm:$0xff]
  %v1210 = vld [vmem:[%s6 + $0xf0] sm:$0xff]
  %v1211 = vld [vmem:[%s6 + $0xf8] sm:$0xff]
  %v1212 = vld [vmem:[%s6 + $0x100] sm:$0xff]
  %v1213 = vld [vmem:[%s6 + $0x108] sm:$0xff]
  %v1214 = vld [vmem:[%s6 + $0x110] sm:$0xff]
  %v1215 = vld [vmem:[%s6 + $0x118] sm:$0xff]
  %v1216 = vld [vmem:[%s6 + $0x120] sm:$0xff]
  %v1217 = vld [vmem:[%s6 + $0x128] sm:$0xff]
  %v1218 = vld [vmem:[%s6 + $0x130] sm:$0xff]
  %v1219 = vld [vmem:[%s6 + $0x138] sm:$0xff]
  %v1220 = vld [vmem:[%s6 + $0x140] sm:$0xff]
  %v1221 = vld [vmem:[%s6 + $0x148] sm:$0xff]
  %v1222 = vld [vmem:[%s6 + $0x150] sm:$0xff]
  %v1223 = vld [vmem:[%s6 + $0x158] sm:$0xff]
  %v1224 = vld [vmem:[%s6 + $0x160] sm:$0xff]
  %v1225 = vld [vmem:[%s6 + $0x168] sm:$0xff]
  %v1226 = vld [vmem:[%s6 + $0x170] sm:$0xff]
  %v1227 = vld [vmem:[%s6 + $0x178] sm:$0xff]
  %v1228 = vld [vmem:[%s6 + $0x180] sm:$0xff]
  %v1229 = vld [vmem:[%s6 + $0x188] sm:$0xff]
  %v1230 = vld [vmem:[%s6 + $0x190] sm:$0xff]
  %v1231 = vld [vmem:[%s6 + $0x198] sm:$0xff]
  %v1232 = vld [vmem:[%s6 + $0x1a0] sm:$0xff]
  %v1233 = vld [vmem:[%s6 + $0x1a8] sm:$0xff]
  %v1234 = vld [vmem:[%s6 + $0x1b0] sm:$0xff]
  %v1235 = vld [vmem:[%s6 + $0x1b8] sm:$0xff]
  %v1236 = vld [vmem:[%s6 + $0x1c0] sm:$0xff]
  %v1237 = vld [vmem:[%s6 + $0x1c8] sm:$0xff]
  %v1238 = vld [vmem:[%s6 + $0x1d0] sm:$0xff]
  %v1239 = vld [vmem:[%s6 + $0x1d8] sm:$0xff]
  %v1240 = vld [vmem:[%s6 + $0x1e0] sm:$0xff]
  %v1241 = vld [vmem:[%s6 + $0x1e8] sm:$0xff]
  %v1242 = vld [vmem:[%s6 + $0x1f0] sm:$0xff]
  %v1243 = vld [vmem:[%s6 + $0x1f8] sm:$0xff]
  %s1244 = scalar_lea.vmem %s9, 6
  %v1245 = vld [vmem:[%s1244] sm:$0x1]
  %v1247 = vlaneseq
  %v1248 = vshrl.u32 %v1247, 7
  %v1249 = vsub.s32 0, %v1248
  %v1250 = vrot.slane %v1245, %v1249
  %v1252 = vmul.f32 %v1180, %v1250
  %v1253 = vmul.f32 %v1181, %v1250
  %v1254 = vmul.f32 %v1182, %v1250
  %v1255 = vmul.f32 %v1183, %v1250
  %v1256 = vmul.f32 %v1184, %v1250
  %v1257 = vmul.f32 %v1185, %v1250
  %v1258 = vmul.f32 %v1186, %v1250
  %v1259 = vmul.f32 %v1187, %v1250
  %v1260 = vmul.f32 %v1188, %v1250
  %v1261 = vmul.f32 %v1189, %v1250
  %v1262 = vmul.f32 %v1190, %v1250
  %v1263 = vmul.f32 %v1191, %v1250
  %v1264 = vmul.f32 %v1192, %v1250
  %v1265 = vmul.f32 %v1193, %v1250
  %v1266 = vmul.f32 %v1194, %v1250
  %v1267 = vmul.f32 %v1195, %v1250
  %v1268 = vmul.f32 %v1196, %v1250
  %v1269 = vmul.f32 %v1197, %v1250
  %v1270 = vmul.f32 %v1198, %v1250
  %v1271 = vmul.f32 %v1199, %v1250
  %v1272 = vmul.f32 %v1200, %v1250
  %v1273 = vmul.f32 %v1201, %v1250
  %v1274 = vmul.f32 %v1202, %v1250
  %v1275 = vmul.f32 %v1203, %v1250
  %v1276 = vmul.f32 %v1204, %v1250
  %v1277 = vmul.f32 %v1205, %v1250
  %v1278 = vmul.f32 %v1206, %v1250
  %v1279 = vmul.f32 %v1207, %v1250
  %v1280 = vmul.f32 %v1208, %v1250
  %v1281 = vmul.f32 %v1209, %v1250
  %v1282 = vmul.f32 %v1210, %v1250
  %v1283 = vmul.f32 %v1211, %v1250
  %v1284 = vmul.f32 %v1212, %v1250
  %v1285 = vmul.f32 %v1213, %v1250
  %v1286 = vmul.f32 %v1214, %v1250
  %v1287 = vmul.f32 %v1215, %v1250
  %v1288 = vmul.f32 %v1216, %v1250
  %v1289 = vmul.f32 %v1217, %v1250
  %v1290 = vmul.f32 %v1218, %v1250
  %v1291 = vmul.f32 %v1219, %v1250
  %v1292 = vmul.f32 %v1220, %v1250
  %v1293 = vmul.f32 %v1221, %v1250
  %v1294 = vmul.f32 %v1222, %v1250
  %v1295 = vmul.f32 %v1223, %v1250
  %v1296 = vmul.f32 %v1224, %v1250
  %v1297 = vmul.f32 %v1225, %v1250
  %v1298 = vmul.f32 %v1226, %v1250
  %v1299 = vmul.f32 %v1227, %v1250
  %v1300 = vmul.f32 %v1228, %v1250
  %v1301 = vmul.f32 %v1229, %v1250
  %v1302 = vmul.f32 %v1230, %v1250
  %v1303 = vmul.f32 %v1231, %v1250
  %v1304 = vmul.f32 %v1232, %v1250
  %v1305 = vmul.f32 %v1233, %v1250
  %v1306 = vmul.f32 %v1234, %v1250
  %v1307 = vmul.f32 %v1235, %v1250
  %v1308 = vmul.f32 %v1236, %v1250
  %v1309 = vmul.f32 %v1237, %v1250
  %v1310 = vmul.f32 %v1238, %v1250
  %v1311 = vmul.f32 %v1239, %v1250
  %v1312 = vmul.f32 %v1240, %v1250
  %v1313 = vmul.f32 %v1241, %v1250
  %v1314 = vmul.f32 %v1242, %v1250
  %v1315 = vmul.f32 %v1243, %v1250
  %v1316 = vadd.f32 %v1116, %v1252
  %v1317 = vadd.f32 %v1117, %v1253
  %v1318 = vadd.f32 %v1118, %v1254
  %v1319 = vadd.f32 %v1119, %v1255
  %v1320 = vadd.f32 %v1120, %v1256
  %v1321 = vadd.f32 %v1121, %v1257
  %v1322 = vadd.f32 %v1122, %v1258
  %v1323 = vadd.f32 %v1123, %v1259
  %v1324 = vadd.f32 %v1124, %v1260
  %v1325 = vadd.f32 %v1125, %v1261
  %v1326 = vadd.f32 %v1126, %v1262
  %v1327 = vadd.f32 %v1127, %v1263
  %v1328 = vadd.f32 %v1128, %v1264
  %v1329 = vadd.f32 %v1129, %v1265
  %v1330 = vadd.f32 %v1130, %v1266
  %v1331 = vadd.f32 %v1131, %v1267
  %v1332 = vadd.f32 %v1132, %v1268
  %v1333 = vadd.f32 %v1133, %v1269
  %v1334 = vadd.f32 %v1134, %v1270
  %v1335 = vadd.f32 %v1135, %v1271
  %v1336 = vadd.f32 %v1136, %v1272
  %v1337 = vadd.f32 %v1137, %v1273
  %v1338 = vadd.f32 %v1138, %v1274
  %v1339 = vadd.f32 %v1139, %v1275
  %v1340 = vadd.f32 %v1140, %v1276
  %v1341 = vadd.f32 %v1141, %v1277
  %v1342 = vadd.f32 %v1142, %v1278
  %v1343 = vadd.f32 %v1143, %v1279
  %v1344 = vadd.f32 %v1144, %v1280
  %v1345 = vadd.f32 %v1145, %v1281
  %v1346 = vadd.f32 %v1146, %v1282
  %v1347 = vadd.f32 %v1147, %v1283
  %v1348 = vadd.f32 %v1148, %v1284
  %v1349 = vadd.f32 %v1149, %v1285
  %v1350 = vadd.f32 %v1150, %v1286
  %v1351 = vadd.f32 %v1151, %v1287
  %v1352 = vadd.f32 %v1152, %v1288
  %v1353 = vadd.f32 %v1153, %v1289
  %v1354 = vadd.f32 %v1154, %v1290
  %v1355 = vadd.f32 %v1155, %v1291
  %v1356 = vadd.f32 %v1156, %v1292
  %v1357 = vadd.f32 %v1157, %v1293
  %v1358 = vadd.f32 %v1158, %v1294
  %v1359 = vadd.f32 %v1159, %v1295
  %v1360 = vadd.f32 %v1160, %v1296
  %v1361 = vadd.f32 %v1161, %v1297
  %v1362 = vadd.f32 %v1162, %v1298
  %v1363 = vadd.f32 %v1163, %v1299
  %v1364 = vadd.f32 %v1164, %v1300
  %v1365 = vadd.f32 %v1165, %v1301
  %v1366 = vadd.f32 %v1166, %v1302
  %v1367 = vadd.f32 %v1167, %v1303
  %v1368 = vadd.f32 %v1168, %v1304
  %v1369 = vadd.f32 %v1169, %v1305
  %v1370 = vadd.f32 %v1170, %v1306
  %v1371 = vadd.f32 %v1171, %v1307
  %v1372 = vadd.f32 %v1172, %v1308
  %v1373 = vadd.f32 %v1173, %v1309
  %v1374 = vadd.f32 %v1174, %v1310
  %v1375 = vadd.f32 %v1175, %v1311
  %v1376 = vadd.f32 %v1176, %v1312
  %v1377 = vadd.f32 %v1177, %v1313
  %v1378 = vadd.f32 %v1178, %v1314
  %v1379 = vadd.f32 %v1179, %v1315
  %v1380 = vld [vmem:[%s7] sm:$0xff]
  %v1381 = vld [vmem:[%s7 + $0x8] sm:$0xff]
  %v1382 = vld [vmem:[%s7 + $0x10] sm:$0xff]
  %v1383 = vld [vmem:[%s7 + $0x18] sm:$0xff]
  %v1384 = vld [vmem:[%s7 + $0x20] sm:$0xff]
  %v1385 = vld [vmem:[%s7 + $0x28] sm:$0xff]
  %v1386 = vld [vmem:[%s7 + $0x30] sm:$0xff]
  %v1387 = vld [vmem:[%s7 + $0x38] sm:$0xff]
  %v1388 = vld [vmem:[%s7 + $0x40] sm:$0xff]
  %v1389 = vld [vmem:[%s7 + $0x48] sm:$0xff]
  %v1390 = vld [vmem:[%s7 + $0x50] sm:$0xff]
  %v1391 = vld [vmem:[%s7 + $0x58] sm:$0xff]
  %v1392 = vld [vmem:[%s7 + $0x60] sm:$0xff]
  %v1393 = vld [vmem:[%s7 + $0x68] sm:$0xff]
  %v1394 = vld [vmem:[%s7 + $0x70] sm:$0xff]
  %v1395 = vld [vmem:[%s7 + $0x78] sm:$0xff]
  %v1396 = vld [vmem:[%s7 + $0x80] sm:$0xff]
  %v1397 = vld [vmem:[%s7 + $0x88] sm:$0xff]
  %v1398 = vld [vmem:[%s7 + $0x90] sm:$0xff]
  %v1399 = vld [vmem:[%s7 + $0x98] sm:$0xff]
  %v1400 = vld [vmem:[%s7 + $0xa0] sm:$0xff]
  %v1401 = vld [vmem:[%s7 + $0xa8] sm:$0xff]
  %v1402 = vld [vmem:[%s7 + $0xb0] sm:$0xff]
  %v1403 = vld [vmem:[%s7 + $0xb8] sm:$0xff]
  %v1404 = vld [vmem:[%s7 + $0xc0] sm:$0xff]
  %v1405 = vld [vmem:[%s7 + $0xc8] sm:$0xff]
  %v1406 = vld [vmem:[%s7 + $0xd0] sm:$0xff]
  %v1407 = vld [vmem:[%s7 + $0xd8] sm:$0xff]
  %v1408 = vld [vmem:[%s7 + $0xe0] sm:$0xff]
  %v1409 = vld [vmem:[%s7 + $0xe8] sm:$0xff]
  %v1410 = vld [vmem:[%s7 + $0xf0] sm:$0xff]
  %v1411 = vld [vmem:[%s7 + $0xf8] sm:$0xff]
  %v1412 = vld [vmem:[%s7 + $0x100] sm:$0xff]
  %v1413 = vld [vmem:[%s7 + $0x108] sm:$0xff]
  %v1414 = vld [vmem:[%s7 + $0x110] sm:$0xff]
  %v1415 = vld [vmem:[%s7 + $0x118] sm:$0xff]
  %v1416 = vld [vmem:[%s7 + $0x120] sm:$0xff]
  %v1417 = vld [vmem:[%s7 + $0x128] sm:$0xff]
  %v1418 = vld [vmem:[%s7 + $0x130] sm:$0xff]
  %v1419 = vld [vmem:[%s7 + $0x138] sm:$0xff]
  %v1420 = vld [vmem:[%s7 + $0x140] sm:$0xff]
  %v1421 = vld [vmem:[%s7 + $0x148] sm:$0xff]
  %v1422 = vld [vmem:[%s7 + $0x150] sm:$0xff]
  %v1423 = vld [vmem:[%s7 + $0x158] sm:$0xff]
  %v1424 = vld [vmem:[%s7 + $0x160] sm:$0xff]
  %v1425 = vld [vmem:[%s7 + $0x168] sm:$0xff]
  %v1426 = vld [vmem:[%s7 + $0x170] sm:$0xff]
  %v1427 = vld [vmem:[%s7 + $0x178] sm:$0xff]
  %v1428 = vld [vmem:[%s7 + $0x180] sm:$0xff]
  %v1429 = vld [vmem:[%s7 + $0x188] sm:$0xff]
  %v1430 = vld [vmem:[%s7 + $0x190] sm:$0xff]
  %v1431 = vld [vmem:[%s7 + $0x198] sm:$0xff]
  %v1432 = vld [vmem:[%s7 + $0x1a0] sm:$0xff]
  %v1433 = vld [vmem:[%s7 + $0x1a8] sm:$0xff]
  %v1434 = vld [vmem:[%s7 + $0x1b0] sm:$0xff]
  %v1435 = vld [vmem:[%s7 + $0x1b8] sm:$0xff]
  %v1436 = vld [vmem:[%s7 + $0x1c0] sm:$0xff]
  %v1437 = vld [vmem:[%s7 + $0x1c8] sm:$0xff]
  %v1438 = vld [vmem:[%s7 + $0x1d0] sm:$0xff]
  %v1439 = vld [vmem:[%s7 + $0x1d8] sm:$0xff]
  %v1440 = vld [vmem:[%s7 + $0x1e0] sm:$0xff]
  %v1441 = vld [vmem:[%s7 + $0x1e8] sm:$0xff]
  %v1442 = vld [vmem:[%s7 + $0x1f0] sm:$0xff]
  %v1443 = vld [vmem:[%s7 + $0x1f8] sm:$0xff]
  %s1444 = scalar_lea.vmem %s9, 7
  %v1445 = vld [vmem:[%s1444] sm:$0x1]
  %v1447 = vlaneseq
  %v1448 = vshrl.u32 %v1447, 7
  %v1449 = vsub.s32 0, %v1448
  %v1450 = vrot.slane %v1445, %v1449
  %v1452 = vmul.f32 %v1380, %v1450
  %v1453 = vmul.f32 %v1381, %v1450
  %v1454 = vmul.f32 %v1382, %v1450
  %v1455 = vmul.f32 %v1383, %v1450
  %v1456 = vmul.f32 %v1384, %v1450
  %v1457 = vmul.f32 %v1385, %v1450
  %v1458 = vmul.f32 %v1386, %v1450
  %v1459 = vmul.f32 %v1387, %v1450
  %v1460 = vmul.f32 %v1388, %v1450
  %v1461 = vmul.f32 %v1389, %v1450
  %v1462 = vmul.f32 %v1390, %v1450
  %v1463 = vmul.f32 %v1391, %v1450
  %v1464 = vmul.f32 %v1392, %v1450
  %v1465 = vmul.f32 %v1393, %v1450
  %v1466 = vmul.f32 %v1394, %v1450
  %v1467 = vmul.f32 %v1395, %v1450
  %v1468 = vmul.f32 %v1396, %v1450
  %v1469 = vmul.f32 %v1397, %v1450
  %v1470 = vmul.f32 %v1398, %v1450
  %v1471 = vmul.f32 %v1399, %v1450
  %v1472 = vmul.f32 %v1400, %v1450
  %v1473 = vmul.f32 %v1401, %v1450
  %v1474 = vmul.f32 %v1402, %v1450
  %v1475 = vmul.f32 %v1403, %v1450
  %v1476 = vmul.f32 %v1404, %v1450
  %v1477 = vmul.f32 %v1405, %v1450
  %v1478 = vmul.f32 %v1406, %v1450
  %v1479 = vmul.f32 %v1407, %v1450
  %v1480 = vmul.f32 %v1408, %v1450
  %v1481 = vmul.f32 %v1409, %v1450
  %v1482 = vmul.f32 %v1410, %v1450
  %v1483 = vmul.f32 %v1411, %v1450
  %v1484 = vmul.f32 %v1412, %v1450
  %v1485 = vmul.f32 %v1413, %v1450
  %v1486 = vmul.f32 %v1414, %v1450
  %v1487 = vmul.f32 %v1415, %v1450
  %v1488 = vmul.f32 %v1416, %v1450
  %v1489 = vmul.f32 %v1417, %v1450
  %v1490 = vmul.f32 %v1418, %v1450
  %v1491 = vmul.f32 %v1419, %v1450
  %v1492 = vmul.f32 %v1420, %v1450
  %v1493 = vmul.f32 %v1421, %v1450
  %v1494 = vmul.f32 %v1422, %v1450
  %v1495 = vmul.f32 %v1423, %v1450
  %v1496 = vmul.f32 %v1424, %v1450
  %v1497 = vmul.f32 %v1425, %v1450
  %v1498 = vmul.f32 %v1426, %v1450
  %v1499 = vmul.f32 %v1427, %v1450
  %v1500 = vmul.f32 %v1428, %v1450
  %v1501 = vmul.f32 %v1429, %v1450
  %v1502 = vmul.f32 %v1430, %v1450
  %v1503 = vmul.f32 %v1431, %v1450
  %v1504 = vmul.f32 %v1432, %v1450
  %v1505 = vmul.f32 %v1433, %v1450
  %v1506 = vmul.f32 %v1434, %v1450
  %v1507 = vmul.f32 %v1435, %v1450
  %v1508 = vmul.f32 %v1436, %v1450
  %v1509 = vmul.f32 %v1437, %v1450
  %v1510 = vmul.f32 %v1438, %v1450
  %v1511 = vmul.f32 %v1439, %v1450
  %v1512 = vmul.f32 %v1440, %v1450
  %v1513 = vmul.f32 %v1441, %v1450
  %v1514 = vmul.f32 %v1442, %v1450
  %v1515 = vmul.f32 %v1443, %v1450
  %v1516 = vadd.f32 %v1316, %v1452
  %v1517 = vadd.f32 %v1317, %v1453
  %v1518 = vadd.f32 %v1318, %v1454
  %v1519 = vadd.f32 %v1319, %v1455
  %v1520 = vadd.f32 %v1320, %v1456
  %v1521 = vadd.f32 %v1321, %v1457
  %v1522 = vadd.f32 %v1322, %v1458
  %v1523 = vadd.f32 %v1323, %v1459
  %v1524 = vadd.f32 %v1324, %v1460
  %v1525 = vadd.f32 %v1325, %v1461
  %v1526 = vadd.f32 %v1326, %v1462
  %v1527 = vadd.f32 %v1327, %v1463
  %v1528 = vadd.f32 %v1328, %v1464
  %v1529 = vadd.f32 %v1329, %v1465
  %v1530 = vadd.f32 %v1330, %v1466
  %v1531 = vadd.f32 %v1331, %v1467
  %v1532 = vadd.f32 %v1332, %v1468
  %v1533 = vadd.f32 %v1333, %v1469
  %v1534 = vadd.f32 %v1334, %v1470
  %v1535 = vadd.f32 %v1335, %v1471
  %v1536 = vadd.f32 %v1336, %v1472
  %v1537 = vadd.f32 %v1337, %v1473
  %v1538 = vadd.f32 %v1338, %v1474
  %v1539 = vadd.f32 %v1339, %v1475
  %v1540 = vadd.f32 %v1340, %v1476
  %v1541 = vadd.f32 %v1341, %v1477
  %v1542 = vadd.f32 %v1342, %v1478
  %v1543 = vadd.f32 %v1343, %v1479
  %v1544 = vadd.f32 %v1344, %v1480
  %v1545 = vadd.f32 %v1345, %v1481
  %v1546 = vadd.f32 %v1346, %v1482
  %v1547 = vadd.f32 %v1347, %v1483
  %v1548 = vadd.f32 %v1348, %v1484
  %v1549 = vadd.f32 %v1349, %v1485
  %v1550 = vadd.f32 %v1350, %v1486
  %v1551 = vadd.f32 %v1351, %v1487
  %v1552 = vadd.f32 %v1352, %v1488
  %v1553 = vadd.f32 %v1353, %v1489
  %v1554 = vadd.f32 %v1354, %v1490
  %v1555 = vadd.f32 %v1355, %v1491
  %v1556 = vadd.f32 %v1356, %v1492
  %v1557 = vadd.f32 %v1357, %v1493
  %v1558 = vadd.f32 %v1358, %v1494
  %v1559 = vadd.f32 %v1359, %v1495
  %v1560 = vadd.f32 %v1360, %v1496
  %v1561 = vadd.f32 %v1361, %v1497
  %v1562 = vadd.f32 %v1362, %v1498
  %v1563 = vadd.f32 %v1363, %v1499
  %v1564 = vadd.f32 %v1364, %v1500
  %v1565 = vadd.f32 %v1365, %v1501
  %v1566 = vadd.f32 %v1366, %v1502
  %v1567 = vadd.f32 %v1367, %v1503
  %v1568 = vadd.f32 %v1368, %v1504
  %v1569 = vadd.f32 %v1369, %v1505
  %v1570 = vadd.f32 %v1370, %v1506
  %v1571 = vadd.f32 %v1371, %v1507
  %v1572 = vadd.f32 %v1372, %v1508
  %v1573 = vadd.f32 %v1373, %v1509
  %v1574 = vadd.f32 %v1374, %v1510
  %v1575 = vadd.f32 %v1375, %v1511
  %v1576 = vadd.f32 %v1376, %v1512
  %v1577 = vadd.f32 %v1377, %v1513
  %v1578 = vadd.f32 %v1378, %v1514
  %v1579 = vadd.f32 %v1379, %v1515
  %v1580 = vld [vmem:[%s8] sm:$0xff]
  %v1581 = vld [vmem:[%s8 + $0x8] sm:$0xff]
  %v1582 = vld [vmem:[%s8 + $0x10] sm:$0xff]
  %v1583 = vld [vmem:[%s8 + $0x18] sm:$0xff]
  %v1584 = vld [vmem:[%s8 + $0x20] sm:$0xff]
  %v1585 = vld [vmem:[%s8 + $0x28] sm:$0xff]
  %v1586 = vld [vmem:[%s8 + $0x30] sm:$0xff]
  %v1587 = vld [vmem:[%s8 + $0x38] sm:$0xff]
  %v1588 = vld [vmem:[%s8 + $0x40] sm:$0xff]
  %v1589 = vld [vmem:[%s8 + $0x48] sm:$0xff]
  %v1590 = vld [vmem:[%s8 + $0x50] sm:$0xff]
  %v1591 = vld [vmem:[%s8 + $0x58] sm:$0xff]
  %v1592 = vld [vmem:[%s8 + $0x60] sm:$0xff]
  %v1593 = vld [vmem:[%s8 + $0x68] sm:$0xff]
  %v1594 = vld [vmem:[%s8 + $0x70] sm:$0xff]
  %v1595 = vld [vmem:[%s8 + $0x78] sm:$0xff]
  %v1596 = vld [vmem:[%s8 + $0x80] sm:$0xff]
  %v1597 = vld [vmem:[%s8 + $0x88] sm:$0xff]
  %v1598 = vld [vmem:[%s8 + $0x90] sm:$0xff]
  %v1599 = vld [vmem:[%s8 + $0x98] sm:$0xff]
  %v1600 = vld [vmem:[%s8 + $0xa0] sm:$0xff]
  %v1601 = vld [vmem:[%s8 + $0xa8] sm:$0xff]
  %v1602 = vld [vmem:[%s8 + $0xb0] sm:$0xff]
  %v1603 = vld [vmem:[%s8 + $0xb8] sm:$0xff]
  %v1604 = vld [vmem:[%s8 + $0xc0] sm:$0xff]
  %v1605 = vld [vmem:[%s8 + $0xc8] sm:$0xff]
  %v1606 = vld [vmem:[%s8 + $0xd0] sm:$0xff]
  %v1607 = vld [vmem:[%s8 + $0xd8] sm:$0xff]
  %v1608 = vld [vmem:[%s8 + $0xe0] sm:$0xff]
  %v1609 = vld [vmem:[%s8 + $0xe8] sm:$0xff]
  %v1610 = vld [vmem:[%s8 + $0xf0] sm:$0xff]
  %v1611 = vld [vmem:[%s8 + $0xf8] sm:$0xff]
  %v1612 = vld [vmem:[%s8 + $0x100] sm:$0xff]
  %v1613 = vld [vmem:[%s8 + $0x108] sm:$0xff]
  %v1614 = vld [vmem:[%s8 + $0x110] sm:$0xff]
  %v1615 = vld [vmem:[%s8 + $0x118] sm:$0xff]
  %v1616 = vld [vmem:[%s8 + $0x120] sm:$0xff]
  %v1617 = vld [vmem:[%s8 + $0x128] sm:$0xff]
  %v1618 = vld [vmem:[%s8 + $0x130] sm:$0xff]
  %v1619 = vld [vmem:[%s8 + $0x138] sm:$0xff]
  %v1620 = vld [vmem:[%s8 + $0x140] sm:$0xff]
  %v1621 = vld [vmem:[%s8 + $0x148] sm:$0xff]
  %v1622 = vld [vmem:[%s8 + $0x150] sm:$0xff]
  %v1623 = vld [vmem:[%s8 + $0x158] sm:$0xff]
  %v1624 = vld [vmem:[%s8 + $0x160] sm:$0xff]
  %v1625 = vld [vmem:[%s8 + $0x168] sm:$0xff]
  %v1626 = vld [vmem:[%s8 + $0x170] sm:$0xff]
  %v1627 = vld [vmem:[%s8 + $0x178] sm:$0xff]
  %v1628 = vld [vmem:[%s8 + $0x180] sm:$0xff]
  %v1629 = vld [vmem:[%s8 + $0x188] sm:$0xff]
  %v1630 = vld [vmem:[%s8 + $0x190] sm:$0xff]
  %v1631 = vld [vmem:[%s8 + $0x198] sm:$0xff]
  %v1632 = vld [vmem:[%s8 + $0x1a0] sm:$0xff]
  %v1633 = vld [vmem:[%s8 + $0x1a8] sm:$0xff]
  %v1634 = vld [vmem:[%s8 + $0x1b0] sm:$0xff]
  %v1635 = vld [vmem:[%s8 + $0x1b8] sm:$0xff]
  %v1636 = vld [vmem:[%s8 + $0x1c0] sm:$0xff]
  %v1637 = vld [vmem:[%s8 + $0x1c8] sm:$0xff]
  %v1638 = vld [vmem:[%s8 + $0x1d0] sm:$0xff]
  %v1639 = vld [vmem:[%s8 + $0x1d8] sm:$0xff]
  %v1640 = vld [vmem:[%s8 + $0x1e0] sm:$0xff]
  %v1641 = vld [vmem:[%s8 + $0x1e8] sm:$0xff]
  %v1642 = vld [vmem:[%s8 + $0x1f0] sm:$0xff]
  %v1643 = vld [vmem:[%s8 + $0x1f8] sm:$0xff]
  %s1644 = scalar_lea.vmem %s9, 8
  %v1645 = vld [vmem:[%s1644] sm:$0x1]
  %v1647 = vlaneseq
  %v1648 = vshrl.u32 %v1647, 7
  %v1649 = vsub.s32 0, %v1648
  %v1650 = vrot.slane %v1645, %v1649
  %v1652 = vmul.f32 %v1580, %v1650
  %v1653 = vmul.f32 %v1581, %v1650
  %v1654 = vmul.f32 %v1582, %v1650
  %v1655 = vmul.f32 %v1583, %v1650
  %v1656 = vmul.f32 %v1584, %v1650
  %v1657 = vmul.f32 %v1585, %v1650
  %v1658 = vmul.f32 %v1586, %v1650
  %v1659 = vmul.f32 %v1587, %v1650
  %v1660 = vmul.f32 %v1588, %v1650
  %v1661 = vmul.f32 %v1589, %v1650
  %v1662 = vmul.f32 %v1590, %v1650
  %v1663 = vmul.f32 %v1591, %v1650
  %v1664 = vmul.f32 %v1592, %v1650
  %v1665 = vmul.f32 %v1593, %v1650
  %v1666 = vmul.f32 %v1594, %v1650
  %v1667 = vmul.f32 %v1595, %v1650
  %v1668 = vmul.f32 %v1596, %v1650
  %v1669 = vmul.f32 %v1597, %v1650
  %v1670 = vmul.f32 %v1598, %v1650
  %v1671 = vmul.f32 %v1599, %v1650
  %v1672 = vmul.f32 %v1600, %v1650
  %v1673 = vmul.f32 %v1601, %v1650
  %v1674 = vmul.f32 %v1602, %v1650
  %v1675 = vmul.f32 %v1603, %v1650
  %v1676 = vmul.f32 %v1604, %v1650
  %v1677 = vmul.f32 %v1605, %v1650
  %v1678 = vmul.f32 %v1606, %v1650
  %v1679 = vmul.f32 %v1607, %v1650
  %v1680 = vmul.f32 %v1608, %v1650
  %v1681 = vmul.f32 %v1609, %v1650
  %v1682 = vmul.f32 %v1610, %v1650
  %v1683 = vmul.f32 %v1611, %v1650
  %v1684 = vmul.f32 %v1612, %v1650
  %v1685 = vmul.f32 %v1613, %v1650
  %v1686 = vmul.f32 %v1614, %v1650
  %v1687 = vmul.f32 %v1615, %v1650
  %v1688 = vmul.f32 %v1616, %v1650
  %v1689 = vmul.f32 %v1617, %v1650
  %v1690 = vmul.f32 %v1618, %v1650
  %v1691 = vmul.f32 %v1619, %v1650
  %v1692 = vmul.f32 %v1620, %v1650
  %v1693 = vmul.f32 %v1621, %v1650
  %v1694 = vmul.f32 %v1622, %v1650
  %v1695 = vmul.f32 %v1623, %v1650
  %v1696 = vmul.f32 %v1624, %v1650
  %v1697 = vmul.f32 %v1625, %v1650
  %v1698 = vmul.f32 %v1626, %v1650
  %v1699 = vmul.f32 %v1627, %v1650
  %v1700 = vmul.f32 %v1628, %v1650
  %v1701 = vmul.f32 %v1629, %v1650
  %v1702 = vmul.f32 %v1630, %v1650
  %v1703 = vmul.f32 %v1631, %v1650
  %v1704 = vmul.f32 %v1632, %v1650
  %v1705 = vmul.f32 %v1633, %v1650
  %v1706 = vmul.f32 %v1634, %v1650
  %v1707 = vmul.f32 %v1635, %v1650
  %v1708 = vmul.f32 %v1636, %v1650
  %v1709 = vmul.f32 %v1637, %v1650
  %v1710 = vmul.f32 %v1638, %v1650
  %v1711 = vmul.f32 %v1639, %v1650
  %v1712 = vmul.f32 %v1640, %v1650
  %v1713 = vmul.f32 %v1641, %v1650
  %v1714 = vmul.f32 %v1642, %v1650
  %v1715 = vmul.f32 %v1643, %v1650
  %v1716 = vadd.f32 %v1516, %v1652
  %v1717 = vadd.f32 %v1517, %v1653
  %v1718 = vadd.f32 %v1518, %v1654
  %v1719 = vadd.f32 %v1519, %v1655
  %v1720 = vadd.f32 %v1520, %v1656
  %v1721 = vadd.f32 %v1521, %v1657
  %v1722 = vadd.f32 %v1522, %v1658
  %v1723 = vadd.f32 %v1523, %v1659
  %v1724 = vadd.f32 %v1524, %v1660
  %v1725 = vadd.f32 %v1525, %v1661
  %v1726 = vadd.f32 %v1526, %v1662
  %v1727 = vadd.f32 %v1527, %v1663
  %v1728 = vadd.f32 %v1528, %v1664
  %v1729 = vadd.f32 %v1529, %v1665
  %v1730 = vadd.f32 %v1530, %v1666
  %v1731 = vadd.f32 %v1531, %v1667
  %v1732 = vadd.f32 %v1532, %v1668
  %v1733 = vadd.f32 %v1533, %v1669
  %v1734 = vadd.f32 %v1534, %v1670
  %v1735 = vadd.f32 %v1535, %v1671
  %v1736 = vadd.f32 %v1536, %v1672
  %v1737 = vadd.f32 %v1537, %v1673
  %v1738 = vadd.f32 %v1538, %v1674
  %v1739 = vadd.f32 %v1539, %v1675
  %v1740 = vadd.f32 %v1540, %v1676
  %v1741 = vadd.f32 %v1541, %v1677
  %v1742 = vadd.f32 %v1542, %v1678
  %v1743 = vadd.f32 %v1543, %v1679
  %v1744 = vadd.f32 %v1544, %v1680
  %v1745 = vadd.f32 %v1545, %v1681
  %v1746 = vadd.f32 %v1546, %v1682
  %v1747 = vadd.f32 %v1547, %v1683
  %v1748 = vadd.f32 %v1548, %v1684
  %v1749 = vadd.f32 %v1549, %v1685
  %v1750 = vadd.f32 %v1550, %v1686
  %v1751 = vadd.f32 %v1551, %v1687
  %v1752 = vadd.f32 %v1552, %v1688
  %v1753 = vadd.f32 %v1553, %v1689
  %v1754 = vadd.f32 %v1554, %v1690
  %v1755 = vadd.f32 %v1555, %v1691
  %v1756 = vadd.f32 %v1556, %v1692
  %v1757 = vadd.f32 %v1557, %v1693
  %v1758 = vadd.f32 %v1558, %v1694
  %v1759 = vadd.f32 %v1559, %v1695
  %v1760 = vadd.f32 %v1560, %v1696
  %v1761 = vadd.f32 %v1561, %v1697
  %v1762 = vadd.f32 %v1562, %v1698
  %v1763 = vadd.f32 %v1563, %v1699
  %v1764 = vadd.f32 %v1564, %v1700
  %v1765 = vadd.f32 %v1565, %v1701
  %v1766 = vadd.f32 %v1566, %v1702
  %v1767 = vadd.f32 %v1567, %v1703
  %v1768 = vadd.f32 %v1568, %v1704
  %v1769 = vadd.f32 %v1569, %v1705
  %v1770 = vadd.f32 %v1570, %v1706
  %v1771 = vadd.f32 %v1571, %v1707
  %v1772 = vadd.f32 %v1572, %v1708
  %v1773 = vadd.f32 %v1573, %v1709
  %v1774 = vadd.f32 %v1574, %v1710
  %v1775 = vadd.f32 %v1575, %v1711
  %v1776 = vadd.f32 %v1576, %v1712
  %v1777 = vadd.f32 %v1577, %v1713
  %v1778 = vadd.f32 %v1578, %v1714
  %v1779 = vadd.f32 %v1579, %v1715
  %v1780 = vld [vmem:[%s10] sm:$0x1]
  %v1782 = vlaneseq
  %v1783 = vshrl.u32 %v1782, 7
  %v1784 = vsub.s32 0, %v1783
  %v1785 = vrot.slane %v1780, %v1784
  %v1787 = vadd.f32 %v1716, %v1785
  %v1788 = vadd.f32 %v1717, %v1785
  %v1789 = vadd.f32 %v1718, %v1785
  %v1790 = vadd.f32 %v1719, %v1785
  %v1791 = vadd.f32 %v1720, %v1785
  %v1792 = vadd.f32 %v1721, %v1785
  %v1793 = vadd.f32 %v1722, %v1785
  %v1794 = vadd.f32 %v1723, %v1785
  %v1795 = vadd.f32 %v1724, %v1785
  %v1796 = vadd.f32 %v1725, %v1785
  %v1797 = vadd.f32 %v1726, %v1785
  %v1798 = vadd.f32 %v1727, %v1785
  %v1799 = vadd.f32 %v1728, %v1785
  %v1800 = vadd.f32 %v1729, %v1785
  %v1801 = vadd.f32 %v1730, %v1785
  %v1802 = vadd.f32 %v1731, %v1785
  %v1803 = vadd.f32 %v1732, %v1785
  %v1804 = vadd.f32 %v1733, %v1785
  %v1805 = vadd.f32 %v1734, %v1785
  %v1806 = vadd.f32 %v1735, %v1785
  %v1807 = vadd.f32 %v1736, %v1785
  %v1808 = vadd.f32 %v1737, %v1785
  %v1809 = vadd.f32 %v1738, %v1785
  %v1810 = vadd.f32 %v1739, %v1785
  %v1811 = vadd.f32 %v1740, %v1785
  %v1812 = vadd.f32 %v1741, %v1785
  %v1813 = vadd.f32 %v1742, %v1785
  %v1814 = vadd.f32 %v1743, %v1785
  %v1815 = vadd.f32 %v1744, %v1785
  %v1816 = vadd.f32 %v1745, %v1785
  %v1817 = vadd.f32 %v1746, %v1785
  %v1818 = vadd.f32 %v1747, %v1785
  %v1819 = vadd.f32 %v1748, %v1785
  %v1820 = vadd.f32 %v1749, %v1785
  %v1821 = vadd.f32 %v1750, %v1785
  %v1822 = vadd.f32 %v1751, %v1785
  %v1823 = vadd.f32 %v1752, %v1785
  %v1824 = vadd.f32 %v1753, %v1785
  %v1825 = vadd.f32 %v1754, %v1785
  %v1826 = vadd.f32 %v1755, %v1785
  %v1827 = vadd.f32 %v1756, %v1785
  %v1828 = vadd.f32 %v1757, %v1785
  %v1829 = vadd.f32 %v1758, %v1785
  %v1830 = vadd.f32 %v1759, %v1785
  %v1831 = vadd.f32 %v1760, %v1785
  %v1832 = vadd.f32 %v1761, %v1785
  %v1833 = vadd.f32 %v1762, %v1785
  %v1834 = vadd.f32 %v1763, %v1785
  %v1835 = vadd.f32 %v1764, %v1785
  %v1836 = vadd.f32 %v1765, %v1785
  %v1837 = vadd.f32 %v1766, %v1785
  %v1838 = vadd.f32 %v1767, %v1785
  %v1839 = vadd.f32 %v1768, %v1785
  %v1840 = vadd.f32 %v1769, %v1785
  %v1841 = vadd.f32 %v1770, %v1785
  %v1842 = vadd.f32 %v1771, %v1785
  %v1843 = vadd.f32 %v1772, %v1785
  %v1844 = vadd.f32 %v1773, %v1785
  %v1845 = vadd.f32 %v1774, %v1785
  %v1846 = vadd.f32 %v1775, %v1785
  %v1847 = vadd.f32 %v1776, %v1785
  %v1848 = vadd.f32 %v1777, %v1785
  %v1849 = vadd.f32 %v1778, %v1785
  %v1850 = vadd.f32 %v1779, %v1785
  %v1851 = vmax.f32 %v1787, 0.0
  %v1852 = vmax.f32 %v1788, 0.0
  %v1853 = vmax.f32 %v1789, 0.0
  %v1854 = vmax.f32 %v1790, 0.0
  %v1855 = vmax.f32 %v1791, 0.0
  %v1856 = vmax.f32 %v1792, 0.0
  %v1857 = vmax.f32 %v1793, 0.0
  %v1858 = vmax.f32 %v1794, 0.0
  %v1859 = vmax.f32 %v1795, 0.0
  %v1860 = vmax.f32 %v1796, 0.0
  %v1861 = vmax.f32 %v1797, 0.0
  %v1862 = vmax.f32 %v1798, 0.0
  %v1863 = vmax.f32 %v1799, 0.0
  %v1864 = vmax.f32 %v1800, 0.0
  %v1865 = vmax.f32 %v1801, 0.0
  %v1866 = vmax.f32 %v1802, 0.0
  %v1867 = vmax.f32 %v1803, 0.0
  %v1868 = vmax.f32 %v1804, 0.0
  %v1869 = vmax.f32 %v1805, 0.0
  %v1870 = vmax.f32 %v1806, 0.0
  %v1871 = vmax.f32 %v1807, 0.0
  %v1872 = vmax.f32 %v1808, 0.0
  %v1873 = vmax.f32 %v1809, 0.0
  %v1874 = vmax.f32 %v1810, 0.0
  %v1875 = vmax.f32 %v1811, 0.0
  %v1876 = vmax.f32 %v1812, 0.0
  %v1877 = vmax.f32 %v1813, 0.0
  %v1878 = vmax.f32 %v1814, 0.0
  %v1879 = vmax.f32 %v1815, 0.0
  %v1880 = vmax.f32 %v1816, 0.0
  %v1881 = vmax.f32 %v1817, 0.0
  %v1882 = vmax.f32 %v1818, 0.0
  %v1883 = vmax.f32 %v1819, 0.0
  %v1884 = vmax.f32 %v1820, 0.0
  %v1885 = vmax.f32 %v1821, 0.0
  %v1886 = vmax.f32 %v1822, 0.0
  %v1887 = vmax.f32 %v1823, 0.0
  %v1888 = vmax.f32 %v1824, 0.0
  %v1889 = vmax.f32 %v1825, 0.0
  %v1890 = vmax.f32 %v1826, 0.0
  %v1891 = vmax.f32 %v1827, 0.0
  %v1892 = vmax.f32 %v1828, 0.0
  %v1893 = vmax.f32 %v1829, 0.0
  %v1894 = vmax.f32 %v1830, 0.0
  %v1895 = vmax.f32 %v1831, 0.0
  %v1896 = vmax.f32 %v1832, 0.0
  %v1897 = vmax.f32 %v1833, 0.0
  %v1898 = vmax.f32 %v1834, 0.0
  %v1899 = vmax.f32 %v1835, 0.0
  %v1900 = vmax.f32 %v1836, 0.0
  %v1901 = vmax.f32 %v1837, 0.0
  %v1902 = vmax.f32 %v1838, 0.0
  %v1903 = vmax.f32 %v1839, 0.0
  %v1904 = vmax.f32 %v1840, 0.0
  %v1905 = vmax.f32 %v1841, 0.0
  %v1906 = vmax.f32 %v1842, 0.0
  %v1907 = vmax.f32 %v1843, 0.0
  %v1908 = vmax.f32 %v1844, 0.0
  %v1909 = vmax.f32 %v1845, 0.0
  %v1910 = vmax.f32 %v1846, 0.0
  %v1911 = vmax.f32 %v1847, 0.0
  %v1912 = vmax.f32 %v1848, 0.0
  %v1913 = vmax.f32 %v1849, 0.0
  %v1914 = vmax.f32 %v1850, 0.0
  %v1915 = vpack.c.bf16 %v1852, %v1851
  %v1916 = vpack.c.bf16 %v1854, %v1853
  %v1917 = vpack.c.bf16 %v1856, %v1855
  %v1918 = vpack.c.bf16 %v1858, %v1857
  %v1919 = vpack.c.bf16 %v1860, %v1859
  %v1920 = vpack.c.bf16 %v1862, %v1861
  %v1921 = vpack.c.bf16 %v1864, %v1863
  %v1922 = vpack.c.bf16 %v1866, %v1865
  %v1923 = vpack.c.bf16 %v1868, %v1867
  %v1924 = vpack.c.bf16 %v1870, %v1869
  %v1925 = vpack.c.bf16 %v1872, %v1871
  %v1926 = vpack.c.bf16 %v1874, %v1873
  %v1927 = vpack.c.bf16 %v1876, %v1875
  %v1928 = vpack.c.bf16 %v1878, %v1877
  %v1929 = vpack.c.bf16 %v1880, %v1879
  %v1930 = vpack.c.bf16 %v1882, %v1881
  %v1931 = vpack.c.bf16 %v1884, %v1883
  %v1932 = vpack.c.bf16 %v1886, %v1885
  %v1933 = vpack.c.bf16 %v1888, %v1887
  %v1934 = vpack.c.bf16 %v1890, %v1889
  %v1935 = vpack.c.bf16 %v1892, %v1891
  %v1936 = vpack.c.bf16 %v1894, %v1893
  %v1937 = vpack.c.bf16 %v1896, %v1895
  %v1938 = vpack.c.bf16 %v1898, %v1897
  %v1939 = vpack.c.bf16 %v1900, %v1899
  %v1940 = vpack.c.bf16 %v1902, %v1901
  %v1941 = vpack.c.bf16 %v1904, %v1903
  %v1942 = vpack.c.bf16 %v1906, %v1905
  %v1943 = vpack.c.bf16 %v1908, %v1907
  %v1944 = vpack.c.bf16 %v1910, %v1909
  %v1945 = vpack.c.bf16 %v1912, %v1911
  %v1946 = vpack.c.bf16 %v1914, %v1913
  %v1947 = vld [vmem:[%s11] sm:$0xf]
  %v1948 = vld [vmem:[%s11 + $0x4] sm:$0xf]
  %v1949 = vld [vmem:[%s11 + $0x8] sm:$0xf]
  %v1950 = vld [vmem:[%s11 + $0xc] sm:$0xf]
  %v1951 = vld [vmem:[%s12] sm:$0x1]
  %v1953 = vlaneseq
  %v1954 = vshrl.u32 %v1953, 7
  %v1955 = vsub.s32 0, %v1954
  %v1956 = vrot.slane %v1951, %v1955
  %v1962 = vunpack.c.l.b16 %v1947
  %v1963 = vunpack.c.l.b16 %v1948
  %v1964 = vunpack.c.l.b16 %v1949
  %v1965 = vunpack.c.l.b16 %v1950
  %v1966 = vpack.c.b16 %v1963, %v1962
  %v1967 = vpack.c.b16 %v1965, %v1964
  %vm1970 = vcmask 261120
  %v1972 = vsel %vm1970, %v1915, 0
  %v1975 = vsel %vm1970, %v1916, 0
  %v1978 = vsel %vm1970, %v1917, 0
  %v1981 = vsel %vm1970, %v1918, 0
  %v1984 = vsel %vm1970, %v1919, 0
  %v1987 = vsel %vm1970, %v1920, 0
  %v1990 = vsel %vm1970, %v1921, 0
  %v1993 = vsel %vm1970, %v1922, 0
  %v1996 = vsel %vm1970, %v1923, 0
  %v1999 = vsel %vm1970, %v1924, 0
  %v2002 = vsel %vm1970, %v1925, 0
  %v2005 = vsel %vm1970, %v1926, 0
  %v2008 = vsel %vm1970, %v1927, 0
  %v2011 = vsel %vm1970, %v1928, 0
  %v2014 = vsel %vm1970, %v1929, 0
  %v2017 = vsel %vm1970, %v1930, 0
  %v2020 = vsel %vm1970, %v1931, 0
  %v2023 = vsel %vm1970, %v1932, 0
  %v2026 = vsel %vm1970, %v1933, 0
  %v2029 = vsel %vm1970, %v1934, 0
  %v2032 = vsel %vm1970, %v1935, 0
  %v2035 = vsel %vm1970, %v1936, 0
  %v2038 = vsel %vm1970, %v1937, 0
  %v2041 = vsel %vm1970, %v1938, 0
  %v2044 = vsel %vm1970, %v1939, 0
  %v2047 = vsel %vm1970, %v1940, 0
  %v2050 = vsel %vm1970, %v1941, 0
  %v2053 = vsel %vm1970, %v1942, 0
  %v2056 = vsel %vm1970, %v1943, 0
  %v2059 = vsel %vm1970, %v1944, 0
  %v2062 = vsel %vm1970, %v1945, 0
  %v2065 = vsel %vm1970, %v1946, 0
  %2067 = vmatprep.subr.bf16.mxu0 0
  %2068 = vmatpush1.bf16.msra.mxu0 %v1966
  %2069 = vmatprep.subr.bf16.mxu0 0
  %2070 = vmatpush1.bf16.msra.mxu0 %v1967
  %2071 = vmatprep.subr.bf16.mxu0 0
  %2072 = vmatpush1.bf16.msra.mxu0 0
  %2073 = vmatprep.subr.bf16.mxu0 0
  %2074 = vmatpush1.bf16.msra.mxu0 0
  %2075 = vmatprep.subr.bf16.mxu0 0
  %2076 = vmatpush1.bf16.msra.mxu0 0
  %2077 = vmatprep.subr.bf16.mxu0 0
  %2078 = vmatpush1.bf16.msra.mxu0 0
  %2079 = vmatprep.subr.bf16.mxu0 0
  %2080 = vmatpush1.bf16.msra.mxu0 0
  %2081 = vmatprep.subr.bf16.mxu0 0
  %2082 = vmatpush1.bf16.msra.mxu0 0
  %2083 = vmatprep.subr.bf16.mxu0 0
  %2084 = vmatpush1.bf16.msra.mxu0 0
  %2085 = vmatprep.subr.bf16.mxu0 0
  %2086 = vmatpush1.bf16.msra.mxu0 0
  %2087 = vmatprep.subr.bf16.mxu0 0
  %2088 = vmatpush1.bf16.msra.mxu0 0
  %2089 = vmatprep.subr.bf16.mxu0 0
  %2090 = vmatpush1.bf16.msra.mxu0 0
  %2091 = vmatprep.subr.bf16.mxu0 0
  %2092 = vmatpush1.bf16.msra.mxu0 0
  %2093 = vmatprep.subr.bf16.mxu0 0
  %2094 = vmatpush1.bf16.msra.mxu0 0
  %2095 = vmatprep.subr.bf16.mxu0 0
  %2096 = vmatpush1.bf16.msra.mxu0 0
  %2097 = vmatprep.subr.bf16.mxu0 0
  %2098 = vmatpush1.bf16.msra.mxu0 0
  %2099 = vmatprep.mubr.bf16.mxu0 0
  %2100 = vmatmul.mubr.bf16.gmra.mrb[0].mxu0 %v1972
  %v2101 = vpop.f32.mrb[0].mxu0
  %v2102 = vadd.f32 %v1956, %v2101
  %v2103 = vpop.f32.mrb[0].mxu0
  %v2104 = vpop.f32.mrb[0].mxu0
  %v2105 = vadd.f32 %v1956, %v2104
  %v2106 = vpop.f32.mrb[0].mxu0
  %2107 = vmatprep.mubr.bf16.mxu0 0
  %2108 = vmatmul.mubr.bf16.gmra.mrb[0].mxu0 %v1975
  %v2109 = vpop.f32.mrb[0].mxu0
  %v2110 = vadd.f32 %v1956, %v2109
  %v2111 = vpop.f32.mrb[0].mxu0
  %v2112 = vpop.f32.mrb[0].mxu0
  %v2113 = vadd.f32 %v1956, %v2112
  %v2114 = vpop.f32.mrb[0].mxu0
  %2115 = vmatprep.mubr.bf16.mxu0 0
  %2116 = vmatmul.mubr.bf16.gmra.mrb[0].mxu0 %v1978
  %v2117 = vpop.f32.mrb[0].mxu0
  %v2118 = vadd.f32 %v1956, %v2117
  %v2119 = vpop.f32.mrb[0].mxu0
  %v2120 = vpop.f32.mrb[0].mxu0
  %v2121 = vadd.f32 %v1956, %v2120
  %v2122 = vpop.f32.mrb[0].mxu0
  %2123 = vmatprep.mubr.bf16.mxu0 0
  %2124 = vmatmul.mubr.bf16.gmra.mrb[0].mxu0 %v1981
  %v2125 = vpop.f32.mrb[0].mxu0
  %v2126 = vadd.f32 %v1956, %v2125
  %v2127 = vpop.f32.mrb[0].mxu0
  %v2128 = vpop.f32.mrb[0].mxu0
  %v2129 = vadd.f32 %v1956, %v2128
  %v2130 = vpop.f32.mrb[0].mxu0
  %2131 = vmatprep.mubr.bf16.mxu0 0
  %2132 = vmatmul.mubr.bf16.gmra.mrb[0].mxu0 %v1984
  %v2133 = vpop.f32.mrb[0].mxu0
  %v2134 = vadd.f32 %v1956, %v2133
  %v2135 = vpop.f32.mrb[0].mxu0
  %v2136 = vpop.f32.mrb[0].mxu0
  %v2137 = vadd.f32 %v1956, %v2136
  %v2138 = vpop.f32.mrb[0].mxu0
  %2139 = vmatprep.mubr.bf16.mxu0 0
  %2140 = vmatmul.mubr.bf16.gmra.mrb[0].mxu0 %v1987
  %v2141 = vpop.f32.mrb[0].mxu0
  %v2142 = vadd.f32 %v1956, %v2141
  %v2143 = vpop.f32.mrb[0].mxu0
  %v2144 = vpop.f32.mrb[0].mxu0
  %v2145 = vadd.f32 %v1956, %v2144
  %v2146 = vpop.f32.mrb[0].mxu0
  %2147 = vmatprep.mubr.bf16.mxu0 0
  %2148 = vmatmul.mubr.bf16.gmra.mrb[0].mxu0 %v1990
  %v2149 = vpop.f32.mrb[0].mxu0
  %v2150 = vadd.f32 %v1956, %v2149
  %v2151 = vpop.f32.mrb[0].mxu0
  %v2152 = vpop.f32.mrb[0].mxu0
  %v2153 = vadd.f32 %v1956, %v2152
  %v2154 = vpop.f32.mrb[0].mxu0
  %2155 = vmatprep.mubr.bf16.mxu0 0
  %2156 = vmatmul.mubr.bf16.gmra.mrb[0].mxu0 %v1993
  %v2157 = vpop.f32.mrb[0].mxu0
  %v2158 = vadd.f32 %v1956, %v2157
  %v2159 = vpop.f32.mrb[0].mxu0
  %v2160 = vpop.f32.mrb[0].mxu0
  %v2161 = vadd.f32 %v1956, %v2160
  %v2162 = vpop.f32.mrb[0].mxu0
  %2163 = vmatprep.mubr.bf16.mxu0 0
  %2164 = vmatmul.mubr.bf16.gmra.mrb[0].mxu0 %v1996
  %v2165 = vpop.f32.mrb[0].mxu0
  %v2166 = vadd.f32 %v1956, %v2165
  %v2167 = vpop.f32.mrb[0].mxu0
  %v2168 = vpop.f32.mrb[0].mxu0
  %v2169 = vadd.f32 %v1956, %v2168
  %v2170 = vpop.f32.mrb[0].mxu0
  %2171 = vmatprep.mubr.bf16.mxu0 0
  %2172 = vmatmul.mubr.bf16.gmra.mrb[0].mxu0 %v1999
  %v2173 = vpop.f32.mrb[0].mxu0
  %v2174 = vadd.f32 %v1956, %v2173
  %v2175 = vpop.f32.mrb[0].mxu0
  %v2176 = vpop.f32.mrb[0].mxu0
  %v2177 = vadd.f32 %v1956, %v2176
  %v2178 = vpop.f32.mrb[0].mxu0
  %2179 = vmatprep.mubr.bf16.mxu0 0
  %2180 = vmatmul.mubr.bf16.gmra.mrb[0].mxu0 %v2002
  %v2181 = vpop.f32.mrb[0].mxu0
  %v2182 = vadd.f32 %v1956, %v2181
  %v2183 = vpop.f32.mrb[0].mxu0
  %v2184 = vpop.f32.mrb[0].mxu0
  %v2185 = vadd.f32 %v1956, %v2184
  %v2186 = vpop.f32.mrb[0].mxu0
  %2187 = vmatprep.mubr.bf16.mxu0 0
  %2188 = vmatmul.mubr.bf16.gmra.mrb[0].mxu0 %v2005
  %v2189 = vpop.f32.mrb[0].mxu0
  %v2190 = vadd.f32 %v1956, %v2189
  %v2191 = vpop.f32.mrb[0].mxu0
  %v2192 = vpop.f32.mrb[0].mxu0
  %v2193 = vadd.f32 %v1956, %v2192
  %v2194 = vpop.f32.mrb[0].mxu0
  %2195 = vmatprep.mubr.bf16.mxu0 0
  %2196 = vmatmul.mubr.bf16.gmra.mrb[0].mxu0 %v2008
  %v2197 = vpop.f32.mrb[0].mxu0
  %v2198 = vadd.f32 %v1956, %v2197
  %v2199 = vpop.f32.mrb[0].mxu0
  %v2200 = vpop.f32.mrb[0].mxu0
  %v2201 = vadd.f32 %v1956, %v2200
  %v2202 = vpop.f32.mrb[0].mxu0
  %2203 = vmatprep.mubr.bf16.mxu0 0
  %2204 = vmatmul.mubr.bf16.gmra.mrb[0].mxu0 %v2011
  %v2205 = vpop.f32.mrb[0].mxu0
  %v2206 = vadd.f32 %v1956, %v2205
  %v2207 = vpop.f32.mrb[0].mxu0
  %v2208 = vpop.f32.mrb[0].mxu0
  %v2209 = vadd.f32 %v1956, %v2208
  %v2210 = vpop.f32.mrb[0].mxu0
  %2211 = vmatprep.mubr.bf16.mxu0 0
  %2212 = vmatmul.mubr.bf16.gmra.mrb[0].mxu0 %v2014
  %v2213 = vpop.f32.mrb[0].mxu0
  %v2214 = vadd.f32 %v1956, %v2213
  %v2215 = vpop.f32.mrb[0].mxu0
  %v2216 = vpop.f32.mrb[0].mxu0
  %v2217 = vadd.f32 %v1956, %v2216
  %v2218 = vpop.f32.mrb[0].mxu0
  %2219 = vmatprep.mubr.bf16.mxu0 0
  %2220 = vmatmul.mubr.bf16.gmra.mrb[0].mxu0 %v2017
  %v2221 = vpop.f32.mrb[0].mxu0
  %v2222 = vadd.f32 %v1956, %v2221
  %v2223 = vpop.f32.mrb[0].mxu0
  %v2224 = vpop.f32.mrb[0].mxu0
  %v2225 = vadd.f32 %v1956, %v2224
  %v2226 = vpop.f32.mrb[0].mxu0
  %2227 = vmatprep.mubr.bf16.mxu0 0
  %2228 = vmatmul.mubr.bf16.gmra.mrb[0].mxu0 %v2020
  %v2229 = vpop.f32.mrb[0].mxu0
  %v2230 = vadd.f32 %v1956, %v2229
  %v2231 = vpop.f32.mrb[0].mxu0
  %v2232 = vpop.f32.mrb[0].mxu0
  %v2233 = vadd.f32 %v1956, %v2232
  %v2234 = vpop.f32.mrb[0].mxu0
  %2235 = vmatprep.mubr.bf16.mxu0 0
  %2236 = vmatmul.mubr.bf16.gmra.mrb[0].mxu0 %v2023
  %v2237 = vpop.f32.mrb[0].mxu0
  %v2238 = vadd.f32 %v1956, %v2237
  %v2239 = vpop.f32.mrb[0].mxu0
  %v2240 = vpop.f32.mrb[0].mxu0
  %v2241 = vadd.f32 %v1956, %v2240
  %v2242 = vpop.f32.mrb[0].mxu0
  %2243 = vmatprep.mubr.bf16.mxu0 0
  %2244 = vmatmul.mubr.bf16.gmra.mrb[0].mxu0 %v2026
  %v2245 = vpop.f32.mrb[0].mxu0
  %v2246 = vadd.f32 %v1956, %v2245
  %v2247 = vpop.f32.mrb[0].mxu0
  %v2248 = vpop.f32.mrb[0].mxu0
  %v2249 = vadd.f32 %v1956, %v2248
  %v2250 = vpop.f32.mrb[0].mxu0
  %2251 = vmatprep.mubr.bf16.mxu0 0
  %2252 = vmatmul.mubr.bf16.gmra.mrb[0].mxu0 %v2029
  %v2253 = vpop.f32.mrb[0].mxu0
  %v2254 = vadd.f32 %v1956, %v2253
  %v2255 = vpop.f32.mrb[0].mxu0
  %v2256 = vpop.f32.mrb[0].mxu0
  %v2257 = vadd.f32 %v1956, %v2256
  %v2258 = vpop.f32.mrb[0].mxu0
  %2259 = vmatprep.mubr.bf16.mxu0 0
  %2260 = vmatmul.mubr.bf16.gmra.mrb[0].mxu0 %v2032
  %v2261 = vpop.f32.mrb[0].mxu0
  %v2262 = vadd.f32 %v1956, %v2261
  %v2263 = vpop.f32.mrb[0].mxu0
  %v2264 = vpop.f32.mrb[0].mxu0
  %v2265 = vadd.f32 %v1956, %v2264
  %v2266 = vpop.f32.mrb[0].mxu0
  %2267 = vmatprep.mubr.bf16.mxu0 0
  %2268 = vmatmul.mubr.bf16.gmra.mrb[0].mxu0 %v2035
  %v2269 = vpop.f32.mrb[0].mxu0
  %v2270 = vadd.f32 %v1956, %v2269
  %v2271 = vpop.f32.mrb[0].mxu0
  %v2272 = vpop.f32.mrb[0].mxu0
  %v2273 = vadd.f32 %v1956, %v2272
  %v2274 = vpop.f32.mrb[0].mxu0
  %2275 = vmatprep.mubr.bf16.mxu0 0
  %2276 = vmatmul.mubr.bf16.gmra.mrb[0].mxu0 %v2038
  %v2277 = vpop.f32.mrb[0].mxu0
  %v2278 = vadd.f32 %v1956, %v2277
  %v2279 = vpop.f32.mrb[0].mxu0
  %v2280 = vpop.f32.mrb[0].mxu0
  %v2281 = vadd.f32 %v1956, %v2280
  %v2282 = vpop.f32.mrb[0].mxu0
  %2283 = vmatprep.mubr.bf16.mxu0 0
  %2284 = vmatmul.mubr.bf16.gmra.mrb[0].mxu0 %v2041
  %v2285 = vpop.f32.mrb[0].mxu0
  %v2286 = vadd.f32 %v1956, %v2285
  %v2287 = vpop.f32.mrb[0].mxu0
  %v2288 = vpop.f32.mrb[0].mxu0
  %v2289 = vadd.f32 %v1956, %v2288
  %v2290 = vpop.f32.mrb[0].mxu0
  %2291 = vmatprep.mubr.bf16.mxu0 0
  %2292 = vmatmul.mubr.bf16.gmra.mrb[0].mxu0 %v2044
  %v2293 = vpop.f32.mrb[0].mxu0
  %v2294 = vadd.f32 %v1956, %v2293
  %v2295 = vpop.f32.mrb[0].mxu0
  %v2296 = vpop.f32.mrb[0].mxu0
  %v2297 = vadd.f32 %v1956, %v2296
  %v2298 = vpop.f32.mrb[0].mxu0
  %2299 = vmatprep.mubr.bf16.mxu0 0
  %2300 = vmatmul.mubr.bf16.gmra.mrb[0].mxu0 %v2047
  %v2301 = vpop.f32.mrb[0].mxu0
  %v2302 = vadd.f32 %v1956, %v2301
  %v2303 = vpop.f32.mrb[0].mxu0
  %v2304 = vpop.f32.mrb[0].mxu0
  %v2305 = vadd.f32 %v1956, %v2304
  %v2306 = vpop.f32.mrb[0].mxu0
  %2307 = vmatprep.mubr.bf16.mxu0 0
  %2308 = vmatmul.mubr.bf16.gmra.mrb[0].mxu0 %v2050
  %v2309 = vpop.f32.mrb[0].mxu0
  %v2310 = vadd.f32 %v1956, %v2309
  %v2311 = vpop.f32.mrb[0].mxu0
  %v2312 = vpop.f32.mrb[0].mxu0
  %v2313 = vadd.f32 %v1956, %v2312
  %v2314 = vpop.f32.mrb[0].mxu0
  %2315 = vmatprep.mubr.bf16.mxu0 0
  %2316 = vmatmul.mubr.bf16.gmra.mrb[0].mxu0 %v2053
  %v2317 = vpop.f32.mrb[0].mxu0
  %v2318 = vadd.f32 %v1956, %v2317
  %v2319 = vpop.f32.mrb[0].mxu0
  %v2320 = vpop.f32.mrb[0].mxu0
  %v2321 = vadd.f32 %v1956, %v2320
  %v2322 = vpop.f32.mrb[0].mxu0
  %2323 = vmatprep.mubr.bf16.mxu0 0
  %2324 = vmatmul.mubr.bf16.gmra.mrb[0].mxu0 %v2056
  %v2325 = vpop.f32.mrb[0].mxu0
  %v2326 = vadd.f32 %v1956, %v2325
  %v2327 = vpop.f32.mrb[0].mxu0
  %v2328 = vpop.f32.mrb[0].mxu0
  %v2329 = vadd.f32 %v1956, %v2328
  %v2330 = vpop.f32.mrb[0].mxu0
  %2331 = vmatprep.mubr.bf16.mxu0 0
  %2332 = vmatmul.mubr.bf16.gmra.mrb[0].mxu0 %v2059
  %v2333 = vpop.f32.mrb[0].mxu0
  %v2334 = vadd.f32 %v1956, %v2333
  %v2335 = vpop.f32.mrb[0].mxu0
  %v2336 = vpop.f32.mrb[0].mxu0
  %v2337 = vadd.f32 %v1956, %v2336
  %v2338 = vpop.f32.mrb[0].mxu0
  %2339 = vmatprep.mubr.bf16.mxu0 0
  %2340 = vmatmul.mubr.bf16.gmra.mrb[0].mxu0 %v2062
  %v2341 = vpop.f32.mrb[0].mxu0
  %v2342 = vadd.f32 %v1956, %v2341
  %v2343 = vpop.f32.mrb[0].mxu0
  %v2344 = vpop.f32.mrb[0].mxu0
  %v2345 = vadd.f32 %v1956, %v2344
  %v2346 = vpop.f32.mrb[0].mxu0
  %2347 = vmatprep.mubr.bf16.mxu0 0
  %2348 = vmatmul.mubr.bf16.gmra.mrb[0].mxu0 %v2065
  %v2349 = vpop.f32.mrb[0].mxu0
  %v2350 = vadd.f32 %v1956, %v2349
  %v2351 = vpop.f32.mrb[0].mxu0
  %v2352 = vpop.f32.mrb[0].mxu0
  %v2353 = vadd.f32 %v1956, %v2352
  %v2354 = vpop.f32.mrb[0].mxu0
  %2355 = vdwg.mxu0
  %v2356 = vmax.f32 %v2102, 0.0
  %v2357 = vmax.f32 %v2105, 0.0
  %v2358 = vmax.f32 %v2110, 0.0
  %v2359 = vmax.f32 %v2113, 0.0
  %v2360 = vmax.f32 %v2118, 0.0
  %v2361 = vmax.f32 %v2121, 0.0
  %v2362 = vmax.f32 %v2126, 0.0
  %v2363 = vmax.f32 %v2129, 0.0
  %v2364 = vmax.f32 %v2134, 0.0
  %v2365 = vmax.f32 %v2137, 0.0
  %v2366 = vmax.f32 %v2142, 0.0
  %v2367 = vmax.f32 %v2145, 0.0
  %v2368 = vmax.f32 %v2150, 0.0
  %v2369 = vmax.f32 %v2153, 0.0
  %v2370 = vmax.f32 %v2158, 0.0
  %v2371 = vmax.f32 %v2161, 0.0
  %v2372 = vmax.f32 %v2166, 0.0
  %v2373 = vmax.f32 %v2169, 0.0
  %v2374 = vmax.f32 %v2174, 0.0
  %v2375 = vmax.f32 %v2177, 0.0
  %v2376 = vmax.f32 %v2182, 0.0
  %v2377 = vmax.f32 %v2185, 0.0
  %v2378 = vmax.f32 %v2190, 0.0
  %v2379 = vmax.f32 %v2193, 0.0
  %v2380 = vmax.f32 %v2198, 0.0
  %v2381 = vmax.f32 %v2201, 0.0
  %v2382 = vmax.f32 %v2206, 0.0
  %v2383 = vmax.f32 %v2209, 0.0
  %v2384 = vmax.f32 %v2214, 0.0
  %v2385 = vmax.f32 %v2217, 0.0
  %v2386 = vmax.f32 %v2222, 0.0
  %v2387 = vmax.f32 %v2225, 0.0
  %v2388 = vmax.f32 %v2230, 0.0
  %v2389 = vmax.f32 %v2233, 0.0
  %v2390 = vmax.f32 %v2238, 0.0
  %v2391 = vmax.f32 %v2241, 0.0
  %v2392 = vmax.f32 %v2246, 0.0
  %v2393 = vmax.f32 %v2249, 0.0
  %v2394 = vmax.f32 %v2254, 0.0
  %v2395 = vmax.f32 %v2257, 0.0
  %v2396 = vmax.f32 %v2262, 0.0
  %v2397 = vmax.f32 %v2265, 0.0
  %v2398 = vmax.f32 %v2270, 0.0
  %v2399 = vmax.f32 %v2273, 0.0
  %v2400 = vmax.f32 %v2278, 0.0
  %v2401 = vmax.f32 %v2281, 0.0
  %v2402 = vmax.f32 %v2286, 0.0
  %v2403 = vmax.f32 %v2289, 0.0
  %v2404 = vmax.f32 %v2294, 0.0
  %v2405 = vmax.f32 %v2297, 0.0
  %v2406 = vmax.f32 %v2302, 0.0
  %v2407 = vmax.f32 %v2305, 0.0
  %v2408 = vmax.f32 %v2310, 0.0
  %v2409 = vmax.f32 %v2313, 0.0
  %v2410 = vmax.f32 %v2318, 0.0
  %v2411 = vmax.f32 %v2321, 0.0
  %v2412 = vmax.f32 %v2326, 0.0
  %v2413 = vmax.f32 %v2329, 0.0
  %v2414 = vmax.f32 %v2334, 0.0
  %v2415 = vmax.f32 %v2337, 0.0
  %v2416 = vmax.f32 %v2342, 0.0
  %v2417 = vmax.f32 %v2345, 0.0
  %v2418 = vmax.f32 %v2350, 0.0
  %v2419 = vmax.f32 %v2353, 0.0
  %vm2420 = vcmask 130048
  %2421 = vst.msk [vmem:[%s13] sm:$0xff] %vm2420, %v2356
  %2422 = vst.msk [vmem:[%s13 + $0x8] sm:$0xff] %vm2420, %v2357
  %2423 = vst.msk [vmem:[%s13 + $0x10] sm:$0xff] %vm2420, %v2358
  %2424 = vst.msk [vmem:[%s13 + $0x18] sm:$0xff] %vm2420, %v2359
  %2425 = vst.msk [vmem:[%s13 + $0x20] sm:$0xff] %vm2420, %v2360
  %2426 = vst.msk [vmem:[%s13 + $0x28] sm:$0xff] %vm2420, %v2361
  %2427 = vst.msk [vmem:[%s13 + $0x30] sm:$0xff] %vm2420, %v2362
  %2428 = vst.msk [vmem:[%s13 + $0x38] sm:$0xff] %vm2420, %v2363
  %2429 = vst.msk [vmem:[%s13 + $0x40] sm:$0xff] %vm2420, %v2364
  %2430 = vst.msk [vmem:[%s13 + $0x48] sm:$0xff] %vm2420, %v2365
  %2431 = vst.msk [vmem:[%s13 + $0x50] sm:$0xff] %vm2420, %v2366
  %2432 = vst.msk [vmem:[%s13 + $0x58] sm:$0xff] %vm2420, %v2367
  %2433 = vst.msk [vmem:[%s13 + $0x60] sm:$0xff] %vm2420, %v2368
  %2434 = vst.msk [vmem:[%s13 + $0x68] sm:$0xff] %vm2420, %v2369
  %2435 = vst.msk [vmem:[%s13 + $0x70] sm:$0xff] %vm2420, %v2370
  %2436 = vst.msk [vmem:[%s13 + $0x78] sm:$0xff] %vm2420, %v2371
  %2437 = vst.msk [vmem:[%s13 + $0x80] sm:$0xff] %vm2420, %v2372
  %2438 = vst.msk [vmem:[%s13 + $0x88] sm:$0xff] %vm2420, %v2373
  %2439 = vst.msk [vmem:[%s13 + $0x90] sm:$0xff] %vm2420, %v2374
  %2440 = vst.msk [vmem:[%s13 + $0x98] sm:$0xff] %vm2420, %v2375
  %2441 = vst.msk [vmem:[%s13 + $0xa0] sm:$0xff] %vm2420, %v2376
  %2442 = vst.msk [vmem:[%s13 + $0xa8] sm:$0xff] %vm2420, %v2377
  %2443 = vst.msk [vmem:[%s13 + $0xb0] sm:$0xff] %vm2420, %v2378
  %2444 = vst.msk [vmem:[%s13 + $0xb8] sm:$0xff] %vm2420, %v2379
  %2445 = vst.msk [vmem:[%s13 + $0xc0] sm:$0xff] %vm2420, %v2380
  %2446 = vst.msk [vmem:[%s13 + $0xc8] sm:$0xff] %vm2420, %v2381
  %2447 = vst.msk [vmem:[%s13 + $0xd0] sm:$0xff] %vm2420, %v2382
  %2448 = vst.msk [vmem:[%s13 + $0xd8] sm:$0xff] %vm2420, %v2383
  %2449 = vst.msk [vmem:[%s13 + $0xe0] sm:$0xff] %vm2420, %v2384
  %2450 = vst.msk [vmem:[%s13 + $0xe8] sm:$0xff] %vm2420, %v2385
  %2451 = vst.msk [vmem:[%s13 + $0xf0] sm:$0xff] %vm2420, %v2386
  %2452 = vst.msk [vmem:[%s13 + $0xf8] sm:$0xff] %vm2420, %v2387
  %2453 = vst.msk [vmem:[%s13 + $0x100] sm:$0xff] %vm2420, %v2388
  %2454 = vst.msk [vmem:[%s13 + $0x108] sm:$0xff] %vm2420, %v2389
  %2455 = vst.msk [vmem:[%s13 + $0x110] sm:$0xff] %vm2420, %v2390
  %2456 = vst.msk [vmem:[%s13 + $0x118] sm:$0xff] %vm2420, %v2391
  %2457 = vst.msk [vmem:[%s13 + $0x120] sm:$0xff] %vm2420, %v2392
  %2458 = vst.msk [vmem:[%s13 + $0x128] sm:$0xff] %vm2420, %v2393
  %2459 = vst.msk [vmem:[%s13 + $0x130] sm:$0xff] %vm2420, %v2394
  %2460 = vst.msk [vmem:[%s13 + $0x138] sm:$0xff] %vm2420, %v2395
  %2461 = vst.msk [vmem:[%s13 + $0x140] sm:$0xff] %vm2420, %v2396
  %2462 = vst.msk [vmem:[%s13 + $0x148] sm:$0xff] %vm2420, %v2397
  %2463 = vst.msk [vmem:[%s13 + $0x150] sm:$0xff] %vm2420, %v2398
  %2464 = vst.msk [vmem:[%s13 + $0x158] sm:$0xff] %vm2420, %v2399
  %2465 = vst.msk [vmem:[%s13 + $0x160] sm:$0xff] %vm2420, %v2400
  %2466 = vst.msk [vmem:[%s13 + $0x168] sm:$0xff] %vm2420, %v2401
  %2467 = vst.msk [vmem:[%s13 + $0x170] sm:$0xff] %vm2420, %v2402
  %2468 = vst.msk [vmem:[%s13 + $0x178] sm:$0xff] %vm2420, %v2403
  %2469 = vst.msk [vmem:[%s13 + $0x180] sm:$0xff] %vm2420, %v2404
  %2470 = vst.msk [vmem:[%s13 + $0x188] sm:$0xff] %vm2420, %v2405
  %2471 = vst.msk [vmem:[%s13 + $0x190] sm:$0xff] %vm2420, %v2406
  %2472 = vst.msk [vmem:[%s13 + $0x198] sm:$0xff] %vm2420, %v2407
  %2473 = vst.msk [vmem:[%s13 + $0x1a0] sm:$0xff] %vm2420, %v2408
  %2474 = vst.msk [vmem:[%s13 + $0x1a8] sm:$0xff] %vm2420, %v2409
  %2475 = vst.msk [vmem:[%s13 + $0x1b0] sm:$0xff] %vm2420, %v2410
  %2476 = vst.msk [vmem:[%s13 + $0x1b8] sm:$0xff] %vm2420, %v2411
  %2477 = vst.msk [vmem:[%s13 + $0x1c0] sm:$0xff] %vm2420, %v2412
  %2478 = vst.msk [vmem:[%s13 + $0x1c8] sm:$0xff] %vm2420, %v2413
  %2479 = vst.msk [vmem:[%s13 + $0x1d0] sm:$0xff] %vm2420, %v2414
  %2480 = vst.msk [vmem:[%s13 + $0x1d8] sm:$0xff] %vm2420, %v2415
  %2481 = vst.msk [vmem:[%s13 + $0x1e0] sm:$0xff] %vm2420, %v2416
  %2482 = vst.msk [vmem:[%s13 + $0x1e8] sm:$0xff] %vm2420, %v2417
  %2483 = vst.msk [vmem:[%s13 + $0x1f0] sm:$0xff] %vm2420, %v2418
  %2484 = vst.msk [vmem:[%s13 + $0x1f8] sm:$0xff] %vm2420, %v2419
  // Predicated region
  $region54: #{forward.16} parent=0 // pred_check
    _
  $region55: #{forward.16} parent=0 // pred_check_branch
    %2486 = sbr.rel (0) target = $region57
  $region56: #{forward.16} parent=0 // pred_region
    _
  $region57: #{forward.16} parent=0 // pred_fallthru
    _
  // Predicated region
  $region58: #{forward.16} parent=0 // pred_check
    _
  $region59: #{forward.16} parent=0 // pred_check_branch
    %2488 = sbr.rel (0) target = $region61
  $region60: #{forward.16} parent=0 // pred_region
    _
  $region61: #{forward.16} parent=0 // pred_fallthru
    _

// kernel: forward.17
$region0: #{forward.17}
  #allocation0 [shape = 'u32[]', space=smem, size = 0x4, offset = 0x4, fixed_abs, tag = 'smem constant byte address 0x4 - core index']
  #allocation1 [shape = 'u32[144,128]{1,0:T(1,128)}', space=vmem, size = 0x12000, scoped, tag = 'internal scratch']
  %s0 = inlined_call_operand.vmem [shape: f32[128,16], index: 0, kind: input, shape index: {}]
  %s1 = inlined_call_operand.vmem [shape: f32[128,16], index: 1, kind: input, shape index: {}]
  %s2 = inlined_call_operand.vmem [shape: f32[128,16], index: 2, kind: input, shape index: {}]
  %s3 = inlined_call_operand.vmem [shape: f32[128,16], index: 3, kind: input, shape index: {}]
  %s4 = inlined_call_operand.vmem [shape: f32[128,16], index: 4, kind: input, shape index: {}]
  %s5 = inlined_call_operand.vmem [shape: f32[128,16], index: 5, kind: input, shape index: {}]
  %s6 = inlined_call_operand.vmem [shape: f32[128,16], index: 6, kind: input, shape index: {}]
  %s7 = inlined_call_operand.vmem [shape: f32[128,16], index: 7, kind: input, shape index: {}]
  %s8 = inlined_call_operand.vmem [shape: f32[128,16], index: 8, kind: input, shape index: {}]
  %s9 = inlined_call_operand.vmem [shape: f32[9,1,16], index: 9, kind: input, shape index: {}]
  %s10 = inlined_call_operand.vmem [shape: f32[1,16], index: 10, kind: input, shape index: {}]
  %s11 = inlined_call_operand.vmem [shape: bf16[16,32], index: 11, kind: input, shape index: {}]
  %s12 = inlined_call_operand.vmem [shape: f32[1,32], index: 12, kind: input, shape index: {}]
  %s13 = inlined_call_operand.vmem [shape: f32[128,32], index: 13, kind: output, shape index: {}]
  %s14 = sld [smem:[#allocation0]]
  $region62: #{forward.17} parent=0
    _
  %s16 = ssub.s32 1, %s14
  %s17 = scalar_select 0, %s16, %s14
  // Predicated region
  $region2: #{forward.17} parent=0 // pred_check
    _
  $region3: #{forward.17} parent=0 // pred_check_branch
    %19 = sbr.rel (0) target = $region5
  $region4: #{forward.17} parent=0 // pred_region
    _
  $region5: #{forward.17} parent=0 // pred_fallthru
    _
  // Predicated region
  $region6: #{forward.17} parent=0 // pred_check
    _
  $region7: #{forward.17} parent=0 // pred_check_branch
    %21 = sbr.rel (0) target = $region9
  $region8: #{forward.17} parent=0 // pred_region
    _
  $region9: #{forward.17} parent=0 // pred_fallthru
    _
  // Predicated region
  $region10: #{forward.17} parent=0 // pred_check
    _
  $region11: #{forward.17} parent=0 // pred_check_branch
    %23 = sbr.rel (0) target = $region13
  $region12: #{forward.17} parent=0 // pred_region
    _
  $region13: #{forward.17} parent=0 // pred_fallthru
    _
  // Predicated region
  $region14: #{forward.17} parent=0 // pred_check
    _
  $region15: #{forward.17} parent=0 // pred_check_branch
    %25 = sbr.rel (0) target = $region17
  $region16: #{forward.17} parent=0 // pred_region
    _
  $region17: #{forward.17} parent=0 // pred_fallthru
    _
  // Predicated region
  $region18: #{forward.17} parent=0 // pred_check
    _
  $region19: #{forward.17} parent=0 // pred_check_branch
    %27 = sbr.rel (0) target = $region21
  $region20: #{forward.17} parent=0 // pred_region
    _
  $region21: #{forward.17} parent=0 // pred_fallthru
    _
  // Predicated region
  $region22: #{forward.17} parent=0 // pred_check
    _
  $region23: #{forward.17} parent=0 // pred_check_branch
    %29 = sbr.rel (0) target = $region25
  $region24: #{forward.17} parent=0 // pred_region
    _
  $region25: #{forward.17} parent=0 // pred_fallthru
    _
  // Predicated region
  $region26: #{forward.17} parent=0 // pred_check
    _
  $region27: #{forward.17} parent=0 // pred_check_branch
    %31 = sbr.rel (0) target = $region29
  $region28: #{forward.17} parent=0 // pred_region
    _
  $region29: #{forward.17} parent=0 // pred_fallthru
    _
  // Predicated region
  $region30: #{forward.17} parent=0 // pred_check
    _
  $region31: #{forward.17} parent=0 // pred_check_branch
    %33 = sbr.rel (0) target = $region33
  $region32: #{forward.17} parent=0 // pred_region
    _
  $region33: #{forward.17} parent=0 // pred_fallthru
    _
  // Predicated region
  $region34: #{forward.17} parent=0 // pred_check
    _
  $region35: #{forward.17} parent=0 // pred_check_branch
    %35 = sbr.rel (0) target = $region37
  $region36: #{forward.17} parent=0 // pred_region
    _
  $region37: #{forward.17} parent=0 // pred_fallthru
    _
  // Predicated region
  $region38: #{forward.17} parent=0 // pred_check
    _
  $region39: #{forward.17} parent=0 // pred_check_branch
    %37 = sbr.rel (0) target = $region41
  $region40: #{forward.17} parent=0 // pred_region
    _
  $region41: #{forward.17} parent=0 // pred_fallthru
    _
  // Predicated region
  $region42: #{forward.17} parent=0 // pred_check
    _
  $region43: #{forward.17} parent=0 // pred_check_branch
    %39 = sbr.rel (0) target = $region45
  $region44: #{forward.17} parent=0 // pred_region
    _
  $region45: #{forward.17} parent=0 // pred_fallthru
    _
  // Predicated region
  $region46: #{forward.17} parent=0 // pred_check
    _
  $region47: #{forward.17} parent=0 // pred_check_branch
    %41 = sbr.rel (0) target = $region49
  $region48: #{forward.17} parent=0 // pred_region
    _
  $region49: #{forward.17} parent=0 // pred_fallthru
    _
  // Predicated region
  $region50: #{forward.17} parent=0 // pred_check
    _
  $region51: #{forward.17} parent=0 // pred_check_branch
    %43 = sbr.rel (0) target = $region53
  $region52: #{forward.17} parent=0 // pred_region
    _
  $region53: #{forward.17} parent=0 // pred_fallthru
    _
  %v45 = vld [vmem:[%s0] sm:$0xff]
  %v46 = vld [vmem:[%s0 + $0x8] sm:$0xff]
  %v47 = vld [vmem:[%s0 + $0x10] sm:$0xff]
  %v48 = vld [vmem:[%s0 + $0x18] sm:$0xff]
  %v49 = vld [vmem:[%s0 + $0x20] sm:$0xff]
  %v50 = vld [vmem:[%s0 + $0x28] sm:$0xff]
  %v51 = vld [vmem:[%s0 + $0x30] sm:$0xff]
  %v52 = vld [vmem:[%s0 + $0x38] sm:$0xff]
  %v53 = vld [vmem:[%s0 + $0x40] sm:$0xff]
  %v54 = vld [vmem:[%s0 + $0x48] sm:$0xff]
  %v55 = vld [vmem:[%s0 + $0x50] sm:$0xff]
  %v56 = vld [vmem:[%s0 + $0x58] sm:$0xff]
  %v57 = vld [vmem:[%s0 + $0x60] sm:$0xff]
  %v58 = vld [vmem:[%s0 + $0x68] sm:$0xff]
  %v59 = vld [vmem:[%s0 + $0x70] sm:$0xff]
  %v60 = vld [vmem:[%s0 + $0x78] sm:$0xff]
  %v61 = vld [vmem:[%s9] sm:$0x1]
  %v63 = vlaneseq
  %v64 = vshrl.u32 %v63, 7
  %v65 = vsub.s32 0, %v64
  %v66 = vrot.slane %v61, %v65
  %v68 = vmul.f32 %v45, %v66
  %v69 = vmul.f32 %v46, %v66
  %v70 = vmul.f32 %v47, %v66
  %v71 = vmul.f32 %v48, %v66
  %v72 = vmul.f32 %v49, %v66
  %v73 = vmul.f32 %v50, %v66
  %v74 = vmul.f32 %v51, %v66
  %v75 = vmul.f32 %v52, %v66
  %v76 = vmul.f32 %v53, %v66
  %v77 = vmul.f32 %v54, %v66
  %v78 = vmul.f32 %v55, %v66
  %v79 = vmul.f32 %v56, %v66
  %v80 = vmul.f32 %v57, %v66
  %v81 = vmul.f32 %v58, %v66
  %v82 = vmul.f32 %v59, %v66
  %v83 = vmul.f32 %v60, %v66
  %v84 = vld [vmem:[%s1] sm:$0xff]
  %v85 = vld [vmem:[%s1 + $0x8] sm:$0xff]
  %v86 = vld [vmem:[%s1 + $0x10] sm:$0xff]
  %v87 = vld [vmem:[%s1 + $0x18] sm:$0xff]
  %v88 = vld [vmem:[%s1 + $0x20] sm:$0xff]
  %v89 = vld [vmem:[%s1 + $0x28] sm:$0xff]
  %v90 = vld [vmem:[%s1 + $0x30] sm:$0xff]
  %v91 = vld [vmem:[%s1 + $0x38] sm:$0xff]
  %v92 = vld [vmem:[%s1 + $0x40] sm:$0xff]
  %v93 = vld [vmem:[%s1 + $0x48] sm:$0xff]
  %v94 = vld [vmem:[%s1 + $0x50] sm:$0xff]
  %v95 = vld [vmem:[%s1 + $0x58] sm:$0xff]
  %v96 = vld [vmem:[%s1 + $0x60] sm:$0xff]
  %v97 = vld [vmem:[%s1 + $0x68] sm:$0xff]
  %v98 = vld [vmem:[%s1 + $0x70] sm:$0xff]
  %v99 = vld [vmem:[%s1 + $0x78] sm:$0xff]
  %s100 = scalar_lea.vmem %s9, 1
  %v101 = vld [vmem:[%s100] sm:$0x1]
  %v103 = vlaneseq
  %v104 = vshrl.u32 %v103, 7
  %v105 = vsub.s32 0, %v104
  %v106 = vrot.slane %v101, %v105
  %v108 = vmul.f32 %v84, %v106
  %v109 = vmul.f32 %v85, %v106
  %v110 = vmul.f32 %v86, %v106
  %v111 = vmul.f32 %v87, %v106
  %v112 = vmul.f32 %v88, %v106
  %v113 = vmul.f32 %v89, %v106
  %v114 = vmul.f32 %v90, %v106
  %v115 = vmul.f32 %v91, %v106
  %v116 = vmul.f32 %v92, %v106
  %v117 = vmul.f32 %v93, %v106
  %v118 = vmul.f32 %v94, %v106
  %v119 = vmul.f32 %v95, %v106
  %v120 = vmul.f32 %v96, %v106
  %v121 = vmul.f32 %v97, %v106
  %v122 = vmul.f32 %v98, %v106
  %v123 = vmul.f32 %v99, %v106
  %v124 = vadd.f32 %v68, %v108
  %v125 = vadd.f32 %v69, %v109
  %v126 = vadd.f32 %v70, %v110
  %v127 = vadd.f32 %v71, %v111
  %v128 = vadd.f32 %v72, %v112
  %v129 = vadd.f32 %v73, %v113
  %v130 = vadd.f32 %v74, %v114
  %v131 = vadd.f32 %v75, %v115
  %v132 = vadd.f32 %v76, %v116
  %v133 = vadd.f32 %v77, %v117
  %v134 = vadd.f32 %v78, %v118
  %v135 = vadd.f32 %v79, %v119
  %v136 = vadd.f32 %v80, %v120
  %v137 = vadd.f32 %v81, %v121
  %v138 = vadd.f32 %v82, %v122
  %v139 = vadd.f32 %v83, %v123
  %v140 = vld [vmem:[%s2] sm:$0xff]
  %v141 = vld [vmem:[%s2 + $0x8] sm:$0xff]
  %v142 = vld [vmem:[%s2 + $0x10] sm:$0xff]
  %v143 = vld [vmem:[%s2 + $0x18] sm:$0xff]
  %v144 = vld [vmem:[%s2 + $0x20] sm:$0xff]
  %v145 = vld [vmem:[%s2 + $0x28] sm:$0xff]
  %v146 = vld [vmem:[%s2 + $0x30] sm:$0xff]
  %v147 = vld [vmem:[%s2 + $0x38] sm:$0xff]
  %v148 = vld [vmem:[%s2 + $0x40] sm:$0xff]
  %v149 = vld [vmem:[%s2 + $0x48] sm:$0xff]
  %v150 = vld [vmem:[%s2 + $0x50] sm:$0xff]
  %v151 = vld [vmem:[%s2 + $0x58] sm:$0xff]
  %v152 = vld [vmem:[%s2 + $0x60] sm:$0xff]
  %v153 = vld [vmem:[%s2 + $0x68] sm:$0xff]
  %v154 = vld [vmem:[%s2 + $0x70] sm:$0xff]
  %v155 = vld [vmem:[%s2 + $0x78] sm:$0xff]
  %s156 = scalar_lea.vmem %s9, 2
  %v157 = vld [vmem:[%s156] sm:$0x1]
  %v159 = vlaneseq
  %v160 = vshrl.u32 %v159, 7
  %v161 = vsub.s32 0, %v160
  %v162 = vrot.slane %v157, %v161
  %v164 = vmul.f32 %v140, %v162
  %v165 = vmul.f32 %v141, %v162
  %v166 = vmul.f32 %v142, %v162
  %v167 = vmul.f32 %v143, %v162
  %v168 = vmul.f32 %v144, %v162
  %v169 = vmul.f32 %v145, %v162
  %v170 = vmul.f32 %v146, %v162
  %v171 = vmul.f32 %v147, %v162
  %v172 = vmul.f32 %v148, %v162
  %v173 = vmul.f32 %v149, %v162
  %v174 = vmul.f32 %v150, %v162
  %v175 = vmul.f32 %v151, %v162
  %v176 = vmul.f32 %v152, %v162
  %v177 = vmul.f32 %v153, %v162
  %v178 = vmul.f32 %v154, %v162
  %v179 = vmul.f32 %v155, %v162
  %v180 = vadd.f32 %v124, %v164
  %v181 = vadd.f32 %v125, %v165
  %v182 = vadd.f32 %v126, %v166
  %v183 = vadd.f32 %v127, %v167
  %v184 = vadd.f32 %v128, %v168
  %v185 = vadd.f32 %v129, %v169
  %v186 = vadd.f32 %v130, %v170
  %v187 = vadd.f32 %v131, %v171
  %v188 = vadd.f32 %v132, %v172
  %v189 = vadd.f32 %v133, %v173
  %v190 = vadd.f32 %v134, %v174
  %v191 = vadd.f32 %v135, %v175
  %v192 = vadd.f32 %v136, %v176
  %v193 = vadd.f32 %v137, %v177
  %v194 = vadd.f32 %v138, %v178
  %v195 = vadd.f32 %v139, %v179
  %v196 = vld [vmem:[%s3] sm:$0xff]
  %v197 = vld [vmem:[%s3 + $0x8] sm:$0xff]
  %v198 = vld [vmem:[%s3 + $0x10] sm:$0xff]
  %v199 = vld [vmem:[%s3 + $0x18] sm:$0xff]
  %v200 = vld [vmem:[%s3 + $0x20] sm:$0xff]
  %v201 = vld [vmem:[%s3 + $0x28] sm:$0xff]
  %v202 = vld [vmem:[%s3 + $0x30] sm:$0xff]
  %v203 = vld [vmem:[%s3 + $0x38] sm:$0xff]
  %v204 = vld [vmem:[%s3 + $0x40] sm:$0xff]
  %v205 = vld [vmem:[%s3 + $0x48] sm:$0xff]
  %v206 = vld [vmem:[%s3 + $0x50] sm:$0xff]
  %v207 = vld [vmem:[%s3 + $0x58] sm:$0xff]
  %v208 = vld [vmem:[%s3 + $0x60] sm:$0xff]
  %v209 = vld [vmem:[%s3 + $0x68] sm:$0xff]
  %v210 = vld [vmem:[%s3 + $0x70] sm:$0xff]
  %v211 = vld [vmem:[%s3 + $0x78] sm:$0xff]
  %s212 = scalar_lea.vmem %s9, 3
  %v213 = vld [vmem:[%s212] sm:$0x1]
  %v215 = vlaneseq
  %v216 = vshrl.u32 %v215, 7
  %v217 = vsub.s32 0, %v216
  %v218 = vrot.slane %v213, %v217
  %v220 = vmul.f32 %v196, %v218
  %v221 = vmul.f32 %v197, %v218
  %v222 = vmul.f32 %v198, %v218
  %v223 = vmul.f32 %v199, %v218
  %v224 = vmul.f32 %v200, %v218
  %v225 = vmul.f32 %v201, %v218
  %v226 = vmul.f32 %v202, %v218
  %v227 = vmul.f32 %v203, %v218
  %v228 = vmul.f32 %v204, %v218
  %v229 = vmul.f32 %v205, %v218
  %v230 = vmul.f32 %v206, %v218
  %v231 = vmul.f32 %v207, %v218
  %v232 = vmul.f32 %v208, %v218
  %v233 = vmul.f32 %v209, %v218
  %v234 = vmul.f32 %v210, %v218
  %v235 = vmul.f32 %v211, %v218
  %v236 = vadd.f32 %v180, %v220
  %v237 = vadd.f32 %v181, %v221
  %v238 = vadd.f32 %v182, %v222
  %v239 = vadd.f32 %v183, %v223
  %v240 = vadd.f32 %v184, %v224
  %v241 = vadd.f32 %v185, %v225
  %v242 = vadd.f32 %v186, %v226
  %v243 = vadd.f32 %v187, %v227
  %v244 = vadd.f32 %v188, %v228
  %v245 = vadd.f32 %v189, %v229
  %v246 = vadd.f32 %v190, %v230
  %v247 = vadd.f32 %v191, %v231
  %v248 = vadd.f32 %v192, %v232
  %v249 = vadd.f32 %v193, %v233
  %v250 = vadd.f32 %v194, %v234
  %v251 = vadd.f32 %v195, %v235
  %v252 = vld [vmem:[%s4] sm:$0xff]
  %v253 = vld [vmem:[%s4 + $0x8] sm:$0xff]
  %v254 = vld [vmem:[%s4 + $0x10] sm:$0xff]
  %v255 = vld [vmem:[%s4 + $0x18] sm:$0xff]
  %v256 = vld [vmem:[%s4 + $0x20] sm:$0xff]
  %v257 = vld [vmem:[%s4 + $0x28] sm:$0xff]
  %v258 = vld [vmem:[%s4 + $0x30] sm:$0xff]
  %v259 = vld [vmem:[%s4 + $0x38] sm:$0xff]
  %v260 = vld [vmem:[%s4 + $0x40] sm:$0xff]
  %v261 = vld [vmem:[%s4 + $0x48] sm:$0xff]
  %v262 = vld [vmem:[%s4 + $0x50] sm:$0xff]
  %v263 = vld [vmem:[%s4 + $0x58] sm:$0xff]
  %v264 = vld [vmem:[%s4 + $0x60] sm:$0xff]
  %v265 = vld [vmem:[%s4 + $0x68] sm:$0xff]
  %v266 = vld [vmem:[%s4 + $0x70] sm:$0xff]
  %v267 = vld [vmem:[%s4 + $0x78] sm:$0xff]
  %s268 = scalar_lea.vmem %s9, 4
  %v269 = vld [vmem:[%s268] sm:$0x1]
  %v271 = vlaneseq
  %v272 = vshrl.u32 %v271, 7
  %v273 = vsub.s32 0, %v272
  %v274 = vrot.slane %v269, %v273
  %v276 = vmul.f32 %v252, %v274
  %v277 = vmul.f32 %v253, %v274
  %v278 = vmul.f32 %v254, %v274
  %v279 = vmul.f32 %v255, %v274
  %v280 = vmul.f32 %v256, %v274
  %v281 = vmul.f32 %v257, %v274
  %v282 = vmul.f32 %v258, %v274
  %v283 = vmul.f32 %v259, %v274
  %v284 = vmul.f32 %v260, %v274
  %v285 = vmul.f32 %v261, %v274
  %v286 = vmul.f32 %v262, %v274
  %v287 = vmul.f32 %v263, %v274
  %v288 = vmul.f32 %v264, %v274
  %v289 = vmul.f32 %v265, %v274
  %v290 = vmul.f32 %v266, %v274
  %v291 = vmul.f32 %v267, %v274
  %v292 = vadd.f32 %v236, %v276
  %v293 = vadd.f32 %v237, %v277
  %v294 = vadd.f32 %v238, %v278
  %v295 = vadd.f32 %v239, %v279
  %v296 = vadd.f32 %v240, %v280
  %v297 = vadd.f32 %v241, %v281
  %v298 = vadd.f32 %v242, %v282
  %v299 = vadd.f32 %v243, %v283
  %v300 = vadd.f32 %v244, %v284
  %v301 = vadd.f32 %v245, %v285
  %v302 = vadd.f32 %v246, %v286
  %v303 = vadd.f32 %v247, %v287
  %v304 = vadd.f32 %v248, %v288
  %v305 = vadd.f32 %v249, %v289
  %v306 = vadd.f32 %v250, %v290
  %v307 = vadd.f32 %v251, %v291
  %v308 = vld [vmem:[%s5] sm:$0xff]
  %v309 = vld [vmem:[%s5 + $0x8] sm:$0xff]
  %v310 = vld [vmem:[%s5 + $0x10] sm:$0xff]
  %v311 = vld [vmem:[%s5 + $0x18] sm:$0xff]
  %v312 = vld [vmem:[%s5 + $0x20] sm:$0xff]
  %v313 = vld [vmem:[%s5 + $0x28] sm:$0xff]
  %v314 = vld [vmem:[%s5 + $0x30] sm:$0xff]
  %v315 = vld [vmem:[%s5 + $0x38] sm:$0xff]
  %v316 = vld [vmem:[%s5 + $0x40] sm:$0xff]
  %v317 = vld [vmem:[%s5 + $0x48] sm:$0xff]
  %v318 = vld [vmem:[%s5 + $0x50] sm:$0xff]
  %v319 = vld [vmem:[%s5 + $0x58] sm:$0xff]
  %v320 = vld [vmem:[%s5 + $0x60] sm:$0xff]
  %v321 = vld [vmem:[%s5 + $0x68] sm:$0xff]
  %v322 = vld [vmem:[%s5 + $0x70] sm:$0xff]
  %v323 = vld [vmem:[%s5 + $0x78] sm:$0xff]
  %s324 = scalar_lea.vmem %s9, 5
  %v325 = vld [vmem:[%s324] sm:$0x1]
  %v327 = vlaneseq
  %v328 = vshrl.u32 %v327, 7
  %v329 = vsub.s32 0, %v328
  %v330 = vrot.slane %v325, %v329
  %v332 = vmul.f32 %v308, %v330
  %v333 = vmul.f32 %v309, %v330
  %v334 = vmul.f32 %v310, %v330
  %v335 = vmul.f32 %v311, %v330
  %v336 = vmul.f32 %v312, %v330
  %v337 = vmul.f32 %v313, %v330
  %v338 = vmul.f32 %v314, %v330
  %v339 = vmul.f32 %v315, %v330
  %v340 = vmul.f32 %v316, %v330
  %v341 = vmul.f32 %v317, %v330
  %v342 = vmul.f32 %v318, %v330
  %v343 = vmul.f32 %v319, %v330
  %v344 = vmul.f32 %v320, %v330
  %v345 = vmul.f32 %v321, %v330
  %v346 = vmul.f32 %v322, %v330
  %v347 = vmul.f32 %v323, %v330
  %v348 = vadd.f32 %v292, %v332
  %v349 = vadd.f32 %v293, %v333
  %v350 = vadd.f32 %v294, %v334
  %v351 = vadd.f32 %v295, %v335
  %v352 = vadd.f32 %v296, %v336
  %v353 = vadd.f32 %v297, %v337
  %v354 = vadd.f32 %v298, %v338
  %v355 = vadd.f32 %v299, %v339
  %v356 = vadd.f32 %v300, %v340
  %v357 = vadd.f32 %v301, %v341
  %v358 = vadd.f32 %v302, %v342
  %v359 = vadd.f32 %v303, %v343
  %v360 = vadd.f32 %v304, %v344
  %v361 = vadd.f32 %v305, %v345
  %v362 = vadd.f32 %v306, %v346
  %v363 = vadd.f32 %v307, %v347
  %v364 = vld [vmem:[%s6] sm:$0xff]
  %v365 = vld [vmem:[%s6 + $0x8] sm:$0xff]
  %v366 = vld [vmem:[%s6 + $0x10] sm:$0xff]
  %v367 = vld [vmem:[%s6 + $0x18] sm:$0xff]
  %v368 = vld [vmem:[%s6 + $0x20] sm:$0xff]
  %v369 = vld [vmem:[%s6 + $0x28] sm:$0xff]
  %v370 = vld [vmem:[%s6 + $0x30] sm:$0xff]
  %v371 = vld [vmem:[%s6 + $0x38] sm:$0xff]
  %v372 = vld [vmem:[%s6 + $0x40] sm:$0xff]
  %v373 = vld [vmem:[%s6 + $0x48] sm:$0xff]
  %v374 = vld [vmem:[%s6 + $0x50] sm:$0xff]
  %v375 = vld [vmem:[%s6 + $0x58] sm:$0xff]
  %v376 = vld [vmem:[%s6 + $0x60] sm:$0xff]
  %v377 = vld [vmem:[%s6 + $0x68] sm:$0xff]
  %v378 = vld [vmem:[%s6 + $0x70] sm:$0xff]
  %v379 = vld [vmem:[%s6 + $0x78] sm:$0xff]
  %s380 = scalar_lea.vmem %s9, 6
  %v381 = vld [vmem:[%s380] sm:$0x1]
  %v383 = vlaneseq
  %v384 = vshrl.u32 %v383, 7
  %v385 = vsub.s32 0, %v384
  %v386 = vrot.slane %v381, %v385
  %v388 = vmul.f32 %v364, %v386
  %v389 = vmul.f32 %v365, %v386
  %v390 = vmul.f32 %v366, %v386
  %v391 = vmul.f32 %v367, %v386
  %v392 = vmul.f32 %v368, %v386
  %v393 = vmul.f32 %v369, %v386
  %v394 = vmul.f32 %v370, %v386
  %v395 = vmul.f32 %v371, %v386
  %v396 = vmul.f32 %v372, %v386
  %v397 = vmul.f32 %v373, %v386
  %v398 = vmul.f32 %v374, %v386
  %v399 = vmul.f32 %v375, %v386
  %v400 = vmul.f32 %v376, %v386
  %v401 = vmul.f32 %v377, %v386
  %v402 = vmul.f32 %v378, %v386
  %v403 = vmul.f32 %v379, %v386
  %v404 = vadd.f32 %v348, %v388
  %v405 = vadd.f32 %v349, %v389
  %v406 = vadd.f32 %v350, %v390
  %v407 = vadd.f32 %v351, %v391
  %v408 = vadd.f32 %v352, %v392
  %v409 = vadd.f32 %v353, %v393
  %v410 = vadd.f32 %v354, %v394
  %v411 = vadd.f32 %v355, %v395
  %v412 = vadd.f32 %v356, %v396
  %v413 = vadd.f32 %v357, %v397
  %v414 = vadd.f32 %v358, %v398
  %v415 = vadd.f32 %v359, %v399
  %v416 = vadd.f32 %v360, %v400
  %v417 = vadd.f32 %v361, %v401
  %v418 = vadd.f32 %v362, %v402
  %v419 = vadd.f32 %v363, %v403
  %v420 = vld [vmem:[%s7] sm:$0xff]
  %v421 = vld [vmem:[%s7 + $0x8] sm:$0xff]
  %v422 = vld [vmem:[%s7 + $0x10] sm:$0xff]
  %v423 = vld [vmem:[%s7 + $0x18] sm:$0xff]
  %v424 = vld [vmem:[%s7 + $0x20] sm:$0xff]
  %v425 = vld [vmem:[%s7 + $0x28] sm:$0xff]
  %v426 = vld [vmem:[%s7 + $0x30] sm:$0xff]
  %v427 = vld [vmem:[%s7 + $0x38] sm:$0xff]
  %v428 = vld [vmem:[%s7 + $0x40] sm:$0xff]
  %v429 = vld [vmem:[%s7 + $0x48] sm:$0xff]
  %v430 = vld [vmem:[%s7 + $0x50] sm:$0xff]
  %v431 = vld [vmem:[%s7 + $0x58] sm:$0xff]
  %v432 = vld [vmem:[%s7 + $0x60] sm:$0xff]
  %v433 = vld [vmem:[%s7 + $0x68] sm:$0xff]
  %v434 = vld [vmem:[%s7 + $0x70] sm:$0xff]
  %v435 = vld [vmem:[%s7 + $0x78] sm:$0xff]
  %s436 = scalar_lea.vmem %s9, 7
  %v437 = vld [vmem:[%s436] sm:$0x1]
  %v439 = vlaneseq
  %v440 = vshrl.u32 %v439, 7
  %v441 = vsub.s32 0, %v440
  %v442 = vrot.slane %v437, %v441
  %v444 = vmul.f32 %v420, %v442
  %v445 = vmul.f32 %v421, %v442
  %v446 = vmul.f32 %v422, %v442
  %v447 = vmul.f32 %v423, %v442
  %v448 = vmul.f32 %v424, %v442
  %v449 = vmul.f32 %v425, %v442
  %v450 = vmul.f32 %v426, %v442
  %v451 = vmul.f32 %v427, %v442
  %v452 = vmul.f32 %v428, %v442
  %v453 = vmul.f32 %v429, %v442
  %v454 = vmul.f32 %v430, %v442
  %v455 = vmul.f32 %v431, %v442
  %v456 = vmul.f32 %v432, %v442
  %v457 = vmul.f32 %v433, %v442
  %v458 = vmul.f32 %v434, %v442
  %v459 = vmul.f32 %v435, %v442
  %v460 = vadd.f32 %v404, %v444
  %v461 = vadd.f32 %v405, %v445
  %v462 = vadd.f32 %v406, %v446
  %v463 = vadd.f32 %v407, %v447
  %v464 = vadd.f32 %v408, %v448
  %v465 = vadd.f32 %v409, %v449
  %v466 = vadd.f32 %v410, %v450
  %v467 = vadd.f32 %v411, %v451
  %v468 = vadd.f32 %v412, %v452
  %v469 = vadd.f32 %v413, %v453
  %v470 = vadd.f32 %v414, %v454
  %v471 = vadd.f32 %v415, %v455
  %v472 = vadd.f32 %v416, %v456
  %v473 = vadd.f32 %v417, %v457
  %v474 = vadd.f32 %v418, %v458
  %v475 = vadd.f32 %v419, %v459
  %v476 = vld [vmem:[%s8] sm:$0xff]
  %v477 = vld [vmem:[%s8 + $0x8] sm:$0xff]
  %v478 = vld [vmem:[%s8 + $0x10] sm:$0xff]
  %v479 = vld [vmem:[%s8 + $0x18] sm:$0xff]
  %v480 = vld [vmem:[%s8 + $0x20] sm:$0xff]
  %v481 = vld [vmem:[%s8 + $0x28] sm:$0xff]
  %v482 = vld [vmem:[%s8 + $0x30] sm:$0xff]
  %v483 = vld [vmem:[%s8 + $0x38] sm:$0xff]
  %v484 = vld [vmem:[%s8 + $0x40] sm:$0xff]
  %v485 = vld [vmem:[%s8 + $0x48] sm:$0xff]
  %v486 = vld [vmem:[%s8 + $0x50] sm:$0xff]
  %v487 = vld [vmem:[%s8 + $0x58] sm:$0xff]
  %v488 = vld [vmem:[%s8 + $0x60] sm:$0xff]
  %v489 = vld [vmem:[%s8 + $0x68] sm:$0xff]
  %v490 = vld [vmem:[%s8 + $0x70] sm:$0xff]
  %v491 = vld [vmem:[%s8 + $0x78] sm:$0xff]
  %s492 = scalar_lea.vmem %s9, 8
  %v493 = vld [vmem:[%s492] sm:$0x1]
  %v495 = vlaneseq
  %v496 = vshrl.u32 %v495, 7
  %v497 = vsub.s32 0, %v496
  %v498 = vrot.slane %v493, %v497
  %v500 = vmul.f32 %v476, %v498
  %v501 = vmul.f32 %v477, %v498
  %v502 = vmul.f32 %v478, %v498
  %v503 = vmul.f32 %v479, %v498
  %v504 = vmul.f32 %v480, %v498
  %v505 = vmul.f32 %v481, %v498
  %v506 = vmul.f32 %v482, %v498
  %v507 = vmul.f32 %v483, %v498
  %v508 = vmul.f32 %v484, %v498
  %v509 = vmul.f32 %v485, %v498
  %v510 = vmul.f32 %v486, %v498
  %v511 = vmul.f32 %v487, %v498
  %v512 = vmul.f32 %v488, %v498
  %v513 = vmul.f32 %v489, %v498
  %v514 = vmul.f32 %v490, %v498
  %v515 = vmul.f32 %v491, %v498
  %v516 = vadd.f32 %v460, %v500
  %v517 = vadd.f32 %v461, %v501
  %v518 = vadd.f32 %v462, %v502
  %v519 = vadd.f32 %v463, %v503
  %v520 = vadd.f32 %v464, %v504
  %v521 = vadd.f32 %v465, %v505
  %v522 = vadd.f32 %v466, %v506
  %v523 = vadd.f32 %v467, %v507
  %v524 = vadd.f32 %v468, %v508
  %v525 = vadd.f32 %v469, %v509
  %v526 = vadd.f32 %v470, %v510
  %v527 = vadd.f32 %v471, %v511
  %v528 = vadd.f32 %v472, %v512
  %v529 = vadd.f32 %v473, %v513
  %v530 = vadd.f32 %v474, %v514
  %v531 = vadd.f32 %v475, %v515
  %v532 = vld [vmem:[%s10] sm:$0x1]
  %v534 = vlaneseq
  %v535 = vshrl.u32 %v534, 7
  %v536 = vsub.s32 0, %v535
  %v537 = vrot.slane %v532, %v536
  %v539 = vadd.f32 %v516, %v537
  %v540 = vadd.f32 %v517, %v537
  %v541 = vadd.f32 %v518, %v537
  %v542 = vadd.f32 %v519, %v537
  %v543 = vadd.f32 %v520, %v537
  %v544 = vadd.f32 %v521, %v537
  %v545 = vadd.f32 %v522, %v537
  %v546 = vadd.f32 %v523, %v537
  %v547 = vadd.f32 %v524, %v537
  %v548 = vadd.f32 %v525, %v537
  %v549 = vadd.f32 %v526, %v537
  %v550 = vadd.f32 %v527, %v537
  %v551 = vadd.f32 %v528, %v537
  %v552 = vadd.f32 %v529, %v537
  %v553 = vadd.f32 %v530, %v537
  %v554 = vadd.f32 %v531, %v537
  %v555 = vmax.f32 %v539, 0.0
  %v556 = vmax.f32 %v540, 0.0
  %v557 = vmax.f32 %v541, 0.0
  %v558 = vmax.f32 %v542, 0.0
  %v559 = vmax.f32 %v543, 0.0
  %v560 = vmax.f32 %v544, 0.0
  %v561 = vmax.f32 %v545, 0.0
  %v562 = vmax.f32 %v546, 0.0
  %v563 = vmax.f32 %v547, 0.0
  %v564 = vmax.f32 %v548, 0.0
  %v565 = vmax.f32 %v549, 0.0
  %v566 = vmax.f32 %v550, 0.0
  %v567 = vmax.f32 %v551, 0.0
  %v568 = vmax.f32 %v552, 0.0
  %v569 = vmax.f32 %v553, 0.0
  %v570 = vmax.f32 %v554, 0.0
  %v571 = vpack.c.bf16 %v556, %v555
  %v572 = vpack.c.bf16 %v558, %v557
  %v573 = vpack.c.bf16 %v560, %v559
  %v574 = vpack.c.bf16 %v562, %v561
  %v575 = vpack.c.bf16 %v564, %v563
  %v576 = vpack.c.bf16 %v566, %v565
  %v577 = vpack.c.bf16 %v568, %v567
  %v578 = vpack.c.bf16 %v570, %v569
  %v579 = vld [vmem:[%s11] sm:$0xf]
  %v580 = vld [vmem:[%s11 + $0x4] sm:$0xf]
  %v581 = vld [vmem:[%s12] sm:$0x1]
  %v583 = vlaneseq
  %v584 = vshrl.u32 %v583, 7
  %v585 = vsub.s32 0, %v584
  %v586 = vrot.slane %v581, %v585
  %v590 = vunpack.c.l.b16 %v579
  %v591 = vunpack.c.l.b16 %v580
  %v592 = vpack.c.b16 %v591, %v590
  %vm594 = vcmask 130048
  %v596 = vsel %vm594, %v571, 0
  %v599 = vsel %vm594, %v572, 0
  %v602 = vsel %vm594, %v573, 0
  %v605 = vsel %vm594, %v574, 0
  %v608 = vsel %vm594, %v575, 0
  %v611 = vsel %vm594, %v576, 0
  %v614 = vsel %vm594, %v577, 0
  %v617 = vsel %vm594, %v578, 0
  %619 = vmatprep.subr.bf16.mxu0 0
  %620 = vmatpush1.bf16.msra.mxu0 %v592
  %621 = vmatprep.subr.bf16.mxu0 0
  %622 = vmatpush1.bf16.msra.mxu0 0
  %623 = vmatprep.subr.bf16.mxu0 0
  %624 = vmatpush1.bf16.msra.mxu0 0
  %625 = vmatprep.subr.bf16.mxu0 0
  %626 = vmatpush1.bf16.msra.mxu0 0
  %627 = vmatprep.subr.bf16.mxu0 0
  %628 = vmatpush1.bf16.msra.mxu0 0
  %629 = vmatprep.subr.bf16.mxu0 0
  %630 = vmatpush1.bf16.msra.mxu0 0
  %631 = vmatprep.subr.bf16.mxu0 0
  %632 = vmatpush1.bf16.msra.mxu0 0
  %633 = vmatprep.subr.bf16.mxu0 0
  %634 = vmatpush1.bf16.msra.mxu0 0
  %635 = vmatprep.subr.bf16.mxu0 0
  %636 = vmatpush1.bf16.msra.mxu0 0
  %637 = vmatprep.subr.bf16.mxu0 0
  %638 = vmatpush1.bf16.msra.mxu0 0
  %639 = vmatprep.subr.bf16.mxu0 0
  %640 = vmatpush1.bf16.msra.mxu0 0
  %641 = vmatprep.subr.bf16.mxu0 0
  %642 = vmatpush1.bf16.msra.mxu0 0
  %643 = vmatprep.subr.bf16.mxu0 0
  %644 = vmatpush1.bf16.msra.mxu0 0
  %645 = vmatprep.subr.bf16.mxu0 0
  %646 = vmatpush1.bf16.msra.mxu0 0
  %647 = vmatprep.subr.bf16.mxu0 0
  %648 = vmatpush1.bf16.msra.mxu0 0
  %649 = vmatprep.subr.bf16.mxu0 0
  %650 = vmatpush1.bf16.msra.mxu0 0
  %651 = vmatprep.mubr.bf16.mxu0 0
  %652 = vmatmul.mubr.bf16.gmra.mrb[0].mxu0 %v596
  %v653 = vpop.f32.mrb[0].mxu0
  %v654 = vadd.f32 %v586, %v653
  %v655 = vpop.f32.mrb[0].mxu0
  %v656 = vpop.f32.mrb[0].mxu0
  %v657 = vadd.f32 %v586, %v656
  %v658 = vpop.f32.mrb[0].mxu0
  %659 = vmatprep.mubr.bf16.mxu0 0
  %660 = vmatmul.mubr.bf16.gmra.mrb[0].mxu0 %v599
  %v661 = vpop.f32.mrb[0].mxu0
  %v662 = vadd.f32 %v586, %v661
  %v663 = vpop.f32.mrb[0].mxu0
  %v664 = vpop.f32.mrb[0].mxu0
  %v665 = vadd.f32 %v586, %v664
  %v666 = vpop.f32.mrb[0].mxu0
  %667 = vmatprep.mubr.bf16.mxu0 0
  %668 = vmatmul.mubr.bf16.gmra.mrb[0].mxu0 %v602
  %v669 = vpop.f32.mrb[0].mxu0
  %v670 = vadd.f32 %v586, %v669
  %v671 = vpop.f32.mrb[0].mxu0
  %v672 = vpop.f32.mrb[0].mxu0
  %v673 = vadd.f32 %v586, %v672
  %v674 = vpop.f32.mrb[0].mxu0
  %675 = vmatprep.mubr.bf16.mxu0 0
  %676 = vmatmul.mubr.bf16.gmra.mrb[0].mxu0 %v605
  %v677 = vpop.f32.mrb[0].mxu0
  %v678 = vadd.f32 %v586, %v677
  %v679 = vpop.f32.mrb[0].mxu0
  %v680 = vpop.f32.mrb[0].mxu0
  %v681 = vadd.f32 %v586, %v680
  %v682 = vpop.f32.mrb[0].mxu0
  %683 = vmatprep.mubr.bf16.mxu0 0
  %684 = vmatmul.mubr.bf16.gmra.mrb[0].mxu0 %v608
  %v685 = vpop.f32.mrb[0].mxu0
  %v686 = vadd.f32 %v586, %v685
  %v687 = vpop.f32.mrb[0].mxu0
  %v688 = vpop.f32.mrb[0].mxu0
  %v689 = vadd.f32 %v586, %v688
  %v690 = vpop.f32.mrb[0].mxu0
  %691 = vmatprep.mubr.bf16.mxu0 0
  %692 = vmatmul.mubr.bf16.gmra.mrb[0].mxu0 %v611
  %v693 = vpop.f32.mrb[0].mxu0
  %v694 = vadd.f32 %v586, %v693
  %v695 = vpop.f32.mrb[0].mxu0
  %v696 = vpop.f32.mrb[0].mxu0
  %v697 = vadd.f32 %v586, %v696
  %v698 = vpop.f32.mrb[0].mxu0
  %699 = vmatprep.mubr.bf16.mxu0 0
  %700 = vmatmul.mubr.bf16.gmra.mrb[0].mxu0 %v614
  %v701 = vpop.f32.mrb[0].mxu0
  %v702 = vadd.f32 %v586, %v701
  %v703 = vpop.f32.mrb[0].mxu0
  %v704 = vpop.f32.mrb[0].mxu0
  %v705 = vadd.f32 %v586, %v704
  %v706 = vpop.f32.mrb[0].mxu0
  %707 = vmatprep.mubr.bf16.mxu0 0
  %708 = vmatmul.mubr.bf16.gmra.mrb[0].mxu0 %v617
  %v709 = vpop.f32.mrb[0].mxu0
  %v710 = vadd.f32 %v586, %v709
  %v711 = vpop.f32.mrb[0].mxu0
  %v712 = vpop.f32.mrb[0].mxu0
  %v713 = vadd.f32 %v586, %v712
  %v714 = vpop.f32.mrb[0].mxu0
  %715 = vdwg.mxu0
  %v716 = vmax.f32 %v654, 0.0
  %v717 = vmax.f32 %v657, 0.0
  %v718 = vmax.f32 %v662, 0.0
  %v719 = vmax.f32 %v665, 0.0
  %v720 = vmax.f32 %v670, 0.0
  %v721 = vmax.f32 %v673, 0.0
  %v722 = vmax.f32 %v678, 0.0
  %v723 = vmax.f32 %v681, 0.0
  %v724 = vmax.f32 %v686, 0.0
  %v725 = vmax.f32 %v689, 0.0
  %v726 = vmax.f32 %v694, 0.0
  %v727 = vmax.f32 %v697, 0.0
  %v728 = vmax.f32 %v702, 0.0
  %v729 = vmax.f32 %v705, 0.0
  %v730 = vmax.f32 %v710, 0.0
  %v731 = vmax.f32 %v713, 0.0
  %vm732 = vcmask 261120
  %733 = vst.msk [vmem:[%s13] sm:$0xff] %vm732, %v716
  %734 = vst.msk [vmem:[%s13 + $0x8] sm:$0xff] %vm732, %v717
  %735 = vst.msk [vmem:[%s13 + $0x10] sm:$0xff] %vm732, %v718
  %736 = vst.msk [vmem:[%s13 + $0x18] sm:$0xff] %vm732, %v719
  %737 = vst.msk [vmem:[%s13 + $0x20] sm:$0xff] %vm732, %v720
  %738 = vst.msk [vmem:[%s13 + $0x28] sm:$0xff] %vm732, %v721
  %739 = vst.msk [vmem:[%s13 + $0x30] sm:$0xff] %vm732, %v722
  %740 = vst.msk [vmem:[%s13 + $0x38] sm:$0xff] %vm732, %v723
  %741 = vst.msk [vmem:[%s13 + $0x40] sm:$0xff] %vm732, %v724
  %742 = vst.msk [vmem:[%s13 + $0x48] sm:$0xff] %vm732, %v725
  %743 = vst.msk [vmem:[%s13 + $0x50] sm:$0xff] %vm732, %v726
  %744 = vst.msk [vmem:[%s13 + $0x58] sm:$0xff] %vm732, %v727
  %745 = vst.msk [vmem:[%s13 + $0x60] sm:$0xff] %vm732, %v728
  %746 = vst.msk [vmem:[%s13 + $0x68] sm:$0xff] %vm732, %v729
  %747 = vst.msk [vmem:[%s13 + $0x70] sm:$0xff] %vm732, %v730
  %748 = vst.msk [vmem:[%s13 + $0x78] sm:$0xff] %vm732, %v731
  // Predicated region
  $region54: #{forward.17} parent=0 // pred_check
    _
  $region55: #{forward.17} parent=0 // pred_check_branch
    %750 = sbr.rel (0) target = $region57
  $region56: #{forward.17} parent=0 // pred_region
    _
  $region57: #{forward.17} parent=0 // pred_fallthru
    _
  // Predicated region
  $region58: #{forward.17} parent=0 // pred_check
    _
  $region59: #{forward.17} parent=0 // pred_check_branch
    %752 = sbr.rel (0) target = $region61
  $region60: #{forward.17} parent=0 // pred_region
    _
  $region61: #{forward.17} parent=0 // pred_fallthru
    _

// kernel: forward.18
$region0: #{forward.18}
  #allocation0 [shape = 'u32[]', space=smem, size = 0x4, offset = 0x4, fixed_abs, tag = 'smem constant byte address 0x4 - core index']
  #allocation1 [shape = 'u32[144,128]{1,0:T(1,128)}', space=vmem, size = 0x12000, scoped, tag = 'internal scratch']
  %s0 = inlined_call_operand.vmem [shape: f32[128,32], index: 0, kind: input, shape index: {}]
  %s1 = inlined_call_operand.vmem [shape: f32[128,32], index: 1, kind: input, shape index: {}]
  %s2 = inlined_call_operand.vmem [shape: f32[128,32], index: 2, kind: input, shape index: {}]
  %s3 = inlined_call_operand.vmem [shape: f32[128,32], index: 3, kind: input, shape index: {}]
  %s4 = inlined_call_operand.vmem [shape: f32[128,32], index: 4, kind: input, shape index: {}]
  %s5 = inlined_call_operand.vmem [shape: f32[128,32], index: 5, kind: input, shape index: {}]
  %s6 = inlined_call_operand.vmem [shape: f32[128,32], index: 6, kind: input, shape index: {}]
  %s7 = inlined_call_operand.vmem [shape: f32[128,32], index: 7, kind: input, shape index: {}]
  %s8 = inlined_call_operand.vmem [shape: f32[128,32], index: 8, kind: input, shape index: {}]
  %s9 = inlined_call_operand.vmem [shape: f32[9,1,32], index: 9, kind: input, shape index: {}]
  %s10 = inlined_call_operand.vmem [shape: f32[1,32], index: 10, kind: input, shape index: {}]
  %s11 = inlined_call_operand.vmem [shape: bf16[32,32], index: 11, kind: input, shape index: {}]
  %s12 = inlined_call_operand.vmem [shape: f32[1,32], index: 12, kind: input, shape index: {}]
  %s13 = inlined_call_operand.vmem [shape: f32[128,32], index: 13, kind: output, shape index: {}]
  %s14 = sld [smem:[#allocation0]]
  $region62: #{forward.18} parent=0
    _
  %s16 = ssub.s32 1, %s14
  %s17 = scalar_select 0, %s16, %s14
  // Predicated region
  $region2: #{forward.18} parent=0 // pred_check
    _
  $region3: #{forward.18} parent=0 // pred_check_branch
    %19 = sbr.rel (0) target = $region5
  $region4: #{forward.18} parent=0 // pred_region
    _
  $region5: #{forward.18} parent=0 // pred_fallthru
    _
  // Predicated region
  $region6: #{forward.18} parent=0 // pred_check
    _
  $region7: #{forward.18} parent=0 // pred_check_branch
    %21 = sbr.rel (0) target = $region9
  $region8: #{forward.18} parent=0 // pred_region
    _
  $region9: #{forward.18} parent=0 // pred_fallthru
    _
  // Predicated region
  $region10: #{forward.18} parent=0 // pred_check
    _
  $region11: #{forward.18} parent=0 // pred_check_branch
    %23 = sbr.rel (0) target = $region13
  $region12: #{forward.18} parent=0 // pred_region
    _
  $region13: #{forward.18} parent=0 // pred_fallthru
    _
  // Predicated region
  $region14: #{forward.18} parent=0 // pred_check
    _
  $region15: #{forward.18} parent=0 // pred_check_branch
    %25 = sbr.rel (0) target = $region17
  $region16: #{forward.18} parent=0 // pred_region
    _
  $region17: #{forward.18} parent=0 // pred_fallthru
    _
  // Predicated region
  $region18: #{forward.18} parent=0 // pred_check
    _
  $region19: #{forward.18} parent=0 // pred_check_branch
    %27 = sbr.rel (0) target = $region21
  $region20: #{forward.18} parent=0 // pred_region
    _
  $region21: #{forward.18} parent=0 // pred_fallthru
    _
  // Predicated region
  $region22: #{forward.18} parent=0 // pred_check
    _
  $region23: #{forward.18} parent=0 // pred_check_branch
    %29 = sbr.rel (0) target = $region25
  $region24: #{forward.18} parent=0 // pred_region
    _
  $region25: #{forward.18} parent=0 // pred_fallthru
    _
  // Predicated region
  $region26: #{forward.18} parent=0 // pred_check
    _
  $region27: #{forward.18} parent=0 // pred_check_branch
    %31 = sbr.rel (0) target = $region29
  $region28: #{forward.18} parent=0 // pred_region
    _
  $region29: #{forward.18} parent=0 // pred_fallthru
    _
  // Predicated region
  $region30: #{forward.18} parent=0 // pred_check
    _
  $region31: #{forward.18} parent=0 // pred_check_branch
    %33 = sbr.rel (0) target = $region33
  $region32: #{forward.18} parent=0 // pred_region
    _
  $region33: #{forward.18} parent=0 // pred_fallthru
    _
  // Predicated region
  $region34: #{forward.18} parent=0 // pred_check
    _
  $region35: #{forward.18} parent=0 // pred_check_branch
    %35 = sbr.rel (0) target = $region37
  $region36: #{forward.18} parent=0 // pred_region
    _
  $region37: #{forward.18} parent=0 // pred_fallthru
    _
  // Predicated region
  $region38: #{forward.18} parent=0 // pred_check
    _
  $region39: #{forward.18} parent=0 // pred_check_branch
    %37 = sbr.rel (0) target = $region41
  $region40: #{forward.18} parent=0 // pred_region
    _
  $region41: #{forward.18} parent=0 // pred_fallthru
    _
  // Predicated region
  $region42: #{forward.18} parent=0 // pred_check
    _
  $region43: #{forward.18} parent=0 // pred_check_branch
    %39 = sbr.rel (0) target = $region45
  $region44: #{forward.18} parent=0 // pred_region
    _
  $region45: #{forward.18} parent=0 // pred_fallthru
    _
  // Predicated region
  $region46: #{forward.18} parent=0 // pred_check
    _
  $region47: #{forward.18} parent=0 // pred_check_branch
    %41 = sbr.rel (0) target = $region49
  $region48: #{forward.18} parent=0 // pred_region
    _
  $region49: #{forward.18} parent=0 // pred_fallthru
    _
  // Predicated region
  $region50: #{forward.18} parent=0 // pred_check
    _
  $region51: #{forward.18} parent=0 // pred_check_branch
    %43 = sbr.rel (0) target = $region53
  $region52: #{forward.18} parent=0 // pred_region
    _
  $region53: #{forward.18} parent=0 // pred_fallthru
    _
  %v45 = vld [vmem:[%s0] sm:$0xff]
  %v46 = vld [vmem:[%s0 + $0x8] sm:$0xff]
  %v47 = vld [vmem:[%s0 + $0x10] sm:$0xff]
  %v48 = vld [vmem:[%s0 + $0x18] sm:$0xff]
  %v49 = vld [vmem:[%s0 + $0x20] sm:$0xff]
  %v50 = vld [vmem:[%s0 + $0x28] sm:$0xff]
  %v51 = vld [vmem:[%s0 + $0x30] sm:$0xff]
  %v52 = vld [vmem:[%s0 + $0x38] sm:$0xff]
  %v53 = vld [vmem:[%s0 + $0x40] sm:$0xff]
  %v54 = vld [vmem:[%s0 + $0x48] sm:$0xff]
  %v55 = vld [vmem:[%s0 + $0x50] sm:$0xff]
  %v56 = vld [vmem:[%s0 + $0x58] sm:$0xff]
  %v57 = vld [vmem:[%s0 + $0x60] sm:$0xff]
  %v58 = vld [vmem:[%s0 + $0x68] sm:$0xff]
  %v59 = vld [vmem:[%s0 + $0x70] sm:$0xff]
  %v60 = vld [vmem:[%s0 + $0x78] sm:$0xff]
  %v61 = vld [vmem:[%s9] sm:$0x1]
  %v63 = vlaneseq
  %v64 = vshrl.u32 %v63, 7
  %v65 = vsub.s32 0, %v64
  %v66 = vrot.slane %v61, %v65
  %v68 = vmul.f32 %v45, %v66
  %v69 = vmul.f32 %v46, %v66
  %v70 = vmul.f32 %v47, %v66
  %v71 = vmul.f32 %v48, %v66
  %v72 = vmul.f32 %v49, %v66
  %v73 = vmul.f32 %v50, %v66
  %v74 = vmul.f32 %v51, %v66
  %v75 = vmul.f32 %v52, %v66
  %v76 = vmul.f32 %v53, %v66
  %v77 = vmul.f32 %v54, %v66
  %v78 = vmul.f32 %v55, %v66
  %v79 = vmul.f32 %v56, %v66
  %v80 = vmul.f32 %v57, %v66
  %v81 = vmul.f32 %v58, %v66
  %v82 = vmul.f32 %v59, %v66
  %v83 = vmul.f32 %v60, %v66
  %v84 = vld [vmem:[%s1] sm:$0xff]
  %v85 = vld [vmem:[%s1 + $0x8] sm:$0xff]
  %v86 = vld [vmem:[%s1 + $0x10] sm:$0xff]
  %v87 = vld [vmem:[%s1 + $0x18] sm:$0xff]
  %v88 = vld [vmem:[%s1 + $0x20] sm:$0xff]
  %v89 = vld [vmem:[%s1 + $0x28] sm:$0xff]
  %v90 = vld [vmem:[%s1 + $0x30] sm:$0xff]
  %v91 = vld [vmem:[%s1 + $0x38] sm:$0xff]
  %v92 = vld [vmem:[%s1 + $0x40] sm:$0xff]
  %v93 = vld [vmem:[%s1 + $0x48] sm:$0xff]
  %v94 = vld [vmem:[%s1 + $0x50] sm:$0xff]
  %v95 = vld [vmem:[%s1 + $0x58] sm:$0xff]
  %v96 = vld [vmem:[%s1 + $0x60] sm:$0xff]
  %v97 = vld [vmem:[%s1 + $0x68] sm:$0xff]
  %v98 = vld [vmem:[%s1 + $0x70] sm:$0xff]
  %v99 = vld [vmem:[%s1 + $0x78] sm:$0xff]
  %s100 = scalar_lea.vmem %s9, 1
  %v101 = vld [vmem:[%s100] sm:$0x1]
  %v103 = vlaneseq
  %v104 = vshrl.u32 %v103, 7
  %v105 = vsub.s32 0, %v104
  %v106 = vrot.slane %v101, %v105
  %v108 = vmul.f32 %v84, %v106
  %v109 = vmul.f32 %v85, %v106
  %v110 = vmul.f32 %v86, %v106
  %v111 = vmul.f32 %v87, %v106
  %v112 = vmul.f32 %v88, %v106
  %v113 = vmul.f32 %v89, %v106
  %v114 = vmul.f32 %v90, %v106
  %v115 = vmul.f32 %v91, %v106
  %v116 = vmul.f32 %v92, %v106
  %v117 = vmul.f32 %v93, %v106
  %v118 = vmul.f32 %v94, %v106
  %v119 = vmul.f32 %v95, %v106
  %v120 = vmul.f32 %v96, %v106
  %v121 = vmul.f32 %v97, %v106
  %v122 = vmul.f32 %v98, %v106
  %v123 = vmul.f32 %v99, %v106
  %v124 = vadd.f32 %v68, %v108
  %v125 = vadd.f32 %v69, %v109
  %v126 = vadd.f32 %v70, %v110
  %v127 = vadd.f32 %v71, %v111
  %v128 = vadd.f32 %v72, %v112
  %v129 = vadd.f32 %v73, %v113
  %v130 = vadd.f32 %v74, %v114
  %v131 = vadd.f32 %v75, %v115
  %v132 = vadd.f32 %v76, %v116
  %v133 = vadd.f32 %v77, %v117
  %v134 = vadd.f32 %v78, %v118
  %v135 = vadd.f32 %v79, %v119
  %v136 = vadd.f32 %v80, %v120
  %v137 = vadd.f32 %v81, %v121
  %v138 = vadd.f32 %v82, %v122
  %v139 = vadd.f32 %v83, %v123
  %v140 = vld [vmem:[%s2] sm:$0xff]
  %v141 = vld [vmem:[%s2 + $0x8] sm:$0xff]
  %v142 = vld [vmem:[%s2 + $0x10] sm:$0xff]
  %v143 = vld [vmem:[%s2 + $0x18] sm:$0xff]
  %v144 = vld [vmem:[%s2 + $0x20] sm:$0xff]
  %v145 = vld [vmem:[%s2 + $0x28] sm:$0xff]
  %v146 = vld [vmem:[%s2 + $0x30] sm:$0xff]
  %v147 = vld [vmem:[%s2 + $0x38] sm:$0xff]
  %v148 = vld [vmem:[%s2 + $0x40] sm:$0xff]
  %v149 = vld [vmem:[%s2 + $0x48] sm:$0xff]
  %v150 = vld [vmem:[%s2 + $0x50] sm:$0xff]
  %v151 = vld [vmem:[%s2 + $0x58] sm:$0xff]
  %v152 = vld [vmem:[%s2 + $0x60] sm:$0xff]
  %v153 = vld [vmem:[%s2 + $0x68] sm:$0xff]
  %v154 = vld [vmem:[%s2 + $0x70] sm:$0xff]
  %v155 = vld [vmem:[%s2 + $0x78] sm:$0xff]
  %s156 = scalar_lea.vmem %s9, 2
  %v157 = vld [vmem:[%s156] sm:$0x1]
  %v159 = vlaneseq
  %v160 = vshrl.u32 %v159, 7
  %v161 = vsub.s32 0, %v160
  %v162 = vrot.slane %v157, %v161
  %v164 = vmul.f32 %v140, %v162
  %v165 = vmul.f32 %v141, %v162
  %v166 = vmul.f32 %v142, %v162
  %v167 = vmul.f32 %v143, %v162
  %v168 = vmul.f32 %v144, %v162
  %v169 = vmul.f32 %v145, %v162
  %v170 = vmul.f32 %v146, %v162
  %v171 = vmul.f32 %v147, %v162
  %v172 = vmul.f32 %v148, %v162
  %v173 = vmul.f32 %v149, %v162
  %v174 = vmul.f32 %v150, %v162
  %v175 = vmul.f32 %v151, %v162
  %v176 = vmul.f32 %v152, %v162
  %v177 = vmul.f32 %v153, %v162
  %v178 = vmul.f32 %v154, %v162
  %v179 = vmul.f32 %v155, %v162
  %v180 = vadd.f32 %v124, %v164
  %v181 = vadd.f32 %v125, %v165
  %v182 = vadd.f32 %v126, %v166
  %v183 = vadd.f32 %v127, %v167
  %v184 = vadd.f32 %v128, %v168
  %v185 = vadd.f32 %v129, %v169
  %v186 = vadd.f32 %v130, %v170
  %v187 = vadd.f32 %v131, %v171
  %v188 = vadd.f32 %v132, %v172
  %v189 = vadd.f32 %v133, %v173
  %v190 = vadd.f32 %v134, %v174
  %v191 = vadd.f32 %v135, %v175
  %v192 = vadd.f32 %v136, %v176
  %v193 = vadd.f32 %v137, %v177
  %v194 = vadd.f32 %v138, %v178
  %v195 = vadd.f32 %v139, %v179
  %v196 = vld [vmem:[%s3] sm:$0xff]
  %v197 = vld [vmem:[%s3 + $0x8] sm:$0xff]
  %v198 = vld [vmem:[%s3 + $0x10] sm:$0xff]
  %v199 = vld [vmem:[%s3 + $0x18] sm:$0xff]
  %v200 = vld [vmem:[%s3 + $0x20] sm:$0xff]
  %v201 = vld [vmem:[%s3 + $0x28] sm:$0xff]
  %v202 = vld [vmem:[%s3 + $0x30] sm:$0xff]
  %v203 = vld [vmem:[%s3 + $0x38] sm:$0xff]
  %v204 = vld [vmem:[%s3 + $0x40] sm:$0xff]
  %v205 = vld [vmem:[%s3 + $0x48] sm:$0xff]
  %v206 = vld [vmem:[%s3 + $0x50] sm:$0xff]
  %v207 = vld [vmem:[%s3 + $0x58] sm:$0xff]
  %v208 = vld [vmem:[%s3 + $0x60] sm:$0xff]
  %v209 = vld [vmem:[%s3 + $0x68] sm:$0xff]
  %v210 = vld [vmem:[%s3 + $0x70] sm:$0xff]
  %v211 = vld [vmem:[%s3 + $0x78] sm:$0xff]
  %s212 = scalar_lea.vmem %s9, 3
  %v213 = vld [vmem:[%s212] sm:$0x1]
  %v215 = vlaneseq
  %v216 = vshrl.u32 %v215, 7
  %v217 = vsub.s32 0, %v216
  %v218 = vrot.slane %v213, %v217
  %v220 = vmul.f32 %v196, %v218
  %v221 = vmul.f32 %v197, %v218
  %v222 = vmul.f32 %v198, %v218
  %v223 = vmul.f32 %v199, %v218
  %v224 = vmul.f32 %v200, %v218
  %v225 = vmul.f32 %v201, %v218
  %v226 = vmul.f32 %v202, %v218
  %v227 = vmul.f32 %v203, %v218
  %v228 = vmul.f32 %v204, %v218
  %v229 = vmul.f32 %v205, %v218
  %v230 = vmul.f32 %v206, %v218
  %v231 = vmul.f32 %v207, %v218
  %v232 = vmul.f32 %v208, %v218
  %v233 = vmul.f32 %v209, %v218
  %v234 = vmul.f32 %v210, %v218
  %v235 = vmul.f32 %v211, %v218
  %v236 = vadd.f32 %v180, %v220
  %v237 = vadd.f32 %v181, %v221
  %v238 = vadd.f32 %v182, %v222
  %v239 = vadd.f32 %v183, %v223
  %v240 = vadd.f32 %v184, %v224
  %v241 = vadd.f32 %v185, %v225
  %v242 = vadd.f32 %v186, %v226
  %v243 = vadd.f32 %v187, %v227
  %v244 = vadd.f32 %v188, %v228
  %v245 = vadd.f32 %v189, %v229
  %v246 = vadd.f32 %v190, %v230
  %v247 = vadd.f32 %v191, %v231
  %v248 = vadd.f32 %v192, %v232
  %v249 = vadd.f32 %v193, %v233
  %v250 = vadd.f32 %v194, %v234
  %v251 = vadd.f32 %v195, %v235
  %v252 = vld [vmem:[%s4] sm:$0xff]
  %v253 = vld [vmem:[%s4 + $0x8] sm:$0xff]
  %v254 = vld [vmem:[%s4 + $0x10] sm:$0xff]
  %v255 = vld [vmem:[%s4 + $0x18] sm:$0xff]
  %v256 = vld [vmem:[%s4 + $0x20] sm:$0xff]
  %v257 = vld [vmem:[%s4 + $0x28] sm:$0xff]
  %v258 = vld [vmem:[%s4 + $0x30] sm:$0xff]
  %v259 = vld [vmem:[%s4 + $0x38] sm:$0xff]
  %v260 = vld [vmem:[%s4 + $0x40] sm:$0xff]
  %v261 = vld [vmem:[%s4 + $0x48] sm:$0xff]
  %v262 = vld [vmem:[%s4 + $0x50] sm:$0xff]
  %v263 = vld [vmem:[%s4 + $0x58] sm:$0xff]
  %v264 = vld [vmem:[%s4 + $0x60] sm:$0xff]
  %v265 = vld [vmem:[%s4 + $0x68] sm:$0xff]
  %v266 = vld [vmem:[%s4 + $0x70] sm:$0xff]
  %v267 = vld [vmem:[%s4 + $0x78] sm:$0xff]
  %s268 = scalar_lea.vmem %s9, 4
  %v269 = vld [vmem:[%s268] sm:$0x1]
  %v271 = vlaneseq
  %v272 = vshrl.u32 %v271, 7
  %v273 = vsub.s32 0, %v272
  %v274 = vrot.slane %v269, %v273
  %v276 = vmul.f32 %v252, %v274
  %v277 = vmul.f32 %v253, %v274
  %v278 = vmul.f32 %v254, %v274
  %v279 = vmul.f32 %v255, %v274
  %v280 = vmul.f32 %v256, %v274
  %v281 = vmul.f32 %v257, %v274
  %v282 = vmul.f32 %v258, %v274
  %v283 = vmul.f32 %v259, %v274
  %v284 = vmul.f32 %v260, %v274
  %v285 = vmul.f32 %v261, %v274
  %v286 = vmul.f32 %v262, %v274
  %v287 = vmul.f32 %v263, %v274
  %v288 = vmul.f32 %v264, %v274
  %v289 = vmul.f32 %v265, %v274
  %v290 = vmul.f32 %v266, %v274
  %v291 = vmul.f32 %v267, %v274
  %v292 = vadd.f32 %v236, %v276
  %v293 = vadd.f32 %v237, %v277
  %v294 = vadd.f32 %v238, %v278
  %v295 = vadd.f32 %v239, %v279
  %v296 = vadd.f32 %v240, %v280
  %v297 = vadd.f32 %v241, %v281
  %v298 = vadd.f32 %v242, %v282
  %v299 = vadd.f32 %v243, %v283
  %v300 = vadd.f32 %v244, %v284
  %v301 = vadd.f32 %v245, %v285
  %v302 = vadd.f32 %v246, %v286
  %v303 = vadd.f32 %v247, %v287
  %v304 = vadd.f32 %v248, %v288
  %v305 = vadd.f32 %v249, %v289
  %v306 = vadd.f32 %v250, %v290
  %v307 = vadd.f32 %v251, %v291
  %v308 = vld [vmem:[%s5] sm:$0xff]
  %v309 = vld [vmem:[%s5 + $0x8] sm:$0xff]
  %v310 = vld [vmem:[%s5 + $0x10] sm:$0xff]
  %v311 = vld [vmem:[%s5 + $0x18] sm:$0xff]
  %v312 = vld [vmem:[%s5 + $0x20] sm:$0xff]
  %v313 = vld [vmem:[%s5 + $0x28] sm:$0xff]
  %v314 = vld [vmem:[%s5 + $0x30] sm:$0xff]
  %v315 = vld [vmem:[%s5 + $0x38] sm:$0xff]
  %v316 = vld [vmem:[%s5 + $0x40] sm:$0xff]
  %v317 = vld [vmem:[%s5 + $0x48] sm:$0xff]
  %v318 = vld [vmem:[%s5 + $0x50] sm:$0xff]
  %v319 = vld [vmem:[%s5 + $0x58] sm:$0xff]
  %v320 = vld [vmem:[%s5 + $0x60] sm:$0xff]
  %v321 = vld [vmem:[%s5 + $0x68] sm:$0xff]
  %v322 = vld [vmem:[%s5 + $0x70] sm:$0xff]
  %v323 = vld [vmem:[%s5 + $0x78] sm:$0xff]
  %s324 = scalar_lea.vmem %s9, 5
  %v325 = vld [vmem:[%s324] sm:$0x1]
  %v327 = vlaneseq
  %v328 = vshrl.u32 %v327, 7
  %v329 = vsub.s32 0, %v328
  %v330 = vrot.slane %v325, %v329
  %v332 = vmul.f32 %v308, %v330
  %v333 = vmul.f32 %v309, %v330
  %v334 = vmul.f32 %v310, %v330
  %v335 = vmul.f32 %v311, %v330
  %v336 = vmul.f32 %v312, %v330
  %v337 = vmul.f32 %v313, %v330
  %v338 = vmul.f32 %v314, %v330
  %v339 = vmul.f32 %v315, %v330
  %v340 = vmul.f32 %v316, %v330
  %v341 = vmul.f32 %v317, %v330
  %v342 = vmul.f32 %v318, %v330
  %v343 = vmul.f32 %v319, %v330
  %v344 = vmul.f32 %v320, %v330
  %v345 = vmul.f32 %v321, %v330
  %v346 = vmul.f32 %v322, %v330
  %v347 = vmul.f32 %v323, %v330
  %v348 = vadd.f32 %v292, %v332
  %v349 = vadd.f32 %v293, %v333
  %v350 = vadd.f32 %v294, %v334
  %v351 = vadd.f32 %v295, %v335
  %v352 = vadd.f32 %v296, %v336
  %v353 = vadd.f32 %v297, %v337
  %v354 = vadd.f32 %v298, %v338
  %v355 = vadd.f32 %v299, %v339
  %v356 = vadd.f32 %v300, %v340
  %v357 = vadd.f32 %v301, %v341
  %v358 = vadd.f32 %v302, %v342
  %v359 = vadd.f32 %v303, %v343
  %v360 = vadd.f32 %v304, %v344
  %v361 = vadd.f32 %v305, %v345
  %v362 = vadd.f32 %v306, %v346
  %v363 = vadd.f32 %v307, %v347
  %v364 = vld [vmem:[%s6] sm:$0xff]
  %v365 = vld [vmem:[%s6 + $0x8] sm:$0xff]
  %v366 = vld [vmem:[%s6 + $0x10] sm:$0xff]
  %v367 = vld [vmem:[%s6 + $0x18] sm:$0xff]
  %v368 = vld [vmem:[%s6 + $0x20] sm:$0xff]
  %v369 = vld [vmem:[%s6 + $0x28] sm:$0xff]
  %v370 = vld [vmem:[%s6 + $0x30] sm:$0xff]
  %v371 = vld [vmem:[%s6 + $0x38] sm:$0xff]
  %v372 = vld [vmem:[%s6 + $0x40] sm:$0xff]
  %v373 = vld [vmem:[%s6 + $0x48] sm:$0xff]
  %v374 = vld [vmem:[%s6 + $0x50] sm:$0xff]
  %v375 = vld [vmem:[%s6 + $0x58] sm:$0xff]
  %v376 = vld [vmem:[%s6 + $0x60] sm:$0xff]
  %v377 = vld [vmem:[%s6 + $0x68] sm:$0xff]
  %v378 = vld [vmem:[%s6 + $0x70] sm:$0xff]
  %v379 = vld [vmem:[%s6 + $0x78] sm:$0xff]
  %s380 = scalar_lea.vmem %s9, 6
  %v381 = vld [vmem:[%s380] sm:$0x1]
  %v383 = vlaneseq
  %v384 = vshrl.u32 %v383, 7
  %v385 = vsub.s32 0, %v384
  %v386 = vrot.slane %v381, %v385
  %v388 = vmul.f32 %v364, %v386
  %v389 = vmul.f32 %v365, %v386
  %v390 = vmul.f32 %v366, %v386
  %v391 = vmul.f32 %v367, %v386
  %v392 = vmul.f32 %v368, %v386
  %v393 = vmul.f32 %v369, %v386
  %v394 = vmul.f32 %v370, %v386
  %v395 = vmul.f32 %v371, %v386
  %v396 = vmul.f32 %v372, %v386
  %v397 = vmul.f32 %v373, %v386
  %v398 = vmul.f32 %v374, %v386
  %v399 = vmul.f32 %v375, %v386
  %v400 = vmul.f32 %v376, %v386
  %v401 = vmul.f32 %v377, %v386
  %v402 = vmul.f32 %v378, %v386
  %v403 = vmul.f32 %v379, %v386
  %v404 = vadd.f32 %v348, %v388
  %v405 = vadd.f32 %v349, %v389
  %v406 = vadd.f32 %v350, %v390
  %v407 = vadd.f32 %v351, %v391
  %v408 = vadd.f32 %v352, %v392
  %v409 = vadd.f32 %v353, %v393
  %v410 = vadd.f32 %v354, %v394
  %v411 = vadd.f32 %v355, %v395
  %v412 = vadd.f32 %v356, %v396
  %v413 = vadd.f32 %v357, %v397
  %v414 = vadd.f32 %v358, %v398
  %v415 = vadd.f32 %v359, %v399
  %v416 = vadd.f32 %v360, %v400
  %v417 = vadd.f32 %v361, %v401
  %v418 = vadd.f32 %v362, %v402
  %v419 = vadd.f32 %v363, %v403
  %v420 = vld [vmem:[%s7] sm:$0xff]
  %v421 = vld [vmem:[%s7 + $0x8] sm:$0xff]
  %v422 = vld [vmem:[%s7 + $0x10] sm:$0xff]
  %v423 = vld [vmem:[%s7 + $0x18] sm:$0xff]
  %v424 = vld [vmem:[%s7 + $0x20] sm:$0xff]
  %v425 = vld [vmem:[%s7 + $0x28] sm:$0xff]
  %v426 = vld [vmem:[%s7 + $0x30] sm:$0xff]
  %v427 = vld [vmem:[%s7 + $0x38] sm:$0xff]
  %v428 = vld [vmem:[%s7 + $0x40] sm:$0xff]
  %v429 = vld [vmem:[%s7 + $0x48] sm:$0xff]
  %v430 = vld [vmem:[%s7 + $0x50] sm:$0xff]
  %v431 = vld [vmem:[%s7 + $0x58] sm:$0xff]
  %v432 = vld [vmem:[%s7 + $0x60] sm:$0xff]
  %v433 = vld [vmem:[%s7 + $0x68] sm:$0xff]
  %v434 = vld [vmem:[%s7 + $0x70] sm:$0xff]
  %v435 = vld [vmem:[%s7 + $0x78] sm:$0xff]
  %s436 = scalar_lea.vmem %s9, 7
  %v437 = vld [vmem:[%s436] sm:$0x1]
  %v439 = vlaneseq
  %v440 = vshrl.u32 %v439, 7
  %v441 = vsub.s32 0, %v440
  %v442 = vrot.slane %v437, %v441
  %v444 = vmul.f32 %v420, %v442
  %v445 = vmul.f32 %v421, %v442
  %v446 = vmul.f32 %v422, %v442
  %v447 = vmul.f32 %v423, %v442
  %v448 = vmul.f32 %v424, %v442
  %v449 = vmul.f32 %v425, %v442
  %v450 = vmul.f32 %v426, %v442
  %v451 = vmul.f32 %v427, %v442
  %v452 = vmul.f32 %v428, %v442
  %v453 = vmul.f32 %v429, %v442
  %v454 = vmul.f32 %v430, %v442
  %v455 = vmul.f32 %v431, %v442
  %v456 = vmul.f32 %v432, %v442
  %v457 = vmul.f32 %v433, %v442
  %v458 = vmul.f32 %v434, %v442
  %v459 = vmul.f32 %v435, %v442
  %v460 = vadd.f32 %v404, %v444
  %v461 = vadd.f32 %v405, %v445
  %v462 = vadd.f32 %v406, %v446
  %v463 = vadd.f32 %v407, %v447
  %v464 = vadd.f32 %v408, %v448
  %v465 = vadd.f32 %v409, %v449
  %v466 = vadd.f32 %v410, %v450
  %v467 = vadd.f32 %v411, %v451
  %v468 = vadd.f32 %v412, %v452
  %v469 = vadd.f32 %v413, %v453
  %v470 = vadd.f32 %v414, %v454
  %v471 = vadd.f32 %v415, %v455
  %v472 = vadd.f32 %v416, %v456
  %v473 = vadd.f32 %v417, %v457
  %v474 = vadd.f32 %v418, %v458
  %v475 = vadd.f32 %v419, %v459
  %v476 = vld [vmem:[%s8] sm:$0xff]
  %v477 = vld [vmem:[%s8 + $0x8] sm:$0xff]
  %v478 = vld [vmem:[%s8 + $0x10] sm:$0xff]
  %v479 = vld [vmem:[%s8 + $0x18] sm:$0xff]
  %v480 = vld [vmem:[%s8 + $0x20] sm:$0xff]
  %v481 = vld [vmem:[%s8 + $0x28] sm:$0xff]
  %v482 = vld [vmem:[%s8 + $0x30] sm:$0xff]
  %v483 = vld [vmem:[%s8 + $0x38] sm:$0xff]
  %v484 = vld [vmem:[%s8 + $0x40] sm:$0xff]
  %v485 = vld [vmem:[%s8 + $0x48] sm:$0xff]
  %v486 = vld [vmem:[%s8 + $0x50] sm:$0xff]
  %v487 = vld [vmem:[%s8 + $0x58] sm:$0xff]
  %v488 = vld [vmem:[%s8 + $0x60] sm:$0xff]
  %v489 = vld [vmem:[%s8 + $0x68] sm:$0xff]
  %v490 = vld [vmem:[%s8 + $0x70] sm:$0xff]
  %v491 = vld [vmem:[%s8 + $0x78] sm:$0xff]
  %s492 = scalar_lea.vmem %s9, 8
  %v493 = vld [vmem:[%s492] sm:$0x1]
  %v495 = vlaneseq
  %v496 = vshrl.u32 %v495, 7
  %v497 = vsub.s32 0, %v496
  %v498 = vrot.slane %v493, %v497
  %v500 = vmul.f32 %v476, %v498
  %v501 = vmul.f32 %v477, %v498
  %v502 = vmul.f32 %v478, %v498
  %v503 = vmul.f32 %v479, %v498
  %v504 = vmul.f32 %v480, %v498
  %v505 = vmul.f32 %v481, %v498
  %v506 = vmul.f32 %v482, %v498
  %v507 = vmul.f32 %v483, %v498
  %v508 = vmul.f32 %v484, %v498
  %v509 = vmul.f32 %v485, %v498
  %v510 = vmul.f32 %v486, %v498
  %v511 = vmul.f32 %v487, %v498
  %v512 = vmul.f32 %v488, %v498
  %v513 = vmul.f32 %v489, %v498
  %v514 = vmul.f32 %v490, %v498
  %v515 = vmul.f32 %v491, %v498
  %v516 = vadd.f32 %v460, %v500
  %v517 = vadd.f32 %v461, %v501
  %v518 = vadd.f32 %v462, %v502
  %v519 = vadd.f32 %v463, %v503
  %v520 = vadd.f32 %v464, %v504
  %v521 = vadd.f32 %v465, %v505
  %v522 = vadd.f32 %v466, %v506
  %v523 = vadd.f32 %v467, %v507
  %v524 = vadd.f32 %v468, %v508
  %v525 = vadd.f32 %v469, %v509
  %v526 = vadd.f32 %v470, %v510
  %v527 = vadd.f32 %v471, %v511
  %v528 = vadd.f32 %v472, %v512
  %v529 = vadd.f32 %v473, %v513
  %v530 = vadd.f32 %v474, %v514
  %v531 = vadd.f32 %v475, %v515
  %v532 = vld [vmem:[%s10] sm:$0x1]
  %v534 = vlaneseq
  %v535 = vshrl.u32 %v534, 7
  %v536 = vsub.s32 0, %v535
  %v537 = vrot.slane %v532, %v536
  %v539 = vadd.f32 %v516, %v537
  %v540 = vadd.f32 %v517, %v537
  %v541 = vadd.f32 %v518, %v537
  %v542 = vadd.f32 %v519, %v537
  %v543 = vadd.f32 %v520, %v537
  %v544 = vadd.f32 %v521, %v537
  %v545 = vadd.f32 %v522, %v537
  %v546 = vadd.f32 %v523, %v537
  %v547 = vadd.f32 %v524, %v537
  %v548 = vadd.f32 %v525, %v537
  %v549 = vadd.f32 %v526, %v537
  %v550 = vadd.f32 %v527, %v537
  %v551 = vadd.f32 %v528, %v537
  %v552 = vadd.f32 %v529, %v537
  %v553 = vadd.f32 %v530, %v537
  %v554 = vadd.f32 %v531, %v537
  %v555 = vmax.f32 %v539, 0.0
  %v556 = vmax.f32 %v540, 0.0
  %v557 = vmax.f32 %v541, 0.0
  %v558 = vmax.f32 %v542, 0.0
  %v559 = vmax.f32 %v543, 0.0
  %v560 = vmax.f32 %v544, 0.0
  %v561 = vmax.f32 %v545, 0.0
  %v562 = vmax.f32 %v546, 0.0
  %v563 = vmax.f32 %v547, 0.0
  %v564 = vmax.f32 %v548, 0.0
  %v565 = vmax.f32 %v549, 0.0
  %v566 = vmax.f32 %v550, 0.0
  %v567 = vmax.f32 %v551, 0.0
  %v568 = vmax.f32 %v552, 0.0
  %v569 = vmax.f32 %v553, 0.0
  %v570 = vmax.f32 %v554, 0.0
  %v571 = vpack.c.bf16 %v556, %v555
  %v572 = vpack.c.bf16 %v558, %v557
  %v573 = vpack.c.bf16 %v560, %v559
  %v574 = vpack.c.bf16 %v562, %v561
  %v575 = vpack.c.bf16 %v564, %v563
  %v576 = vpack.c.bf16 %v566, %v565
  %v577 = vpack.c.bf16 %v568, %v567
  %v578 = vpack.c.bf16 %v570, %v569
  %v579 = vld [vmem:[%s11] sm:$0xf]
  %v580 = vld [vmem:[%s11 + $0x4] sm:$0xf]
  %v581 = vld [vmem:[%s11 + $0x8] sm:$0xf]
  %v582 = vld [vmem:[%s11 + $0xc] sm:$0xf]
  %v583 = vld [vmem:[%s12] sm:$0x1]
  %v585 = vlaneseq
  %v586 = vshrl.u32 %v585, 7
  %v587 = vsub.s32 0, %v586
  %v588 = vrot.slane %v583, %v587
  %v594 = vunpack.c.l.b16 %v579
  %v595 = vunpack.c.l.b16 %v580
  %v596 = vunpack.c.l.b16 %v581
  %v597 = vunpack.c.l.b16 %v582
  %v598 = vpack.c.b16 %v595, %v594
  %v599 = vpack.c.b16 %v597, %v596
  %vm602 = vcmask 261120
  %v604 = vsel %vm602, %v571, 0
  %v607 = vsel %vm602, %v572, 0
  %v610 = vsel %vm602, %v573, 0
  %v613 = vsel %vm602, %v574, 0
  %v616 = vsel %vm602, %v575, 0
  %v619 = vsel %vm602, %v576, 0
  %v622 = vsel %vm602, %v577, 0
  %v625 = vsel %vm602, %v578, 0
  %627 = vmatprep.subr.bf16.mxu0 0
  %628 = vmatpush1.bf16.msra.mxu0 %v598
  %629 = vmatprep.subr.bf16.mxu0 0
  %630 = vmatpush1.bf16.msra.mxu0 %v599
  %631 = vmatprep.subr.bf16.mxu0 0
  %632 = vmatpush1.bf16.msra.mxu0 0
  %633 = vmatprep.subr.bf16.mxu0 0
  %634 = vmatpush1.bf16.msra.mxu0 0
  %635 = vmatprep.subr.bf16.mxu0 0
  %636 = vmatpush1.bf16.msra.mxu0 0
  %637 = vmatprep.subr.bf16.mxu0 0
  %638 = vmatpush1.bf16.msra.mxu0 0
  %639 = vmatprep.subr.bf16.mxu0 0
  %640 = vmatpush1.bf16.msra.mxu0 0
  %641 = vmatprep.subr.bf16.mxu0 0
  %642 = vmatpush1.bf16.msra.mxu0 0
  %643 = vmatprep.subr.bf16.mxu0 0
  %644 = vmatpush1.bf16.msra.mxu0 0
  %645 = vmatprep.subr.bf16.mxu0 0
  %646 = vmatpush1.bf16.msra.mxu0 0
  %647 = vmatprep.subr.bf16.mxu0 0
  %648 = vmatpush1.bf16.msra.mxu0 0
  %649 = vmatprep.subr.bf16.mxu0 0
  %650 = vmatpush1.bf16.msra.mxu0 0
  %651 = vmatprep.subr.bf16.mxu0 0
  %652 = vmatpush1.bf16.msra.mxu0 0
  %653 = vmatprep.subr.bf16.mxu0 0
  %654 = vmatpush1.bf16.msra.mxu0 0
  %655 = vmatprep.subr.bf16.mxu0 0
  %656 = vmatpush1.bf16.msra.mxu0 0
  %657 = vmatprep.subr.bf16.mxu0 0
  %658 = vmatpush1.bf16.msra.mxu0 0
  %659 = vmatprep.mubr.bf16.mxu0 0
  %660 = vmatmul.mubr.bf16.gmra.mrb[0].mxu0 %v604
  %v661 = vpop.f32.mrb[0].mxu0
  %v662 = vadd.f32 %v588, %v661
  %v663 = vpop.f32.mrb[0].mxu0
  %v664 = vpop.f32.mrb[0].mxu0
  %v665 = vadd.f32 %v588, %v664
  %v666 = vpop.f32.mrb[0].mxu0
  %667 = vmatprep.mubr.bf16.mxu0 0
  %668 = vmatmul.mubr.bf16.gmra.mrb[0].mxu0 %v607
  %v669 = vpop.f32.mrb[0].mxu0
  %v670 = vadd.f32 %v588, %v669
  %v671 = vpop.f32.mrb[0].mxu0
  %v672 = vpop.f32.mrb[0].mxu0
  %v673 = vadd.f32 %v588, %v672
  %v674 = vpop.f32.mrb[0].mxu0
  %675 = vmatprep.mubr.bf16.mxu0 0
  %676 = vmatmul.mubr.bf16.gmra.mrb[0].mxu0 %v610
  %v677 = vpop.f32.mrb[0].mxu0
  %v678 = vadd.f32 %v588, %v677
  %v679 = vpop.f32.mrb[0].mxu0
  %v680 = vpop.f32.mrb[0].mxu0
  %v681 = vadd.f32 %v588, %v680
  %v682 = vpop.f32.mrb[0].mxu0
  %683 = vmatprep.mubr.bf16.mxu0 0
  %684 = vmatmul.mubr.bf16.gmra.mrb[0].mxu0 %v613
  %v685 = vpop.f32.mrb[0].mxu0
  %v686 = vadd.f32 %v588, %v685
  %v687 = vpop.f32.mrb[0].mxu0
  %v688 = vpop.f32.mrb[0].mxu0
  %v689 = vadd.f32 %v588, %v688
  %v690 = vpop.f32.mrb[0].mxu0
  %691 = vmatprep.mubr.bf16.mxu0 0
  %692 = vmatmul.mubr.bf16.gmra.mrb[0].mxu0 %v616
  %v693 = vpop.f32.mrb[0].mxu0
  %v694 = vadd.f32 %v588, %v693
  %v695 = vpop.f32.mrb[0].mxu0
  %v696 = vpop.f32.mrb[0].mxu0
  %v697 = vadd.f32 %v588, %v696
  %v698 = vpop.f32.mrb[0].mxu0
  %699 = vmatprep.mubr.bf16.mxu0 0
  %700 = vmatmul.mubr.bf16.gmra.mrb[0].mxu0 %v619
  %v701 = vpop.f32.mrb[0].mxu0
  %v702 = vadd.f32 %v588, %v701
  %v703 = vpop.f32.mrb[0].mxu0
  %v704 = vpop.f32.mrb[0].mxu0
  %v705 = vadd.f32 %v588, %v704
  %v706 = vpop.f32.mrb[0].mxu0
  %707 = vmatprep.mubr.bf16.mxu0 0
  %708 = vmatmul.mubr.bf16.gmra.mrb[0].mxu0 %v622
  %v709 = vpop.f32.mrb[0].mxu0
  %v710 = vadd.f32 %v588, %v709
  %v711 = vpop.f32.mrb[0].mxu0
  %v712 = vpop.f32.mrb[0].mxu0
  %v713 = vadd.f32 %v588, %v712
  %v714 = vpop.f32.mrb[0].mxu0
  %715 = vmatprep.mubr.bf16.mxu0 0
  %716 = vmatmul.mubr.bf16.gmra.mrb[0].mxu0 %v625
  %v717 = vpop.f32.mrb[0].mxu0
  %v718 = vadd.f32 %v588, %v717
  %v719 = vpop.f32.mrb[0].mxu0
  %v720 = vpop.f32.mrb[0].mxu0
  %v721 = vadd.f32 %v588, %v720
  %v722 = vpop.f32.mrb[0].mxu0
  %723 = vdwg.mxu0
  %v724 = vmax.f32 %v662, 0.0
  %v725 = vmax.f32 %v665, 0.0
  %v726 = vmax.f32 %v670, 0.0
  %v727 = vmax.f32 %v673, 0.0
  %v728 = vmax.f32 %v678, 0.0
  %v729 = vmax.f32 %v681, 0.0
  %v730 = vmax.f32 %v686, 0.0
  %v731 = vmax.f32 %v689, 0.0
  %v732 = vmax.f32 %v694, 0.0
  %v733 = vmax.f32 %v697, 0.0
  %v734 = vmax.f32 %v702, 0.0
  %v735 = vmax.f32 %v705, 0.0
  %v736 = vmax.f32 %v710, 0.0
  %v737 = vmax.f32 %v713, 0.0
  %v738 = vmax.f32 %v718, 0.0
  %v739 = vmax.f32 %v721, 0.0
  %740 = vst.msk [vmem:[%s13] sm:$0xff] %vm602, %v724
  %741 = vst.msk [vmem:[%s13 + $0x8] sm:$0xff] %vm602, %v725
  %742 = vst.msk [vmem:[%s13 + $0x10] sm:$0xff] %vm602, %v726
  %743 = vst.msk [vmem:[%s13 + $0x18] sm:$0xff] %vm602, %v727
  %744 = vst.msk [vmem:[%s13 + $0x20] sm:$0xff] %vm602, %v728
  %745 = vst.msk [vmem:[%s13 + $0x28] sm:$0xff] %vm602, %v729
  %746 = vst.msk [vmem:[%s13 + $0x30] sm:$0xff] %vm602, %v730
  %747 = vst.msk [vmem:[%s13 + $0x38] sm:$0xff] %vm602, %v731
  %748 = vst.msk [vmem:[%s13 + $0x40] sm:$0xff] %vm602, %v732
  %749 = vst.msk [vmem:[%s13 + $0x48] sm:$0xff] %vm602, %v733
  %750 = vst.msk [vmem:[%s13 + $0x50] sm:$0xff] %vm602, %v734
  %751 = vst.msk [vmem:[%s13 + $0x58] sm:$0xff] %vm602, %v735
  %752 = vst.msk [vmem:[%s13 + $0x60] sm:$0xff] %vm602, %v736
  %753 = vst.msk [vmem:[%s13 + $0x68] sm:$0xff] %vm602, %v737
  %754 = vst.msk [vmem:[%s13 + $0x70] sm:$0xff] %vm602, %v738
  %755 = vst.msk [vmem:[%s13 + $0x78] sm:$0xff] %vm602, %v739
  // Predicated region
  $region54: #{forward.18} parent=0 // pred_check
    _
  $region55: #{forward.18} parent=0 // pred_check_branch
    %757 = sbr.rel (0) target = $region57
  $region56: #{forward.18} parent=0 // pred_region
    _
  $region57: #{forward.18} parent=0 // pred_fallthru
    _
  // Predicated region
  $region58: #{forward.18} parent=0 // pred_check
    _
  $region59: #{forward.18} parent=0 // pred_check_branch
    %759 = sbr.rel (0) target = $region61
  $region60: #{forward.18} parent=0 // pred_region
    _
  $region61: #{forward.18} parent=0 // pred_fallthru
    _

// kernel: forward.19
$region0: #{forward.19}
  #allocation0 [shape = 'u32[]', space=smem, size = 0x4, offset = 0x4, fixed_abs, tag = 'smem constant byte address 0x4 - core index']
  #allocation1 [shape = 'u32[144,128]{1,0:T(1,128)}', space=vmem, size = 0x12000, scoped, tag = 'internal scratch']
  %s0 = inlined_call_operand.vmem [shape: f32[32,32], index: 0, kind: input, shape index: {}]
  %s1 = inlined_call_operand.vmem [shape: f32[32,32], index: 1, kind: input, shape index: {}]
  %s2 = inlined_call_operand.vmem [shape: f32[32,32], index: 2, kind: input, shape index: {}]
  %s3 = inlined_call_operand.vmem [shape: f32[32,32], index: 3, kind: input, shape index: {}]
  %s4 = inlined_call_operand.vmem [shape: f32[32,32], index: 4, kind: input, shape index: {}]
  %s5 = inlined_call_operand.vmem [shape: f32[32,32], index: 5, kind: input, shape index: {}]
  %s6 = inlined_call_operand.vmem [shape: f32[32,32], index: 6, kind: input, shape index: {}]
  %s7 = inlined_call_operand.vmem [shape: f32[32,32], index: 7, kind: input, shape index: {}]
  %s8 = inlined_call_operand.vmem [shape: f32[32,32], index: 8, kind: input, shape index: {}]
  %s9 = inlined_call_operand.vmem [shape: f32[9,1,32], index: 9, kind: input, shape index: {}]
  %s10 = inlined_call_operand.vmem [shape: f32[1,32], index: 10, kind: input, shape index: {}]
  %s11 = inlined_call_operand.vmem [shape: bf16[32,64], index: 11, kind: input, shape index: {}]
  %s12 = inlined_call_operand.vmem [shape: f32[1,64], index: 12, kind: input, shape index: {}]
  %s13 = inlined_call_operand.vmem [shape: f32[32,64], index: 13, kind: output, shape index: {}]
  %s14 = sld [smem:[#allocation0]]
  $region62: #{forward.19} parent=0
    _
  %s16 = ssub.s32 1, %s14
  %s17 = scalar_select 0, %s16, %s14
  // Predicated region
  $region2: #{forward.19} parent=0 // pred_check
    _
  $region3: #{forward.19} parent=0 // pred_check_branch
    %19 = sbr.rel (0) target = $region5
  $region4: #{forward.19} parent=0 // pred_region
    _
  $region5: #{forward.19} parent=0 // pred_fallthru
    _
  // Predicated region
  $region6: #{forward.19} parent=0 // pred_check
    _
  $region7: #{forward.19} parent=0 // pred_check_branch
    %21 = sbr.rel (0) target = $region9
  $region8: #{forward.19} parent=0 // pred_region
    _
  $region9: #{forward.19} parent=0 // pred_fallthru
    _
  // Predicated region
  $region10: #{forward.19} parent=0 // pred_check
    _
  $region11: #{forward.19} parent=0 // pred_check_branch
    %23 = sbr.rel (0) target = $region13
  $region12: #{forward.19} parent=0 // pred_region
    _
  $region13: #{forward.19} parent=0 // pred_fallthru
    _
  // Predicated region
  $region14: #{forward.19} parent=0 // pred_check
    _
  $region15: #{forward.19} parent=0 // pred_check_branch
    %25 = sbr.rel (0) target = $region17
  $region16: #{forward.19} parent=0 // pred_region
    _
  $region17: #{forward.19} parent=0 // pred_fallthru
    _
  // Predicated region
  $region18: #{forward.19} parent=0 // pred_check
    _
  $region19: #{forward.19} parent=0 // pred_check_branch
    %27 = sbr.rel (0) target = $region21
  $region20: #{forward.19} parent=0 // pred_region
    _
  $region21: #{forward.19} parent=0 // pred_fallthru
    _
  // Predicated region
  $region22: #{forward.19} parent=0 // pred_check
    _
  $region23: #{forward.19} parent=0 // pred_check_branch
    %29 = sbr.rel (0) target = $region25
  $region24: #{forward.19} parent=0 // pred_region
    _
  $region25: #{forward.19} parent=0 // pred_fallthru
    _
  // Predicated region
  $region26: #{forward.19} parent=0 // pred_check
    _
  $region27: #{forward.19} parent=0 // pred_check_branch
    %31 = sbr.rel (0) target = $region29
  $region28: #{forward.19} parent=0 // pred_region
    _
  $region29: #{forward.19} parent=0 // pred_fallthru
    _
  // Predicated region
  $region30: #{forward.19} parent=0 // pred_check
    _
  $region31: #{forward.19} parent=0 // pred_check_branch
    %33 = sbr.rel (0) target = $region33
  $region32: #{forward.19} parent=0 // pred_region
    _
  $region33: #{forward.19} parent=0 // pred_fallthru
    _
  // Predicated region
  $region34: #{forward.19} parent=0 // pred_check
    _
  $region35: #{forward.19} parent=0 // pred_check_branch
    %35 = sbr.rel (0) target = $region37
  $region36: #{forward.19} parent=0 // pred_region
    _
  $region37: #{forward.19} parent=0 // pred_fallthru
    _
  // Predicated region
  $region38: #{forward.19} parent=0 // pred_check
    _
  $region39: #{forward.19} parent=0 // pred_check_branch
    %37 = sbr.rel (0) target = $region41
  $region40: #{forward.19} parent=0 // pred_region
    _
  $region41: #{forward.19} parent=0 // pred_fallthru
    _
  // Predicated region
  $region42: #{forward.19} parent=0 // pred_check
    _
  $region43: #{forward.19} parent=0 // pred_check_branch
    %39 = sbr.rel (0) target = $region45
  $region44: #{forward.19} parent=0 // pred_region
    _
  $region45: #{forward.19} parent=0 // pred_fallthru
    _
  // Predicated region
  $region46: #{forward.19} parent=0 // pred_check
    _
  $region47: #{forward.19} parent=0 // pred_check_branch
    %41 = sbr.rel (0) target = $region49
  $region48: #{forward.19} parent=0 // pred_region
    _
  $region49: #{forward.19} parent=0 // pred_fallthru
    _
  // Predicated region
  $region50: #{forward.19} parent=0 // pred_check
    _
  $region51: #{forward.19} parent=0 // pred_check_branch
    %43 = sbr.rel (0) target = $region53
  $region52: #{forward.19} parent=0 // pred_region
    _
  $region53: #{forward.19} parent=0 // pred_fallthru
    _
  %v45 = vld [vmem:[%s0] sm:$0xff]
  %v46 = vld [vmem:[%s0 + $0x8] sm:$0xff]
  %v47 = vld [vmem:[%s0 + $0x10] sm:$0xff]
  %v48 = vld [vmem:[%s0 + $0x18] sm:$0xff]
  %v49 = vld [vmem:[%s9] sm:$0x1]
  %v51 = vlaneseq
  %v52 = vshrl.u32 %v51, 7
  %v53 = vsub.s32 0, %v52
  %v54 = vrot.slane %v49, %v53
  %v56 = vmul.f32 %v45, %v54
  %v57 = vmul.f32 %v46, %v54
  %v58 = vmul.f32 %v47, %v54
  %v59 = vmul.f32 %v48, %v54
  %v60 = vld [vmem:[%s1] sm:$0xff]
  %v61 = vld [vmem:[%s1 + $0x8] sm:$0xff]
  %v62 = vld [vmem:[%s1 + $0x10] sm:$0xff]
  %v63 = vld [vmem:[%s1 + $0x18] sm:$0xff]
  %s64 = scalar_lea.vmem %s9, 1
  %v65 = vld [vmem:[%s64] sm:$0x1]
  %v67 = vlaneseq
  %v68 = vshrl.u32 %v67, 7
  %v69 = vsub.s32 0, %v68
  %v70 = vrot.slane %v65, %v69
  %v72 = vmul.f32 %v60, %v70
  %v73 = vmul.f32 %v61, %v70
  %v74 = vmul.f32 %v62, %v70
  %v75 = vmul.f32 %v63, %v70
  %v76 = vadd.f32 %v56, %v72
  %v77 = vadd.f32 %v57, %v73
  %v78 = vadd.f32 %v58, %v74
  %v79 = vadd.f32 %v59, %v75
  %v80 = vld [vmem:[%s2] sm:$0xff]
  %v81 = vld [vmem:[%s2 + $0x8] sm:$0xff]
  %v82 = vld [vmem:[%s2 + $0x10] sm:$0xff]
  %v83 = vld [vmem:[%s2 + $0x18] sm:$0xff]
  %s84 = scalar_lea.vmem %s9, 2
  %v85 = vld [vmem:[%s84] sm:$0x1]
  %v87 = vlaneseq
  %v88 = vshrl.u32 %v87, 7
  %v89 = vsub.s32 0, %v88
  %v90 = vrot.slane %v85, %v89
  %v92 = vmul.f32 %v80, %v90
  %v93 = vmul.f32 %v81, %v90
  %v94 = vmul.f32 %v82, %v90
  %v95 = vmul.f32 %v83, %v90
  %v96 = vadd.f32 %v76, %v92
  %v97 = vadd.f32 %v77, %v93
  %v98 = vadd.f32 %v78, %v94
  %v99 = vadd.f32 %v79, %v95
  %v100 = vld [vmem:[%s3] sm:$0xff]
  %v101 = vld [vmem:[%s3 + $0x8] sm:$0xff]
  %v102 = vld [vmem:[%s3 + $0x10] sm:$0xff]
  %v103 = vld [vmem:[%s3 + $0x18] sm:$0xff]
  %s104 = scalar_lea.vmem %s9, 3
  %v105 = vld [vmem:[%s104] sm:$0x1]
  %v107 = vlaneseq
  %v108 = vshrl.u32 %v107, 7
  %v109 = vsub.s32 0, %v108
  %v110 = vrot.slane %v105, %v109
  %v112 = vmul.f32 %v100, %v110
  %v113 = vmul.f32 %v101, %v110
  %v114 = vmul.f32 %v102, %v110
  %v115 = vmul.f32 %v103, %v110
  %v116 = vadd.f32 %v96, %v112
  %v117 = vadd.f32 %v97, %v113
  %v118 = vadd.f32 %v98, %v114
  %v119 = vadd.f32 %v99, %v115
  %v120 = vld [vmem:[%s4] sm:$0xff]
  %v121 = vld [vmem:[%s4 + $0x8] sm:$0xff]
  %v122 = vld [vmem:[%s4 + $0x10] sm:$0xff]
  %v123 = vld [vmem:[%s4 + $0x18] sm:$0xff]
  %s124 = scalar_lea.vmem %s9, 4
  %v125 = vld [vmem:[%s124] sm:$0x1]
  %v127 = vlaneseq
  %v128 = vshrl.u32 %v127, 7
  %v129 = vsub.s32 0, %v128
  %v130 = vrot.slane %v125, %v129
  %v132 = vmul.f32 %v120, %v130
  %v133 = vmul.f32 %v121, %v130
  %v134 = vmul.f32 %v122, %v130
  %v135 = vmul.f32 %v123, %v130
  %v136 = vadd.f32 %v116, %v132
  %v137 = vadd.f32 %v117, %v133
  %v138 = vadd.f32 %v118, %v134
  %v139 = vadd.f32 %v119, %v135
  %v140 = vld [vmem:[%s5] sm:$0xff]
  %v141 = vld [vmem:[%s5 + $0x8] sm:$0xff]
  %v142 = vld [vmem:[%s5 + $0x10] sm:$0xff]
  %v143 = vld [vmem:[%s5 + $0x18] sm:$0xff]
  %s144 = scalar_lea.vmem %s9, 5
  %v145 = vld [vmem:[%s144] sm:$0x1]
  %v147 = vlaneseq
  %v148 = vshrl.u32 %v147, 7
  %v149 = vsub.s32 0, %v148
  %v150 = vrot.slane %v145, %v149
  %v152 = vmul.f32 %v140, %v150
  %v153 = vmul.f32 %v141, %v150
  %v154 = vmul.f32 %v142, %v150
  %v155 = vmul.f32 %v143, %v150
  %v156 = vadd.f32 %v136, %v152
  %v157 = vadd.f32 %v137, %v153
  %v158 = vadd.f32 %v138, %v154
  %v159 = vadd.f32 %v139, %v155
  %v160 = vld [vmem:[%s6] sm:$0xff]
  %v161 = vld [vmem:[%s6 + $0x8] sm:$0xff]
  %v162 = vld [vmem:[%s6 + $0x10] sm:$0xff]
  %v163 = vld [vmem:[%s6 + $0x18] sm:$0xff]
  %s164 = scalar_lea.vmem %s9, 6
  %v165 = vld [vmem:[%s164] sm:$0x1]
  %v167 = vlaneseq
  %v168 = vshrl.u32 %v167, 7
  %v169 = vsub.s32 0, %v168
  %v170 = vrot.slane %v165, %v169
  %v172 = vmul.f32 %v160, %v170
  %v173 = vmul.f32 %v161, %v170
  %v174 = vmul.f32 %v162, %v170
  %v175 = vmul.f32 %v163, %v170
  %v176 = vadd.f32 %v156, %v172
  %v177 = vadd.f32 %v157, %v173
  %v178 = vadd.f32 %v158, %v174
  %v179 = vadd.f32 %v159, %v175
  %v180 = vld [vmem:[%s7] sm:$0xff]
  %v181 = vld [vmem:[%s7 + $0x8] sm:$0xff]
  %v182 = vld [vmem:[%s7 + $0x10] sm:$0xff]
  %v183 = vld [vmem:[%s7 + $0x18] sm:$0xff]
  %s184 = scalar_lea.vmem %s9, 7
  %v185 = vld [vmem:[%s184] sm:$0x1]
  %v187 = vlaneseq
  %v188 = vshrl.u32 %v187, 7
  %v189 = vsub.s32 0, %v188
  %v190 = vrot.slane %v185, %v189
  %v192 = vmul.f32 %v180, %v190
  %v193 = vmul.f32 %v181, %v190
  %v194 = vmul.f32 %v182, %v190
  %v195 = vmul.f32 %v183, %v190
  %v196 = vadd.f32 %v176, %v192
  %v197 = vadd.f32 %v177, %v193
  %v198 = vadd.f32 %v178, %v194
  %v199 = vadd.f32 %v179, %v195
  %v200 = vld [vmem:[%s8] sm:$0xff]
  %v201 = vld [vmem:[%s8 + $0x8] sm:$0xff]
  %v202 = vld [vmem:[%s8 + $0x10] sm:$0xff]
  %v203 = vld [vmem:[%s8 + $0x18] sm:$0xff]
  %s204 = scalar_lea.vmem %s9, 8
  %v205 = vld [vmem:[%s204] sm:$0x1]
  %v207 = vlaneseq
  %v208 = vshrl.u32 %v207, 7
  %v209 = vsub.s32 0, %v208
  %v210 = vrot.slane %v205, %v209
  %v212 = vmul.f32 %v200, %v210
  %v213 = vmul.f32 %v201, %v210
  %v214 = vmul.f32 %v202, %v210
  %v215 = vmul.f32 %v203, %v210
  %v216 = vadd.f32 %v196, %v212
  %v217 = vadd.f32 %v197, %v213
  %v218 = vadd.f32 %v198, %v214
  %v219 = vadd.f32 %v199, %v215
  %v220 = vld [vmem:[%s10] sm:$0x1]
  %v222 = vlaneseq
  %v223 = vshrl.u32 %v222, 7
  %v224 = vsub.s32 0, %v223
  %v225 = vrot.slane %v220, %v224
  %v227 = vadd.f32 %v216, %v225
  %v228 = vadd.f32 %v217, %v225
  %v229 = vadd.f32 %v218, %v225
  %v230 = vadd.f32 %v219, %v225
  %v231 = vmax.f32 %v227, 0.0
  %v232 = vmax.f32 %v228, 0.0
  %v233 = vmax.f32 %v229, 0.0
  %v234 = vmax.f32 %v230, 0.0
  %v235 = vpack.c.bf16 %v232, %v231
  %v236 = vpack.c.bf16 %v234, %v233
  %v237 = vld [vmem:[%s11] sm:$0xf]
  %v238 = vld [vmem:[%s11 + $0x4] sm:$0xf]
  %v239 = vld [vmem:[%s11 + $0x8] sm:$0xf]
  %v240 = vld [vmem:[%s11 + $0xc] sm:$0xf]
  %v241 = vld [vmem:[%s12] sm:$0x1]
  %v243 = vlaneseq
  %v244 = vshrl.u32 %v243, 7
  %v245 = vsub.s32 0, %v244
  %v246 = vrot.slane %v241, %v245
  %v252 = vunpack.c.l.b16 %v237
  %v253 = vunpack.c.l.b16 %v238
  %v254 = vunpack.c.l.b16 %v239
  %v255 = vunpack.c.l.b16 %v240
  %v256 = vpack.c.b16 %v253, %v252
  %v257 = vpack.c.b16 %v255, %v254
  %vm260 = vcmask 261120
  %v262 = vsel %vm260, %v235, 0
  %v265 = vsel %vm260, %v236, 0
  %267 = vmatprep.subr.bf16.mxu0 0
  %268 = vmatpush1.bf16.msra.mxu0 %v256
  %269 = vmatprep.subr.bf16.mxu0 0
  %270 = vmatpush1.bf16.msra.mxu0 %v257
  %271 = vmatprep.subr.bf16.mxu0 0
  %272 = vmatpush1.bf16.msra.mxu0 0
  %273 = vmatprep.subr.bf16.mxu0 0
  %274 = vmatpush1.bf16.msra.mxu0 0
  %275 = vmatprep.subr.bf16.mxu0 0
  %276 = vmatpush1.bf16.msra.mxu0 0
  %277 = vmatprep.subr.bf16.mxu0 0
  %278 = vmatpush1.bf16.msra.mxu0 0
  %279 = vmatprep.subr.bf16.mxu0 0
  %280 = vmatpush1.bf16.msra.mxu0 0
  %281 = vmatprep.subr.bf16.mxu0 0
  %282 = vmatpush1.bf16.msra.mxu0 0
  %283 = vmatprep.subr.bf16.mxu0 0
  %284 = vmatpush1.bf16.msra.mxu0 0
  %285 = vmatprep.subr.bf16.mxu0 0
  %286 = vmatpush1.bf16.msra.mxu0 0
  %287 = vmatprep.subr.bf16.mxu0 0
  %288 = vmatpush1.bf16.msra.mxu0 0
  %289 = vmatprep.subr.bf16.mxu0 0
  %290 = vmatpush1.bf16.msra.mxu0 0
  %291 = vmatprep.subr.bf16.mxu0 0
  %292 = vmatpush1.bf16.msra.mxu0 0
  %293 = vmatprep.subr.bf16.mxu0 0
  %294 = vmatpush1.bf16.msra.mxu0 0
  %295 = vmatprep.subr.bf16.mxu0 0
  %296 = vmatpush1.bf16.msra.mxu0 0
  %297 = vmatprep.subr.bf16.mxu0 0
  %298 = vmatpush1.bf16.msra.mxu0 0
  %299 = vmatprep.mubr.bf16.mxu0 0
  %300 = vmatmul.mubr.bf16.gmra.mrb[0].mxu0 %v262
  %v301 = vpop.f32.mrb[0].mxu0
  %v302 = vadd.f32 %v246, %v301
  %v303 = vpop.f32.mrb[0].mxu0
  %v304 = vpop.f32.mrb[0].mxu0
  %v305 = vadd.f32 %v246, %v304
  %v306 = vpop.f32.mrb[0].mxu0
  %307 = vmatprep.mubr.bf16.mxu0 0
  %308 = vmatmul.mubr.bf16.gmra.mrb[0].mxu0 %v265
  %v309 = vpop.f32.mrb[0].mxu0
  %v310 = vadd.f32 %v246, %v309
  %v311 = vpop.f32.mrb[0].mxu0
  %v312 = vpop.f32.mrb[0].mxu0
  %v313 = vadd.f32 %v246, %v312
  %v314 = vpop.f32.mrb[0].mxu0
  %315 = vdwg.mxu0
  %v316 = vmax.f32 %v302, 0.0
  %v317 = vmax.f32 %v305, 0.0
  %v318 = vmax.f32 %v310, 0.0
  %v319 = vmax.f32 %v313, 0.0
  %vm320 = vcmask 523264
  %321 = vst.msk [vmem:[%s13] sm:$0xff] %vm320, %v316
  %322 = vst.msk [vmem:[%s13 + $0x8] sm:$0xff] %vm320, %v317
  %323 = vst.msk [vmem:[%s13 + $0x10] sm:$0xff] %vm320, %v318
  %324 = vst.msk [vmem:[%s13 + $0x18] sm:$0xff] %vm320, %v319
  // Predicated region
  $region54: #{forward.19} parent=0 // pred_check
    _
  $region55: #{forward.19} parent=0 // pred_check_branch
    %326 = sbr.rel (0) target = $region57
  $region56: #{forward.19} parent=0 // pred_region
    _
  $region57: #{forward.19} parent=0 // pred_fallthru
    _
  // Predicated region
  $region58: #{forward.19} parent=0 // pred_check
    _
  $region59: #{forward.19} parent=0 // pred_check_branch
    %328 = sbr.rel (0) target = $region61
  $region60: #{forward.19} parent=0 // pred_region
    _
  $region61: #{forward.19} parent=0 // pred_fallthru
    _

// kernel: forward.20
$region0: #{forward.20}
  #allocation0 [shape = 'u32[]', space=smem, size = 0x4, offset = 0x4, fixed_abs, tag = 'smem constant byte address 0x4 - core index']
  #allocation1 [shape = 'u32[144,128]{1,0:T(1,128)}', space=vmem, size = 0x12000, scoped, tag = 'internal scratch']
  %s0 = inlined_call_operand.vmem [shape: f32[32,64], index: 0, kind: input, shape index: {}]
  %s1 = inlined_call_operand.vmem [shape: f32[32,64], index: 1, kind: input, shape index: {}]
  %s2 = inlined_call_operand.vmem [shape: f32[32,64], index: 2, kind: input, shape index: {}]
  %s3 = inlined_call_operand.vmem [shape: f32[32,64], index: 3, kind: input, shape index: {}]
  %s4 = inlined_call_operand.vmem [shape: f32[32,64], index: 4, kind: input, shape index: {}]
  %s5 = inlined_call_operand.vmem [shape: f32[32,64], index: 5, kind: input, shape index: {}]
  %s6 = inlined_call_operand.vmem [shape: f32[32,64], index: 6, kind: input, shape index: {}]
  %s7 = inlined_call_operand.vmem [shape: f32[32,64], index: 7, kind: input, shape index: {}]
  %s8 = inlined_call_operand.vmem [shape: f32[32,64], index: 8, kind: input, shape index: {}]
  %s9 = inlined_call_operand.vmem [shape: f32[9,1,64], index: 9, kind: input, shape index: {}]
  %s10 = inlined_call_operand.vmem [shape: f32[1,64], index: 10, kind: input, shape index: {}]
  %s11 = inlined_call_operand.vmem [shape: bf16[64,64], index: 11, kind: input, shape index: {}]
  %s12 = inlined_call_operand.vmem [shape: f32[1,64], index: 12, kind: input, shape index: {}]
  %s13 = inlined_call_operand.vmem [shape: f32[32,64], index: 13, kind: output, shape index: {}]
  %s14 = sld [smem:[#allocation0]]
  $region62: #{forward.20} parent=0
    _
  %s16 = ssub.s32 1, %s14
  %s17 = scalar_select 0, %s16, %s14
  // Predicated region
  $region2: #{forward.20} parent=0 // pred_check
    _
  $region3: #{forward.20} parent=0 // pred_check_branch
    %19 = sbr.rel (0) target = $region5
  $region4: #{forward.20} parent=0 // pred_region
    _
  $region5: #{forward.20} parent=0 // pred_fallthru
    _
  // Predicated region
  $region6: #{forward.20} parent=0 // pred_check
    _
  $region7: #{forward.20} parent=0 // pred_check_branch
    %21 = sbr.rel (0) target = $region9
  $region8: #{forward.20} parent=0 // pred_region
    _
  $region9: #{forward.20} parent=0 // pred_fallthru
    _
  // Predicated region
  $region10: #{forward.20} parent=0 // pred_check
    _
  $region11: #{forward.20} parent=0 // pred_check_branch
    %23 = sbr.rel (0) target = $region13
  $region12: #{forward.20} parent=0 // pred_region
    _
  $region13: #{forward.20} parent=0 // pred_fallthru
    _
  // Predicated region
  $region14: #{forward.20} parent=0 // pred_check
    _
  $region15: #{forward.20} parent=0 // pred_check_branch
    %25 = sbr.rel (0) target = $region17
  $region16: #{forward.20} parent=0 // pred_region
    _
  $region17: #{forward.20} parent=0 // pred_fallthru
    _
  // Predicated region
  $region18: #{forward.20} parent=0 // pred_check
    _
  $region19: #{forward.20} parent=0 // pred_check_branch
    %27 = sbr.rel (0) target = $region21
  $region20: #{forward.20} parent=0 // pred_region
    _
  $region21: #{forward.20} parent=0 // pred_fallthru
    _
  // Predicated region
  $region22: #{forward.20} parent=0 // pred_check
    _
  $region23: #{forward.20} parent=0 // pred_check_branch
    %29 = sbr.rel (0) target = $region25
  $region24: #{forward.20} parent=0 // pred_region
    _
  $region25: #{forward.20} parent=0 // pred_fallthru
    _
  // Predicated region
  $region26: #{forward.20} parent=0 // pred_check
    _
  $region27: #{forward.20} parent=0 // pred_check_branch
    %31 = sbr.rel (0) target = $region29
  $region28: #{forward.20} parent=0 // pred_region
    _
  $region29: #{forward.20} parent=0 // pred_fallthru
    _
  // Predicated region
  $region30: #{forward.20} parent=0 // pred_check
    _
  $region31: #{forward.20} parent=0 // pred_check_branch
    %33 = sbr.rel (0) target = $region33
  $region32: #{forward.20} parent=0 // pred_region
    _
  $region33: #{forward.20} parent=0 // pred_fallthru
    _
  // Predicated region
  $region34: #{forward.20} parent=0 // pred_check
    _
  $region35: #{forward.20} parent=0 // pred_check_branch
    %35 = sbr.rel (0) target = $region37
  $region36: #{forward.20} parent=0 // pred_region
    _
  $region37: #{forward.20} parent=0 // pred_fallthru
    _
  // Predicated region
  $region38: #{forward.20} parent=0 // pred_check
    _
  $region39: #{forward.20} parent=0 // pred_check_branch
    %37 = sbr.rel (0) target = $region41
  $region40: #{forward.20} parent=0 // pred_region
    _
  $region41: #{forward.20} parent=0 // pred_fallthru
    _
  // Predicated region
  $region42: #{forward.20} parent=0 // pred_check
    _
  $region43: #{forward.20} parent=0 // pred_check_branch
    %39 = sbr.rel (0) target = $region45
  $region44: #{forward.20} parent=0 // pred_region
    _
  $region45: #{forward.20} parent=0 // pred_fallthru
    _
  // Predicated region
  $region46: #{forward.20} parent=0 // pred_check
    _
  $region47: #{forward.20} parent=0 // pred_check_branch
    %41 = sbr.rel (0) target = $region49
  $region48: #{forward.20} parent=0 // pred_region
    _
  $region49: #{forward.20} parent=0 // pred_fallthru
    _
  // Predicated region
  $region50: #{forward.20} parent=0 // pred_check
    _
  $region51: #{forward.20} parent=0 // pred_check_branch
    %43 = sbr.rel (0) target = $region53
  $region52: #{forward.20} parent=0 // pred_region
    _
  $region53: #{forward.20} parent=0 // pred_fallthru
    _
  %v45 = vld [vmem:[%s0] sm:$0xff]
  %v46 = vld [vmem:[%s0 + $0x8] sm:$0xff]
  %v47 = vld [vmem:[%s0 + $0x10] sm:$0xff]
  %v48 = vld [vmem:[%s0 + $0x18] sm:$0xff]
  %v49 = vld [vmem:[%s9] sm:$0x1]
  %v51 = vlaneseq
  %v52 = vshrl.u32 %v51, 7
  %v53 = vsub.s32 0, %v52
  %v54 = vrot.slane %v49, %v53
  %v56 = vmul.f32 %v45, %v54
  %v57 = vmul.f32 %v46, %v54
  %v58 = vmul.f32 %v47, %v54
  %v59 = vmul.f32 %v48, %v54
  %v60 = vld [vmem:[%s1] sm:$0xff]
  %v61 = vld [vmem:[%s1 + $0x8] sm:$0xff]
  %v62 = vld [vmem:[%s1 + $0x10] sm:$0xff]
  %v63 = vld [vmem:[%s1 + $0x18] sm:$0xff]
  %s64 = scalar_lea.vmem %s9, 1
  %v65 = vld [vmem:[%s64] sm:$0x1]
  %v67 = vlaneseq
  %v68 = vshrl.u32 %v67, 7
  %v69 = vsub.s32 0, %v68
  %v70 = vrot.slane %v65, %v69
  %v72 = vmul.f32 %v60, %v70
  %v73 = vmul.f32 %v61, %v70
  %v74 = vmul.f32 %v62, %v70
  %v75 = vmul.f32 %v63, %v70
  %v76 = vadd.f32 %v56, %v72
  %v77 = vadd.f32 %v57, %v73
  %v78 = vadd.f32 %v58, %v74
  %v79 = vadd.f32 %v59, %v75
  %v80 = vld [vmem:[%s2] sm:$0xff]
  %v81 = vld [vmem:[%s2 + $0x8] sm:$0xff]
  %v82 = vld [vmem:[%s2 + $0x10] sm:$0xff]
  %v83 = vld [vmem:[%s2 + $0x18] sm:$0xff]
  %s84 = scalar_lea.vmem %s9, 2
  %v85 = vld [vmem:[%s84] sm:$0x1]
  %v87 = vlaneseq
  %v88 = vshrl.u32 %v87, 7
  %v89 = vsub.s32 0, %v88
  %v90 = vrot.slane %v85, %v89
  %v92 = vmul.f32 %v80, %v90
  %v93 = vmul.f32 %v81, %v90
  %v94 = vmul.f32 %v82, %v90
  %v95 = vmul.f32 %v83, %v90
  %v96 = vadd.f32 %v76, %v92
  %v97 = vadd.f32 %v77, %v93
  %v98 = vadd.f32 %v78, %v94
  %v99 = vadd.f32 %v79, %v95
  %v100 = vld [vmem:[%s3] sm:$0xff]
  %v101 = vld [vmem:[%s3 + $0x8] sm:$0xff]
  %v102 = vld [vmem:[%s3 + $0x10] sm:$0xff]
  %v103 = vld [vmem:[%s3 + $0x18] sm:$0xff]
  %s104 = scalar_lea.vmem %s9, 3
  %v105 = vld [vmem:[%s104] sm:$0x1]
  %v107 = vlaneseq
  %v108 = vshrl.u32 %v107, 7
  %v109 = vsub.s32 0, %v108
  %v110 = vrot.slane %v105, %v109
  %v112 = vmul.f32 %v100, %v110
  %v113 = vmul.f32 %v101, %v110
  %v114 = vmul.f32 %v102, %v110
  %v115 = vmul.f32 %v103, %v110
  %v116 = vadd.f32 %v96, %v112
  %v117 = vadd.f32 %v97, %v113
  %v118 = vadd.f32 %v98, %v114
  %v119 = vadd.f32 %v99, %v115
  %v120 = vld [vmem:[%s4] sm:$0xff]
  %v121 = vld [vmem:[%s4 + $0x8] sm:$0xff]
  %v122 = vld [vmem:[%s4 + $0x10] sm:$0xff]
  %v123 = vld [vmem:[%s4 + $0x18] sm:$0xff]
  %s124 = scalar_lea.vmem %s9, 4
  %v125 = vld [vmem:[%s124] sm:$0x1]
  %v127 = vlaneseq
  %v128 = vshrl.u32 %v127, 7
  %v129 = vsub.s32 0, %v128
  %v130 = vrot.slane %v125, %v129
  %v132 = vmul.f32 %v120, %v130
  %v133 = vmul.f32 %v121, %v130
  %v134 = vmul.f32 %v122, %v130
  %v135 = vmul.f32 %v123, %v130
  %v136 = vadd.f32 %v116, %v132
  %v137 = vadd.f32 %v117, %v133
  %v138 = vadd.f32 %v118, %v134
  %v139 = vadd.f32 %v119, %v135
  %v140 = vld [vmem:[%s5] sm:$0xff]
  %v141 = vld [vmem:[%s5 + $0x8] sm:$0xff]
  %v142 = vld [vmem:[%s5 + $0x10] sm:$0xff]
  %v143 = vld [vmem:[%s5 + $0x18] sm:$0xff]
  %s144 = scalar_lea.vmem %s9, 5
  %v145 = vld [vmem:[%s144] sm:$0x1]
  %v147 = vlaneseq
  %v148 = vshrl.u32 %v147, 7
  %v149 = vsub.s32 0, %v148
  %v150 = vrot.slane %v145, %v149
  %v152 = vmul.f32 %v140, %v150
  %v153 = vmul.f32 %v141, %v150
  %v154 = vmul.f32 %v142, %v150
  %v155 = vmul.f32 %v143, %v150
  %v156 = vadd.f32 %v136, %v152
  %v157 = vadd.f32 %v137, %v153
  %v158 = vadd.f32 %v138, %v154
  %v159 = vadd.f32 %v139, %v155
  %v160 = vld [vmem:[%s6] sm:$0xff]
  %v161 = vld [vmem:[%s6 + $0x8] sm:$0xff]
  %v162 = vld [vmem:[%s6 + $0x10] sm:$0xff]
  %v163 = vld [vmem:[%s6 + $0x18] sm:$0xff]
  %s164 = scalar_lea.vmem %s9, 6
  %v165 = vld [vmem:[%s164] sm:$0x1]
  %v167 = vlaneseq
  %v168 = vshrl.u32 %v167, 7
  %v169 = vsub.s32 0, %v168
  %v170 = vrot.slane %v165, %v169
  %v172 = vmul.f32 %v160, %v170
  %v173 = vmul.f32 %v161, %v170
  %v174 = vmul.f32 %v162, %v170
  %v175 = vmul.f32 %v163, %v170
  %v176 = vadd.f32 %v156, %v172
  %v177 = vadd.f32 %v157, %v173
  %v178 = vadd.f32 %v158, %v174
  %v179 = vadd.f32 %v159, %v175
  %v180 = vld [vmem:[%s7] sm:$0xff]
  %v181 = vld [vmem:[%s7 + $0x8] sm:$0xff]
  %v182 = vld [vmem:[%s7 + $0x10] sm:$0xff]
  %v183 = vld [vmem:[%s7 + $0x18] sm:$0xff]
  %s184 = scalar_lea.vmem %s9, 7
  %v185 = vld [vmem:[%s184] sm:$0x1]
  %v187 = vlaneseq
  %v188 = vshrl.u32 %v187, 7
  %v189 = vsub.s32 0, %v188
  %v190 = vrot.slane %v185, %v189
  %v192 = vmul.f32 %v180, %v190
  %v193 = vmul.f32 %v181, %v190
  %v194 = vmul.f32 %v182, %v190
  %v195 = vmul.f32 %v183, %v190
  %v196 = vadd.f32 %v176, %v192
  %v197 = vadd.f32 %v177, %v193
  %v198 = vadd.f32 %v178, %v194
  %v199 = vadd.f32 %v179, %v195
  %v200 = vld [vmem:[%s8] sm:$0xff]
  %v201 = vld [vmem:[%s8 + $0x8] sm:$0xff]
  %v202 = vld [vmem:[%s8 + $0x10] sm:$0xff]
  %v203 = vld [vmem:[%s8 + $0x18] sm:$0xff]
  %s204 = scalar_lea.vmem %s9, 8
  %v205 = vld [vmem:[%s204] sm:$0x1]
  %v207 = vlaneseq
  %v208 = vshrl.u32 %v207, 7
  %v209 = vsub.s32 0, %v208
  %v210 = vrot.slane %v205, %v209
  %v212 = vmul.f32 %v200, %v210
  %v213 = vmul.f32 %v201, %v210
  %v214 = vmul.f32 %v202, %v210
  %v215 = vmul.f32 %v203, %v210
  %v216 = vadd.f32 %v196, %v212
  %v217 = vadd.f32 %v197, %v213
  %v218 = vadd.f32 %v198, %v214
  %v219 = vadd.f32 %v199, %v215
  %v220 = vld [vmem:[%s10] sm:$0x1]
  %v222 = vlaneseq
  %v223 = vshrl.u32 %v222, 7
  %v224 = vsub.s32 0, %v223
  %v225 = vrot.slane %v220, %v224
  %v227 = vadd.f32 %v216, %v225
  %v228 = vadd.f32 %v217, %v225
  %v229 = vadd.f32 %v218, %v225
  %v230 = vadd.f32 %v219, %v225
  %v231 = vmax.f32 %v227, 0.0
  %v232 = vmax.f32 %v228, 0.0
  %v233 = vmax.f32 %v229, 0.0
  %v234 = vmax.f32 %v230, 0.0
  %v235 = vpack.c.bf16 %v232, %v231
  %v236 = vpack.c.bf16 %v234, %v233
  %v237 = vld [vmem:[%s11] sm:$0xf]
  %v238 = vld [vmem:[%s11 + $0x4] sm:$0xf]
  %v239 = vld [vmem:[%s11 + $0x8] sm:$0xf]
  %v240 = vld [vmem:[%s11 + $0xc] sm:$0xf]
  %v241 = vld [vmem:[%s11 + $0x10] sm:$0xf]
  %v242 = vld [vmem:[%s11 + $0x14] sm:$0xf]
  %v243 = vld [vmem:[%s11 + $0x18] sm:$0xf]
  %v244 = vld [vmem:[%s11 + $0x1c] sm:$0xf]
  %v245 = vld [vmem:[%s12] sm:$0x1]
  %v247 = vlaneseq
  %v248 = vshrl.u32 %v247, 7
  %v249 = vsub.s32 0, %v248
  %v250 = vrot.slane %v245, %v249
  %v260 = vunpack.c.l.b16 %v237
  %v261 = vunpack.c.l.b16 %v238
  %v262 = vunpack.c.l.b16 %v239
  %v263 = vunpack.c.l.b16 %v240
  %v264 = vunpack.c.l.b16 %v241
  %v265 = vunpack.c.l.b16 %v242
  %v266 = vunpack.c.l.b16 %v243
  %v267 = vunpack.c.l.b16 %v244
  %v268 = vpack.c.b16 %v261, %v260
  %v269 = vpack.c.b16 %v263, %v262
  %v270 = vpack.c.b16 %v265, %v264
  %v271 = vpack.c.b16 %v267, %v266
  %vm276 = vcmask 523264
  %v278 = vsel %vm276, %v235, 0
  %v281 = vsel %vm276, %v236, 0
  %283 = vmatprep.subr.bf16.mxu0 0
  %284 = vmatpush1.bf16.msra.mxu0 %v268
  %285 = vmatprep.subr.bf16.mxu0 0
  %286 = vmatpush1.bf16.msra.mxu0 %v269
  %287 = vmatprep.subr.bf16.mxu0 0
  %288 = vmatpush1.bf16.msra.mxu0 %v270
  %289 = vmatprep.subr.bf16.mxu0 0
  %290 = vmatpush1.bf16.msra.mxu0 %v271
  %291 = vmatprep.subr.bf16.mxu0 0
  %292 = vmatpush1.bf16.msra.mxu0 0
  %293 = vmatprep.subr.bf16.mxu0 0
  %294 = vmatpush1.bf16.msra.mxu0 0
  %295 = vmatprep.subr.bf16.mxu0 0
  %296 = vmatpush1.bf16.msra.mxu0 0
  %297 = vmatprep.subr.bf16.mxu0 0
  %298 = vmatpush1.bf16.msra.mxu0 0
  %299 = vmatprep.subr.bf16.mxu0 0
  %300 = vmatpush1.bf16.msra.mxu0 0
  %301 = vmatprep.subr.bf16.mxu0 0
  %302 = vmatpush1.bf16.msra.mxu0 0
  %303 = vmatprep.subr.bf16.mxu0 0
  %304 = vmatpush1.bf16.msra.mxu0 0
  %305 = vmatprep.subr.bf16.mxu0 0
  %306 = vmatpush1.bf16.msra.mxu0 0
  %307 = vmatprep.subr.bf16.mxu0 0
  %308 = vmatpush1.bf16.msra.mxu0 0
  %309 = vmatprep.subr.bf16.mxu0 0
  %310 = vmatpush1.bf16.msra.mxu0 0
  %311 = vmatprep.subr.bf16.mxu0 0
  %312 = vmatpush1.bf16.msra.mxu0 0
  %313 = vmatprep.subr.bf16.mxu0 0
  %314 = vmatpush1.bf16.msra.mxu0 0
  %315 = vmatprep.mubr.bf16.mxu0 0
  %316 = vmatmul.mubr.bf16.gmra.mrb[0].mxu0 %v278
  %v317 = vpop.f32.mrb[0].mxu0
  %v318 = vadd.f32 %v250, %v317
  %v319 = vpop.f32.mrb[0].mxu0
  %v320 = vpop.f32.mrb[0].mxu0
  %v321 = vadd.f32 %v250, %v320
  %v322 = vpop.f32.mrb[0].mxu0
  %323 = vmatprep.mubr.bf16.mxu0 0
  %324 = vmatmul.mubr.bf16.gmra.mrb[0].mxu0 %v281
  %v325 = vpop.f32.mrb[0].mxu0
  %v326 = vadd.f32 %v250, %v325
  %v327 = vpop.f32.mrb[0].mxu0
  %v328 = vpop.f32.mrb[0].mxu0
  %v329 = vadd.f32 %v250, %v328
  %v330 = vpop.f32.mrb[0].mxu0
  %331 = vdwg.mxu0
  %v332 = vmax.f32 %v318, 0.0
  %v333 = vmax.f32 %v321, 0.0
  %v334 = vmax.f32 %v326, 0.0
  %v335 = vmax.f32 %v329, 0.0
  %336 = vst.msk [vmem:[%s13] sm:$0xff] %vm276, %v332
  %337 = vst.msk [vmem:[%s13 + $0x8] sm:$0xff] %vm276, %v333
  %338 = vst.msk [vmem:[%s13 + $0x10] sm:$0xff] %vm276, %v334
  %339 = vst.msk [vmem:[%s13 + $0x18] sm:$0xff] %vm276, %v335
  // Predicated region
  $region54: #{forward.20} parent=0 // pred_check
    _
  $region55: #{forward.20} parent=0 // pred_check_branch
    %341 = sbr.rel (0) target = $region57
  $region56: #{forward.20} parent=0 // pred_region
    _
  $region57: #{forward.20} parent=0 // pred_fallthru
    _
  // Predicated region
  $region58: #{forward.20} parent=0 // pred_check
    _
  $region59: #{forward.20} parent=0 // pred_check_branch
    %343 = sbr.rel (0) target = $region61
  $region60: #{forward.20} parent=0 // pred_region
    _
  $region61: #{forward.20} parent=0 // pred_fallthru
    _

// kernel: forward.21
$region0: #{forward.21}
  #allocation0 [shape = 'u32[]', space=smem, size = 0x4, offset = 0x4, fixed_abs, tag = 'smem constant byte address 0x4 - core index']
  #allocation1 [shape = 'u32[144,128]{1,0:T(1,128)}', space=vmem, size = 0x12000, scoped, tag = 'internal scratch']
  %s0 = inlined_call_operand.vmem [shape: f32[8,64], index: 0, kind: input, shape index: {}]
  %s1 = inlined_call_operand.vmem [shape: f32[8,64], index: 1, kind: input, shape index: {}]
  %s2 = inlined_call_operand.vmem [shape: f32[8,64], index: 2, kind: input, shape index: {}]
  %s3 = inlined_call_operand.vmem [shape: f32[8,64], index: 3, kind: input, shape index: {}]
  %s4 = inlined_call_operand.vmem [shape: f32[8,64], index: 4, kind: input, shape index: {}]
  %s5 = inlined_call_operand.vmem [shape: f32[8,64], index: 5, kind: input, shape index: {}]
  %s6 = inlined_call_operand.vmem [shape: f32[8,64], index: 6, kind: input, shape index: {}]
  %s7 = inlined_call_operand.vmem [shape: f32[8,64], index: 7, kind: input, shape index: {}]
  %s8 = inlined_call_operand.vmem [shape: f32[8,64], index: 8, kind: input, shape index: {}]
  %s9 = inlined_call_operand.vmem [shape: f32[9,1,64], index: 9, kind: input, shape index: {}]
  %s10 = inlined_call_operand.vmem [shape: f32[1,64], index: 10, kind: input, shape index: {}]
  %s11 = inlined_call_operand.vmem [shape: bf16[64,128], index: 11, kind: input, shape index: {}]
  %s12 = inlined_call_operand.vmem [shape: f32[1,128], index: 12, kind: input, shape index: {}]
  %s13 = inlined_call_operand.vmem [shape: f32[8,128], index: 13, kind: output, shape index: {}]
  %s14 = sld [smem:[#allocation0]]
  $region62: #{forward.21} parent=0
    _
  %s16 = ssub.s32 1, %s14
  %s17 = scalar_select 0, %s16, %s14
  // Predicated region
  $region2: #{forward.21} parent=0 // pred_check
    _
  $region3: #{forward.21} parent=0 // pred_check_branch
    %19 = sbr.rel (0) target = $region5
  $region4: #{forward.21} parent=0 // pred_region
    _
  $region5: #{forward.21} parent=0 // pred_fallthru
    _
  // Predicated region
  $region6: #{forward.21} parent=0 // pred_check
    _
  $region7: #{forward.21} parent=0 // pred_check_branch
    %21 = sbr.rel (0) target = $region9
  $region8: #{forward.21} parent=0 // pred_region
    _
  $region9: #{forward.21} parent=0 // pred_fallthru
    _
  // Predicated region
  $region10: #{forward.21} parent=0 // pred_check
    _
  $region11: #{forward.21} parent=0 // pred_check_branch
    %23 = sbr.rel (0) target = $region13
  $region12: #{forward.21} parent=0 // pred_region
    _
  $region13: #{forward.21} parent=0 // pred_fallthru
    _
  // Predicated region
  $region14: #{forward.21} parent=0 // pred_check
    _
  $region15: #{forward.21} parent=0 // pred_check_branch
    %25 = sbr.rel (0) target = $region17
  $region16: #{forward.21} parent=0 // pred_region
    _
  $region17: #{forward.21} parent=0 // pred_fallthru
    _
  // Predicated region
  $region18: #{forward.21} parent=0 // pred_check
    _
  $region19: #{forward.21} parent=0 // pred_check_branch
    %27 = sbr.rel (0) target = $region21
  $region20: #{forward.21} parent=0 // pred_region
    _
  $region21: #{forward.21} parent=0 // pred_fallthru
    _
  // Predicated region
  $region22: #{forward.21} parent=0 // pred_check
    _
  $region23: #{forward.21} parent=0 // pred_check_branch
    %29 = sbr.rel (0) target = $region25
  $region24: #{forward.21} parent=0 // pred_region
    _
  $region25: #{forward.21} parent=0 // pred_fallthru
    _
  // Predicated region
  $region26: #{forward.21} parent=0 // pred_check
    _
  $region27: #{forward.21} parent=0 // pred_check_branch
    %31 = sbr.rel (0) target = $region29
  $region28: #{forward.21} parent=0 // pred_region
    _
  $region29: #{forward.21} parent=0 // pred_fallthru
    _
  // Predicated region
  $region30: #{forward.21} parent=0 // pred_check
    _
  $region31: #{forward.21} parent=0 // pred_check_branch
    %33 = sbr.rel (0) target = $region33
  $region32: #{forward.21} parent=0 // pred_region
    _
  $region33: #{forward.21} parent=0 // pred_fallthru
    _
  // Predicated region
  $region34: #{forward.21} parent=0 // pred_check
    _
  $region35: #{forward.21} parent=0 // pred_check_branch
    %35 = sbr.rel (0) target = $region37
  $region36: #{forward.21} parent=0 // pred_region
    _
  $region37: #{forward.21} parent=0 // pred_fallthru
    _
  // Predicated region
  $region38: #{forward.21} parent=0 // pred_check
    _
  $region39: #{forward.21} parent=0 // pred_check_branch
    %37 = sbr.rel (0) target = $region41
  $region40: #{forward.21} parent=0 // pred_region
    _
  $region41: #{forward.21} parent=0 // pred_fallthru
    _
  // Predicated region
  $region42: #{forward.21} parent=0 // pred_check
    _
  $region43: #{forward.21} parent=0 // pred_check_branch
    %39 = sbr.rel (0) target = $region45
  $region44: #{forward.21} parent=0 // pred_region
    _
  $region45: #{forward.21} parent=0 // pred_fallthru
    _
  // Predicated region
  $region46: #{forward.21} parent=0 // pred_check
    _
  $region47: #{forward.21} parent=0 // pred_check_branch
    %41 = sbr.rel (0) target = $region49
  $region48: #{forward.21} parent=0 // pred_region
    _
  $region49: #{forward.21} parent=0 // pred_fallthru
    _
  // Predicated region
  $region50: #{forward.21} parent=0 // pred_check
    _
  $region51: #{forward.21} parent=0 // pred_check_branch
    %43 = sbr.rel (0) target = $region53
  $region52: #{forward.21} parent=0 // pred_region
    _
  $region53: #{forward.21} parent=0 // pred_fallthru
    _
  %v45 = vld [vmem:[%s0] sm:$0xff]
  %v46 = vld [vmem:[%s9] sm:$0x1]
  %v48 = vlaneseq
  %v49 = vshrl.u32 %v48, 7
  %v50 = vsub.s32 0, %v49
  %v51 = vrot.slane %v46, %v50
  %v53 = vmul.f32 %v45, %v51
  %v54 = vld [vmem:[%s1] sm:$0xff]
  %s55 = scalar_lea.vmem %s9, 1
  %v56 = vld [vmem:[%s55] sm:$0x1]
  %v58 = vlaneseq
  %v59 = vshrl.u32 %v58, 7
  %v60 = vsub.s32 0, %v59
  %v61 = vrot.slane %v56, %v60
  %v63 = vmul.f32 %v54, %v61
  %v64 = vadd.f32 %v53, %v63
  %v65 = vld [vmem:[%s2] sm:$0xff]
  %s66 = scalar_lea.vmem %s9, 2
  %v67 = vld [vmem:[%s66] sm:$0x1]
  %v69 = vlaneseq
  %v70 = vshrl.u32 %v69, 7
  %v71 = vsub.s32 0, %v70
  %v72 = vrot.slane %v67, %v71
  %v74 = vmul.f32 %v65, %v72
  %v75 = vadd.f32 %v64, %v74
  %v76 = vld [vmem:[%s3] sm:$0xff]
  %s77 = scalar_lea.vmem %s9, 3
  %v78 = vld [vmem:[%s77] sm:$0x1]
  %v80 = vlaneseq
  %v81 = vshrl.u32 %v80, 7
  %v82 = vsub.s32 0, %v81
  %v83 = vrot.slane %v78, %v82
  %v85 = vmul.f32 %v76, %v83
  %v86 = vadd.f32 %v75, %v85
  %v87 = vld [vmem:[%s4] sm:$0xff]
  %s88 = scalar_lea.vmem %s9, 4
  %v89 = vld [vmem:[%s88] sm:$0x1]
  %v91 = vlaneseq
  %v92 = vshrl.u32 %v91, 7
  %v93 = vsub.s32 0, %v92
  %v94 = vrot.slane %v89, %v93
  %v96 = vmul.f32 %v87, %v94
  %v97 = vadd.f32 %v86, %v96
  %v98 = vld [vmem:[%s5] sm:$0xff]
  %s99 = scalar_lea.vmem %s9, 5
  %v100 = vld [vmem:[%s99] sm:$0x1]
  %v102 = vlaneseq
  %v103 = vshrl.u32 %v102, 7
  %v104 = vsub.s32 0, %v103
  %v105 = vrot.slane %v100, %v104
  %v107 = vmul.f32 %v98, %v105
  %v108 = vadd.f32 %v97, %v107
  %v109 = vld [vmem:[%s6] sm:$0xff]
  %s110 = scalar_lea.vmem %s9, 6
  %v111 = vld [vmem:[%s110] sm:$0x1]
  %v113 = vlaneseq
  %v114 = vshrl.u32 %v113, 7
  %v115 = vsub.s32 0, %v114
  %v116 = vrot.slane %v111, %v115
  %v118 = vmul.f32 %v109, %v116
  %v119 = vadd.f32 %v108, %v118
  %v120 = vld [vmem:[%s7] sm:$0xff]
  %s121 = scalar_lea.vmem %s9, 7
  %v122 = vld [vmem:[%s121] sm:$0x1]
  %v124 = vlaneseq
  %v125 = vshrl.u32 %v124, 7
  %v126 = vsub.s32 0, %v125
  %v127 = vrot.slane %v122, %v126
  %v129 = vmul.f32 %v120, %v127
  %v130 = vadd.f32 %v119, %v129
  %v131 = vld [vmem:[%s8] sm:$0xff]
  %s132 = scalar_lea.vmem %s9, 8
  %v133 = vld [vmem:[%s132] sm:$0x1]
  %v135 = vlaneseq
  %v136 = vshrl.u32 %v135, 7
  %v137 = vsub.s32 0, %v136
  %v138 = vrot.slane %v133, %v137
  %v140 = vmul.f32 %v131, %v138
  %v141 = vadd.f32 %v130, %v140
  %v142 = vld [vmem:[%s10] sm:$0x1]
  %v144 = vlaneseq
  %v145 = vshrl.u32 %v144, 7
  %v146 = vsub.s32 0, %v145
  %v147 = vrot.slane %v142, %v146
  %v149 = vadd.f32 %v141, %v147
  %v150 = vmax.f32 %v149, 0.0
  %v151 = vpack.c.bf16 %v150, %v150
  %v152 = vld [vmem:[%s11] sm:$0xf]
  %v153 = vld [vmem:[%s11 + $0x4] sm:$0xf]
  %v154 = vld [vmem:[%s11 + $0x8] sm:$0xf]
  %v155 = vld [vmem:[%s11 + $0xc] sm:$0xf]
  %v156 = vld [vmem:[%s11 + $0x10] sm:$0xf]
  %v157 = vld [vmem:[%s11 + $0x14] sm:$0xf]
  %v158 = vld [vmem:[%s11 + $0x18] sm:$0xf]
  %v159 = vld [vmem:[%s11 + $0x1c] sm:$0xf]
  %v160 = vld [vmem:[%s12] sm:$0x1]
  %v162 = vlaneseq
  %v163 = vshrl.u32 %v162, 7
  %v164 = vsub.s32 0, %v163
  %v165 = vrot.slane %v160, %v164
  %v175 = vunpack.c.l.b16 %v152
  %v176 = vunpack.c.l.b16 %v153
  %v177 = vunpack.c.l.b16 %v154
  %v178 = vunpack.c.l.b16 %v155
  %v179 = vunpack.c.l.b16 %v156
  %v180 = vunpack.c.l.b16 %v157
  %v181 = vunpack.c.l.b16 %v158
  %v182 = vunpack.c.l.b16 %v159
  %v183 = vpack.c.b16 %v176, %v175
  %v184 = vpack.c.b16 %v178, %v177
  %v185 = vpack.c.b16 %v180, %v179
  %v186 = vpack.c.b16 %v182, %v181
  %vm191 = vcmask 523264
  %v193 = vsel %vm191, %v151, 0
  %195 = vmatprep.subr.bf16.mxu0 0
  %196 = vmatpush1.bf16.msra.mxu0 %v183
  %197 = vmatprep.subr.bf16.mxu0 0
  %198 = vmatpush1.bf16.msra.mxu0 %v184
  %199 = vmatprep.subr.bf16.mxu0 0
  %200 = vmatpush1.bf16.msra.mxu0 %v185
  %201 = vmatprep.subr.bf16.mxu0 0
  %202 = vmatpush1.bf16.msra.mxu0 %v186
  %203 = vmatprep.subr.bf16.mxu0 0
  %204 = vmatpush1.bf16.msra.mxu0 0
  %205 = vmatprep.subr.bf16.mxu0 0
  %206 = vmatpush1.bf16.msra.mxu0 0
  %207 = vmatprep.subr.bf16.mxu0 0
  %208 = vmatpush1.bf16.msra.mxu0 0
  %209 = vmatprep.subr.bf16.mxu0 0
  %210 = vmatpush1.bf16.msra.mxu0 0
  %211 = vmatprep.subr.bf16.mxu0 0
  %212 = vmatpush1.bf16.msra.mxu0 0
  %213 = vmatprep.subr.bf16.mxu0 0
  %214 = vmatpush1.bf16.msra.mxu0 0
  %215 = vmatprep.subr.bf16.mxu0 0
  %216 = vmatpush1.bf16.msra.mxu0 0
  %217 = vmatprep.subr.bf16.mxu0 0
  %218 = vmatpush1.bf16.msra.mxu0 0
  %219 = vmatprep.subr.bf16.mxu0 0
  %220 = vmatpush1.bf16.msra.mxu0 0
  %221 = vmatprep.subr.bf16.mxu0 0
  %222 = vmatpush1.bf16.msra.mxu0 0
  %223 = vmatprep.subr.bf16.mxu0 0
  %224 = vmatpush1.bf16.msra.mxu0 0
  %225 = vmatprep.subr.bf16.mxu0 0
  %226 = vmatpush1.bf16.msra.mxu0 0
  %227 = vmatprep.mubr.bf16.mxu0 0
  %228 = vmatmul.mubr.bf16.gmra.mrb[0].mxu0 %v193
  %v229 = vpop.f32.mrb[0].mxu0
  %v230 = vadd.f32 %v165, %v229
  %v231 = vpop.f32.mrb[0].mxu0
  %v232 = vpop.f32.mrb[0].mxu0
  %v233 = vpop.f32.mrb[0].mxu0
  %234 = vdwg.mxu0
  %v235 = vmax.f32 %v230, 0.0
  %236 = vst [vmem:[%s13] sm:$0xff] %v235
  // Predicated region
  $region54: #{forward.21} parent=0 // pred_check
    _
  $region55: #{forward.21} parent=0 // pred_check_branch
    %238 = sbr.rel (0) target = $region57
  $region56: #{forward.21} parent=0 // pred_region
    _
  $region57: #{forward.21} parent=0 // pred_fallthru
    _
  // Predicated region
  $region58: #{forward.21} parent=0 // pred_check
    _
  $region59: #{forward.21} parent=0 // pred_check_branch
    %240 = sbr.rel (0) target = $region61
  $region60: #{forward.21} parent=0 // pred_region
    _
  $region61: #{forward.21} parent=0 // pred_fallthru
    _

// kernel: forward.22
$region0: #{forward.22}
  #allocation0 [shape = 'u32[]', space=smem, size = 0x4, offset = 0x4, fixed_abs, tag = 'smem constant byte address 0x4 - core index']
  #allocation1 [shape = 'u32[144,128]{1,0:T(1,128)}', space=vmem, size = 0x12000, scoped, tag = 'internal scratch']
  %s0 = inlined_call_operand.vmem [shape: f32[8,128], index: 0, kind: input, shape index: {}]
  %s1 = inlined_call_operand.vmem [shape: f32[8,128], index: 1, kind: input, shape index: {}]
  %s2 = inlined_call_operand.vmem [shape: f32[8,128], index: 2, kind: input, shape index: {}]
  %s3 = inlined_call_operand.vmem [shape: f32[8,128], index: 3, kind: input, shape index: {}]
  %s4 = inlined_call_operand.vmem [shape: f32[8,128], index: 4, kind: input, shape index: {}]
  %s5 = inlined_call_operand.vmem [shape: f32[8,128], index: 5, kind: input, shape index: {}]
  %s6 = inlined_call_operand.vmem [shape: f32[8,128], index: 6, kind: input, shape index: {}]
  %s7 = inlined_call_operand.vmem [shape: f32[8,128], index: 7, kind: input, shape index: {}]
  %s8 = inlined_call_operand.vmem [shape: f32[8,128], index: 8, kind: input, shape index: {}]
  %s9 = inlined_call_operand.vmem [shape: f32[9,1,128], index: 9, kind: input, shape index: {}]
  %s10 = inlined_call_operand.vmem [shape: f32[1,128], index: 10, kind: input, shape index: {}]
  %s11 = inlined_call_operand.vmem [shape: bf16[128,128], index: 11, kind: input, shape index: {}]
  %s12 = inlined_call_operand.vmem [shape: f32[1,128], index: 12, kind: input, shape index: {}]
  %s13 = inlined_call_operand.vmem [shape: f32[8,128], index: 13, kind: output, shape index: {}]
  %s14 = sld [smem:[#allocation0]]
  $region62: #{forward.22} parent=0
    _
  %s16 = ssub.s32 1, %s14
  %s17 = scalar_select 0, %s16, %s14
  // Predicated region
  $region2: #{forward.22} parent=0 // pred_check
    _
  $region3: #{forward.22} parent=0 // pred_check_branch
    %19 = sbr.rel (0) target = $region5
  $region4: #{forward.22} parent=0 // pred_region
    _
  $region5: #{forward.22} parent=0 // pred_fallthru
    _
  // Predicated region
  $region6: #{forward.22} parent=0 // pred_check
    _
  $region7: #{forward.22} parent=0 // pred_check_branch
    %21 = sbr.rel (0) target = $region9
  $region8: #{forward.22} parent=0 // pred_region
    _
  $region9: #{forward.22} parent=0 // pred_fallthru
    _
  // Predicated region
  $region10: #{forward.22} parent=0 // pred_check
    _
  $region11: #{forward.22} parent=0 // pred_check_branch
    %23 = sbr.rel (0) target = $region13
  $region12: #{forward.22} parent=0 // pred_region
    _
  $region13: #{forward.22} parent=0 // pred_fallthru
    _
  // Predicated region
  $region14: #{forward.22} parent=0 // pred_check
    _
  $region15: #{forward.22} parent=0 // pred_check_branch
    %25 = sbr.rel (0) target = $region17
  $region16: #{forward.22} parent=0 // pred_region
    _
  $region17: #{forward.22} parent=0 // pred_fallthru
    _
  // Predicated region
  $region18: #{forward.22} parent=0 // pred_check
    _
  $region19: #{forward.22} parent=0 // pred_check_branch
    %27 = sbr.rel (0) target = $region21
  $region20: #{forward.22} parent=0 // pred_region
    _
  $region21: #{forward.22} parent=0 // pred_fallthru
    _
  // Predicated region
  $region22: #{forward.22} parent=0 // pred_check
    _
  $region23: #{forward.22} parent=0 // pred_check_branch
    %29 = sbr.rel (0) target = $region25
  $region24: #{forward.22} parent=0 // pred_region
    _
  $region25: #{forward.22} parent=0 // pred_fallthru
    _
  // Predicated region
  $region26: #{forward.22} parent=0 // pred_check
    _
  $region27: #{forward.22} parent=0 // pred_check_branch
    %31 = sbr.rel (0) target = $region29
  $region28: #{forward.22} parent=0 // pred_region
    _
  $region29: #{forward.22} parent=0 // pred_fallthru
    _
  // Predicated region
  $region30: #{forward.22} parent=0 // pred_check
    _
  $region31: #{forward.22} parent=0 // pred_check_branch
    %33 = sbr.rel (0) target = $region33
  $region32: #{forward.22} parent=0 // pred_region
    _
  $region33: #{forward.22} parent=0 // pred_fallthru
    _
  // Predicated region
  $region34: #{forward.22} parent=0 // pred_check
    _
  $region35: #{forward.22} parent=0 // pred_check_branch
    %35 = sbr.rel (0) target = $region37
  $region36: #{forward.22} parent=0 // pred_region
    _
  $region37: #{forward.22} parent=0 // pred_fallthru
    _
  // Predicated region
  $region38: #{forward.22} parent=0 // pred_check
    _
  $region39: #{forward.22} parent=0 // pred_check_branch
    %37 = sbr.rel (0) target = $region41
  $region40: #{forward.22} parent=0 // pred_region
    _
  $region41: #{forward.22} parent=0 // pred_fallthru
    _
  // Predicated region
  $region42: #{forward.22} parent=0 // pred_check
    _
  $region43: #{forward.22} parent=0 // pred_check_branch
    %39 = sbr.rel (0) target = $region45
  $region44: #{forward.22} parent=0 // pred_region
    _
  $region45: #{forward.22} parent=0 // pred_fallthru
    _
  // Predicated region
  $region46: #{forward.22} parent=0 // pred_check
    _
  $region47: #{forward.22} parent=0 // pred_check_branch
    %41 = sbr.rel (0) target = $region49
  $region48: #{forward.22} parent=0 // pred_region
    _
  $region49: #{forward.22} parent=0 // pred_fallthru
    _
  // Predicated region
  $region50: #{forward.22} parent=0 // pred_check
    _
  $region51: #{forward.22} parent=0 // pred_check_branch
    %43 = sbr.rel (0) target = $region53
  $region52: #{forward.22} parent=0 // pred_region
    _
  $region53: #{forward.22} parent=0 // pred_fallthru
    _
  %v45 = vld [vmem:[%s0] sm:$0xff]
  %v46 = vld [vmem:[%s9] sm:$0x1]
  %v48 = vlaneseq
  %v49 = vshrl.u32 %v48, 7
  %v50 = vsub.s32 0, %v49
  %v51 = vrot.slane %v46, %v50
  %v53 = vmul.f32 %v45, %v51
  %v54 = vld [vmem:[%s1] sm:$0xff]
  %s55 = scalar_lea.vmem %s9, 1
  %v56 = vld [vmem:[%s55] sm:$0x1]
  %v58 = vlaneseq
  %v59 = vshrl.u32 %v58, 7
  %v60 = vsub.s32 0, %v59
  %v61 = vrot.slane %v56, %v60
  %v63 = vmul.f32 %v54, %v61
  %v64 = vadd.f32 %v53, %v63
  %v65 = vld [vmem:[%s2] sm:$0xff]
  %s66 = scalar_lea.vmem %s9, 2
  %v67 = vld [vmem:[%s66] sm:$0x1]
  %v69 = vlaneseq
  %v70 = vshrl.u32 %v69, 7
  %v71 = vsub.s32 0, %v70
  %v72 = vrot.slane %v67, %v71
  %v74 = vmul.f32 %v65, %v72
  %v75 = vadd.f32 %v64, %v74
  %v76 = vld [vmem:[%s3] sm:$0xff]
  %s77 = scalar_lea.vmem %s9, 3
  %v78 = vld [vmem:[%s77] sm:$0x1]
  %v80 = vlaneseq
  %v81 = vshrl.u32 %v80, 7
  %v82 = vsub.s32 0, %v81
  %v83 = vrot.slane %v78, %v82
  %v85 = vmul.f32 %v76, %v83
  %v86 = vadd.f32 %v75, %v85
  %v87 = vld [vmem:[%s4] sm:$0xff]
  %s88 = scalar_lea.vmem %s9, 4
  %v89 = vld [vmem:[%s88] sm:$0x1]
  %v91 = vlaneseq
  %v92 = vshrl.u32 %v91, 7
  %v93 = vsub.s32 0, %v92
  %v94 = vrot.slane %v89, %v93
  %v96 = vmul.f32 %v87, %v94
  %v97 = vadd.f32 %v86, %v96
  %v98 = vld [vmem:[%s5] sm:$0xff]
  %s99 = scalar_lea.vmem %s9, 5
  %v100 = vld [vmem:[%s99] sm:$0x1]
  %v102 = vlaneseq
  %v103 = vshrl.u32 %v102, 7
  %v104 = vsub.s32 0, %v103
  %v105 = vrot.slane %v100, %v104
  %v107 = vmul.f32 %v98, %v105
  %v108 = vadd.f32 %v97, %v107
  %v109 = vld [vmem:[%s6] sm:$0xff]
  %s110 = scalar_lea.vmem %s9, 6
  %v111 = vld [vmem:[%s110] sm:$0x1]
  %v113 = vlaneseq
  %v114 = vshrl.u32 %v113, 7
  %v115 = vsub.s32 0, %v114
  %v116 = vrot.slane %v111, %v115
  %v118 = vmul.f32 %v109, %v116
  %v119 = vadd.f32 %v108, %v118
  %v120 = vld [vmem:[%s7] sm:$0xff]
  %s121 = scalar_lea.vmem %s9, 7
  %v122 = vld [vmem:[%s121] sm:$0x1]
  %v124 = vlaneseq
  %v125 = vshrl.u32 %v124, 7
  %v126 = vsub.s32 0, %v125
  %v127 = vrot.slane %v122, %v126
  %v129 = vmul.f32 %v120, %v127
  %v130 = vadd.f32 %v119, %v129
  %v131 = vld [vmem:[%s8] sm:$0xff]
  %s132 = scalar_lea.vmem %s9, 8
  %v133 = vld [vmem:[%s132] sm:$0x1]
  %v135 = vlaneseq
  %v136 = vshrl.u32 %v135, 7
  %v137 = vsub.s32 0, %v136
  %v138 = vrot.slane %v133, %v137
  %v140 = vmul.f32 %v131, %v138
  %v141 = vadd.f32 %v130, %v140
  %v142 = vld [vmem:[%s10] sm:$0x1]
  %v144 = vlaneseq
  %v145 = vshrl.u32 %v144, 7
  %v146 = vsub.s32 0, %v145
  %v147 = vrot.slane %v142, %v146
  %v149 = vadd.f32 %v141, %v147
  %v150 = vmax.f32 %v149, 0.0
  %v151 = vpack.c.bf16 %v150, %v150
  %v152 = vld [vmem:[%s11] sm:$0xf]
  %v153 = vld [vmem:[%s11 + $0x4] sm:$0xf]
  %v154 = vld [vmem:[%s11 + $0x8] sm:$0xf]
  %v155 = vld [vmem:[%s11 + $0xc] sm:$0xf]
  %v156 = vld [vmem:[%s11 + $0x10] sm:$0xf]
  %v157 = vld [vmem:[%s11 + $0x14] sm:$0xf]
  %v158 = vld [vmem:[%s11 + $0x18] sm:$0xf]
  %v159 = vld [vmem:[%s11 + $0x1c] sm:$0xf]
  %v160 = vld [vmem:[%s11 + $0x20] sm:$0xf]
  %v161 = vld [vmem:[%s11 + $0x24] sm:$0xf]
  %v162 = vld [vmem:[%s11 + $0x28] sm:$0xf]
  %v163 = vld [vmem:[%s11 + $0x2c] sm:$0xf]
  %v164 = vld [vmem:[%s11 + $0x30] sm:$0xf]
  %v165 = vld [vmem:[%s11 + $0x34] sm:$0xf]
  %v166 = vld [vmem:[%s11 + $0x38] sm:$0xf]
  %v167 = vld [vmem:[%s11 + $0x3c] sm:$0xf]
  %v168 = vld [vmem:[%s12] sm:$0x1]
  %v170 = vlaneseq
  %v171 = vshrl.u32 %v170, 7
  %v172 = vsub.s32 0, %v171
  %v173 = vrot.slane %v168, %v172
  %v191 = vunpack.c.l.b16 %v152
  %v192 = vunpack.c.l.b16 %v153
  %v193 = vunpack.c.l.b16 %v154
  %v194 = vunpack.c.l.b16 %v155
  %v195 = vunpack.c.l.b16 %v156
  %v196 = vunpack.c.l.b16 %v157
  %v197 = vunpack.c.l.b16 %v158
  %v198 = vunpack.c.l.b16 %v159
  %v199 = vunpack.c.l.b16 %v160
  %v200 = vunpack.c.l.b16 %v161
  %v201 = vunpack.c.l.b16 %v162
  %v202 = vunpack.c.l.b16 %v163
  %v203 = vunpack.c.l.b16 %v164
  %v204 = vunpack.c.l.b16 %v165
  %v205 = vunpack.c.l.b16 %v166
  %v206 = vunpack.c.l.b16 %v167
  %v207 = vpack.c.b16 %v192, %v191
  %v208 = vpack.c.b16 %v194, %v193
  %v209 = vpack.c.b16 %v196, %v195
  %v210 = vpack.c.b16 %v198, %v197
  %v211 = vpack.c.b16 %v200, %v199
  %v212 = vpack.c.b16 %v202, %v201
  %v213 = vpack.c.b16 %v204, %v203
  %v214 = vpack.c.b16 %v206, %v205
  %223 = vmatprep.subr.bf16.mxu0 0
  %224 = vmatpush1.bf16.msra.mxu0 %v207
  %225 = vmatprep.subr.bf16.mxu0 0
  %226 = vmatpush1.bf16.msra.mxu0 %v208
  %227 = vmatprep.subr.bf16.mxu0 0
  %228 = vmatpush1.bf16.msra.mxu0 %v209
  %229 = vmatprep.subr.bf16.mxu0 0
  %230 = vmatpush1.bf16.msra.mxu0 %v210
  %231 = vmatprep.subr.bf16.mxu0 0
  %232 = vmatpush1.bf16.msra.mxu0 %v211
  %233 = vmatprep.subr.bf16.mxu0 0
  %234 = vmatpush1.bf16.msra.mxu0 %v212
  %235 = vmatprep.subr.bf16.mxu0 0
  %236 = vmatpush1.bf16.msra.mxu0 %v213
  %237 = vmatprep.subr.bf16.mxu0 0
  %238 = vmatpush1.bf16.msra.mxu0 %v214
  %239 = vmatprep.subr.bf16.mxu0 0
  %240 = vmatpush1.bf16.msra.mxu0 0
  %241 = vmatprep.subr.bf16.mxu0 0
  %242 = vmatpush1.bf16.msra.mxu0 0
  %243 = vmatprep.subr.bf16.mxu0 0
  %244 = vmatpush1.bf16.msra.mxu0 0
  %245 = vmatprep.subr.bf16.mxu0 0
  %246 = vmatpush1.bf16.msra.mxu0 0
  %247 = vmatprep.subr.bf16.mxu0 0
  %248 = vmatpush1.bf16.msra.mxu0 0
  %249 = vmatprep.subr.bf16.mxu0 0
  %250 = vmatpush1.bf16.msra.mxu0 0
  %251 = vmatprep.subr.bf16.mxu0 0
  %252 = vmatpush1.bf16.msra.mxu0 0
  %253 = vmatprep.subr.bf16.mxu0 0
  %254 = vmatpush1.bf16.msra.mxu0 0
  %255 = vmatprep.mubr.bf16.mxu0 0
  %256 = vmatmul.mubr.bf16.gmra.mrb[0].mxu0 %v151
  %v257 = vpop.f32.mrb[0].mxu0
  %v258 = vadd.f32 %v173, %v257
  %v259 = vpop.f32.mrb[0].mxu0
  %v260 = vpop.f32.mrb[0].mxu0
  %v261 = vpop.f32.mrb[0].mxu0
  %262 = vdwg.mxu0
  %v263 = vmax.f32 %v258, 0.0
  %264 = vst [vmem:[%s13] sm:$0xff] %v263
  // Predicated region
  $region54: #{forward.22} parent=0 // pred_check
    _
  $region55: #{forward.22} parent=0 // pred_check_branch
    %266 = sbr.rel (0) target = $region57
  $region56: #{forward.22} parent=0 // pred_region
    _
  $region57: #{forward.22} parent=0 // pred_fallthru
    _
  // Predicated region
  $region58: #{forward.22} parent=0 // pred_check
    _
  $region59: #{forward.22} parent=0 // pred_check_branch
    %268 = sbr.rel (0) target = $region61
  $region60: #{forward.22} parent=0 // pred_region
    _
  $region61: #{forward.22} parent=0 // pred_fallthru
    _

// kernel: forward.27
$region0: #{forward.27}
  #allocation0 [shape = 'u32[]', space=smem, size = 0x4, offset = 0x4, fixed_abs, tag = 'smem constant byte address 0x4 - core index']
  #allocation1 [shape = 'u32[144,128]{1,0:T(1,128)}', space=vmem, size = 0x12000, scoped, tag = 'internal scratch']
  %s0 = inlined_call_operand.vmem [shape: f32[2,128], index: 0, kind: input, shape index: {}, may-alias: {0,1,2,3,6}]
  %s1 = inlined_call_operand.vmem [shape: f32[2,128], index: 1, kind: input, shape index: {}, may-alias: {0,1,2,3,6}]
  %s2 = inlined_call_operand.vmem [shape: f32[2,128], index: 2, kind: input, shape index: {}, may-alias: {0,1,2,3,6}]
  %s3 = inlined_call_operand.vmem [shape: f32[2,128], index: 3, kind: input, shape index: {}, may-alias: {0,1,2,3,6}]
  %s4 = inlined_call_operand.vmem [shape: f32[2,128], index: 4, kind: input, shape index: {}]
  %s5 = inlined_call_operand.vmem [shape: f32[2,128], index: 5, kind: input, shape index: {}]
  %s6 = inlined_call_operand.vmem [shape: f32[2,128], index: 6, kind: input, shape index: {}, may-alias: {0,1,2,3,6}]
  %s7 = inlined_call_operand.vmem [shape: f32[2,128], index: 7, kind: input, shape index: {}]
  %s8 = inlined_call_operand.vmem [shape: f32[2,128], index: 8, kind: input, shape index: {}]
  %s9 = inlined_call_operand.vmem [shape: f32[9,1,128], index: 9, kind: input, shape index: {}]
  %s10 = inlined_call_operand.vmem [shape: f32[1,128], index: 10, kind: input, shape index: {}]
  %s11 = inlined_call_operand.vmem [shape: bf16[128,256], index: 11, kind: input, shape index: {}]
  %s12 = inlined_call_operand.vmem [shape: f32[1,256], index: 12, kind: input, shape index: {}]
  %s13 = inlined_call_operand.vmem [shape: f32[2,256], index: 13, kind: output, shape index: {}]
  %s14 = sld [smem:[#allocation0]]
  $region62: #{forward.27} parent=0
    _
  %s16 = ssub.s32 1, %s14
  %s17 = scalar_select 0, %s16, %s14
  // Predicated region
  $region2: #{forward.27} parent=0 // pred_check
    _
  $region3: #{forward.27} parent=0 // pred_check_branch
    %19 = sbr.rel (0) target = $region5
  $region4: #{forward.27} parent=0 // pred_region
    _
  $region5: #{forward.27} parent=0 // pred_fallthru
    _
  // Predicated region
  $region6: #{forward.27} parent=0 // pred_check
    _
  $region7: #{forward.27} parent=0 // pred_check_branch
    %21 = sbr.rel (0) target = $region9
  $region8: #{forward.27} parent=0 // pred_region
    _
  $region9: #{forward.27} parent=0 // pred_fallthru
    _
  // Predicated region
  $region10: #{forward.27} parent=0 // pred_check
    _
  $region11: #{forward.27} parent=0 // pred_check_branch
    %23 = sbr.rel (0) target = $region13
  $region12: #{forward.27} parent=0 // pred_region
    _
  $region13: #{forward.27} parent=0 // pred_fallthru
    _
  // Predicated region
  $region14: #{forward.27} parent=0 // pred_check
    _
  $region15: #{forward.27} parent=0 // pred_check_branch
    %25 = sbr.rel (0) target = $region17
  $region16: #{forward.27} parent=0 // pred_region
    _
  $region17: #{forward.27} parent=0 // pred_fallthru
    _
  // Predicated region
  $region18: #{forward.27} parent=0 // pred_check
    _
  $region19: #{forward.27} parent=0 // pred_check_branch
    %27 = sbr.rel (0) target = $region21
  $region20: #{forward.27} parent=0 // pred_region
    _
  $region21: #{forward.27} parent=0 // pred_fallthru
    _
  // Predicated region
  $region22: #{forward.27} parent=0 // pred_check
    _
  $region23: #{forward.27} parent=0 // pred_check_branch
    %29 = sbr.rel (0) target = $region25
  $region24: #{forward.27} parent=0 // pred_region
    _
  $region25: #{forward.27} parent=0 // pred_fallthru
    _
  // Predicated region
  $region26: #{forward.27} parent=0 // pred_check
    _
  $region27: #{forward.27} parent=0 // pred_check_branch
    %31 = sbr.rel (0) target = $region29
  $region28: #{forward.27} parent=0 // pred_region
    _
  $region29: #{forward.27} parent=0 // pred_fallthru
    _
  // Predicated region
  $region30: #{forward.27} parent=0 // pred_check
    _
  $region31: #{forward.27} parent=0 // pred_check_branch
    %33 = sbr.rel (0) target = $region33
  $region32: #{forward.27} parent=0 // pred_region
    _
  $region33: #{forward.27} parent=0 // pred_fallthru
    _
  // Predicated region
  $region34: #{forward.27} parent=0 // pred_check
    _
  $region35: #{forward.27} parent=0 // pred_check_branch
    %35 = sbr.rel (0) target = $region37
  $region36: #{forward.27} parent=0 // pred_region
    _
  $region37: #{forward.27} parent=0 // pred_fallthru
    _
  // Predicated region
  $region38: #{forward.27} parent=0 // pred_check
    _
  $region39: #{forward.27} parent=0 // pred_check_branch
    %37 = sbr.rel (0) target = $region41
  $region40: #{forward.27} parent=0 // pred_region
    _
  $region41: #{forward.27} parent=0 // pred_fallthru
    _
  // Predicated region
  $region42: #{forward.27} parent=0 // pred_check
    _
  $region43: #{forward.27} parent=0 // pred_check_branch
    %39 = sbr.rel (0) target = $region45
  $region44: #{forward.27} parent=0 // pred_region
    _
  $region45: #{forward.27} parent=0 // pred_fallthru
    _
  // Predicated region
  $region46: #{forward.27} parent=0 // pred_check
    _
  $region47: #{forward.27} parent=0 // pred_check_branch
    %41 = sbr.rel (0) target = $region49
  $region48: #{forward.27} parent=0 // pred_region
    _
  $region49: #{forward.27} parent=0 // pred_fallthru
    _
  // Predicated region
  $region50: #{forward.27} parent=0 // pred_check
    _
  $region51: #{forward.27} parent=0 // pred_check_branch
    %43 = sbr.rel (0) target = $region53
  $region52: #{forward.27} parent=0 // pred_region
    _
  $region53: #{forward.27} parent=0 // pred_fallthru
    _
  %v45 = vld [vmem:[%s0] sm:$0x3]
  %v46 = vld [vmem:[%s9] sm:$0x1]
  %v48 = vlaneseq
  %v49 = vshrl.u32 %v48, 7
  %v50 = vsub.s32 0, %v49
  %v51 = vrot.slane %v46, %v50
  %v53 = vmul.f32 %v45, %v51
  %v54 = vld [vmem:[%s1] sm:$0x3]
  %s55 = scalar_lea.vmem %s9, 1
  %v56 = vld [vmem:[%s55] sm:$0x1]
  %v58 = vlaneseq
  %v59 = vshrl.u32 %v58, 7
  %v60 = vsub.s32 0, %v59
  %v61 = vrot.slane %v56, %v60
  %v63 = vmul.f32 %v54, %v61
  %v64 = vadd.f32 %v53, %v63
  %v65 = vld [vmem:[%s2] sm:$0x3]
  %s66 = scalar_lea.vmem %s9, 2
  %v67 = vld [vmem:[%s66] sm:$0x1]
  %v69 = vlaneseq
  %v70 = vshrl.u32 %v69, 7
  %v71 = vsub.s32 0, %v70
  %v72 = vrot.slane %v67, %v71
  %v74 = vmul.f32 %v65, %v72
  %v75 = vadd.f32 %v64, %v74
  %v76 = vld [vmem:[%s3] sm:$0x3]
  %s77 = scalar_lea.vmem %s9, 3
  %v78 = vld [vmem:[%s77] sm:$0x1]
  %v80 = vlaneseq
  %v81 = vshrl.u32 %v80, 7
  %v82 = vsub.s32 0, %v81
  %v83 = vrot.slane %v78, %v82
  %v85 = vmul.f32 %v76, %v83
  %v86 = vadd.f32 %v75, %v85
  %v87 = vld [vmem:[%s4] sm:$0x3]
  %s88 = scalar_lea.vmem %s9, 4
  %v89 = vld [vmem:[%s88] sm:$0x1]
  %v91 = vlaneseq
  %v92 = vshrl.u32 %v91, 7
  %v93 = vsub.s32 0, %v92
  %v94 = vrot.slane %v89, %v93
  %v96 = vmul.f32 %v87, %v94
  %v97 = vadd.f32 %v86, %v96
  %v98 = vld [vmem:[%s5] sm:$0x3]
  %s99 = scalar_lea.vmem %s9, 5
  %v100 = vld [vmem:[%s99] sm:$0x1]
  %v102 = vlaneseq
  %v103 = vshrl.u32 %v102, 7
  %v104 = vsub.s32 0, %v103
  %v105 = vrot.slane %v100, %v104
  %v107 = vmul.f32 %v98, %v105
  %v108 = vadd.f32 %v97, %v107
  %v109 = vld [vmem:[%s6] sm:$0x3]
  %s110 = scalar_lea.vmem %s9, 6
  %v111 = vld [vmem:[%s110] sm:$0x1]
  %v113 = vlaneseq
  %v114 = vshrl.u32 %v113, 7
  %v115 = vsub.s32 0, %v114
  %v116 = vrot.slane %v111, %v115
  %v118 = vmul.f32 %v109, %v116
  %v119 = vadd.f32 %v108, %v118
  %v120 = vld [vmem:[%s7] sm:$0x3]
  %s121 = scalar_lea.vmem %s9, 7
  %v122 = vld [vmem:[%s121] sm:$0x1]
  %v124 = vlaneseq
  %v125 = vshrl.u32 %v124, 7
  %v126 = vsub.s32 0, %v125
  %v127 = vrot.slane %v122, %v126
  %v129 = vmul.f32 %v120, %v127
  %v130 = vadd.f32 %v119, %v129
  %v131 = vld [vmem:[%s8] sm:$0x3]
  %s132 = scalar_lea.vmem %s9, 8
  %v133 = vld [vmem:[%s132] sm:$0x1]
  %v135 = vlaneseq
  %v136 = vshrl.u32 %v135, 7
  %v137 = vsub.s32 0, %v136
  %v138 = vrot.slane %v133, %v137
  %v140 = vmul.f32 %v131, %v138
  %v141 = vadd.f32 %v130, %v140
  %v142 = vld [vmem:[%s10] sm:$0x1]
  %v144 = vlaneseq
  %v145 = vshrl.u32 %v144, 7
  %v146 = vsub.s32 0, %v145
  %v147 = vrot.slane %v142, %v146
  %v149 = vadd.f32 %v141, %v147
  %v150 = vmax.f32 %v149, 0.0
  %v151 = vpack.c.bf16 %v150, %v150
  %v152 = vld [vmem:[%s11] sm:$0xff]
  %v153 = vld [vmem:[%s11 + $0x8] sm:$0xff]
  %v154 = vld [vmem:[%s11 + $0x10] sm:$0xff]
  %v155 = vld [vmem:[%s11 + $0x18] sm:$0xff]
  %v156 = vld [vmem:[%s11 + $0x20] sm:$0xff]
  %v157 = vld [vmem:[%s11 + $0x28] sm:$0xff]
  %v158 = vld [vmem:[%s11 + $0x30] sm:$0xff]
  %v159 = vld [vmem:[%s11 + $0x38] sm:$0xff]
  %v160 = vld [vmem:[%s11 + $0x40] sm:$0xff]
  %v161 = vld [vmem:[%s11 + $0x48] sm:$0xff]
  %v162 = vld [vmem:[%s11 + $0x50] sm:$0xff]
  %v163 = vld [vmem:[%s11 + $0x58] sm:$0xff]
  %v164 = vld [vmem:[%s11 + $0x60] sm:$0xff]
  %v165 = vld [vmem:[%s11 + $0x68] sm:$0xff]
  %v166 = vld [vmem:[%s11 + $0x70] sm:$0xff]
  %v167 = vld [vmem:[%s11 + $0x78] sm:$0xff]
  %v168 = vld [vmem:[%s12] sm:$0x3]
  %v170 = vlaneseq
  %v171 = vshrl.u32 %v170, 7
  %v172 = vsub.s32 0, %v171
  %v173 = vrot.slane %v168, %v172
  %v174 = vlaneseq
  %v175 = vshrl.u32 %v174, 7
  %v176 = vsub.s32 1, %v175
  %v177 = vrot.slane %v168, %v176
  %v196 = vunpack.c.l.b16 %v152
  %v197 = vunpack.c.h.b16 %v152
  %v198 = vunpack.c.l.b16 %v153
  %v199 = vunpack.c.h.b16 %v153
  %v200 = vunpack.c.l.b16 %v154
  %v201 = vunpack.c.h.b16 %v154
  %v202 = vunpack.c.l.b16 %v155
  %v203 = vunpack.c.h.b16 %v155
  %v204 = vunpack.c.l.b16 %v156
  %v205 = vunpack.c.h.b16 %v156
  %v206 = vunpack.c.l.b16 %v157
  %v207 = vunpack.c.h.b16 %v157
  %v208 = vunpack.c.l.b16 %v158
  %v209 = vunpack.c.h.b16 %v158
  %v210 = vunpack.c.l.b16 %v159
  %v211 = vunpack.c.h.b16 %v159
  %v212 = vunpack.c.l.b16 %v160
  %v213 = vunpack.c.h.b16 %v160
  %v214 = vunpack.c.l.b16 %v161
  %v215 = vunpack.c.h.b16 %v161
  %v216 = vunpack.c.l.b16 %v162
  %v217 = vunpack.c.h.b16 %v162
  %v218 = vunpack.c.l.b16 %v163
  %v219 = vunpack.c.h.b16 %v163
  %v220 = vunpack.c.l.b16 %v164
  %v221 = vunpack.c.h.b16 %v164
  %v222 = vunpack.c.l.b16 %v165
  %v223 = vunpack.c.h.b16 %v165
  %v224 = vunpack.c.l.b16 %v166
  %v225 = vunpack.c.h.b16 %v166
  %v226 = vunpack.c.l.b16 %v167
  %v227 = vunpack.c.h.b16 %v167
  %v228 = vpack.c.b16 %v198, %v196
  %v229 = vpack.c.b16 %v199, %v197
  %v230 = vpack.c.b16 %v202, %v200
  %v231 = vpack.c.b16 %v203, %v201
  %v232 = vpack.c.b16 %v206, %v204
  %v233 = vpack.c.b16 %v207, %v205
  %v234 = vpack.c.b16 %v210, %v208
  %v235 = vpack.c.b16 %v211, %v209
  %v236 = vpack.c.b16 %v214, %v212
  %v237 = vpack.c.b16 %v215, %v213
  %v238 = vpack.c.b16 %v218, %v216
  %v239 = vpack.c.b16 %v219, %v217
  %v240 = vpack.c.b16 %v222, %v220
  %v241 = vpack.c.b16 %v223, %v221
  %v242 = vpack.c.b16 %v226, %v224
  %v243 = vpack.c.b16 %v227, %v225
  %260 = vmatprep.subr.bf16.mxu0 %v229
  %261 = vmatpush1.bf16.msra.mxu0 %v228
  %262 = vmatprep.subr.bf16.mxu0 %v231
  %263 = vmatpush1.bf16.msra.mxu0 %v230
  %264 = vmatprep.subr.bf16.mxu0 %v233
  %265 = vmatpush1.bf16.msra.mxu0 %v232
  %266 = vmatprep.subr.bf16.mxu0 %v235
  %267 = vmatpush1.bf16.msra.mxu0 %v234
  %268 = vmatprep.subr.bf16.mxu0 %v237
  %269 = vmatpush1.bf16.msra.mxu0 %v236
  %270 = vmatprep.subr.bf16.mxu0 %v239
  %271 = vmatpush1.bf16.msra.mxu0 %v238
  %272 = vmatprep.subr.bf16.mxu0 %v241
  %273 = vmatpush1.bf16.msra.mxu0 %v240
  %274 = vmatprep.subr.bf16.mxu0 %v243
  %275 = vmatpush1.bf16.msra.mxu0 %v242
  %276 = vmatprep.subr.bf16.mxu0 0
  %277 = vmatpush1.bf16.msra.mxu0 0
  %278 = vmatprep.subr.bf16.mxu0 0
  %279 = vmatpush1.bf16.msra.mxu0 0
  %280 = vmatprep.subr.bf16.mxu0 0
  %281 = vmatpush1.bf16.msra.mxu0 0
  %282 = vmatprep.subr.bf16.mxu0 0
  %283 = vmatpush1.bf16.msra.mxu0 0
  %284 = vmatprep.subr.bf16.mxu0 0
  %285 = vmatpush1.bf16.msra.mxu0 0
  %286 = vmatprep.subr.bf16.mxu0 0
  %287 = vmatpush1.bf16.msra.mxu0 0
  %288 = vmatprep.subr.bf16.mxu0 0
  %289 = vmatpush1.bf16.msra.mxu0 0
  %290 = vmatprep.subr.bf16.mxu0 0
  %291 = vmatpush1.bf16.msra.mxu0 0
  %292 = vmatprep.mubr.bf16.mxu0 0
  %293 = vmatmul.mubr.bf16.gmra.mrb[0].mxu0 %v151
  %v294 = vpop.f32.mrb[0].mxu0
  %v295 = vadd.f32 %v173, %v294
  %v296 = vpop.f32.mrb[0].mxu0
  %v297 = vadd.f32 %v177, %v296
  %v298 = vpop.f32.mrb[0].mxu0
  %v299 = vpop.f32.mrb[0].mxu0
  %300 = vdwg.mxu0
  %v301 = vmax.f32 %v295, 0.0
  %v302 = vmax.f32 %v297, 0.0
  %v305 = vcombine.low %v301, %v302
  %v307 = vunpack.c.l.s4 1983009808
  %v308 = vunpack.c.0.s8 %v307
  %v309 = vlaneseq
  %v310 = vshrl.u32 %v309, 7
  %v311 = vsub.s32 %v308, %v310
  %v312 = vrot.slane %v305, %v311
  %314 = vst [vmem:[%s13] sm:$0xf] %v312
  // Predicated region
  $region54: #{forward.27} parent=0 // pred_check
    _
  $region55: #{forward.27} parent=0 // pred_check_branch
    %316 = sbr.rel (0) target = $region57
  $region56: #{forward.27} parent=0 // pred_region
    _
  $region57: #{forward.27} parent=0 // pred_fallthru
    _
  // Predicated region
  $region58: #{forward.27} parent=0 // pred_check
    _
  $region59: #{forward.27} parent=0 // pred_check_branch
    %318 = sbr.rel (0) target = $region61
  $region60: #{forward.27} parent=0 // pred_region
    _
  $region61: #{forward.27} parent=0 // pred_fallthru
    _

// kernel: forward.29
$region0: #{forward.29}
  #allocation0 [shape = 'u32[]', space=smem, size = 0x4, offset = 0x4, fixed_abs, tag = 'smem constant byte address 0x4 - core index']
  #allocation1 [shape = 'u32[144,128]{1,0:T(1,128)}', space=vmem, size = 0x12000, scoped, tag = 'internal scratch']
  %s0 = inlined_call_operand.vmem [shape: f32[32,256], index: 0, kind: input, shape index: {}]
  %s1 = inlined_call_operand.vmem [shape: f32[2,32], index: 1, kind: input, shape index: {}]
  %s2 = inlined_call_operand.vmem [shape: f32[256,10], index: 2, kind: input, shape index: {}]
  %s3 = inlined_call_operand.vmem [shape: f32[1,10], index: 3, kind: input, shape index: {}]
  %s4 = inlined_call_operand.hbm [shape: f32[2,10], index: 4, kind: output, shape index: {}]
  %s5 = sld [smem:[#allocation0]]
  $region26: #{forward.29} parent=0
    _
  %s7 = ssub.s32 1, %s5
  %s8 = scalar_select 0, %s7, %s5
  $region1: #{forward.29} parent=0
    #allocation2 [shape = 'u8[1024]{0}', space=vmem, size = 0x400, scoped, tag = 'output window, operand 0, single buffered']
    #allocation3 [shape = 's32[1]{0}', space=sflag, size = 0x4, scoped, tag = 'scoped memory for forward.29']
    %9 = vsyncpa [#allocation3], 0
    // Predicated region
    $region2: #{forward.29} parent=1 // pred_check
      _
    $region3: #{forward.29} parent=1 // pred_check_branch
      %11 = sbr.rel (0) target = $region5
    $region4: #{forward.29} parent=1 // pred_region
      _
    $region5: #{forward.29} parent=1 // pred_fallthru
      _
    // Predicated region
    $region6: #{forward.29} parent=1 // pred_check
      _
    $region7: #{forward.29} parent=1 // pred_check_branch
      %13 = sbr.rel (0) target = $region9
    $region8: #{forward.29} parent=1 // pred_region
      _
    $region9: #{forward.29} parent=1 // pred_fallthru
      _
    // Predicated region
    $region10: #{forward.29} parent=1 // pred_check
      _
    $region11: #{forward.29} parent=1 // pred_check_branch
      %15 = sbr.rel (0) target = $region13
    $region12: #{forward.29} parent=1 // pred_region
      _
    $region13: #{forward.29} parent=1 // pred_fallthru
      _
    // Predicated region
    $region14: #{forward.29} parent=1 // pred_check
      _
    $region15: #{forward.29} parent=1 // pred_check_branch
      %17 = sbr.rel (0) target = $region17
    $region16: #{forward.29} parent=1 // pred_region
      _
    $region17: #{forward.29} parent=1 // pred_fallthru
      _
    %v18 = vld [vmem:[%s1] sm:$0x3]
    %v19 = vld [vmem:[%s0] sm:$0xff]
    %v20 = vld [vmem:[%s0 + $0x8] sm:$0xff]
    %v21 = vld [vmem:[%s0 + $0x10] sm:$0xff]
    %v22 = vld [vmem:[%s0 + $0x18] sm:$0xff]
    %v23 = vld [vmem:[%s0 + $0x20] sm:$0xff]
    %v24 = vld [vmem:[%s0 + $0x28] sm:$0xff]
    %v25 = vld [vmem:[%s0 + $0x30] sm:$0xff]
    %v26 = vld [vmem:[%s0 + $0x38] sm:$0xff]
    %vm27 = vcmask 261120
    %v29 = vsel %vm27, %v18, 0
    %31 = vmatprep.subr.mxu0 %v20
    %32 = vmatpush1.msra.mxu0 %v19
    %33 = vmatprep.subr.mxu0 %v22
    %34 = vmatpush1.msra.mxu0 %v21
    %35 = vmatprep.subr.mxu0 %v24
    %36 = vmatpush1.msra.mxu0 %v23
    %37 = vmatprep.subr.mxu0 %v26
    %38 = vmatpush1.msra.mxu0 %v25
    %39 = vmatprep.subr.mxu0 0.0
    %40 = vmatpush1.msra.mxu0 0.0
    %41 = vmatprep.subr.mxu0 0.0
    %42 = vmatpush1.msra.mxu0 0.0
    %43 = vmatprep.subr.mxu0 0.0
    %44 = vmatpush1.msra.mxu0 0.0
    %45 = vmatprep.subr.mxu0 0.0
    %46 = vmatpush1.msra.mxu0 0.0
    %47 = vmatprep.subr.mxu0 0.0
    %48 = vmatpush1.msra.mxu0 0.0
    %49 = vmatprep.subr.mxu0 0.0
    %50 = vmatpush1.msra.mxu0 0.0
    %51 = vmatprep.subr.mxu0 0.0
    %52 = vmatpush1.msra.mxu0 0.0
    %53 = vmatprep.subr.mxu0 0.0
    %54 = vmatpush1.msra.mxu0 0.0
    %55 = vmatprep.subr.mxu0 0.0
    %56 = vmatpush1.msra.mxu0 0.0
    %57 = vmatprep.subr.mxu0 0.0
    %58 = vmatpush1.msra.mxu0 0.0
    %59 = vmatprep.subr.mxu0 0.0
    %60 = vmatpush1.msra.mxu0 0.0
    %61 = vmatprep.subr.mxu0 0.0
    %62 = vmatpush1.msra.mxu0 0.0
    %63 = vmatprep.subr.mxu0 0.0
    %64 = vmatpush1.msra.mxu0 0.0
    %65 = vmatprep.subr.mxu0 0.0
    %66 = vmatpush1.msra.mxu0 0.0
    %67 = vmatprep.subr.mxu0 0.0
    %68 = vmatpush1.msra.mxu0 0.0
    %69 = vmatprep.subr.mxu0 0.0
    %70 = vmatpush1.msra.mxu0 0.0
    %71 = vmatprep.subr.mxu0 0.0
    %72 = vmatpush1.msra.mxu0 0.0
    %73 = vmatprep.subr.mxu0 0.0
    %74 = vmatpush1.msra.mxu0 0.0
    %75 = vmatprep.subr.mxu0 0.0
    %76 = vmatpush1.msra.mxu0 0.0
    %77 = vmatprep.subr.mxu0 0.0
    %78 = vmatpush1.msra.mxu0 0.0
    %79 = vmatprep.subr.mxu0 0.0
    %80 = vmatpush1.msra.mxu0 0.0
    %81 = vmatprep.subr.mxu0 0.0
    %82 = vmatpush1.msra.mxu0 0.0
    %83 = vmatprep.subr.mxu0 0.0
    %84 = vmatpush1.msra.mxu0 0.0
    %85 = vmatprep.subr.mxu0 0.0
    %86 = vmatpush1.msra.mxu0 0.0
    %87 = vmatprep.subr.mxu0 0.0
    %88 = vmatpush1.msra.mxu0 0.0
    %89 = vmatprep.subr.mxu0 0.0
    %90 = vmatpush1.msra.mxu0 0.0
    %91 = vmatprep.subr.mxu0 0.0
    %92 = vmatpush1.msra.mxu0 0.0
    %93 = vmatprep.subr.mxu0 0.0
    %94 = vmatpush1.msra.mxu0 0.0
    %95 = vmatprep.mubr.f32.mxu0 0.0
    %96 = vmatmul.mubr.f32.gmra.mrb[0].mxu0 %v29
    %v97 = vpop.f32.mrb[0].mxu0
    %v98 = vadd.f32 0.0, %v97
    %v99 = vpop.f32.mrb[0].mxu0
    %v100 = vadd.f32 0.0, %v99
    %101 = vdwg.mxu0
    %v102 = vld [vmem:[%s2] sm:$0xff]
    %v103 = vld [vmem:[%s2 + $0x8] sm:$0xff]
    %v104 = vld [vmem:[%s2 + $0x10] sm:$0xff]
    %v105 = vld [vmem:[%s2 + $0x18] sm:$0xff]
    %v106 = vld [vmem:[%s2 + $0x20] sm:$0xff]
    %v107 = vld [vmem:[%s2 + $0x28] sm:$0xff]
    %v108 = vld [vmem:[%s2 + $0x30] sm:$0xff]
    %v109 = vld [vmem:[%s2 + $0x38] sm:$0xff]
    %v110 = vld [vmem:[%s2 + $0x40] sm:$0xff]
    %v111 = vld [vmem:[%s2 + $0x48] sm:$0xff]
    %v112 = vld [vmem:[%s2 + $0x50] sm:$0xff]
    %v113 = vld [vmem:[%s2 + $0x58] sm:$0xff]
    %v114 = vld [vmem:[%s2 + $0x60] sm:$0xff]
    %v115 = vld [vmem:[%s2 + $0x68] sm:$0xff]
    %v116 = vld [vmem:[%s2 + $0x70] sm:$0xff]
    %v117 = vld [vmem:[%s2 + $0x78] sm:$0xff]
    %v118 = vld [vmem:[%s2 + $0x80] sm:$0xff]
    %v119 = vld [vmem:[%s2 + $0x88] sm:$0xff]
    %v120 = vld [vmem:[%s2 + $0x90] sm:$0xff]
    %v121 = vld [vmem:[%s2 + $0x98] sm:$0xff]
    %v122 = vld [vmem:[%s2 + $0xa0] sm:$0xff]
    %v123 = vld [vmem:[%s2 + $0xa8] sm:$0xff]
    %v124 = vld [vmem:[%s2 + $0xb0] sm:$0xff]
    %v125 = vld [vmem:[%s2 + $0xb8] sm:$0xff]
    %v126 = vld [vmem:[%s2 + $0xc0] sm:$0xff]
    %v127 = vld [vmem:[%s2 + $0xc8] sm:$0xff]
    %v128 = vld [vmem:[%s2 + $0xd0] sm:$0xff]
    %v129 = vld [vmem:[%s2 + $0xd8] sm:$0xff]
    %v130 = vld [vmem:[%s2 + $0xe0] sm:$0xff]
    %v131 = vld [vmem:[%s2 + $0xe8] sm:$0xff]
    %v132 = vld [vmem:[%s2 + $0xf0] sm:$0xff]
    %v133 = vld [vmem:[%s2 + $0xf8] sm:$0xff]
    %v134 = vld [vmem:[%s3] sm:$0x1]
    %v136 = vlaneseq
    %v137 = vshrl.u32 %v136, 7
    %v138 = vsub.s32 0, %v137
    %v139 = vrot.slane %v134, %v138
    %141 = vmatprep.subr.mxu0 0.0
    %142 = vmatpush1.msra.mxu0 %v102
    %143 = vmatprep.subr.mxu0 0.0
    %144 = vmatpush1.msra.mxu0 %v103
    %145 = vmatprep.subr.mxu0 0.0
    %146 = vmatpush1.msra.mxu0 %v104
    %147 = vmatprep.subr.mxu0 0.0
    %148 = vmatpush1.msra.mxu0 %v105
    %149 = vmatprep.subr.mxu0 0.0
    %150 = vmatpush1.msra.mxu0 %v106
    %151 = vmatprep.subr.mxu0 0.0
    %152 = vmatpush1.msra.mxu0 %v107
    %153 = vmatprep.subr.mxu0 0.0
    %154 = vmatpush1.msra.mxu0 %v108
    %155 = vmatprep.subr.mxu0 0.0
    %156 = vmatpush1.msra.mxu0 %v109
    %157 = vmatprep.subr.mxu0 0.0
    %158 = vmatpush1.msra.mxu0 %v110
    %159 = vmatprep.subr.mxu0 0.0
    %160 = vmatpush1.msra.mxu0 %v111
    %161 = vmatprep.subr.mxu0 0.0
    %162 = vmatpush1.msra.mxu0 %v112
    %163 = vmatprep.subr.mxu0 0.0
    %164 = vmatpush1.msra.mxu0 %v113
    %165 = vmatprep.subr.mxu0 0.0
    %166 = vmatpush1.msra.mxu0 %v114
    %167 = vmatprep.subr.mxu0 0.0
    %168 = vmatpush1.msra.mxu0 %v115
    %169 = vmatprep.subr.mxu0 0.0
    %170 = vmatpush1.msra.mxu0 %v116
    %171 = vmatprep.subr.mxu0 0.0
    %172 = vmatpush1.msra.mxu0 %v117
    %173 = vmatprep.subr.mxu0 0.0
    %174 = vmatpush1.msra.mxu0 %v118
    %175 = vmatprep.subr.mxu0 0.0
    %176 = vmatpush1.msra.mxu0 %v119
    %177 = vmatprep.subr.mxu0 0.0
    %178 = vmatpush1.msra.mxu0 %v120
    %179 = vmatprep.subr.mxu0 0.0
    %180 = vmatpush1.msra.mxu0 %v121
    %181 = vmatprep.subr.mxu0 0.0
    %182 = vmatpush1.msra.mxu0 %v122
    %183 = vmatprep.subr.mxu0 0.0
    %184 = vmatpush1.msra.mxu0 %v123
    %185 = vmatprep.subr.mxu0 0.0
    %186 = vmatpush1.msra.mxu0 %v124
    %187 = vmatprep.subr.mxu0 0.0
    %188 = vmatpush1.msra.mxu0 %v125
    %189 = vmatprep.subr.mxu0 0.0
    %190 = vmatpush1.msra.mxu0 %v126
    %191 = vmatprep.subr.mxu0 0.0
    %192 = vmatpush1.msra.mxu0 %v127
    %193 = vmatprep.subr.mxu0 0.0
    %194 = vmatpush1.msra.mxu0 %v128
    %195 = vmatprep.subr.mxu0 0.0
    %196 = vmatpush1.msra.mxu0 %v129
    %197 = vmatprep.subr.mxu0 0.0
    %198 = vmatpush1.msra.mxu0 %v130
    %199 = vmatprep.subr.mxu0 0.0
    %200 = vmatpush1.msra.mxu0 %v131
    %201 = vmatprep.subr.mxu0 0.0
    %202 = vmatpush1.msra.mxu0 %v132
    %203 = vmatprep.subr.mxu0 0.0
    %204 = vmatpush1.msra.mxu0 %v133
    %205 = vmatprep.mubr.f32.mxu0 %v100
    %206 = vmatmul.mubr.f32.gmra.mrb[0].mxu0 %v98
    %v207 = vpop.f32.mrb[0].mxu0
    %v208 = vadd.f32 %v139, %v207
    %v209 = vpop.f32.mrb[0].mxu0
    %210 = vdwg.mxu0
    %vm211 = vcmask 74752
    %212 = vst.msk [vmem:[#allocation2] sm:$0x3] %vm211, %v208
    // Predicated region
    $region18: #{forward.29} parent=1 // pred_check
      _
    $region19: #{forward.29} parent=1 // pred_check_branch
      %214 = sbr.rel (0) target = $region21
    $region20: #{forward.29} parent=1 // pred_region
      %s216 = ssub.s32 32, 32
      %217 = vsyncadd [#allocation3], %s216
      %s219 = sshll.u32 [#allocation2], 4
      %s220 = int_to_ptr.vmem [resolvable:$true] %s219
      %222 = dma.vmem_to_hbm [thread:$0]  %s220, 32, %s4, [#allocation3]
    $region21: #{forward.29} parent=1 // pred_fallthru
      _
    // Predicated region
    $region22: #{forward.29} parent=1 // pred_check
      _
    $region23: #{forward.29} parent=1 // pred_check_branch
      %224 = sbr.rel (0) target = $region25
    $region24: #{forward.29} parent=1 // pred_region
      %225 = dma.done [#allocation3], 32
    $region25: #{forward.29} parent=1 // pred_fallthru
      _
    %226 = vsyncpa [#allocation3], 1

// kernel: forward.28
$region0: #{forward.28}
  #allocation0 [shape = 'u32[]', space=smem, size = 0x4, offset = 0x4, fixed_abs, tag = 'smem constant byte address 0x4 - core index']
  #allocation1 [shape = 'u32[144,128]{1,0:T(1,128)}', space=vmem, size = 0x12000, scoped, tag = 'internal scratch']
  %s0 = inlined_call_operand.vmem [shape: f32[32,256], index: 0, kind: input, shape index: {}]
  %s1 = inlined_call_operand.vmem [shape: f32[32,256], index: 1, kind: input, shape index: {}]
  %s2 = inlined_call_operand.vmem [shape: f32[32,256], index: 2, kind: input, shape index: {}]
  %s3 = inlined_call_operand.vmem [shape: f32[32,256], index: 3, kind: input, shape index: {}]
  %s4 = inlined_call_operand.vmem [shape: f32[32,256], index: 4, kind: input, shape index: {}]
  %s5 = inlined_call_operand.vmem [shape: f32[32,256], index: 5, kind: input, shape index: {}]
  %s6 = inlined_call_operand.vmem [shape: f32[32,256], index: 6, kind: input, shape index: {}]
  %s7 = inlined_call_operand.vmem [shape: f32[32,256], index: 7, kind: input, shape index: {}]
  %s8 = inlined_call_operand.vmem [shape: f32[32,256], index: 8, kind: input, shape index: {}]
  %s9 = inlined_call_operand.vmem [shape: f32[9,1,256], index: 9, kind: input, shape index: {}]
  %s10 = inlined_call_operand.vmem [shape: f32[1,256], index: 10, kind: input, shape index: {}]
  %s11 = inlined_call_operand.vmem [shape: bf16[256,256], index: 11, kind: input, shape index: {}]
  %s12 = inlined_call_operand.vmem [shape: f32[1,256], index: 12, kind: input, shape index: {}]
  %s13 = inlined_call_operand.vmem [shape: f32[32,256], index: 13, kind: output, shape index: {}]
  %s14 = sld [smem:[#allocation0]]
  $region62: #{forward.28} parent=0
    _
  %s16 = ssub.s32 1, %s14
  %s17 = scalar_select 0, %s16, %s14
  // Predicated region
  $region2: #{forward.28} parent=0 // pred_check
    _
  $region3: #{forward.28} parent=0 // pred_check_branch
    %19 = sbr.rel (0) target = $region5
  $region4: #{forward.28} parent=0 // pred_region
    _
  $region5: #{forward.28} parent=0 // pred_fallthru
    _
  // Predicated region
  $region6: #{forward.28} parent=0 // pred_check
    _
  $region7: #{forward.28} parent=0 // pred_check_branch
    %21 = sbr.rel (0) target = $region9
  $region8: #{forward.28} parent=0 // pred_region
    _
  $region9: #{forward.28} parent=0 // pred_fallthru
    _
  // Predicated region
  $region10: #{forward.28} parent=0 // pred_check
    _
  $region11: #{forward.28} parent=0 // pred_check_branch
    %23 = sbr.rel (0) target = $region13
  $region12: #{forward.28} parent=0 // pred_region
    _
  $region13: #{forward.28} parent=0 // pred_fallthru
    _
  // Predicated region
  $region14: #{forward.28} parent=0 // pred_check
    _
  $region15: #{forward.28} parent=0 // pred_check_branch
    %25 = sbr.rel (0) target = $region17
  $region16: #{forward.28} parent=0 // pred_region
    _
  $region17: #{forward.28} parent=0 // pred_fallthru
    _
  // Predicated region
  $region18: #{forward.28} parent=0 // pred_check
    _
  $region19: #{forward.28} parent=0 // pred_check_branch
    %27 = sbr.rel (0) target = $region21
  $region20: #{forward.28} parent=0 // pred_region
    _
  $region21: #{forward.28} parent=0 // pred_fallthru
    _
  // Predicated region
  $region22: #{forward.28} parent=0 // pred_check
    _
  $region23: #{forward.28} parent=0 // pred_check_branch
    %29 = sbr.rel (0) target = $region25
  $region24: #{forward.28} parent=0 // pred_region
    _
  $region25: #{forward.28} parent=0 // pred_fallthru
    _
  // Predicated region
  $region26: #{forward.28} parent=0 // pred_check
    _
  $region27: #{forward.28} parent=0 // pred_check_branch
    %31 = sbr.rel (0) target = $region29
  $region28: #{forward.28} parent=0 // pred_region
    _
  $region29: #{forward.28} parent=0 // pred_fallthru
    _
  // Predicated region
  $region30: #{forward.28} parent=0 // pred_check
    _
  $region31: #{forward.28} parent=0 // pred_check_branch
    %33 = sbr.rel (0) target = $region33
  $region32: #{forward.28} parent=0 // pred_region
    _
  $region33: #{forward.28} parent=0 // pred_fallthru
    _
  // Predicated region
  $region34: #{forward.28} parent=0 // pred_check
    _
  $region35: #{forward.28} parent=0 // pred_check_branch
    %35 = sbr.rel (0) target = $region37
  $region36: #{forward.28} parent=0 // pred_region
    _
  $region37: #{forward.28} parent=0 // pred_fallthru
    _
  // Predicated region
  $region38: #{forward.28} parent=0 // pred_check
    _
  $region39: #{forward.28} parent=0 // pred_check_branch
    %37 = sbr.rel (0) target = $region41
  $region40: #{forward.28} parent=0 // pred_region
    _
  $region41: #{forward.28} parent=0 // pred_fallthru
    _
  // Predicated region
  $region42: #{forward.28} parent=0 // pred_check
    _
  $region43: #{forward.28} parent=0 // pred_check_branch
    %39 = sbr.rel (0) target = $region45
  $region44: #{forward.28} parent=0 // pred_region
    _
  $region45: #{forward.28} parent=0 // pred_fallthru
    _
  // Predicated region
  $region46: #{forward.28} parent=0 // pred_check
    _
  $region47: #{forward.28} parent=0 // pred_check_branch
    %41 = sbr.rel (0) target = $region49
  $region48: #{forward.28} parent=0 // pred_region
    _
  $region49: #{forward.28} parent=0 // pred_fallthru
    _
  // Predicated region
  $region50: #{forward.28} parent=0 // pred_check
    _
  $region51: #{forward.28} parent=0 // pred_check_branch
    %43 = sbr.rel (0) target = $region53
  $region52: #{forward.28} parent=0 // pred_region
    _
  $region53: #{forward.28} parent=0 // pred_fallthru
    _
  %v44 = vld [vmem:[%s0] sm:$0xff]
  %v45 = vld [vmem:[%s0 + $0x8] sm:$0xff]
  %v46 = vld [vmem:[%s0 + $0x10] sm:$0xff]
  %v47 = vld [vmem:[%s0 + $0x18] sm:$0xff]
  %v48 = vld [vmem:[%s0 + $0x20] sm:$0xff]
  %v49 = vld [vmem:[%s0 + $0x28] sm:$0xff]
  %v50 = vld [vmem:[%s0 + $0x30] sm:$0xff]
  %v51 = vld [vmem:[%s0 + $0x38] sm:$0xff]
  %v52 = vld [vmem:[%s9] sm:$0x3]
  %v54 = vlaneseq
  %v55 = vshrl.u32 %v54, 7
  %v56 = vsub.s32 0, %v55
  %v57 = vrot.slane %v52, %v56
  %v58 = vlaneseq
  %v59 = vshrl.u32 %v58, 7
  %v60 = vsub.s32 1, %v59
  %v61 = vrot.slane %v52, %v60
  %v64 = vmul.f32 %v44, %v57
  %v65 = vmul.f32 %v45, %v61
  %v66 = vmul.f32 %v46, %v57
  %v67 = vmul.f32 %v47, %v61
  %v68 = vmul.f32 %v48, %v57
  %v69 = vmul.f32 %v49, %v61
  %v70 = vmul.f32 %v50, %v57
  %v71 = vmul.f32 %v51, %v61
  %v72 = vld [vmem:[%s1] sm:$0xff]
  %v73 = vld [vmem:[%s1 + $0x8] sm:$0xff]
  %v74 = vld [vmem:[%s1 + $0x10] sm:$0xff]
  %v75 = vld [vmem:[%s1 + $0x18] sm:$0xff]
  %v76 = vld [vmem:[%s1 + $0x20] sm:$0xff]
  %v77 = vld [vmem:[%s1 + $0x28] sm:$0xff]
  %v78 = vld [vmem:[%s1 + $0x30] sm:$0xff]
  %v79 = vld [vmem:[%s1 + $0x38] sm:$0xff]
  %s80 = scalar_lea.vmem %s9, 2
  %v81 = vld [vmem:[%s80] sm:$0x3]
  %v83 = vlaneseq
  %v84 = vshrl.u32 %v83, 7
  %v85 = vsub.s32 0, %v84
  %v86 = vrot.slane %v81, %v85
  %v87 = vlaneseq
  %v88 = vshrl.u32 %v87, 7
  %v89 = vsub.s32 1, %v88
  %v90 = vrot.slane %v81, %v89
  %v93 = vmul.f32 %v72, %v86
  %v94 = vmul.f32 %v73, %v90
  %v95 = vmul.f32 %v74, %v86
  %v96 = vmul.f32 %v75, %v90
  %v97 = vmul.f32 %v76, %v86
  %v98 = vmul.f32 %v77, %v90
  %v99 = vmul.f32 %v78, %v86
  %v100 = vmul.f32 %v79, %v90
  %v101 = vadd.f32 %v64, %v93
  %v102 = vadd.f32 %v65, %v94
  %v103 = vadd.f32 %v66, %v95
  %v104 = vadd.f32 %v67, %v96
  %v105 = vadd.f32 %v68, %v97
  %v106 = vadd.f32 %v69, %v98
  %v107 = vadd.f32 %v70, %v99
  %v108 = vadd.f32 %v71, %v100
  %v109 = vld [vmem:[%s2] sm:$0xff]
  %v110 = vld [vmem:[%s2 + $0x8] sm:$0xff]
  %v111 = vld [vmem:[%s2 + $0x10] sm:$0xff]
  %v112 = vld [vmem:[%s2 + $0x18] sm:$0xff]
  %v113 = vld [vmem:[%s2 + $0x20] sm:$0xff]
  %v114 = vld [vmem:[%s2 + $0x28] sm:$0xff]
  %v115 = vld [vmem:[%s2 + $0x30] sm:$0xff]
  %v116 = vld [vmem:[%s2 + $0x38] sm:$0xff]
  %s117 = scalar_lea.vmem %s9, 4
  %v118 = vld [vmem:[%s117] sm:$0x3]
  %v120 = vlaneseq
  %v121 = vshrl.u32 %v120, 7
  %v122 = vsub.s32 0, %v121
  %v123 = vrot.slane %v118, %v122
  %v124 = vlaneseq
  %v125 = vshrl.u32 %v124, 7
  %v126 = vsub.s32 1, %v125
  %v127 = vrot.slane %v118, %v126
  %v130 = vmul.f32 %v109, %v123
  %v131 = vmul.f32 %v110, %v127
  %v132 = vmul.f32 %v111, %v123
  %v133 = vmul.f32 %v112, %v127
  %v134 = vmul.f32 %v113, %v123
  %v135 = vmul.f32 %v114, %v127
  %v136 = vmul.f32 %v115, %v123
  %v137 = vmul.f32 %v116, %v127
  %v138 = vadd.f32 %v101, %v130
  %v139 = vadd.f32 %v102, %v131
  %v140 = vadd.f32 %v103, %v132
  %v141 = vadd.f32 %v104, %v133
  %v142 = vadd.f32 %v105, %v134
  %v143 = vadd.f32 %v106, %v135
  %v144 = vadd.f32 %v107, %v136
  %v145 = vadd.f32 %v108, %v137
  %v146 = vld [vmem:[%s3] sm:$0xff]
  %v147 = vld [vmem:[%s3 + $0x8] sm:$0xff]
  %v148 = vld [vmem:[%s3 + $0x10] sm:$0xff]
  %v149 = vld [vmem:[%s3 + $0x18] sm:$0xff]
  %v150 = vld [vmem:[%s3 + $0x20] sm:$0xff]
  %v151 = vld [vmem:[%s3 + $0x28] sm:$0xff]
  %v152 = vld [vmem:[%s3 + $0x30] sm:$0xff]
  %v153 = vld [vmem:[%s3 + $0x38] sm:$0xff]
  %s154 = scalar_lea.vmem %s9, 6
  %v155 = vld [vmem:[%s154] sm:$0x3]
  %v157 = vlaneseq
  %v158 = vshrl.u32 %v157, 7
  %v159 = vsub.s32 0, %v158
  %v160 = vrot.slane %v155, %v159
  %v161 = vlaneseq
  %v162 = vshrl.u32 %v161, 7
  %v163 = vsub.s32 1, %v162
  %v164 = vrot.slane %v155, %v163
  %v167 = vmul.f32 %v146, %v160
  %v168 = vmul.f32 %v147, %v164
  %v169 = vmul.f32 %v148, %v160
  %v170 = vmul.f32 %v149, %v164
  %v171 = vmul.f32 %v150, %v160
  %v172 = vmul.f32 %v151, %v164
  %v173 = vmul.f32 %v152, %v160
  %v174 = vmul.f32 %v153, %v164
  %v175 = vadd.f32 %v138, %v167
  %v176 = vadd.f32 %v139, %v168
  %v177 = vadd.f32 %v140, %v169
  %v178 = vadd.f32 %v141, %v170
  %v179 = vadd.f32 %v142, %v171
  %v180 = vadd.f32 %v143, %v172
  %v181 = vadd.f32 %v144, %v173
  %v182 = vadd.f32 %v145, %v174
  %v183 = vld [vmem:[%s4] sm:$0xff]
  %v184 = vld [vmem:[%s4 + $0x8] sm:$0xff]
  %v185 = vld [vmem:[%s4 + $0x10] sm:$0xff]
  %v186 = vld [vmem:[%s4 + $0x18] sm:$0xff]
  %v187 = vld [vmem:[%s4 + $0x20] sm:$0xff]
  %v188 = vld [vmem:[%s4 + $0x28] sm:$0xff]
  %v189 = vld [vmem:[%s4 + $0x30] sm:$0xff]
  %v190 = vld [vmem:[%s4 + $0x38] sm:$0xff]
  %s191 = scalar_lea.vmem %s9, 8
  %v192 = vld [vmem:[%s191] sm:$0x3]
  %v194 = vlaneseq
  %v195 = vshrl.u32 %v194, 7
  %v196 = vsub.s32 0, %v195
  %v197 = vrot.slane %v192, %v196
  %v198 = vlaneseq
  %v199 = vshrl.u32 %v198, 7
  %v200 = vsub.s32 1, %v199
  %v201 = vrot.slane %v192, %v200
  %v204 = vmul.f32 %v183, %v197
  %v205 = vmul.f32 %v184, %v201
  %v206 = vmul.f32 %v185, %v197
  %v207 = vmul.f32 %v186, %v201
  %v208 = vmul.f32 %v187, %v197
  %v209 = vmul.f32 %v188, %v201
  %v210 = vmul.f32 %v189, %v197
  %v211 = vmul.f32 %v190, %v201
  %v212 = vadd.f32 %v175, %v204
  %v213 = vadd.f32 %v176, %v205
  %v214 = vadd.f32 %v177, %v206
  %v215 = vadd.f32 %v178, %v207
  %v216 = vadd.f32 %v179, %v208
  %v217 = vadd.f32 %v180, %v209
  %v218 = vadd.f32 %v181, %v210
  %v219 = vadd.f32 %v182, %v211
  %v220 = vld [vmem:[%s5] sm:$0xff]
  %v221 = vld [vmem:[%s5 + $0x8] sm:$0xff]
  %v222 = vld [vmem:[%s5 + $0x10] sm:$0xff]
  %v223 = vld [vmem:[%s5 + $0x18] sm:$0xff]
  %v224 = vld [vmem:[%s5 + $0x20] sm:$0xff]
  %v225 = vld [vmem:[%s5 + $0x28] sm:$0xff]
  %v226 = vld [vmem:[%s5 + $0x30] sm:$0xff]
  %v227 = vld [vmem:[%s5 + $0x38] sm:$0xff]
  %s228 = scalar_lea.vmem %s9, 10
  %v229 = vld [vmem:[%s228] sm:$0x3]
  %v231 = vlaneseq
  %v232 = vshrl.u32 %v231, 7
  %v233 = vsub.s32 0, %v232
  %v234 = vrot.slane %v229, %v233
  %v235 = vlaneseq
  %v236 = vshrl.u32 %v235, 7
  %v237 = vsub.s32 1, %v236
  %v238 = vrot.slane %v229, %v237
  %v241 = vmul.f32 %v220, %v234
  %v242 = vmul.f32 %v221, %v238
  %v243 = vmul.f32 %v222, %v234
  %v244 = vmul.f32 %v223, %v238
  %v245 = vmul.f32 %v224, %v234
  %v246 = vmul.f32 %v225, %v238
  %v247 = vmul.f32 %v226, %v234
  %v248 = vmul.f32 %v227, %v238
  %v249 = vadd.f32 %v212, %v241
  %v250 = vadd.f32 %v213, %v242
  %v251 = vadd.f32 %v214, %v243
  %v252 = vadd.f32 %v215, %v244
  %v253 = vadd.f32 %v216, %v245
  %v254 = vadd.f32 %v217, %v246
  %v255 = vadd.f32 %v218, %v247
  %v256 = vadd.f32 %v219, %v248
  %v257 = vld [vmem:[%s6] sm:$0xff]
  %v258 = vld [vmem:[%s6 + $0x8] sm:$0xff]
  %v259 = vld [vmem:[%s6 + $0x10] sm:$0xff]
  %v260 = vld [vmem:[%s6 + $0x18] sm:$0xff]
  %v261 = vld [vmem:[%s6 + $0x20] sm:$0xff]
  %v262 = vld [vmem:[%s6 + $0x28] sm:$0xff]
  %v263 = vld [vmem:[%s6 + $0x30] sm:$0xff]
  %v264 = vld [vmem:[%s6 + $0x38] sm:$0xff]
  %s265 = scalar_lea.vmem %s9, 12
  %v266 = vld [vmem:[%s265] sm:$0x3]
  %v268 = vlaneseq
  %v269 = vshrl.u32 %v268, 7
  %v270 = vsub.s32 0, %v269
  %v271 = vrot.slane %v266, %v270
  %v272 = vlaneseq
  %v273 = vshrl.u32 %v272, 7
  %v274 = vsub.s32 1, %v273
  %v275 = vrot.slane %v266, %v274
  %v278 = vmul.f32 %v257, %v271
  %v279 = vmul.f32 %v258, %v275
  %v280 = vmul.f32 %v259, %v271
  %v281 = vmul.f32 %v260, %v275
  %v282 = vmul.f32 %v261, %v271
  %v283 = vmul.f32 %v262, %v275
  %v284 = vmul.f32 %v263, %v271
  %v285 = vmul.f32 %v264, %v275
  %v286 = vadd.f32 %v249, %v278
  %v287 = vadd.f32 %v250, %v279
  %v288 = vadd.f32 %v251, %v280
  %v289 = vadd.f32 %v252, %v281
  %v290 = vadd.f32 %v253, %v282
  %v291 = vadd.f32 %v254, %v283
  %v292 = vadd.f32 %v255, %v284
  %v293 = vadd.f32 %v256, %v285
  %v294 = vld [vmem:[%s7] sm:$0xff]
  %v295 = vld [vmem:[%s7 + $0x8] sm:$0xff]
  %v296 = vld [vmem:[%s7 + $0x10] sm:$0xff]
  %v297 = vld [vmem:[%s7 + $0x18] sm:$0xff]
  %v298 = vld [vmem:[%s7 + $0x20] sm:$0xff]
  %v299 = vld [vmem:[%s7 + $0x28] sm:$0xff]
  %v300 = vld [vmem:[%s7 + $0x30] sm:$0xff]
  %v301 = vld [vmem:[%s7 + $0x38] sm:$0xff]
  %s302 = scalar_lea.vmem %s9, 14
  %v303 = vld [vmem:[%s302] sm:$0x3]
  %v305 = vlaneseq
  %v306 = vshrl.u32 %v305, 7
  %v307 = vsub.s32 0, %v306
  %v308 = vrot.slane %v303, %v307
  %v309 = vlaneseq
  %v310 = vshrl.u32 %v309, 7
  %v311 = vsub.s32 1, %v310
  %v312 = vrot.slane %v303, %v311
  %v315 = vmul.f32 %v294, %v308
  %v316 = vmul.f32 %v295, %v312
  %v317 = vmul.f32 %v296, %v308
  %v318 = vmul.f32 %v297, %v312
  %v319 = vmul.f32 %v298, %v308
  %v320 = vmul.f32 %v299, %v312
  %v321 = vmul.f32 %v300, %v308
  %v322 = vmul.f32 %v301, %v312
  %v323 = vadd.f32 %v286, %v315
  %v324 = vadd.f32 %v287, %v316
  %v325 = vadd.f32 %v288, %v317
  %v326 = vadd.f32 %v289, %v318
  %v327 = vadd.f32 %v290, %v319
  %v328 = vadd.f32 %v291, %v320
  %v329 = vadd.f32 %v292, %v321
  %v330 = vadd.f32 %v293, %v322
  %v331 = vld [vmem:[%s8] sm:$0xff]
  %v332 = vld [vmem:[%s8 + $0x8] sm:$0xff]
  %v333 = vld [vmem:[%s8 + $0x10] sm:$0xff]
  %v334 = vld [vmem:[%s8 + $0x18] sm:$0xff]
  %v335 = vld [vmem:[%s8 + $0x20] sm:$0xff]
  %v336 = vld [vmem:[%s8 + $0x28] sm:$0xff]
  %v337 = vld [vmem:[%s8 + $0x30] sm:$0xff]
  %v338 = vld [vmem:[%s8 + $0x38] sm:$0xff]
  %s339 = scalar_lea.vmem %s9, 16
  %v340 = vld [vmem:[%s339] sm:$0x3]
  %v342 = vlaneseq
  %v343 = vshrl.u32 %v342, 7
  %v344 = vsub.s32 0, %v343
  %v345 = vrot.slane %v340, %v344
  %v346 = vlaneseq
  %v347 = vshrl.u32 %v346, 7
  %v348 = vsub.s32 1, %v347
  %v349 = vrot.slane %v340, %v348
  %v352 = vmul.f32 %v331, %v345
  %v353 = vmul.f32 %v332, %v349
  %v354 = vmul.f32 %v333, %v345
  %v355 = vmul.f32 %v334, %v349
  %v356 = vmul.f32 %v335, %v345
  %v357 = vmul.f32 %v336, %v349
  %v358 = vmul.f32 %v337, %v345
  %v359 = vmul.f32 %v338, %v349
  %v360 = vadd.f32 %v323, %v352
  %v361 = vadd.f32 %v324, %v353
  %v362 = vadd.f32 %v325, %v354
  %v363 = vadd.f32 %v326, %v355
  %v364 = vadd.f32 %v327, %v356
  %v365 = vadd.f32 %v328, %v357
  %v366 = vadd.f32 %v329, %v358
  %v367 = vadd.f32 %v330, %v359
  %v368 = vld [vmem:[%s10] sm:$0x3]
  %v370 = vlaneseq
  %v371 = vshrl.u32 %v370, 7
  %v372 = vsub.s32 0, %v371
  %v373 = vrot.slane %v368, %v372
  %v374 = vlaneseq
  %v375 = vshrl.u32 %v374, 7
  %v376 = vsub.s32 1, %v375
  %v377 = vrot.slane %v368, %v376
  %v380 = vadd.f32 %v360, %v373
  %v381 = vadd.f32 %v361, %v377
  %v382 = vadd.f32 %v362, %v373
  %v383 = vadd.f32 %v363, %v377
  %v384 = vadd.f32 %v364, %v373
  %v385 = vadd.f32 %v365, %v377
  %v386 = vadd.f32 %v366, %v373
  %v387 = vadd.f32 %v367, %v377
  %v388 = vmax.f32 %v380, 0.0
  %v389 = vmax.f32 %v381, 0.0
  %v390 = vmax.f32 %v382, 0.0
  %v391 = vmax.f32 %v383, 0.0
  %v392 = vmax.f32 %v384, 0.0
  %v393 = vmax.f32 %v385, 0.0
  %v394 = vmax.f32 %v386, 0.0
  %v395 = vmax.f32 %v387, 0.0
  %v396 = vpack.c.bf16 %v390, %v388
  %v397 = vpack.c.bf16 %v391, %v389
  %v398 = vpack.c.bf16 %v394, %v392
  %v399 = vpack.c.bf16 %v395, %v393
  %v400 = vld [vmem:[%s11] sm:$0xff]
  %v401 = vld [vmem:[%s11 + $0x8] sm:$0xff]
  %v402 = vld [vmem:[%s11 + $0x10] sm:$0xff]
  %v403 = vld [vmem:[%s11 + $0x18] sm:$0xff]
  %v404 = vld [vmem:[%s11 + $0x20] sm:$0xff]
  %v405 = vld [vmem:[%s11 + $0x28] sm:$0xff]
  %v406 = vld [vmem:[%s11 + $0x30] sm:$0xff]
  %v407 = vld [vmem:[%s11 + $0x38] sm:$0xff]
  %v408 = vld [vmem:[%s11 + $0x40] sm:$0xff]
  %v409 = vld [vmem:[%s11 + $0x48] sm:$0xff]
  %v410 = vld [vmem:[%s11 + $0x50] sm:$0xff]
  %v411 = vld [vmem:[%s11 + $0x58] sm:$0xff]
  %v412 = vld [vmem:[%s11 + $0x60] sm:$0xff]
  %v413 = vld [vmem:[%s11 + $0x68] sm:$0xff]
  %v414 = vld [vmem:[%s11 + $0x70] sm:$0xff]
  %v415 = vld [vmem:[%s11 + $0x78] sm:$0xff]
  %v416 = vld [vmem:[%s11 + $0x80] sm:$0xff]
  %v417 = vld [vmem:[%s11 + $0x88] sm:$0xff]
  %v418 = vld [vmem:[%s11 + $0x90] sm:$0xff]
  %v419 = vld [vmem:[%s11 + $0x98] sm:$0xff]
  %v420 = vld [vmem:[%s11 + $0xa0] sm:$0xff]
  %v421 = vld [vmem:[%s11 + $0xa8] sm:$0xff]
  %v422 = vld [vmem:[%s11 + $0xb0] sm:$0xff]
  %v423 = vld [vmem:[%s11 + $0xb8] sm:$0xff]
  %v424 = vld [vmem:[%s11 + $0xc0] sm:$0xff]
  %v425 = vld [vmem:[%s11 + $0xc8] sm:$0xff]
  %v426 = vld [vmem:[%s11 + $0xd0] sm:$0xff]
  %v427 = vld [vmem:[%s11 + $0xd8] sm:$0xff]
  %v428 = vld [vmem:[%s11 + $0xe0] sm:$0xff]
  %v429 = vld [vmem:[%s11 + $0xe8] sm:$0xff]
  %v430 = vld [vmem:[%s11 + $0xf0] sm:$0xff]
  %v431 = vld [vmem:[%s11 + $0xf8] sm:$0xff]
  %v432 = vld [vmem:[%s12] sm:$0x3]
  %v434 = vlaneseq
  %v435 = vshrl.u32 %v434, 7
  %v436 = vsub.s32 0, %v435
  %v437 = vrot.slane %v432, %v436
  %v438 = vlaneseq
  %v439 = vshrl.u32 %v438, 7
  %v440 = vsub.s32 1, %v439
  %v441 = vrot.slane %v432, %v440
  %v476 = vunpack.c.l.b16 %v400
  %v477 = vunpack.c.h.b16 %v400
  %v478 = vunpack.c.l.b16 %v401
  %v479 = vunpack.c.h.b16 %v401
  %v480 = vunpack.c.l.b16 %v402
  %v481 = vunpack.c.h.b16 %v402
  %v482 = vunpack.c.l.b16 %v403
  %v483 = vunpack.c.h.b16 %v403
  %v484 = vunpack.c.l.b16 %v404
  %v485 = vunpack.c.h.b16 %v404
  %v486 = vunpack.c.l.b16 %v405
  %v487 = vunpack.c.h.b16 %v405
  %v488 = vunpack.c.l.b16 %v406
  %v489 = vunpack.c.h.b16 %v406
  %v490 = vunpack.c.l.b16 %v407
  %v491 = vunpack.c.h.b16 %v407
  %v492 = vunpack.c.l.b16 %v408
  %v493 = vunpack.c.h.b16 %v408
  %v494 = vunpack.c.l.b16 %v409
  %v495 = vunpack.c.h.b16 %v409
  %v496 = vunpack.c.l.b16 %v410
  %v497 = vunpack.c.h.b16 %v410
  %v498 = vunpack.c.l.b16 %v411
  %v499 = vunpack.c.h.b16 %v411
  %v500 = vunpack.c.l.b16 %v412
  %v501 = vunpack.c.h.b16 %v412
  %v502 = vunpack.c.l.b16 %v413
  %v503 = vunpack.c.h.b16 %v413
  %v504 = vunpack.c.l.b16 %v414
  %v505 = vunpack.c.h.b16 %v414
  %v506 = vunpack.c.l.b16 %v415
  %v507 = vunpack.c.h.b16 %v415
  %v508 = vunpack.c.l.b16 %v416
  %v509 = vunpack.c.h.b16 %v416
  %v510 = vunpack.c.l.b16 %v417
  %v511 = vunpack.c.h.b16 %v417
  %v512 = vunpack.c.l.b16 %v418
  %v513 = vunpack.c.h.b16 %v418
  %v514 = vunpack.c.l.b16 %v419
  %v515 = vunpack.c.h.b16 %v419
  %v516 = vunpack.c.l.b16 %v420
  %v517 = vunpack.c.h.b16 %v420
  %v518 = vunpack.c.l.b16 %v421
  %v519 = vunpack.c.h.b16 %v421
  %v520 = vunpack.c.l.b16 %v422
  %v521 = vunpack.c.h.b16 %v422
  %v522 = vunpack.c.l.b16 %v423
  %v523 = vunpack.c.h.b16 %v423
  %v524 = vunpack.c.l.b16 %v424
  %v525 = vunpack.c.h.b16 %v424
  %v526 = vunpack.c.l.b16 %v425
  %v527 = vunpack.c.h.b16 %v425
  %v528 = vunpack.c.l.b16 %v426
  %v529 = vunpack.c.h.b16 %v426
  %v530 = vunpack.c.l.b16 %v427
  %v531 = vunpack.c.h.b16 %v427
  %v532 = vunpack.c.l.b16 %v428
  %v533 = vunpack.c.h.b16 %v428
  %v534 = vunpack.c.l.b16 %v429
  %v535 = vunpack.c.h.b16 %v429
  %v536 = vunpack.c.l.b16 %v430
  %v537 = vunpack.c.h.b16 %v430
  %v538 = vunpack.c.l.b16 %v431
  %v539 = vunpack.c.h.b16 %v431
  %v540 = vpack.c.b16 %v478, %v476
  %v541 = vpack.c.b16 %v479, %v477
  %v542 = vpack.c.b16 %v482, %v480
  %v543 = vpack.c.b16 %v483, %v481
  %v544 = vpack.c.b16 %v486, %v484
  %v545 = vpack.c.b16 %v487, %v485
  %v546 = vpack.c.b16 %v490, %v488
  %v547 = vpack.c.b16 %v491, %v489
  %v548 = vpack.c.b16 %v494, %v492
  %v549 = vpack.c.b16 %v495, %v493
  %v550 = vpack.c.b16 %v498, %v496
  %v551 = vpack.c.b16 %v499, %v497
  %v552 = vpack.c.b16 %v502, %v500
  %v553 = vpack.c.b16 %v503, %v501
  %v554 = vpack.c.b16 %v506, %v504
  %v555 = vpack.c.b16 %v507, %v505
  %v556 = vpack.c.b16 %v510, %v508
  %v557 = vpack.c.b16 %v511, %v509
  %v558 = vpack.c.b16 %v514, %v512
  %v559 = vpack.c.b16 %v515, %v513
  %v560 = vpack.c.b16 %v518, %v516
  %v561 = vpack.c.b16 %v519, %v517
  %v562 = vpack.c.b16 %v522, %v520
  %v563 = vpack.c.b16 %v523, %v521
  %v564 = vpack.c.b16 %v526, %v524
  %v565 = vpack.c.b16 %v527, %v525
  %v566 = vpack.c.b16 %v530, %v528
  %v567 = vpack.c.b16 %v531, %v529
  %v568 = vpack.c.b16 %v534, %v532
  %v569 = vpack.c.b16 %v535, %v533
  %v570 = vpack.c.b16 %v538, %v536
  %v571 = vpack.c.b16 %v539, %v537
  %604 = vmatprep.subr.bf16.mxu0 %v541
  %605 = vmatpush1.bf16.msra.mxu0 %v540
  %606 = vmatprep.subr.bf16.mxu0 %v543
  %607 = vmatpush1.bf16.msra.mxu0 %v542
  %608 = vmatprep.subr.bf16.mxu0 %v545
  %609 = vmatpush1.bf16.msra.mxu0 %v544
  %610 = vmatprep.subr.bf16.mxu0 %v547
  %611 = vmatpush1.bf16.msra.mxu0 %v546
  %612 = vmatprep.subr.bf16.mxu0 %v549
  %613 = vmatpush1.bf16.msra.mxu0 %v548
  %614 = vmatprep.subr.bf16.mxu0 %v551
  %615 = vmatpush1.bf16.msra.mxu0 %v550
  %616 = vmatprep.subr.bf16.mxu0 %v553
  %617 = vmatpush1.bf16.msra.mxu0 %v552
  %618 = vmatprep.subr.bf16.mxu0 %v555
  %619 = vmatpush1.bf16.msra.mxu0 %v554
  %620 = vmatprep.subr.bf16.mxu0 %v557
  %621 = vmatpush1.bf16.msra.mxu0 %v556
  %622 = vmatprep.subr.bf16.mxu0 %v559
  %623 = vmatpush1.bf16.msra.mxu0 %v558
  %624 = vmatprep.subr.bf16.mxu0 %v561
  %625 = vmatpush1.bf16.msra.mxu0 %v560
  %626 = vmatprep.subr.bf16.mxu0 %v563
  %627 = vmatpush1.bf16.msra.mxu0 %v562
  %628 = vmatprep.subr.bf16.mxu0 %v565
  %629 = vmatpush1.bf16.msra.mxu0 %v564
  %630 = vmatprep.subr.bf16.mxu0 %v567
  %631 = vmatpush1.bf16.msra.mxu0 %v566
  %632 = vmatprep.subr.bf16.mxu0 %v569
  %633 = vmatpush1.bf16.msra.mxu0 %v568
  %634 = vmatprep.subr.bf16.mxu0 %v571
  %635 = vmatpush1.bf16.msra.mxu0 %v570
  %636 = vmatprep.mubr.bf16.mxu0 %v397
  %637 = vmatmul.mubr.bf16.gmra.mrb[0].mxu0 %v396
  %v638 = vpop.f32.mrb[0].mxu0
  %v639 = vadd.f32 %v437, %v638
  %v640 = vpop.f32.mrb[0].mxu0
  %v641 = vadd.f32 %v441, %v640
  %v642 = vpop.f32.mrb[0].mxu0
  %v643 = vadd.f32 %v437, %v642
  %v644 = vpop.f32.mrb[0].mxu0
  %v645 = vadd.f32 %v441, %v644
  %646 = vmatprep.mubr.bf16.mxu0 %v399
  %647 = vmatmul.mubr.bf16.gmra.mrb[0].mxu0 %v398
  %v648 = vpop.f32.mrb[0].mxu0
  %v649 = vadd.f32 %v437, %v648
  %v650 = vpop.f32.mrb[0].mxu0
  %v651 = vadd.f32 %v441, %v650
  %v652 = vpop.f32.mrb[0].mxu0
  %v653 = vadd.f32 %v437, %v652
  %v654 = vpop.f32.mrb[0].mxu0
  %v655 = vadd.f32 %v441, %v654
  %656 = vdwg.mxu0
  %v657 = vmax.f32 %v639, 0.0
  %v658 = vmax.f32 %v641, 0.0
  %v659 = vmax.f32 %v643, 0.0
  %v660 = vmax.f32 %v645, 0.0
  %v661 = vmax.f32 %v649, 0.0
  %v662 = vmax.f32 %v651, 0.0
  %v663 = vmax.f32 %v653, 0.0
  %v664 = vmax.f32 %v655, 0.0
  %665 = vst [vmem:[%s13] sm:$0xff] %v657
  %666 = vst [vmem:[%s13 + $0x8] sm:$0xff] %v658
  %667 = vst [vmem:[%s13 + $0x10] sm:$0xff] %v659
  %668 = vst [vmem:[%s13 + $0x18] sm:$0xff] %v660
  %669 = vst [vmem:[%s13 + $0x20] sm:$0xff] %v661
  %670 = vst [vmem:[%s13 + $0x28] sm:$0xff] %v662
  %671 = vst [vmem:[%s13 + $0x30] sm:$0xff] %v663
  %672 = vst [vmem:[%s13 + $0x38] sm:$0xff] %v664
  // Predicated region
  $region54: #{forward.28} parent=0 // pred_check
    _
  $region55: #{forward.28} parent=0 // pred_check_branch
    %674 = sbr.rel (0) target = $region57
  $region56: #{forward.28} parent=0 // pred_region
    _
  $region57: #{forward.28} parent=0 // pred_fallthru
    _
  // Predicated region
  $region58: #{forward.28} parent=0 // pred_check
    _
  $region59: #{forward.28} parent=0 // pred_check_branch
    %676 = sbr.rel (0) target = $region61
  $region60: #{forward.28} parent=0 // pred_region
    _
  $region61: #{forward.28} parent=0 // pred_fallthru
    _

</llo_original>
